<compile_context>
chip_gen: v7x
topology: tpu7x:2x2x1
jax: 0.10.0
libtpu: 0.0.40
codegen_flags: <defaults>
</compile_context>

<pallas_src>
import functools

import jax
import jax.numpy as jnp
from jax.experimental import pallas as pl
from jax.experimental.pallas import tpu as pltpu

D_IN = 32 * 32 * 3   # 3072
H_RAW = 500          # PyTorch hidden width
H_PAD = 512          # padded hidden width (multiple of 128 -> lane-dense)
OUT_PAD = 128        # padded output width (lane-dense final store)


def mlp_kernel(x_ref, w1_ref, b1_ref, w2_ref, b2_ref, w3_ref, b3_ref,
               w4_ref, b4_ref, o_ref):
    # Cast to bf16 in VMEM (input DMA stays f32; no separate HBM convert pass).
    x = x_ref[...].astype(jnp.bfloat16)
    # fc1 + ReLU  (bf16 MXU matmul, f32 accumulation / bias / ReLU)
    h = jnp.dot(x, w1_ref[...], preferred_element_type=jnp.float32)
    h = jnp.maximum(h + b1_ref[...], 0.0).astype(jnp.bfloat16)
    # fc2 + ReLU
    h = jnp.dot(h, w2_ref[...], preferred_element_type=jnp.float32)
    h = jnp.maximum(h + b2_ref[...], 0.0).astype(jnp.bfloat16)
    # fc3 + ReLU
    h = jnp.dot(h, w3_ref[...], preferred_element_type=jnp.float32)
    h = jnp.maximum(h + b3_ref[...], 0.0).astype(jnp.bfloat16)
    # fc4 + ReLU (PyTorch forward applies ReLU to the last layer too)
    h = jnp.dot(h, w4_ref[...], preferred_element_type=jnp.float32)
    h = jnp.maximum(h + b4_ref[...], 0.0)
    o_ref[...] = h.astype(o_ref.dtype)


def _pad2d(a, rows, cols):
    return jnp.pad(a, ((0, rows - a.shape[0]), (0, cols - a.shape[1])))


def prepare_params(params):
    """Zero-pad to lane-aligned shapes; cast weights to bf16 (biases stay f32).

    Zero-padded columns give ReLU(0 + 0) = 0 activations, and zero-padded input
    rows of the next weight contribute nothing, so the math is unchanged.
    """
    w1, b1, w2, b2, w3, b3, w4, b4 = params
    w1p = _pad2d(w1, D_IN, H_PAD).astype(jnp.bfloat16)
    w2p = _pad2d(w2, H_PAD, H_PAD).astype(jnp.bfloat16)
    w3p = _pad2d(w3, H_PAD, H_PAD).astype(jnp.bfloat16)
    w4p = _pad2d(w4, H_PAD, OUT_PAD).astype(jnp.bfloat16)
    b1p = _pad2d(b1, 1, H_PAD)
    b2p = _pad2d(b2, 1, H_PAD)
    b3p = _pad2d(b3, 1, H_PAD)
    b4p = _pad2d(b4, 1, OUT_PAD)
    return (w1p, b1p, w2p, b2p, w3p, b3p, w4p, b4p)


def _round_up(v, m):
    return -(-v // m) * m


def _pick_tile_n(n, max_tile):
    """Rows per grid step.

    * n < 256: a single full-extent block (block dim == array dim is always legal,
      no raggedness, no wasted compute).
    * 256 <= n <= max_tile: two roughly-equal 128-aligned tiles so both v7x
      TensorCores get work.
    * n > max_tile: max_tile-row tiles (ragged last block handled by Pallas).
    """
    if n < 2 * 128:
        return n
    return min(max_tile, _round_up(-(-n // 2), 128))


@functools.partial(jax.jit, static_argnames=("num_class", "max_tile_n"))
def mlp_forward(x_nchw, prepared, num_class=2, max_tile_n=512):
    """x_nchw: (N, 3, 32, 32) float32. Returns (N, num_class) float32."""
    n = x_nchw.shape[0]
    # Same as torch x.view(n, -1); contiguous reshape -> no HBM pass, stays f32.
    x2d = x_nchw.reshape(n, -1)

    tn = _pick_tile_n(n, max_tile_n)
    grid_n = pl.cdiv(n, tn)

    w1, b1, w2, b2, w3, b3, w4, b4 = prepared

    # Weights / biases: constant index_map -> fetched once, resident across steps.
    const = lambda shape: pl.BlockSpec(shape, lambda i: (0, 0))

    flops_per_row = 2 * (D_IN * H_PAD + 2 * H_PAD * H_PAD + H_PAD * OUT_PAD)
    weight_bytes = (2 * (D_IN * H_PAD + 2 * H_PAD * H_PAD + H_PAD * OUT_PAD)
                    + 4 * (3 * H_PAD + OUT_PAD))
    cost = pl.CostEstimate(
        flops=n * flops_per_row,
        transcendentals=0,
        bytes_accessed=n * (D_IN * 4 + OUT_PAD * 2) + weight_bytes,
    )

    out = pl.pallas_call(
        mlp_kernel,
        out_shape=jax.ShapeDtypeStruct((n, OUT_PAD), jnp.bfloat16),
        grid=(grid_n,),
        in_specs=[
            pl.BlockSpec((tn, D_IN), lambda i: (i, 0)),   # x: batch-tiled, f32
            const((D_IN, H_PAD)), const((1, H_PAD)),
            const((H_PAD, H_PAD)), const((1, H_PAD)),
            const((H_PAD, H_PAD)), const((1, H_PAD)),
            const((H_PAD, OUT_PAD)), const((1, OUT_PAD)),
        ],
        out_specs=pl.BlockSpec((tn, OUT_PAD), lambda i: (i, 0)),
        compiler_params=pltpu.CompilerParams(
            dimension_semantics=("parallel",),   # shard batch tiles across TCs (v7x)
            vmem_limit_bytes=48 << 20,           # fits v7x 64 MiB/TC; plenty on v5e/v6e
        ),
        cost_estimate=cost,
    )(x2d, w1, b1, w2, b2, w3, b3, w4, b4)

    return out[:, :num_class].astype(jnp.float32)


def init_params(key, num_class=2):
    """PyTorch-Linear-style init: U(-1/sqrt(fan_in), 1/sqrt(fan_in)).
    Weights stored as (in_features, out_features), i.e. W_pt.T."""
    dims = [(D_IN, H_RAW), (H_RAW, H_RAW), (H_RAW, H_RAW), (H_RAW, num_class)]
    params = []
    for (fan_in, fan_out) in dims:
        key, kw, kb = jax.random.split(key, 3)
        bound = 1.0 / (fan_in ** 0.5)
        w = jax.random.uniform(kw, (fan_in, fan_out), jnp.float32, -bound, bound)
        b = jax.random.uniform(kb, (1, fan_out), jnp.float32, -bound, bound)
        params.extend([w, b])
    return tuple(params)


if __name__ == "__main__":
    key = jax.random.PRNGKey(0)
    key, kx = jax.random.split(key)

    # MLPNet flattens (N, C, H, W) to (N, 3072), so C,H,W must be 3,32,32.
    N = 2
    x = jax.random.normal(kx, (N, 3, 32, 32), jnp.float32)

    params = init_params(key, num_class=2)
    prepared = prepare_params(params)

    out = mlp_forward(x, prepared, num_class=2)
    out = jax.block_until_ready(out)

    # Reference in plain JAX with the same bf16-input / f32-accumulate recipe.
    w1, b1, w2, b2, w3, b3, w4, b4 = params
    h = x.reshape(N, -1).astype(jnp.bfloat16)
    for (w, b) in ((w1, b1), (w2, b2), (w3, b3)):
        h = jnp.maximum(
            jnp.dot(h, w.astype(jnp.bfloat16), preferred_element_type=jnp.float32) + b,
            0.0).astype(jnp.bfloat16)
    ref = jnp.maximum(
        jnp.dot(h, w4.astype(jnp.bfloat16), preferred_element_type=jnp.float32) + b4,
        0.0)

    assert out.shape == (N, 2)
    assert jnp.allclose(out, ref, atol=2e-2, rtol=2e-2), \
        float(jnp.max(jnp.abs(out - ref)))

    print("KERNEL_OK")
</pallas_src>

<mosaic_0001>
module attributes {stable_mosaic.version = 11 : i64} {
  func.func @mlp_kernel(%arg0: i32, %arg1: memref<2x3072xf32, #tpu.memory_space<vmem>>, %arg2: memref<3072x512xbf16, #tpu.memory_space<vmem>>, %arg3: memref<1x512xf32, #tpu.memory_space<vmem>>, %arg4: memref<512x512xbf16, #tpu.memory_space<vmem>>, %arg5: memref<1x512xf32, #tpu.memory_space<vmem>>, %arg6: memref<512x512xbf16, #tpu.memory_space<vmem>>, %arg7: memref<1x512xf32, #tpu.memory_space<vmem>>, %arg8: memref<512x128xbf16, #tpu.memory_space<vmem>>, %arg9: memref<1x128xf32, #tpu.memory_space<vmem>>, %arg10: memref<2x128xbf16, #tpu.memory_space<vmem>>) attributes {dimension_semantics = [#tpu.dimension_semantics<parallel>], iteration_bounds = array<i64: 1>, scalar_prefetch = 0 : i64, scratch_operands = 0 : i64, tpu.core_type = #tpu.core_type<tc>, window_params = [{transform_indices = @transform_0, window_bounds = array<i64: 2, 3072>}, {pipeline_mode = #tpu.pipeline_mode<synchronous>, transform_indices = @transform_1, window_bounds = array<i64: 3072, 512>}, {pipeline_mode = #tpu.pipeline_mode<synchronous>, transform_indices = @transform_2, window_bounds = array<i64: 1, 512>}, {pipeline_mode = #tpu.pipeline_mode<synchronous>, transform_indices = @transform_3, window_bounds = array<i64: 512, 512>}, {pipeline_mode = #tpu.pipeline_mode<synchronous>, transform_indices = @transform_4, window_bounds = array<i64: 1, 512>}, {pipeline_mode = #tpu.pipeline_mode<synchronous>, transform_indices = @transform_5, window_bounds = array<i64: 512, 512>}, {pipeline_mode = #tpu.pipeline_mode<synchronous>, transform_indices = @transform_6, window_bounds = array<i64: 1, 512>}, {pipeline_mode = #tpu.pipeline_mode<synchronous>, transform_indices = @transform_7, window_bounds = array<i64: 512, 128>}, {pipeline_mode = #tpu.pipeline_mode<synchronous>, transform_indices = @transform_8, window_bounds = array<i64: 1, 128>}, {transform_indices = @transform_9, window_bounds = array<i64: 2, 128>}]} {
    %c0 = arith.constant 0 : index
    %c0_0 = arith.constant 0 : index
    %0 = vector.load %arg1[%c0, %c0_0] : memref<2x3072xf32, #tpu.memory_space<vmem>>, vector<2x3072xf32>
    %1 = arith.truncf %0 : vector<2x3072xf32> to vector<2x3072xbf16>
    %c0_1 = arith.constant 0 : index
    %c0_2 = arith.constant 0 : index
    %2 = vector.load %arg2[%c0_1, %c0_2] : memref<3072x512xbf16, #tpu.memory_space<vmem>>, vector<3072x512xbf16>
    %cst = arith.constant dense<0.000000e+00> : vector<2x512xf32>
    %3 = tpu.matmul %1, %2, %cst {dimension_numbers = #tpu.dot_dimension_numbers<[1], [0], [0], [1], [0, 0, 1, 1], [], []>} : vector<2x3072xbf16>, vector<3072x512xbf16>, vector<2x512xf32> -> vector<2x512xf32>
    %c0_3 = arith.constant 0 : index
    %c0_4 = arith.constant 0 : index
    %4 = vector.load %arg3[%c0_3, %c0_4] : memref<1x512xf32, #tpu.memory_space<vmem>>, vector<1x512xf32>
    %5 = vector.broadcast %4 : vector<1x512xf32> to vector<2x512xf32>
    %6 = arith.addf %3, %5 : vector<2x512xf32>
    %cst_5 = arith.constant 0.000000e+00 : f32
    %7 = vector.broadcast %cst_5 : f32 to vector<2x512xf32>
    %8 = arith.maximumf %6, %7 : vector<2x512xf32>
    %9 = arith.truncf %8 : vector<2x512xf32> to vector<2x512xbf16>
    %c0_6 = arith.constant 0 : index
    %c0_7 = arith.constant 0 : index
    %10 = vector.load %arg4[%c0_6, %c0_7] : memref<512x512xbf16, #tpu.memory_space<vmem>>, vector<512x512xbf16>
    %cst_8 = arith.constant dense<0.000000e+00> : vector<2x512xf32>
    %11 = tpu.matmul %9, %10, %cst_8 {dimension_numbers = #tpu.dot_dimension_numbers<[1], [0], [0], [1], [0, 0, 1, 1], [], []>} : vector<2x512xbf16>, vector<512x512xbf16>, vector<2x512xf32> -> vector<2x512xf32>
    %c0_9 = arith.constant 0 : index
    %c0_10 = arith.constant 0 : index
    %12 = vector.load %arg5[%c0_9, %c0_10] : memref<1x512xf32, #tpu.memory_space<vmem>>, vector<1x512xf32>
    %13 = vector.broadcast %12 : vector<1x512xf32> to vector<2x512xf32>
    %14 = arith.addf %11, %13 : vector<2x512xf32>
    %cst_11 = arith.constant 0.000000e+00 : f32
    %15 = vector.broadcast %cst_11 : f32 to vector<2x512xf32>
    %16 = arith.maximumf %14, %15 : vector<2x512xf32>
    %17 = arith.truncf %16 : vector<2x512xf32> to vector<2x512xbf16>
    %c0_12 = arith.constant 0 : index
    %c0_13 = arith.constant 0 : index
    %18 = vector.load %arg6[%c0_12, %c0_13] : memref<512x512xbf16, #tpu.memory_space<vmem>>, vector<512x512xbf16>
    %cst_14 = arith.constant dense<0.000000e+00> : vector<2x512xf32>
    %19 = tpu.matmul %17, %18, %cst_14 {dimension_numbers = #tpu.dot_dimension_numbers<[1], [0], [0], [1], [0, 0, 1, 1], [], []>} : vector<2x512xbf16>, vector<512x512xbf16>, vector<2x512xf32> -> vector<2x512xf32>
    %c0_15 = arith.constant 0 : index
    %c0_16 = arith.constant 0 : index
    %20 = vector.load %arg7[%c0_15, %c0_16] : memref<1x512xf32, #tpu.memory_space<vmem>>, vector<1x512xf32>
    %21 = vector.broadcast %20 : vector<1x512xf32> to vector<2x512xf32>
    %22 = arith.addf %19, %21 : vector<2x512xf32>
    %cst_17 = arith.constant 0.000000e+00 : f32
    %23 = vector.broadcast %cst_17 : f32 to vector<2x512xf32>
    %24 = arith.maximumf %22, %23 : vector<2x512xf32>
    %25 = arith.truncf %24 : vector<2x512xf32> to vector<2x512xbf16>
    %c0_18 = arith.constant 0 : index
    %c0_19 = arith.constant 0 : index
    %26 = vector.load %arg8[%c0_18, %c0_19] : memref<512x128xbf16, #tpu.memory_space<vmem>>, vector<512x128xbf16>
    %cst_20 = arith.constant dense<0.000000e+00> : vector<2x128xf32>
    %27 = tpu.matmul %25, %26, %cst_20 {dimension_numbers = #tpu.dot_dimension_numbers<[1], [0], [0], [1], [0, 0, 1, 1], [], []>} : vector<2x512xbf16>, vector<512x128xbf16>, vector<2x128xf32> -> vector<2x128xf32>
    %c0_21 = arith.constant 0 : index
    %c0_22 = arith.constant 0 : index
    %28 = vector.load %arg9[%c0_21, %c0_22] : memref<1x128xf32, #tpu.memory_space<vmem>>, vector<1x128xf32>
    %29 = vector.broadcast %28 : vector<1x128xf32> to vector<2x128xf32>
    %30 = arith.addf %27, %29 : vector<2x128xf32>
    %cst_23 = arith.constant 0.000000e+00 : f32
    %31 = vector.broadcast %cst_23 : f32 to vector<2x128xf32>
    %32 = arith.maximumf %30, %31 : vector<2x128xf32>
    %33 = arith.truncf %32 : vector<2x128xf32> to vector<2x128xbf16>
    %c0_24 = arith.constant 0 : index
    %c0_25 = arith.constant 0 : index
    %34 = vector.load %arg10[%c0_24, %c0_25] : memref<2x128xbf16, #tpu.memory_space<vmem>>, vector<2x128xbf16>
    tpu.vector_store %arg10[%c0_24, %c0_25], %33 {strides = array<i32>} : memref<2x128xbf16, #tpu.memory_space<vmem>>, vector<2x128xbf16>,
    return
  }
  func.func @transform_0(%arg0: i32) -> (i32, i32) {
    %c0_i32 = arith.constant 0 : i32
    %c0_i32_0 = arith.constant 0 : i32
    return %arg0, %c0_i32 : i32, i32
  }
  func.func @transform_1(%arg0: i32) -> (i32, i32) {
    %c0_i32 = arith.constant 0 : i32
    %c0_i32_0 = arith.constant 0 : i32
    %c0_i32_1 = arith.constant 0 : i32
    return %c0_i32, %c0_i32_0 : i32, i32
  }
  func.func @transform_2(%arg0: i32) -> (i32, i32) {
    %c0_i32 = arith.constant 0 : i32
    %c0_i32_0 = arith.constant 0 : i32
    %c0_i32_1 = arith.constant 0 : i32
    return %c0_i32, %c0_i32_0 : i32, i32
  }
  func.func @transform_3(%arg0: i32) -> (i32, i32) {
    %c0_i32 = arith.constant 0 : i32
    %c0_i32_0 = arith.constant 0 : i32
    %c0_i32_1 = arith.constant 0 : i32
    return %c0_i32, %c0_i32_0 : i32, i32
  }
  func.func @transform_4(%arg0: i32) -> (i32, i32) {
    %c0_i32 = arith.constant 0 : i32
    %c0_i32_0 = arith.constant 0 : i32
    %c0_i32_1 = arith.constant 0 : i32
    return %c0_i32, %c0_i32_0 : i32, i32
  }
  func.func @transform_5(%arg0: i32) -> (i32, i32) {
    %c0_i32 = arith.constant 0 : i32
    %c0_i32_0 = arith.constant 0 : i32
    %c0_i32_1 = arith.constant 0 : i32
    return %c0_i32, %c0_i32_0 : i32, i32
  }
  func.func @transform_6(%arg0: i32) -> (i32, i32) {
    %c0_i32 = arith.constant 0 : i32
    %c0_i32_0 = arith.constant 0 : i32
    %c0_i32_1 = arith.constant 0 : i32
    return %c0_i32, %c0_i32_0 : i32, i32
  }
  func.func @transform_7(%arg0: i32) -> (i32, i32) {
    %c0_i32 = arith.constant 0 : i32
    %c0_i32_0 = arith.constant 0 : i32
    %c0_i32_1 = arith.constant 0 : i32
    return %c0_i32, %c0_i32_0 : i32, i32
  }
  func.func @transform_8(%arg0: i32) -> (i32, i32) {
    %c0_i32 = arith.constant 0 : i32
    %c0_i32_0 = arith.constant 0 : i32
    %c0_i32_1 = arith.constant 0 : i32
    return %c0_i32, %c0_i32_0 : i32, i32
  }
  func.func @transform_9(%arg0: i32) -> (i32, i32) {
    %c0_i32 = arith.constant 0 : i32
    %c0_i32_0 = arith.constant 0 : i32
    return %arg0, %c0_i32 : i32, i32
  }
}

</mosaic_0001>

<llo_original>
// kernel: mlp_forward.1
$region0: #{mlp_forward.1}
  #allocation0 [shape = 'u32[]', space=smem, size = 0x4, offset = 0x4, fixed_abs, tag = 'smem constant byte address 0x4 - core index']
  #allocation1 [shape = 'u32[144,128]{1,0:T(1,128)}', space=vmem, size = 0x12000, scoped, tag = 'internal scratch']
  %s0 = inlined_call_operand.vmem [shape: f32[2,3072], index: 0, kind: input, shape index: {}]
  %s1 = inlined_call_operand.hbm [shape: bf16[3072,512], index: 1, kind: input, shape index: {}]
  %s2 = inlined_call_operand.hbm [shape: f32[1,512], index: 2, kind: input, shape index: {}]
  %s3 = inlined_call_operand.hbm [shape: bf16[512,512], index: 3, kind: input, shape index: {}]
  %s4 = inlined_call_operand.hbm [shape: f32[1,512], index: 4, kind: input, shape index: {}]
  %s5 = inlined_call_operand.hbm [shape: bf16[512,512], index: 5, kind: input, shape index: {}]
  %s6 = inlined_call_operand.hbm [shape: f32[1,512], index: 6, kind: input, shape index: {}]
  %s7 = inlined_call_operand.hbm [shape: bf16[512,128], index: 7, kind: input, shape index: {}]
  %s8 = inlined_call_operand.hbm [shape: f32[1,128], index: 8, kind: input, shape index: {}]
  %s9 = inlined_call_operand.vmem [shape: bf16[2,128], index: 9, kind: output, shape index: {}]
  %s10 = sld [smem:[#allocation0]]
  $region78: #{mlp_forward.1} parent=0
    _
  %s12 = ssub.s32 1, %s10
  %s13 = scalar_select 0, %s12, %s10
  $region1: #{mlp_forward.1} parent=0
    #allocation2 [shape = 'u8[3145728]{0}', space=vmem, size = 0x300000, scoped, tag = 'input window, operand 1, single buffered']
    #allocation3 [shape = 's32[1]{0}', space=sflag, size = 0x4, scoped, tag = 'scoped memory for mlp_forward.1']
    #allocation4 [shape = 'u8[2048]{0}', space=vmem, size = 0x800, scoped, tag = 'input window, operand 2, single buffered']
    #allocation5 [shape = 's32[1]{0}', space=sflag, size = 0x4, scoped, tag = 'scoped memory for mlp_forward.1']
    #allocation6 [shape = 'u8[524288]{0}', space=vmem, size = 0x80000, scoped, tag = 'input window, operand 3, single buffered']
    #allocation7 [shape = 'u8[2048]{0}', space=vmem, size = 0x800, scoped, tag = 'input window, operand 4, single buffered']
    #allocation8 [shape = 's32[1]{0}', space=sflag, size = 0x4, scoped, tag = 'scoped memory for mlp_forward.1']
    #allocation9 [shape = 'u8[524288]{0}', space=vmem, size = 0x80000, scoped, tag = 'input window, operand 5, single buffered']
    #allocation10 [shape = 'u8[2048]{0}', space=vmem, size = 0x800, scoped, tag = 'input window, operand 6, single buffered']
    #allocation11 [shape = 's32[1]{0}', space=sflag, size = 0x4, scoped, tag = 'scoped memory for mlp_forward.1']
    #allocation12 [shape = 'u8[131072]{0}', space=vmem, size = 0x20000, scoped, tag = 'input window, operand 7, single buffered']
    #allocation13 [shape = 'u8[512]{0}', space=vmem, size = 0x400, scoped, tag = 'input window, operand 8, single buffered']
    #allocation14 [shape = 's32[1]{0}', space=sflag, size = 0x4, scoped, tag = 'scoped memory for mlp_forward.1']
    %14 = vsyncpa [#allocation3], 0
    %15 = vsyncpa [#allocation5], 0
    %16 = vsyncpa [#allocation8], 0
    %17 = vsyncpa [#allocation11], 0
    %18 = vsyncpa [#allocation14], 0
    // Predicated region
    $region2: #{mlp_forward.1} parent=1 // pred_check
      _
    $region3: #{mlp_forward.1} parent=1 // pred_check_branch
      %20 = sbr.rel (0) target = $region5
    $region4: #{mlp_forward.1} parent=1 // pred_region
      _
    $region5: #{mlp_forward.1} parent=1 // pred_fallthru
      _
    // Predicated region
    $region6: #{mlp_forward.1} parent=1 // pred_check
      _
    $region7: #{mlp_forward.1} parent=1 // pred_check_branch
      %22 = sbr.rel (0) target = $region9
    $region8: #{mlp_forward.1} parent=1 // pred_region
      %s24 = ssub.s32 98304, 98304
      %25 = vsyncadd [#allocation3], %s24
      %s26 = sshll.u32 [#allocation2], 4
      %s27 = int_to_ptr.vmem [resolvable:$true] %s26
      %32 = dma.hbm_to_vmem [thread:$0]  %s1, 98304, %s27, [#allocation3], 256, 256, 16
    $region9: #{mlp_forward.1} parent=1 // pred_fallthru
      _
    // Predicated region
    $region10: #{mlp_forward.1} parent=1 // pred_check
      _
    $region11: #{mlp_forward.1} parent=1 // pred_check_branch
      %34 = sbr.rel (0) target = $region13
    $region12: #{mlp_forward.1} parent=1 // pred_region
      %s36 = ssub.s32 64, 64
      %37 = vsyncadd [#allocation5], %s36
      %s39 = sshll.u32 [#allocation4], 4
      %s40 = int_to_ptr.vmem [resolvable:$true] %s39
      %42 = dma.hbm_to_vmem [thread:$0]  %s2, 64, %s40, [#allocation5]
    $region13: #{mlp_forward.1} parent=1 // pred_fallthru
      _
    // Predicated region
    $region14: #{mlp_forward.1} parent=1 // pred_check
      _
    $region15: #{mlp_forward.1} parent=1 // pred_check_branch
      %44 = sbr.rel (0) target = $region17
    $region16: #{mlp_forward.1} parent=1 // pred_region
      %s46 = ssub.s32 16384, 16384
      %47 = vsyncadd [#allocation5], %s46
      %s48 = sshll.u32 [#allocation6], 4
      %s49 = int_to_ptr.vmem [resolvable:$true] %s48
      %54 = dma.hbm_to_vmem [thread:$0]  %s3, 16384, %s49, [#allocation5], 256, 256, 16
    $region17: #{mlp_forward.1} parent=1 // pred_fallthru
      _
    // Predicated region
    $region18: #{mlp_forward.1} parent=1 // pred_check
      _
    $region19: #{mlp_forward.1} parent=1 // pred_check_branch
      %56 = sbr.rel (0) target = $region21
    $region20: #{mlp_forward.1} parent=1 // pred_region
      %s58 = ssub.s32 64, 64
      %59 = vsyncadd [#allocation8], %s58
      %s61 = sshll.u32 [#allocation7], 4
      %s62 = int_to_ptr.vmem [resolvable:$true] %s61
      %64 = dma.hbm_to_vmem [thread:$0]  %s4, 64, %s62, [#allocation8]
    $region21: #{mlp_forward.1} parent=1 // pred_fallthru
      _
    // Predicated region
    $region22: #{mlp_forward.1} parent=1 // pred_check
      _
    $region23: #{mlp_forward.1} parent=1 // pred_check_branch
      %66 = sbr.rel (0) target = $region25
    $region24: #{mlp_forward.1} parent=1 // pred_region
      %s68 = ssub.s32 16384, 16384
      %69 = vsyncadd [#allocation8], %s68
      %s70 = sshll.u32 [#allocation9], 4
      %s71 = int_to_ptr.vmem [resolvable:$true] %s70
      %76 = dma.hbm_to_vmem [thread:$0]  %s5, 16384, %s71, [#allocation8], 256, 256, 16
    $region25: #{mlp_forward.1} parent=1 // pred_fallthru
      _
    // Predicated region
    $region26: #{mlp_forward.1} parent=1 // pred_check
      _
    $region27: #{mlp_forward.1} parent=1 // pred_check_branch
      %78 = sbr.rel (0) target = $region29
    $region28: #{mlp_forward.1} parent=1 // pred_region
      %s80 = ssub.s32 64, 64
      %81 = vsyncadd [#allocation11], %s80
      %s83 = sshll.u32 [#allocation10], 4
      %s84 = int_to_ptr.vmem [resolvable:$true] %s83
      %86 = dma.hbm_to_vmem [thread:$0]  %s6, 64, %s84, [#allocation11]
    $region29: #{mlp_forward.1} parent=1 // pred_fallthru
      _
    // Predicated region
    $region30: #{mlp_forward.1} parent=1 // pred_check
      _
    $region31: #{mlp_forward.1} parent=1 // pred_check_branch
      %88 = sbr.rel (0) target = $region33
    $region32: #{mlp_forward.1} parent=1 // pred_region
      %s90 = ssub.s32 4096, 4096
      %91 = vsyncadd [#allocation11], %s90
      %s92 = sshll.u32 [#allocation12], 4
      %s93 = int_to_ptr.vmem [resolvable:$true] %s92
      %98 = dma.hbm_to_vmem [thread:$0]  %s7, 4096, %s93, [#allocation11], 64, 64, 4
    $region33: #{mlp_forward.1} parent=1 // pred_fallthru
      _
    // Predicated region
    $region34: #{mlp_forward.1} parent=1 // pred_check
      _
    $region35: #{mlp_forward.1} parent=1 // pred_check_branch
      %100 = sbr.rel (0) target = $region37
    $region36: #{mlp_forward.1} parent=1 // pred_region
      %s102 = ssub.s32 16, 16
      %103 = vsyncadd [#allocation14], %s102
      %s105 = sshll.u32 [#allocation13], 4
      %s106 = int_to_ptr.vmem [resolvable:$true] %s105
      %108 = dma.hbm_to_vmem [thread:$0]  %s8, 16, %s106, [#allocation14]
    $region37: #{mlp_forward.1} parent=1 // pred_fallthru
      _
    // Predicated region
    $region38: #{mlp_forward.1} parent=1 // pred_check
      _
    $region39: #{mlp_forward.1} parent=1 // pred_check_branch
      %110 = sbr.rel (0) target = $region41
    $region40: #{mlp_forward.1} parent=1 // pred_region
      %111 = dma.done [#allocation3], 98304
    $region41: #{mlp_forward.1} parent=1 // pred_fallthru
      _
    // Predicated region
    $region42: #{mlp_forward.1} parent=1 // pred_check
      _
    $region43: #{mlp_forward.1} parent=1 // pred_check_branch
      %113 = sbr.rel (0) target = $region45
    $region44: #{mlp_forward.1} parent=1 // pred_region
      %114 = dma.done [#allocation5], 64
    $region45: #{mlp_forward.1} parent=1 // pred_fallthru
      _
    // Predicated region
    $region46: #{mlp_forward.1} parent=1 // pred_check
      _
    $region47: #{mlp_forward.1} parent=1 // pred_check_branch
      %116 = sbr.rel (0) target = $region49
    $region48: #{mlp_forward.1} parent=1 // pred_region
      %117 = dma.done [#allocation5], 16384
    $region49: #{mlp_forward.1} parent=1 // pred_fallthru
      _
    // Predicated region
    $region50: #{mlp_forward.1} parent=1 // pred_check
      _
    $region51: #{mlp_forward.1} parent=1 // pred_check_branch
      %119 = sbr.rel (0) target = $region53
    $region52: #{mlp_forward.1} parent=1 // pred_region
      %120 = dma.done [#allocation8], 64
    $region53: #{mlp_forward.1} parent=1 // pred_fallthru
      _
    // Predicated region
    $region54: #{mlp_forward.1} parent=1 // pred_check
      _
    $region55: #{mlp_forward.1} parent=1 // pred_check_branch
      %122 = sbr.rel (0) target = $region57
    $region56: #{mlp_forward.1} parent=1 // pred_region
      %123 = dma.done [#allocation8], 16384
    $region57: #{mlp_forward.1} parent=1 // pred_fallthru
      _
    // Predicated region
    $region58: #{mlp_forward.1} parent=1 // pred_check
      _
    $region59: #{mlp_forward.1} parent=1 // pred_check_branch
      %125 = sbr.rel (0) target = $region61
    $region60: #{mlp_forward.1} parent=1 // pred_region
      %126 = dma.done [#allocation11], 64
    $region61: #{mlp_forward.1} parent=1 // pred_fallthru
      _
    // Predicated region
    $region62: #{mlp_forward.1} parent=1 // pred_check
      _
    $region63: #{mlp_forward.1} parent=1 // pred_check_branch
      %128 = sbr.rel (0) target = $region65
    $region64: #{mlp_forward.1} parent=1 // pred_region
      %129 = dma.done [#allocation11], 4096
    $region65: #{mlp_forward.1} parent=1 // pred_fallthru
      _
    // Predicated region
    $region66: #{mlp_forward.1} parent=1 // pred_check
      _
    $region67: #{mlp_forward.1} parent=1 // pred_check_branch
      %131 = sbr.rel (0) target = $region69
    $region68: #{mlp_forward.1} parent=1 // pred_region
      %132 = dma.done [#allocation14], 16
    $region69: #{mlp_forward.1} parent=1 // pred_fallthru
      _
    %v134 = vld [vmem:[%s0] sm:$0xff]
    %v135 = vld [vmem:[%s0 + $0x8] sm:$0xff]
    %v136 = vld [vmem:[%s0 + $0x10] sm:$0xff]
    %v137 = vld [vmem:[%s0 + $0x18] sm:$0xff]
    %v138 = vld [vmem:[%s0 + $0x20] sm:$0xff]
    %v139 = vld [vmem:[%s0 + $0x28] sm:$0xff]
    %v146 = vcombine.high %v134, %v134
    %v148 = vunpack.c.l.s4 1983009808
    %v149 = vunpack.c.0.s8 %v148
    %v150 = vlaneseq
    %v151 = vshrl.u32 %v150, 7
    %v152 = vsub.s32 %v149, %v151
    %v153 = vrot.slane %v134, %v152
    %v155 = vunpack.c.l.s4 1983009808
    %v156 = vunpack.c.0.s8 %v155
    %v157 = vlaneseq
    %v158 = vshrl.u32 %v157, 7
    %v159 = vsub.s32 %v156, %v158
    %v160 = vrot.slane %v146, %v159
    %v161 = vcombine.high %v153, %v153
    %v162 = vcombine.high %v160, %v160
    %v163 = vcombine.high %v135, %v135
    %v165 = vunpack.c.l.s4 1983009808
    %v166 = vunpack.c.0.s8 %v165
    %v167 = vlaneseq
    %v168 = vshrl.u32 %v167, 7
    %v169 = vsub.s32 %v166, %v168
    %v170 = vrot.slane %v135, %v169
    %v172 = vunpack.c.l.s4 1983009808
    %v173 = vunpack.c.0.s8 %v172
    %v174 = vlaneseq
    %v175 = vshrl.u32 %v174, 7
    %v176 = vsub.s32 %v173, %v175
    %v177 = vrot.slane %v163, %v176
    %v178 = vcombine.high %v170, %v170
    %v179 = vcombine.high %v177, %v177
    %v180 = vcombine.high %v136, %v136
    %v182 = vunpack.c.l.s4 1983009808
    %v183 = vunpack.c.0.s8 %v182
    %v184 = vlaneseq
    %v185 = vshrl.u32 %v184, 7
    %v186 = vsub.s32 %v183, %v185
    %v187 = vrot.slane %v136, %v186
    %v189 = vunpack.c.l.s4 1983009808
    %v190 = vunpack.c.0.s8 %v189
    %v191 = vlaneseq
    %v192 = vshrl.u32 %v191, 7
    %v193 = vsub.s32 %v190, %v192
    %v194 = vrot.slane %v180, %v193
    %v195 = vcombine.high %v187, %v187
    %v196 = vcombine.high %v194, %v194
    %v197 = vcombine.high %v137, %v137
    %v199 = vunpack.c.l.s4 1983009808
    %v200 = vunpack.c.0.s8 %v199
    %v201 = vlaneseq
    %v202 = vshrl.u32 %v201, 7
    %v203 = vsub.s32 %v200, %v202
    %v204 = vrot.slane %v137, %v203
    %v206 = vunpack.c.l.s4 1983009808
    %v207 = vunpack.c.0.s8 %v206
    %v208 = vlaneseq
    %v209 = vshrl.u32 %v208, 7
    %v210 = vsub.s32 %v207, %v209
    %v211 = vrot.slane %v197, %v210
    %v212 = vcombine.high %v204, %v204
    %v213 = vcombine.high %v211, %v211
    %v214 = vcombine.high %v138, %v138
    %v216 = vunpack.c.l.s4 1983009808
    %v217 = vunpack.c.0.s8 %v216
    %v218 = vlaneseq
    %v219 = vshrl.u32 %v218, 7
    %v220 = vsub.s32 %v217, %v219
    %v221 = vrot.slane %v138, %v220
    %v223 = vunpack.c.l.s4 1983009808
    %v224 = vunpack.c.0.s8 %v223
    %v225 = vlaneseq
    %v226 = vshrl.u32 %v225, 7
    %v227 = vsub.s32 %v224, %v226
    %v228 = vrot.slane %v214, %v227
    %v229 = vcombine.high %v221, %v221
    %v230 = vcombine.high %v228, %v228
    %v231 = vcombine.high %v139, %v139
    %v233 = vunpack.c.l.s4 1983009808
    %v234 = vunpack.c.0.s8 %v233
    %v235 = vlaneseq
    %v236 = vshrl.u32 %v235, 7
    %v237 = vsub.s32 %v234, %v236
    %v238 = vrot.slane %v139, %v237
    %v240 = vunpack.c.l.s4 1983009808
    %v241 = vunpack.c.0.s8 %v240
    %v242 = vlaneseq
    %v243 = vshrl.u32 %v242, 7
    %v244 = vsub.s32 %v241, %v243
    %v245 = vrot.slane %v231, %v244
    %v246 = vcombine.high %v238, %v238
    %v247 = vcombine.high %v245, %v245
    %v272 = vpack.c.bf16 %v153, %v153
    %v273 = vpack.c.bf16 %v161, %v161
    %v274 = vpack.c.bf16 %v160, %v160
    %v275 = vpack.c.bf16 %v162, %v162
    %v276 = vpack.c.bf16 %v170, %v170
    %v277 = vpack.c.bf16 %v178, %v178
    %v278 = vpack.c.bf16 %v177, %v177
    %v279 = vpack.c.bf16 %v179, %v179
    %v280 = vpack.c.bf16 %v187, %v187
    %v281 = vpack.c.bf16 %v195, %v195
    %v282 = vpack.c.bf16 %v194, %v194
    %v283 = vpack.c.bf16 %v196, %v196
    %v284 = vpack.c.bf16 %v204, %v204
    %v285 = vpack.c.bf16 %v212, %v212
    %v286 = vpack.c.bf16 %v211, %v211
    %v287 = vpack.c.bf16 %v213, %v213
    %v288 = vpack.c.bf16 %v221, %v221
    %v289 = vpack.c.bf16 %v229, %v229
    %v290 = vpack.c.bf16 %v228, %v228
    %v291 = vpack.c.bf16 %v230, %v230
    %v292 = vpack.c.bf16 %v238, %v238
    %v293 = vpack.c.bf16 %v246, %v246
    %v294 = vpack.c.bf16 %v245, %v245
    %v295 = vpack.c.bf16 %v247, %v247
    %v296 = vld [vmem:[#allocation2] sm:$0xff]
    %v297 = vld [vmem:[#allocation2 + $0x8] sm:$0xff]
    %v298 = vld [vmem:[#allocation2 + $0x10] sm:$0xff]
    %v299 = vld [vmem:[#allocation2 + $0x18] sm:$0xff]
    %v300 = vld [vmem:[#allocation2 + $0x20] sm:$0xff]
    %v301 = vld [vmem:[#allocation2 + $0x28] sm:$0xff]
    %v302 = vld [vmem:[#allocation2 + $0x30] sm:$0xff]
    %v303 = vld [vmem:[#allocation2 + $0x38] sm:$0xff]
    %v304 = vld [vmem:[#allocation2 + $0x40] sm:$0xff]
    %v305 = vld [vmem:[#allocation2 + $0x48] sm:$0xff]
    %v306 = vld [vmem:[#allocation2 + $0x50] sm:$0xff]
    %v307 = vld [vmem:[#allocation2 + $0x58] sm:$0xff]
    %v308 = vld [vmem:[#allocation2 + $0x60] sm:$0xff]
    %v309 = vld [vmem:[#allocation2 + $0x68] sm:$0xff]
    %v310 = vld [vmem:[#allocation2 + $0x70] sm:$0xff]
    %v311 = vld [vmem:[#allocation2 + $0x78] sm:$0xff]
    %v312 = vld [vmem:[#allocation2 + $0x80] sm:$0xff]
    %v313 = vld [vmem:[#allocation2 + $0x88] sm:$0xff]
    %v314 = vld [vmem:[#allocation2 + $0x90] sm:$0xff]
    %v315 = vld [vmem:[#allocation2 + $0x98] sm:$0xff]
    %v316 = vld [vmem:[#allocation2 + $0xa0] sm:$0xff]
    %v317 = vld [vmem:[#allocation2 + $0xa8] sm:$0xff]
    %v318 = vld [vmem:[#allocation2 + $0xb0] sm:$0xff]
    %v319 = vld [vmem:[#allocation2 + $0xb8] sm:$0xff]
    %v320 = vld [vmem:[#allocation2 + $0xc0] sm:$0xff]
    %v321 = vld [vmem:[#allocation2 + $0xc8] sm:$0xff]
    %v322 = vld [vmem:[#allocation2 + $0xd0] sm:$0xff]
    %v323 = vld [vmem:[#allocation2 + $0xd8] sm:$0xff]
    %v324 = vld [vmem:[#allocation2 + $0xe0] sm:$0xff]
    %v325 = vld [vmem:[#allocation2 + $0xe8] sm:$0xff]
    %v326 = vld [vmem:[#allocation2 + $0xf0] sm:$0xff]
    %v327 = vld [vmem:[#allocation2 + $0xf8] sm:$0xff]
    %v328 = vld [vmem:[#allocation2 + $0x100] sm:$0xff]
    %v329 = vld [vmem:[#allocation2 + $0x108] sm:$0xff]
    %v330 = vld [vmem:[#allocation2 + $0x110] sm:$0xff]
    %v331 = vld [vmem:[#allocation2 + $0x118] sm:$0xff]
    %v332 = vld [vmem:[#allocation2 + $0x120] sm:$0xff]
    %v333 = vld [vmem:[#allocation2 + $0x128] sm:$0xff]
    %v334 = vld [vmem:[#allocation2 + $0x130] sm:$0xff]
    %v335 = vld [vmem:[#allocation2 + $0x138] sm:$0xff]
    %v336 = vld [vmem:[#allocation2 + $0x140] sm:$0xff]
    %v337 = vld [vmem:[#allocation2 + $0x148] sm:$0xff]
    %v338 = vld [vmem:[#allocation2 + $0x150] sm:$0xff]
    %v339 = vld [vmem:[#allocation2 + $0x158] sm:$0xff]
    %v340 = vld [vmem:[#allocation2 + $0x160] sm:$0xff]
    %v341 = vld [vmem:[#allocation2 + $0x168] sm:$0xff]
    %v342 = vld [vmem:[#allocation2 + $0x170] sm:$0xff]
    %v343 = vld [vmem:[#allocation2 + $0x178] sm:$0xff]
    %v344 = vld [vmem:[#allocation2 + $0x180] sm:$0xff]
    %v345 = vld [vmem:[#allocation2 + $0x188] sm:$0xff]
    %v346 = vld [vmem:[#allocation2 + $0x190] sm:$0xff]
    %v347 = vld [vmem:[#allocation2 + $0x198] sm:$0xff]
    %v348 = vld [vmem:[#allocation2 + $0x1a0] sm:$0xff]
    %v349 = vld [vmem:[#allocation2 + $0x1a8] sm:$0xff]
    %v350 = vld [vmem:[#allocation2 + $0x1b0] sm:$0xff]
    %v351 = vld [vmem:[#allocation2 + $0x1b8] sm:$0xff]
    %v352 = vld [vmem:[#allocation2 + $0x1c0] sm:$0xff]
    %v353 = vld [vmem:[#allocation2 + $0x1c8] sm:$0xff]
    %v354 = vld [vmem:[#allocation2 + $0x1d0] sm:$0xff]
    %v355 = vld [vmem:[#allocation2 + $0x1d8] sm:$0xff]
    %v356 = vld [vmem:[#allocation2 + $0x1e0] sm:$0xff]
    %v357 = vld [vmem:[#allocation2 + $0x1e8] sm:$0xff]
    %v358 = vld [vmem:[#allocation2 + $0x1f0] sm:$0xff]
    %v359 = vld [vmem:[#allocation2 + $0x1f8] sm:$0xff]
    %v360 = vld [vmem:[#allocation2 + $0x200] sm:$0xff]
    %v361 = vld [vmem:[#allocation2 + $0x208] sm:$0xff]
    %v362 = vld [vmem:[#allocation2 + $0x210] sm:$0xff]
    %v363 = vld [vmem:[#allocation2 + $0x218] sm:$0xff]
    %v364 = vld [vmem:[#allocation2 + $0x220] sm:$0xff]
    %v365 = vld [vmem:[#allocation2 + $0x228] sm:$0xff]
    %v366 = vld [vmem:[#allocation2 + $0x230] sm:$0xff]
    %v367 = vld [vmem:[#allocation2 + $0x238] sm:$0xff]
    %v368 = vld [vmem:[#allocation2 + $0x240] sm:$0xff]
    %v369 = vld [vmem:[#allocation2 + $0x248] sm:$0xff]
    %v370 = vld [vmem:[#allocation2 + $0x250] sm:$0xff]
    %v371 = vld [vmem:[#allocation2 + $0x258] sm:$0xff]
    %v372 = vld [vmem:[#allocation2 + $0x260] sm:$0xff]
    %v373 = vld [vmem:[#allocation2 + $0x268] sm:$0xff]
    %v374 = vld [vmem:[#allocation2 + $0x270] sm:$0xff]
    %v375 = vld [vmem:[#allocation2 + $0x278] sm:$0xff]
    %v376 = vld [vmem:[#allocation2 + $0x280] sm:$0xff]
    %v377 = vld [vmem:[#allocation2 + $0x288] sm:$0xff]
    %v378 = vld [vmem:[#allocation2 + $0x290] sm:$0xff]
    %v379 = vld [vmem:[#allocation2 + $0x298] sm:$0xff]
    %v380 = vld [vmem:[#allocation2 + $0x2a0] sm:$0xff]
    %v381 = vld [vmem:[#allocation2 + $0x2a8] sm:$0xff]
    %v382 = vld [vmem:[#allocation2 + $0x2b0] sm:$0xff]
    %v383 = vld [vmem:[#allocation2 + $0x2b8] sm:$0xff]
    %v384 = vld [vmem:[#allocation2 + $0x2c0] sm:$0xff]
    %v385 = vld [vmem:[#allocation2 + $0x2c8] sm:$0xff]
    %v386 = vld [vmem:[#allocation2 + $0x2d0] sm:$0xff]
    %v387 = vld [vmem:[#allocation2 + $0x2d8] sm:$0xff]
    %v388 = vld [vmem:[#allocation2 + $0x2e0] sm:$0xff]
    %v389 = vld [vmem:[#allocation2 + $0x2e8] sm:$0xff]
    %v390 = vld [vmem:[#allocation2 + $0x2f0] sm:$0xff]
    %v391 = vld [vmem:[#allocation2 + $0x2f8] sm:$0xff]
    %v392 = vld [vmem:[#allocation2 + $0x300] sm:$0xff]
    %v393 = vld [vmem:[#allocation2 + $0x308] sm:$0xff]
    %v394 = vld [vmem:[#allocation2 + $0x310] sm:$0xff]
    %v395 = vld [vmem:[#allocation2 + $0x318] sm:$0xff]
    %v396 = vld [vmem:[#allocation2 + $0x320] sm:$0xff]
    %v397 = vld [vmem:[#allocation2 + $0x328] sm:$0xff]
    %v398 = vld [vmem:[#allocation2 + $0x330] sm:$0xff]
    %v399 = vld [vmem:[#allocation2 + $0x338] sm:$0xff]
    %v400 = vld [vmem:[#allocation2 + $0x340] sm:$0xff]
    %v401 = vld [vmem:[#allocation2 + $0x348] sm:$0xff]
    %v402 = vld [vmem:[#allocation2 + $0x350] sm:$0xff]
    %v403 = vld [vmem:[#allocation2 + $0x358] sm:$0xff]
    %v404 = vld [vmem:[#allocation2 + $0x360] sm:$0xff]
    %v405 = vld [vmem:[#allocation2 + $0x368] sm:$0xff]
    %v406 = vld [vmem:[#allocation2 + $0x370] sm:$0xff]
    %v407 = vld [vmem:[#allocation2 + $0x378] sm:$0xff]
    %v408 = vld [vmem:[#allocation2 + $0x380] sm:$0xff]
    %v409 = vld [vmem:[#allocation2 + $0x388] sm:$0xff]
    %v410 = vld [vmem:[#allocation2 + $0x390] sm:$0xff]
    %v411 = vld [vmem:[#allocation2 + $0x398] sm:$0xff]
    %v412 = vld [vmem:[#allocation2 + $0x3a0] sm:$0xff]
    %v413 = vld [vmem:[#allocation2 + $0x3a8] sm:$0xff]
    %v414 = vld [vmem:[#allocation2 + $0x3b0] sm:$0xff]
    %v415 = vld [vmem:[#allocation2 + $0x3b8] sm:$0xff]
    %v416 = vld [vmem:[#allocation2 + $0x3c0] sm:$0xff]
    %v417 = vld [vmem:[#allocation2 + $0x3c8] sm:$0xff]
    %v418 = vld [vmem:[#allocation2 + $0x3d0] sm:$0xff]
    %v419 = vld [vmem:[#allocation2 + $0x3d8] sm:$0xff]
    %v420 = vld [vmem:[#allocation2 + $0x3e0] sm:$0xff]
    %v421 = vld [vmem:[#allocation2 + $0x3e8] sm:$0xff]
    %v422 = vld [vmem:[#allocation2 + $0x3f0] sm:$0xff]
    %v423 = vld [vmem:[#allocation2 + $0x3f8] sm:$0xff]
    %v424 = vld [vmem:[#allocation2 + $0x400] sm:$0xff]
    %v425 = vld [vmem:[#allocation2 + $0x408] sm:$0xff]
    %v426 = vld [vmem:[#allocation2 + $0x410] sm:$0xff]
    %v427 = vld [vmem:[#allocation2 + $0x418] sm:$0xff]
    %v428 = vld [vmem:[#allocation2 + $0x420] sm:$0xff]
    %v429 = vld [vmem:[#allocation2 + $0x428] sm:$0xff]
    %v430 = vld [vmem:[#allocation2 + $0x430] sm:$0xff]
    %v431 = vld [vmem:[#allocation2 + $0x438] sm:$0xff]
    %v432 = vld [vmem:[#allocation2 + $0x440] sm:$0xff]
    %v433 = vld [vmem:[#allocation2 + $0x448] sm:$0xff]
    %v434 = vld [vmem:[#allocation2 + $0x450] sm:$0xff]
    %v435 = vld [vmem:[#allocation2 + $0x458] sm:$0xff]
    %v436 = vld [vmem:[#allocation2 + $0x460] sm:$0xff]
    %v437 = vld [vmem:[#allocation2 + $0x468] sm:$0xff]
    %v438 = vld [vmem:[#allocation2 + $0x470] sm:$0xff]
    %v439 = vld [vmem:[#allocation2 + $0x478] sm:$0xff]
    %v440 = vld [vmem:[#allocation2 + $0x480] sm:$0xff]
    %v441 = vld [vmem:[#allocation2 + $0x488] sm:$0xff]
    %v442 = vld [vmem:[#allocation2 + $0x490] sm:$0xff]
    %v443 = vld [vmem:[#allocation2 + $0x498] sm:$0xff]
    %v444 = vld [vmem:[#allocation2 + $0x4a0] sm:$0xff]
    %v445 = vld [vmem:[#allocation2 + $0x4a8] sm:$0xff]
    %v446 = vld [vmem:[#allocation2 + $0x4b0] sm:$0xff]
    %v447 = vld [vmem:[#allocation2 + $0x4b8] sm:$0xff]
    %v448 = vld [vmem:[#allocation2 + $0x4c0] sm:$0xff]
    %v449 = vld [vmem:[#allocation2 + $0x4c8] sm:$0xff]
    %v450 = vld [vmem:[#allocation2 + $0x4d0] sm:$0xff]
    %v451 = vld [vmem:[#allocation2 + $0x4d8] sm:$0xff]
    %v452 = vld [vmem:[#allocation2 + $0x4e0] sm:$0xff]
    %v453 = vld [vmem:[#allocation2 + $0x4e8] sm:$0xff]
    %v454 = vld [vmem:[#allocation2 + $0x4f0] sm:$0xff]
    %v455 = vld [vmem:[#allocation2 + $0x4f8] sm:$0xff]
    %v456 = vld [vmem:[#allocation2 + $0x500] sm:$0xff]
    %v457 = vld [vmem:[#allocation2 + $0x508] sm:$0xff]
    %v458 = vld [vmem:[#allocation2 + $0x510] sm:$0xff]
    %v459 = vld [vmem:[#allocation2 + $0x518] sm:$0xff]
    %v460 = vld [vmem:[#allocation2 + $0x520] sm:$0xff]
    %v461 = vld [vmem:[#allocation2 + $0x528] sm:$0xff]
    %v462 = vld [vmem:[#allocation2 + $0x530] sm:$0xff]
    %v463 = vld [vmem:[#allocation2 + $0x538] sm:$0xff]
    %v464 = vld [vmem:[#allocation2 + $0x540] sm:$0xff]
    %v465 = vld [vmem:[#allocation2 + $0x548] sm:$0xff]
    %v466 = vld [vmem:[#allocation2 + $0x550] sm:$0xff]
    %v467 = vld [vmem:[#allocation2 + $0x558] sm:$0xff]
    %v468 = vld [vmem:[#allocation2 + $0x560] sm:$0xff]
    %v469 = vld [vmem:[#allocation2 + $0x568] sm:$0xff]
    %v470 = vld [vmem:[#allocation2 + $0x570] sm:$0xff]
    %v471 = vld [vmem:[#allocation2 + $0x578] sm:$0xff]
    %v472 = vld [vmem:[#allocation2 + $0x580] sm:$0xff]
    %v473 = vld [vmem:[#allocation2 + $0x588] sm:$0xff]
    %v474 = vld [vmem:[#allocation2 + $0x590] sm:$0xff]
    %v475 = vld [vmem:[#allocation2 + $0x598] sm:$0xff]
    %v476 = vld [vmem:[#allocation2 + $0x5a0] sm:$0xff]
    %v477 = vld [vmem:[#allocation2 + $0x5a8] sm:$0xff]
    %v478 = vld [vmem:[#allocation2 + $0x5b0] sm:$0xff]
    %v479 = vld [vmem:[#allocation2 + $0x5b8] sm:$0xff]
    %v480 = vld [vmem:[#allocation2 + $0x5c0] sm:$0xff]
    %v481 = vld [vmem:[#allocation2 + $0x5c8] sm:$0xff]
    %v482 = vld [vmem:[#allocation2 + $0x5d0] sm:$0xff]
    %v483 = vld [vmem:[#allocation2 + $0x5d8] sm:$0xff]
    %v484 = vld [vmem:[#allocation2 + $0x5e0] sm:$0xff]
    %v485 = vld [vmem:[#allocation2 + $0x5e8] sm:$0xff]
    %v486 = vld [vmem:[#allocation2 + $0x5f0] sm:$0xff]
    %v487 = vld [vmem:[#allocation2 + $0x5f8] sm:$0xff]
    %v488 = vld [vmem:[#allocation2 + $0x600] sm:$0xff]
    %v489 = vld [vmem:[#allocation2 + $0x608] sm:$0xff]
    %v490 = vld [vmem:[#allocation2 + $0x610] sm:$0xff]
    %v491 = vld [vmem:[#allocation2 + $0x618] sm:$0xff]
    %v492 = vld [vmem:[#allocation2 + $0x620] sm:$0xff]
    %v493 = vld [vmem:[#allocation2 + $0x628] sm:$0xff]
    %v494 = vld [vmem:[#allocation2 + $0x630] sm:$0xff]
    %v495 = vld [vmem:[#allocation2 + $0x638] sm:$0xff]
    %v496 = vld [vmem:[#allocation2 + $0x640] sm:$0xff]
    %v497 = vld [vmem:[#allocation2 + $0x648] sm:$0xff]
    %v498 = vld [vmem:[#allocation2 + $0x650] sm:$0xff]
    %v499 = vld [vmem:[#allocation2 + $0x658] sm:$0xff]
    %v500 = vld [vmem:[#allocation2 + $0x660] sm:$0xff]
    %v501 = vld [vmem:[#allocation2 + $0x668] sm:$0xff]
    %v502 = vld [vmem:[#allocation2 + $0x670] sm:$0xff]
    %v503 = vld [vmem:[#allocation2 + $0x678] sm:$0xff]
    %v504 = vld [vmem:[#allocation2 + $0x680] sm:$0xff]
    %v505 = vld [vmem:[#allocation2 + $0x688] sm:$0xff]
    %v506 = vld [vmem:[#allocation2 + $0x690] sm:$0xff]
    %v507 = vld [vmem:[#allocation2 + $0x698] sm:$0xff]
    %v508 = vld [vmem:[#allocation2 + $0x6a0] sm:$0xff]
    %v509 = vld [vmem:[#allocation2 + $0x6a8] sm:$0xff]
    %v510 = vld [vmem:[#allocation2 + $0x6b0] sm:$0xff]
    %v511 = vld [vmem:[#allocation2 + $0x6b8] sm:$0xff]
    %v512 = vld [vmem:[#allocation2 + $0x6c0] sm:$0xff]
    %v513 = vld [vmem:[#allocation2 + $0x6c8] sm:$0xff]
    %v514 = vld [vmem:[#allocation2 + $0x6d0] sm:$0xff]
    %v515 = vld [vmem:[#allocation2 + $0x6d8] sm:$0xff]
    %v516 = vld [vmem:[#allocation2 + $0x6e0] sm:$0xff]
    %v517 = vld [vmem:[#allocation2 + $0x6e8] sm:$0xff]
    %v518 = vld [vmem:[#allocation2 + $0x6f0] sm:$0xff]
    %v519 = vld [vmem:[#allocation2 + $0x6f8] sm:$0xff]
    %v520 = vld [vmem:[#allocation2 + $0x700] sm:$0xff]
    %v521 = vld [vmem:[#allocation2 + $0x708] sm:$0xff]
    %v522 = vld [vmem:[#allocation2 + $0x710] sm:$0xff]
    %v523 = vld [vmem:[#allocation2 + $0x718] sm:$0xff]
    %v524 = vld [vmem:[#allocation2 + $0x720] sm:$0xff]
    %v525 = vld [vmem:[#allocation2 + $0x728] sm:$0xff]
    %v526 = vld [vmem:[#allocation2 + $0x730] sm:$0xff]
    %v527 = vld [vmem:[#allocation2 + $0x738] sm:$0xff]
    %v528 = vld [vmem:[#allocation2 + $0x740] sm:$0xff]
    %v529 = vld [vmem:[#allocation2 + $0x748] sm:$0xff]
    %v530 = vld [vmem:[#allocation2 + $0x750] sm:$0xff]
    %v531 = vld [vmem:[#allocation2 + $0x758] sm:$0xff]
    %v532 = vld [vmem:[#allocation2 + $0x760] sm:$0xff]
    %v533 = vld [vmem:[#allocation2 + $0x768] sm:$0xff]
    %v534 = vld [vmem:[#allocation2 + $0x770] sm:$0xff]
    %v535 = vld [vmem:[#allocation2 + $0x778] sm:$0xff]
    %v536 = vld [vmem:[#allocation2 + $0x780] sm:$0xff]
    %v537 = vld [vmem:[#allocation2 + $0x788] sm:$0xff]
    %v538 = vld [vmem:[#allocation2 + $0x790] sm:$0xff]
    %v539 = vld [vmem:[#allocation2 + $0x798] sm:$0xff]
    %v540 = vld [vmem:[#allocation2 + $0x7a0] sm:$0xff]
    %v541 = vld [vmem:[#allocation2 + $0x7a8] sm:$0xff]
    %v542 = vld [vmem:[#allocation2 + $0x7b0] sm:$0xff]
    %v543 = vld [vmem:[#allocation2 + $0x7b8] sm:$0xff]
    %v544 = vld [vmem:[#allocation2 + $0x7c0] sm:$0xff]
    %v545 = vld [vmem:[#allocation2 + $0x7c8] sm:$0xff]
    %v546 = vld [vmem:[#allocation2 + $0x7d0] sm:$0xff]
    %v547 = vld [vmem:[#allocation2 + $0x7d8] sm:$0xff]
    %v548 = vld [vmem:[#allocation2 + $0x7e0] sm:$0xff]
    %v549 = vld [vmem:[#allocation2 + $0x7e8] sm:$0xff]
    %v550 = vld [vmem:[#allocation2 + $0x7f0] sm:$0xff]
    %v551 = vld [vmem:[#allocation2 + $0x7f8] sm:$0xff]
    %v552 = vld [vmem:[#allocation2 + $0x800] sm:$0xff]
    %v553 = vld [vmem:[#allocation2 + $0x808] sm:$0xff]
    %v554 = vld [vmem:[#allocation2 + $0x810] sm:$0xff]
    %v555 = vld [vmem:[#allocation2 + $0x818] sm:$0xff]
    %v556 = vld [vmem:[#allocation2 + $0x820] sm:$0xff]
    %v557 = vld [vmem:[#allocation2 + $0x828] sm:$0xff]
    %v558 = vld [vmem:[#allocation2 + $0x830] sm:$0xff]
    %v559 = vld [vmem:[#allocation2 + $0x838] sm:$0xff]
    %v560 = vld [vmem:[#allocation2 + $0x840] sm:$0xff]
    %v561 = vld [vmem:[#allocation2 + $0x848] sm:$0xff]
    %v562 = vld [vmem:[#allocation2 + $0x850] sm:$0xff]
    %v563 = vld [vmem:[#allocation2 + $0x858] sm:$0xff]
    %v564 = vld [vmem:[#allocation2 + $0x860] sm:$0xff]
    %v565 = vld [vmem:[#allocation2 + $0x868] sm:$0xff]
    %v566 = vld [vmem:[#allocation2 + $0x870] sm:$0xff]
    %v567 = vld [vmem:[#allocation2 + $0x878] sm:$0xff]
    %v568 = vld [vmem:[#allocation2 + $0x880] sm:$0xff]
    %v569 = vld [vmem:[#allocation2 + $0x888] sm:$0xff]
    %v570 = vld [vmem:[#allocation2 + $0x890] sm:$0xff]
    %v571 = vld [vmem:[#allocation2 + $0x898] sm:$0xff]
    %v572 = vld [vmem:[#allocation2 + $0x8a0] sm:$0xff]
    %v573 = vld [vmem:[#allocation2 + $0x8a8] sm:$0xff]
    %v574 = vld [vmem:[#allocation2 + $0x8b0] sm:$0xff]
    %v575 = vld [vmem:[#allocation2 + $0x8b8] sm:$0xff]
    %v576 = vld [vmem:[#allocation2 + $0x8c0] sm:$0xff]
    %v577 = vld [vmem:[#allocation2 + $0x8c8] sm:$0xff]
    %v578 = vld [vmem:[#allocation2 + $0x8d0] sm:$0xff]
    %v579 = vld [vmem:[#allocation2 + $0x8d8] sm:$0xff]
    %v580 = vld [vmem:[#allocation2 + $0x8e0] sm:$0xff]
    %v581 = vld [vmem:[#allocation2 + $0x8e8] sm:$0xff]
    %v582 = vld [vmem:[#allocation2 + $0x8f0] sm:$0xff]
    %v583 = vld [vmem:[#allocation2 + $0x8f8] sm:$0xff]
    %v584 = vld [vmem:[#allocation2 + $0x900] sm:$0xff]
    %v585 = vld [vmem:[#allocation2 + $0x908] sm:$0xff]
    %v586 = vld [vmem:[#allocation2 + $0x910] sm:$0xff]
    %v587 = vld [vmem:[#allocation2 + $0x918] sm:$0xff]
    %v588 = vld [vmem:[#allocation2 + $0x920] sm:$0xff]
    %v589 = vld [vmem:[#allocation2 + $0x928] sm:$0xff]
    %v590 = vld [vmem:[#allocation2 + $0x930] sm:$0xff]
    %v591 = vld [vmem:[#allocation2 + $0x938] sm:$0xff]
    %v592 = vld [vmem:[#allocation2 + $0x940] sm:$0xff]
    %v593 = vld [vmem:[#allocation2 + $0x948] sm:$0xff]
    %v594 = vld [vmem:[#allocation2 + $0x950] sm:$0xff]
    %v595 = vld [vmem:[#allocation2 + $0x958] sm:$0xff]
    %v596 = vld [vmem:[#allocation2 + $0x960] sm:$0xff]
    %v597 = vld [vmem:[#allocation2 + $0x968] sm:$0xff]
    %v598 = vld [vmem:[#allocation2 + $0x970] sm:$0xff]
    %v599 = vld [vmem:[#allocation2 + $0x978] sm:$0xff]
    %v600 = vld [vmem:[#allocation2 + $0x980] sm:$0xff]
    %v601 = vld [vmem:[#allocation2 + $0x988] sm:$0xff]
    %v602 = vld [vmem:[#allocation2 + $0x990] sm:$0xff]
    %v603 = vld [vmem:[#allocation2 + $0x998] sm:$0xff]
    %v604 = vld [vmem:[#allocation2 + $0x9a0] sm:$0xff]
    %v605 = vld [vmem:[#allocation2 + $0x9a8] sm:$0xff]
    %v606 = vld [vmem:[#allocation2 + $0x9b0] sm:$0xff]
    %v607 = vld [vmem:[#allocation2 + $0x9b8] sm:$0xff]
    %v608 = vld [vmem:[#allocation2 + $0x9c0] sm:$0xff]
    %v609 = vld [vmem:[#allocation2 + $0x9c8] sm:$0xff]
    %v610 = vld [vmem:[#allocation2 + $0x9d0] sm:$0xff]
    %v611 = vld [vmem:[#allocation2 + $0x9d8] sm:$0xff]
    %v612 = vld [vmem:[#allocation2 + $0x9e0] sm:$0xff]
    %v613 = vld [vmem:[#allocation2 + $0x9e8] sm:$0xff]
    %v614 = vld [vmem:[#allocation2 + $0x9f0] sm:$0xff]
    %v615 = vld [vmem:[#allocation2 + $0x9f8] sm:$0xff]
    %v616 = vld [vmem:[#allocation2 + $0xa00] sm:$0xff]
    %v617 = vld [vmem:[#allocation2 + $0xa08] sm:$0xff]
    %v618 = vld [vmem:[#allocation2 + $0xa10] sm:$0xff]
    %v619 = vld [vmem:[#allocation2 + $0xa18] sm:$0xff]
    %v620 = vld [vmem:[#allocation2 + $0xa20] sm:$0xff]
    %v621 = vld [vmem:[#allocation2 + $0xa28] sm:$0xff]
    %v622 = vld [vmem:[#allocation2 + $0xa30] sm:$0xff]
    %v623 = vld [vmem:[#allocation2 + $0xa38] sm:$0xff]
    %v624 = vld [vmem:[#allocation2 + $0xa40] sm:$0xff]
    %v625 = vld [vmem:[#allocation2 + $0xa48] sm:$0xff]
    %v626 = vld [vmem:[#allocation2 + $0xa50] sm:$0xff]
    %v627 = vld [vmem:[#allocation2 + $0xa58] sm:$0xff]
    %v628 = vld [vmem:[#allocation2 + $0xa60] sm:$0xff]
    %v629 = vld [vmem:[#allocation2 + $0xa68] sm:$0xff]
    %v630 = vld [vmem:[#allocation2 + $0xa70] sm:$0xff]
    %v631 = vld [vmem:[#allocation2 + $0xa78] sm:$0xff]
    %v632 = vld [vmem:[#allocation2 + $0xa80] sm:$0xff]
    %v633 = vld [vmem:[#allocation2 + $0xa88] sm:$0xff]
    %v634 = vld [vmem:[#allocation2 + $0xa90] sm:$0xff]
    %v635 = vld [vmem:[#allocation2 + $0xa98] sm:$0xff]
    %v636 = vld [vmem:[#allocation2 + $0xaa0] sm:$0xff]
    %v637 = vld [vmem:[#allocation2 + $0xaa8] sm:$0xff]
    %v638 = vld [vmem:[#allocation2 + $0xab0] sm:$0xff]
    %v639 = vld [vmem:[#allocation2 + $0xab8] sm:$0xff]
    %v640 = vld [vmem:[#allocation2 + $0xac0] sm:$0xff]
    %v641 = vld [vmem:[#allocation2 + $0xac8] sm:$0xff]
    %v642 = vld [vmem:[#allocation2 + $0xad0] sm:$0xff]
    %v643 = vld [vmem:[#allocation2 + $0xad8] sm:$0xff]
    %v644 = vld [vmem:[#allocation2 + $0xae0] sm:$0xff]
    %v645 = vld [vmem:[#allocation2 + $0xae8] sm:$0xff]
    %v646 = vld [vmem:[#allocation2 + $0xaf0] sm:$0xff]
    %v647 = vld [vmem:[#allocation2 + $0xaf8] sm:$0xff]
    %v648 = vld [vmem:[#allocation2 + $0xb00] sm:$0xff]
    %v649 = vld [vmem:[#allocation2 + $0xb08] sm:$0xff]
    %v650 = vld [vmem:[#allocation2 + $0xb10] sm:$0xff]
    %v651 = vld [vmem:[#allocation2 + $0xb18] sm:$0xff]
    %v652 = vld [vmem:[#allocation2 + $0xb20] sm:$0xff]
    %v653 = vld [vmem:[#allocation2 + $0xb28] sm:$0xff]
    %v654 = vld [vmem:[#allocation2 + $0xb30] sm:$0xff]
    %v655 = vld [vmem:[#allocation2 + $0xb38] sm:$0xff]
    %v656 = vld [vmem:[#allocation2 + $0xb40] sm:$0xff]
    %v657 = vld [vmem:[#allocation2 + $0xb48] sm:$0xff]
    %v658 = vld [vmem:[#allocation2 + $0xb50] sm:$0xff]
    %v659 = vld [vmem:[#allocation2 + $0xb58] sm:$0xff]
    %v660 = vld [vmem:[#allocation2 + $0xb60] sm:$0xff]
    %v661 = vld [vmem:[#allocation2 + $0xb68] sm:$0xff]
    %v662 = vld [vmem:[#allocation2 + $0xb70] sm:$0xff]
    %v663 = vld [vmem:[#allocation2 + $0xb78] sm:$0xff]
    %v664 = vld [vmem:[#allocation2 + $0xb80] sm:$0xff]
    %v665 = vld [vmem:[#allocation2 + $0xb88] sm:$0xff]
    %v666 = vld [vmem:[#allocation2 + $0xb90] sm:$0xff]
    %v667 = vld [vmem:[#allocation2 + $0xb98] sm:$0xff]
    %v668 = vld [vmem:[#allocation2 + $0xba0] sm:$0xff]
    %v669 = vld [vmem:[#allocation2 + $0xba8] sm:$0xff]
    %v670 = vld [vmem:[#allocation2 + $0xbb0] sm:$0xff]
    %v671 = vld [vmem:[#allocation2 + $0xbb8] sm:$0xff]
    %v672 = vld [vmem:[#allocation2 + $0xbc0] sm:$0xff]
    %v673 = vld [vmem:[#allocation2 + $0xbc8] sm:$0xff]
    %v674 = vld [vmem:[#allocation2 + $0xbd0] sm:$0xff]
    %v675 = vld [vmem:[#allocation2 + $0xbd8] sm:$0xff]
    %v676 = vld [vmem:[#allocation2 + $0xbe0] sm:$0xff]
    %v677 = vld [vmem:[#allocation2 + $0xbe8] sm:$0xff]
    %v678 = vld [vmem:[#allocation2 + $0xbf0] sm:$0xff]
    %v679 = vld [vmem:[#allocation2 + $0xbf8] sm:$0xff]
    %v680 = vld [vmem:[#allocation2 + $0xc00] sm:$0xff]
    %v681 = vld [vmem:[#allocation2 + $0xc08] sm:$0xff]
    %v682 = vld [vmem:[#allocation2 + $0xc10] sm:$0xff]
    %v683 = vld [vmem:[#allocation2 + $0xc18] sm:$0xff]
    %v684 = vld [vmem:[#allocation2 + $0xc20] sm:$0xff]
    %v685 = vld [vmem:[#allocation2 + $0xc28] sm:$0xff]
    %v686 = vld [vmem:[#allocation2 + $0xc30] sm:$0xff]
    %v687 = vld [vmem:[#allocation2 + $0xc38] sm:$0xff]
    %v688 = vld [vmem:[#allocation2 + $0xc40] sm:$0xff]
    %v689 = vld [vmem:[#allocation2 + $0xc48] sm:$0xff]
    %v690 = vld [vmem:[#allocation2 + $0xc50] sm:$0xff]
    %v691 = vld [vmem:[#allocation2 + $0xc58] sm:$0xff]
    %v692 = vld [vmem:[#allocation2 + $0xc60] sm:$0xff]
    %v693 = vld [vmem:[#allocation2 + $0xc68] sm:$0xff]
    %v694 = vld [vmem:[#allocation2 + $0xc70] sm:$0xff]
    %v695 = vld [vmem:[#allocation2 + $0xc78] sm:$0xff]
    %v696 = vld [vmem:[#allocation2 + $0xc80] sm:$0xff]
    %v697 = vld [vmem:[#allocation2 + $0xc88] sm:$0xff]
    %v698 = vld [vmem:[#allocation2 + $0xc90] sm:$0xff]
    %v699 = vld [vmem:[#allocation2 + $0xc98] sm:$0xff]
    %v700 = vld [vmem:[#allocation2 + $0xca0] sm:$0xff]
    %v701 = vld [vmem:[#allocation2 + $0xca8] sm:$0xff]
    %v702 = vld [vmem:[#allocation2 + $0xcb0] sm:$0xff]
    %v703 = vld [vmem:[#allocation2 + $0xcb8] sm:$0xff]
    %v704 = vld [vmem:[#allocation2 + $0xcc0] sm:$0xff]
    %v705 = vld [vmem:[#allocation2 + $0xcc8] sm:$0xff]
    %v706 = vld [vmem:[#allocation2 + $0xcd0] sm:$0xff]
    %v707 = vld [vmem:[#allocation2 + $0xcd8] sm:$0xff]
    %v708 = vld [vmem:[#allocation2 + $0xce0] sm:$0xff]
    %v709 = vld [vmem:[#allocation2 + $0xce8] sm:$0xff]
    %v710 = vld [vmem:[#allocation2 + $0xcf0] sm:$0xff]
    %v711 = vld [vmem:[#allocation2 + $0xcf8] sm:$0xff]
    %v712 = vld [vmem:[#allocation2 + $0xd00] sm:$0xff]
    %v713 = vld [vmem:[#allocation2 + $0xd08] sm:$0xff]
    %v714 = vld [vmem:[#allocation2 + $0xd10] sm:$0xff]
    %v715 = vld [vmem:[#allocation2 + $0xd18] sm:$0xff]
    %v716 = vld [vmem:[#allocation2 + $0xd20] sm:$0xff]
    %v717 = vld [vmem:[#allocation2 + $0xd28] sm:$0xff]
    %v718 = vld [vmem:[#allocation2 + $0xd30] sm:$0xff]
    %v719 = vld [vmem:[#allocation2 + $0xd38] sm:$0xff]
    %v720 = vld [vmem:[#allocation2 + $0xd40] sm:$0xff]
    %v721 = vld [vmem:[#allocation2 + $0xd48] sm:$0xff]
    %v722 = vld [vmem:[#allocation2 + $0xd50] sm:$0xff]
    %v723 = vld [vmem:[#allocation2 + $0xd58] sm:$0xff]
    %v724 = vld [vmem:[#allocation2 + $0xd60] sm:$0xff]
    %v725 = vld [vmem:[#allocation2 + $0xd68] sm:$0xff]
    %v726 = vld [vmem:[#allocation2 + $0xd70] sm:$0xff]
    %v727 = vld [vmem:[#allocation2 + $0xd78] sm:$0xff]
    %v728 = vld [vmem:[#allocation2 + $0xd80] sm:$0xff]
    %v729 = vld [vmem:[#allocation2 + $0xd88] sm:$0xff]
    %v730 = vld [vmem:[#allocation2 + $0xd90] sm:$0xff]
    %v731 = vld [vmem:[#allocation2 + $0xd98] sm:$0xff]
    %v732 = vld [vmem:[#allocation2 + $0xda0] sm:$0xff]
    %v733 = vld [vmem:[#allocation2 + $0xda8] sm:$0xff]
    %v734 = vld [vmem:[#allocation2 + $0xdb0] sm:$0xff]
    %v735 = vld [vmem:[#allocation2 + $0xdb8] sm:$0xff]
    %v736 = vld [vmem:[#allocation2 + $0xdc0] sm:$0xff]
    %v737 = vld [vmem:[#allocation2 + $0xdc8] sm:$0xff]
    %v738 = vld [vmem:[#allocation2 + $0xdd0] sm:$0xff]
    %v739 = vld [vmem:[#allocation2 + $0xdd8] sm:$0xff]
    %v740 = vld [vmem:[#allocation2 + $0xde0] sm:$0xff]
    %v741 = vld [vmem:[#allocation2 + $0xde8] sm:$0xff]
    %v742 = vld [vmem:[#allocation2 + $0xdf0] sm:$0xff]
    %v743 = vld [vmem:[#allocation2 + $0xdf8] sm:$0xff]
    %v744 = vld [vmem:[#allocation2 + $0xe00] sm:$0xff]
    %v745 = vld [vmem:[#allocation2 + $0xe08] sm:$0xff]
    %v746 = vld [vmem:[#allocation2 + $0xe10] sm:$0xff]
    %v747 = vld [vmem:[#allocation2 + $0xe18] sm:$0xff]
    %v748 = vld [vmem:[#allocation2 + $0xe20] sm:$0xff]
    %v749 = vld [vmem:[#allocation2 + $0xe28] sm:$0xff]
    %v750 = vld [vmem:[#allocation2 + $0xe30] sm:$0xff]
    %v751 = vld [vmem:[#allocation2 + $0xe38] sm:$0xff]
    %v752 = vld [vmem:[#allocation2 + $0xe40] sm:$0xff]
    %v753 = vld [vmem:[#allocation2 + $0xe48] sm:$0xff]
    %v754 = vld [vmem:[#allocation2 + $0xe50] sm:$0xff]
    %v755 = vld [vmem:[#allocation2 + $0xe58] sm:$0xff]
    %v756 = vld [vmem:[#allocation2 + $0xe60] sm:$0xff]
    %v757 = vld [vmem:[#allocation2 + $0xe68] sm:$0xff]
    %v758 = vld [vmem:[#allocation2 + $0xe70] sm:$0xff]
    %v759 = vld [vmem:[#allocation2 + $0xe78] sm:$0xff]
    %v760 = vld [vmem:[#allocation2 + $0xe80] sm:$0xff]
    %v761 = vld [vmem:[#allocation2 + $0xe88] sm:$0xff]
    %v762 = vld [vmem:[#allocation2 + $0xe90] sm:$0xff]
    %v763 = vld [vmem:[#allocation2 + $0xe98] sm:$0xff]
    %v764 = vld [vmem:[#allocation2 + $0xea0] sm:$0xff]
    %v765 = vld [vmem:[#allocation2 + $0xea8] sm:$0xff]
    %v766 = vld [vmem:[#allocation2 + $0xeb0] sm:$0xff]
    %v767 = vld [vmem:[#allocation2 + $0xeb8] sm:$0xff]
    %v768 = vld [vmem:[#allocation2 + $0xec0] sm:$0xff]
    %v769 = vld [vmem:[#allocation2 + $0xec8] sm:$0xff]
    %v770 = vld [vmem:[#allocation2 + $0xed0] sm:$0xff]
    %v771 = vld [vmem:[#allocation2 + $0xed8] sm:$0xff]
    %v772 = vld [vmem:[#allocation2 + $0xee0] sm:$0xff]
    %v773 = vld [vmem:[#allocation2 + $0xee8] sm:$0xff]
    %v774 = vld [vmem:[#allocation2 + $0xef0] sm:$0xff]
    %v775 = vld [vmem:[#allocation2 + $0xef8] sm:$0xff]
    %v776 = vld [vmem:[#allocation2 + $0xf00] sm:$0xff]
    %v777 = vld [vmem:[#allocation2 + $0xf08] sm:$0xff]
    %v778 = vld [vmem:[#allocation2 + $0xf10] sm:$0xff]
    %v779 = vld [vmem:[#allocation2 + $0xf18] sm:$0xff]
    %v780 = vld [vmem:[#allocation2 + $0xf20] sm:$0xff]
    %v781 = vld [vmem:[#allocation2 + $0xf28] sm:$0xff]
    %v782 = vld [vmem:[#allocation2 + $0xf30] sm:$0xff]
    %v783 = vld [vmem:[#allocation2 + $0xf38] sm:$0xff]
    %v784 = vld [vmem:[#allocation2 + $0xf40] sm:$0xff]
    %v785 = vld [vmem:[#allocation2 + $0xf48] sm:$0xff]
    %v786 = vld [vmem:[#allocation2 + $0xf50] sm:$0xff]
    %v787 = vld [vmem:[#allocation2 + $0xf58] sm:$0xff]
    %v788 = vld [vmem:[#allocation2 + $0xf60] sm:$0xff]
    %v789 = vld [vmem:[#allocation2 + $0xf68] sm:$0xff]
    %v790 = vld [vmem:[#allocation2 + $0xf70] sm:$0xff]
    %v791 = vld [vmem:[#allocation2 + $0xf78] sm:$0xff]
    %v792 = vld [vmem:[#allocation2 + $0xf80] sm:$0xff]
    %v793 = vld [vmem:[#allocation2 + $0xf88] sm:$0xff]
    %v794 = vld [vmem:[#allocation2 + $0xf90] sm:$0xff]
    %v795 = vld [vmem:[#allocation2 + $0xf98] sm:$0xff]
    %v796 = vld [vmem:[#allocation2 + $0xfa0] sm:$0xff]
    %v797 = vld [vmem:[#allocation2 + $0xfa8] sm:$0xff]
    %v798 = vld [vmem:[#allocation2 + $0xfb0] sm:$0xff]
    %v799 = vld [vmem:[#allocation2 + $0xfb8] sm:$0xff]
    %v800 = vld [vmem:[#allocation2 + $0xfc0] sm:$0xff]
    %v801 = vld [vmem:[#allocation2 + $0xfc8] sm:$0xff]
    %v802 = vld [vmem:[#allocation2 + $0xfd0] sm:$0xff]
    %v803 = vld [vmem:[#allocation2 + $0xfd8] sm:$0xff]
    %v804 = vld [vmem:[#allocation2 + $0xfe0] sm:$0xff]
    %v805 = vld [vmem:[#allocation2 + $0xfe8] sm:$0xff]
    %v806 = vld [vmem:[#allocation2 + $0xff0] sm:$0xff]
    %v807 = vld [vmem:[#allocation2 + $0xff8] sm:$0xff]
    %v808 = vld [vmem:[#allocation2 + $0x1000] sm:$0xff]
    %v809 = vld [vmem:[#allocation2 + $0x1008] sm:$0xff]
    %v810 = vld [vmem:[#allocation2 + $0x1010] sm:$0xff]
    %v811 = vld [vmem:[#allocation2 + $0x1018] sm:$0xff]
    %v812 = vld [vmem:[#allocation2 + $0x1020] sm:$0xff]
    %v813 = vld [vmem:[#allocation2 + $0x1028] sm:$0xff]
    %v814 = vld [vmem:[#allocation2 + $0x1030] sm:$0xff]
    %v815 = vld [vmem:[#allocation2 + $0x1038] sm:$0xff]
    %v816 = vld [vmem:[#allocation2 + $0x1040] sm:$0xff]
    %v817 = vld [vmem:[#allocation2 + $0x1048] sm:$0xff]
    %v818 = vld [vmem:[#allocation2 + $0x1050] sm:$0xff]
    %v819 = vld [vmem:[#allocation2 + $0x1058] sm:$0xff]
    %v820 = vld [vmem:[#allocation2 + $0x1060] sm:$0xff]
    %v821 = vld [vmem:[#allocation2 + $0x1068] sm:$0xff]
    %v822 = vld [vmem:[#allocation2 + $0x1070] sm:$0xff]
    %v823 = vld [vmem:[#allocation2 + $0x1078] sm:$0xff]
    %v824 = vld [vmem:[#allocation2 + $0x1080] sm:$0xff]
    %v825 = vld [vmem:[#allocation2 + $0x1088] sm:$0xff]
    %v826 = vld [vmem:[#allocation2 + $0x1090] sm:$0xff]
    %v827 = vld [vmem:[#allocation2 + $0x1098] sm:$0xff]
    %v828 = vld [vmem:[#allocation2 + $0x10a0] sm:$0xff]
    %v829 = vld [vmem:[#allocation2 + $0x10a8] sm:$0xff]
    %v830 = vld [vmem:[#allocation2 + $0x10b0] sm:$0xff]
    %v831 = vld [vmem:[#allocation2 + $0x10b8] sm:$0xff]
    %v832 = vld [vmem:[#allocation2 + $0x10c0] sm:$0xff]
    %v833 = vld [vmem:[#allocation2 + $0x10c8] sm:$0xff]
    %v834 = vld [vmem:[#allocation2 + $0x10d0] sm:$0xff]
    %v835 = vld [vmem:[#allocation2 + $0x10d8] sm:$0xff]
    %v836 = vld [vmem:[#allocation2 + $0x10e0] sm:$0xff]
    %v837 = vld [vmem:[#allocation2 + $0x10e8] sm:$0xff]
    %v838 = vld [vmem:[#allocation2 + $0x10f0] sm:$0xff]
    %v839 = vld [vmem:[#allocation2 + $0x10f8] sm:$0xff]
    %v840 = vld [vmem:[#allocation2 + $0x1100] sm:$0xff]
    %v841 = vld [vmem:[#allocation2 + $0x1108] sm:$0xff]
    %v842 = vld [vmem:[#allocation2 + $0x1110] sm:$0xff]
    %v843 = vld [vmem:[#allocation2 + $0x1118] sm:$0xff]
    %v844 = vld [vmem:[#allocation2 + $0x1120] sm:$0xff]
    %v845 = vld [vmem:[#allocation2 + $0x1128] sm:$0xff]
    %v846 = vld [vmem:[#allocation2 + $0x1130] sm:$0xff]
    %v847 = vld [vmem:[#allocation2 + $0x1138] sm:$0xff]
    %v848 = vld [vmem:[#allocation2 + $0x1140] sm:$0xff]
    %v849 = vld [vmem:[#allocation2 + $0x1148] sm:$0xff]
    %v850 = vld [vmem:[#allocation2 + $0x1150] sm:$0xff]
    %v851 = vld [vmem:[#allocation2 + $0x1158] sm:$0xff]
    %v852 = vld [vmem:[#allocation2 + $0x1160] sm:$0xff]
    %v853 = vld [vmem:[#allocation2 + $0x1168] sm:$0xff]
    %v854 = vld [vmem:[#allocation2 + $0x1170] sm:$0xff]
    %v855 = vld [vmem:[#allocation2 + $0x1178] sm:$0xff]
    %v856 = vld [vmem:[#allocation2 + $0x1180] sm:$0xff]
    %v857 = vld [vmem:[#allocation2 + $0x1188] sm:$0xff]
    %v858 = vld [vmem:[#allocation2 + $0x1190] sm:$0xff]
    %v859 = vld [vmem:[#allocation2 + $0x1198] sm:$0xff]
    %v860 = vld [vmem:[#allocation2 + $0x11a0] sm:$0xff]
    %v861 = vld [vmem:[#allocation2 + $0x11a8] sm:$0xff]
    %v862 = vld [vmem:[#allocation2 + $0x11b0] sm:$0xff]
    %v863 = vld [vmem:[#allocation2 + $0x11b8] sm:$0xff]
    %v864 = vld [vmem:[#allocation2 + $0x11c0] sm:$0xff]
    %v865 = vld [vmem:[#allocation2 + $0x11c8] sm:$0xff]
    %v866 = vld [vmem:[#allocation2 + $0x11d0] sm:$0xff]
    %v867 = vld [vmem:[#allocation2 + $0x11d8] sm:$0xff]
    %v868 = vld [vmem:[#allocation2 + $0x11e0] sm:$0xff]
    %v869 = vld [vmem:[#allocation2 + $0x11e8] sm:$0xff]
    %v870 = vld [vmem:[#allocation2 + $0x11f0] sm:$0xff]
    %v871 = vld [vmem:[#allocation2 + $0x11f8] sm:$0xff]
    %v872 = vld [vmem:[#allocation2 + $0x1200] sm:$0xff]
    %v873 = vld [vmem:[#allocation2 + $0x1208] sm:$0xff]
    %v874 = vld [vmem:[#allocation2 + $0x1210] sm:$0xff]
    %v875 = vld [vmem:[#allocation2 + $0x1218] sm:$0xff]
    %v876 = vld [vmem:[#allocation2 + $0x1220] sm:$0xff]
    %v877 = vld [vmem:[#allocation2 + $0x1228] sm:$0xff]
    %v878 = vld [vmem:[#allocation2 + $0x1230] sm:$0xff]
    %v879 = vld [vmem:[#allocation2 + $0x1238] sm:$0xff]
    %v880 = vld [vmem:[#allocation2 + $0x1240] sm:$0xff]
    %v881 = vld [vmem:[#allocation2 + $0x1248] sm:$0xff]
    %v882 = vld [vmem:[#allocation2 + $0x1250] sm:$0xff]
    %v883 = vld [vmem:[#allocation2 + $0x1258] sm:$0xff]
    %v884 = vld [vmem:[#allocation2 + $0x1260] sm:$0xff]
    %v885 = vld [vmem:[#allocation2 + $0x1268] sm:$0xff]
    %v886 = vld [vmem:[#allocation2 + $0x1270] sm:$0xff]
    %v887 = vld [vmem:[#allocation2 + $0x1278] sm:$0xff]
    %v888 = vld [vmem:[#allocation2 + $0x1280] sm:$0xff]
    %v889 = vld [vmem:[#allocation2 + $0x1288] sm:$0xff]
    %v890 = vld [vmem:[#allocation2 + $0x1290] sm:$0xff]
    %v891 = vld [vmem:[#allocation2 + $0x1298] sm:$0xff]
    %v892 = vld [vmem:[#allocation2 + $0x12a0] sm:$0xff]
    %v893 = vld [vmem:[#allocation2 + $0x12a8] sm:$0xff]
    %v894 = vld [vmem:[#allocation2 + $0x12b0] sm:$0xff]
    %v895 = vld [vmem:[#allocation2 + $0x12b8] sm:$0xff]
    %v896 = vld [vmem:[#allocation2 + $0x12c0] sm:$0xff]
    %v897 = vld [vmem:[#allocation2 + $0x12c8] sm:$0xff]
    %v898 = vld [vmem:[#allocation2 + $0x12d0] sm:$0xff]
    %v899 = vld [vmem:[#allocation2 + $0x12d8] sm:$0xff]
    %v900 = vld [vmem:[#allocation2 + $0x12e0] sm:$0xff]
    %v901 = vld [vmem:[#allocation2 + $0x12e8] sm:$0xff]
    %v902 = vld [vmem:[#allocation2 + $0x12f0] sm:$0xff]
    %v903 = vld [vmem:[#allocation2 + $0x12f8] sm:$0xff]
    %v904 = vld [vmem:[#allocation2 + $0x1300] sm:$0xff]
    %v905 = vld [vmem:[#allocation2 + $0x1308] sm:$0xff]
    %v906 = vld [vmem:[#allocation2 + $0x1310] sm:$0xff]
    %v907 = vld [vmem:[#allocation2 + $0x1318] sm:$0xff]
    %v908 = vld [vmem:[#allocation2 + $0x1320] sm:$0xff]
    %v909 = vld [vmem:[#allocation2 + $0x1328] sm:$0xff]
    %v910 = vld [vmem:[#allocation2 + $0x1330] sm:$0xff]
    %v911 = vld [vmem:[#allocation2 + $0x1338] sm:$0xff]
    %v912 = vld [vmem:[#allocation2 + $0x1340] sm:$0xff]
    %v913 = vld [vmem:[#allocation2 + $0x1348] sm:$0xff]
    %v914 = vld [vmem:[#allocation2 + $0x1350] sm:$0xff]
    %v915 = vld [vmem:[#allocation2 + $0x1358] sm:$0xff]
    %v916 = vld [vmem:[#allocation2 + $0x1360] sm:$0xff]
    %v917 = vld [vmem:[#allocation2 + $0x1368] sm:$0xff]
    %v918 = vld [vmem:[#allocation2 + $0x1370] sm:$0xff]
    %v919 = vld [vmem:[#allocation2 + $0x1378] sm:$0xff]
    %v920 = vld [vmem:[#allocation2 + $0x1380] sm:$0xff]
    %v921 = vld [vmem:[#allocation2 + $0x1388] sm:$0xff]
    %v922 = vld [vmem:[#allocation2 + $0x1390] sm:$0xff]
    %v923 = vld [vmem:[#allocation2 + $0x1398] sm:$0xff]
    %v924 = vld [vmem:[#allocation2 + $0x13a0] sm:$0xff]
    %v925 = vld [vmem:[#allocation2 + $0x13a8] sm:$0xff]
    %v926 = vld [vmem:[#allocation2 + $0x13b0] sm:$0xff]
    %v927 = vld [vmem:[#allocation2 + $0x13b8] sm:$0xff]
    %v928 = vld [vmem:[#allocation2 + $0x13c0] sm:$0xff]
    %v929 = vld [vmem:[#allocation2 + $0x13c8] sm:$0xff]
    %v930 = vld [vmem:[#allocation2 + $0x13d0] sm:$0xff]
    %v931 = vld [vmem:[#allocation2 + $0x13d8] sm:$0xff]
    %v932 = vld [vmem:[#allocation2 + $0x13e0] sm:$0xff]
    %v933 = vld [vmem:[#allocation2 + $0x13e8] sm:$0xff]
    %v934 = vld [vmem:[#allocation2 + $0x13f0] sm:$0xff]
    %v935 = vld [vmem:[#allocation2 + $0x13f8] sm:$0xff]
    %v936 = vld [vmem:[#allocation2 + $0x1400] sm:$0xff]
    %v937 = vld [vmem:[#allocation2 + $0x1408] sm:$0xff]
    %v938 = vld [vmem:[#allocation2 + $0x1410] sm:$0xff]
    %v939 = vld [vmem:[#allocation2 + $0x1418] sm:$0xff]
    %v940 = vld [vmem:[#allocation2 + $0x1420] sm:$0xff]
    %v941 = vld [vmem:[#allocation2 + $0x1428] sm:$0xff]
    %v942 = vld [vmem:[#allocation2 + $0x1430] sm:$0xff]
    %v943 = vld [vmem:[#allocation2 + $0x1438] sm:$0xff]
    %v944 = vld [vmem:[#allocation2 + $0x1440] sm:$0xff]
    %v945 = vld [vmem:[#allocation2 + $0x1448] sm:$0xff]
    %v946 = vld [vmem:[#allocation2 + $0x1450] sm:$0xff]
    %v947 = vld [vmem:[#allocation2 + $0x1458] sm:$0xff]
    %v948 = vld [vmem:[#allocation2 + $0x1460] sm:$0xff]
    %v949 = vld [vmem:[#allocation2 + $0x1468] sm:$0xff]
    %v950 = vld [vmem:[#allocation2 + $0x1470] sm:$0xff]
    %v951 = vld [vmem:[#allocation2 + $0x1478] sm:$0xff]
    %v952 = vld [vmem:[#allocation2 + $0x1480] sm:$0xff]
    %v953 = vld [vmem:[#allocation2 + $0x1488] sm:$0xff]
    %v954 = vld [vmem:[#allocation2 + $0x1490] sm:$0xff]
    %v955 = vld [vmem:[#allocation2 + $0x1498] sm:$0xff]
    %v956 = vld [vmem:[#allocation2 + $0x14a0] sm:$0xff]
    %v957 = vld [vmem:[#allocation2 + $0x14a8] sm:$0xff]
    %v958 = vld [vmem:[#allocation2 + $0x14b0] sm:$0xff]
    %v959 = vld [vmem:[#allocation2 + $0x14b8] sm:$0xff]
    %v960 = vld [vmem:[#allocation2 + $0x14c0] sm:$0xff]
    %v961 = vld [vmem:[#allocation2 + $0x14c8] sm:$0xff]
    %v962 = vld [vmem:[#allocation2 + $0x14d0] sm:$0xff]
    %v963 = vld [vmem:[#allocation2 + $0x14d8] sm:$0xff]
    %v964 = vld [vmem:[#allocation2 + $0x14e0] sm:$0xff]
    %v965 = vld [vmem:[#allocation2 + $0x14e8] sm:$0xff]
    %v966 = vld [vmem:[#allocation2 + $0x14f0] sm:$0xff]
    %v967 = vld [vmem:[#allocation2 + $0x14f8] sm:$0xff]
    %v968 = vld [vmem:[#allocation2 + $0x1500] sm:$0xff]
    %v969 = vld [vmem:[#allocation2 + $0x1508] sm:$0xff]
    %v970 = vld [vmem:[#allocation2 + $0x1510] sm:$0xff]
    %v971 = vld [vmem:[#allocation2 + $0x1518] sm:$0xff]
    %v972 = vld [vmem:[#allocation2 + $0x1520] sm:$0xff]
    %v973 = vld [vmem:[#allocation2 + $0x1528] sm:$0xff]
    %v974 = vld [vmem:[#allocation2 + $0x1530] sm:$0xff]
    %v975 = vld [vmem:[#allocation2 + $0x1538] sm:$0xff]
    %v976 = vld [vmem:[#allocation2 + $0x1540] sm:$0xff]
    %v977 = vld [vmem:[#allocation2 + $0x1548] sm:$0xff]
    %v978 = vld [vmem:[#allocation2 + $0x1550] sm:$0xff]
    %v979 = vld [vmem:[#allocation2 + $0x1558] sm:$0xff]
    %v980 = vld [vmem:[#allocation2 + $0x1560] sm:$0xff]
    %v981 = vld [vmem:[#allocation2 + $0x1568] sm:$0xff]
    %v982 = vld [vmem:[#allocation2 + $0x1570] sm:$0xff]
    %v983 = vld [vmem:[#allocation2 + $0x1578] sm:$0xff]
    %v984 = vld [vmem:[#allocation2 + $0x1580] sm:$0xff]
    %v985 = vld [vmem:[#allocation2 + $0x1588] sm:$0xff]
    %v986 = vld [vmem:[#allocation2 + $0x1590] sm:$0xff]
    %v987 = vld [vmem:[#allocation2 + $0x1598] sm:$0xff]
    %v988 = vld [vmem:[#allocation2 + $0x15a0] sm:$0xff]
    %v989 = vld [vmem:[#allocation2 + $0x15a8] sm:$0xff]
    %v990 = vld [vmem:[#allocation2 + $0x15b0] sm:$0xff]
    %v991 = vld [vmem:[#allocation2 + $0x15b8] sm:$0xff]
    %v992 = vld [vmem:[#allocation2 + $0x15c0] sm:$0xff]
    %v993 = vld [vmem:[#allocation2 + $0x15c8] sm:$0xff]
    %v994 = vld [vmem:[#allocation2 + $0x15d0] sm:$0xff]
    %v995 = vld [vmem:[#allocation2 + $0x15d8] sm:$0xff]
    %v996 = vld [vmem:[#allocation2 + $0x15e0] sm:$0xff]
    %v997 = vld [vmem:[#allocation2 + $0x15e8] sm:$0xff]
    %v998 = vld [vmem:[#allocation2 + $0x15f0] sm:$0xff]
    %v999 = vld [vmem:[#allocation2 + $0x15f8] sm:$0xff]
    %v1000 = vld [vmem:[#allocation2 + $0x1600] sm:$0xff]
    %v1001 = vld [vmem:[#allocation2 + $0x1608] sm:$0xff]
    %v1002 = vld [vmem:[#allocation2 + $0x1610] sm:$0xff]
    %v1003 = vld [vmem:[#allocation2 + $0x1618] sm:$0xff]
    %v1004 = vld [vmem:[#allocation2 + $0x1620] sm:$0xff]
    %v1005 = vld [vmem:[#allocation2 + $0x1628] sm:$0xff]
    %v1006 = vld [vmem:[#allocation2 + $0x1630] sm:$0xff]
    %v1007 = vld [vmem:[#allocation2 + $0x1638] sm:$0xff]
    %v1008 = vld [vmem:[#allocation2 + $0x1640] sm:$0xff]
    %v1009 = vld [vmem:[#allocation2 + $0x1648] sm:$0xff]
    %v1010 = vld [vmem:[#allocation2 + $0x1650] sm:$0xff]
    %v1011 = vld [vmem:[#allocation2 + $0x1658] sm:$0xff]
    %v1012 = vld [vmem:[#allocation2 + $0x1660] sm:$0xff]
    %v1013 = vld [vmem:[#allocation2 + $0x1668] sm:$0xff]
    %v1014 = vld [vmem:[#allocation2 + $0x1670] sm:$0xff]
    %v1015 = vld [vmem:[#allocation2 + $0x1678] sm:$0xff]
    %v1016 = vld [vmem:[#allocation2 + $0x1680] sm:$0xff]
    %v1017 = vld [vmem:[#allocation2 + $0x1688] sm:$0xff]
    %v1018 = vld [vmem:[#allocation2 + $0x1690] sm:$0xff]
    %v1019 = vld [vmem:[#allocation2 + $0x1698] sm:$0xff]
    %v1020 = vld [vmem:[#allocation2 + $0x16a0] sm:$0xff]
    %v1021 = vld [vmem:[#allocation2 + $0x16a8] sm:$0xff]
    %v1022 = vld [vmem:[#allocation2 + $0x16b0] sm:$0xff]
    %v1023 = vld [vmem:[#allocation2 + $0x16b8] sm:$0xff]
    %v1024 = vld [vmem:[#allocation2 + $0x16c0] sm:$0xff]
    %v1025 = vld [vmem:[#allocation2 + $0x16c8] sm:$0xff]
    %v1026 = vld [vmem:[#allocation2 + $0x16d0] sm:$0xff]
    %v1027 = vld [vmem:[#allocation2 + $0x16d8] sm:$0xff]
    %v1028 = vld [vmem:[#allocation2 + $0x16e0] sm:$0xff]
    %v1029 = vld [vmem:[#allocation2 + $0x16e8] sm:$0xff]
    %v1030 = vld [vmem:[#allocation2 + $0x16f0] sm:$0xff]
    %v1031 = vld [vmem:[#allocation2 + $0x16f8] sm:$0xff]
    %v1032 = vld [vmem:[#allocation2 + $0x1700] sm:$0xff]
    %v1033 = vld [vmem:[#allocation2 + $0x1708] sm:$0xff]
    %v1034 = vld [vmem:[#allocation2 + $0x1710] sm:$0xff]
    %v1035 = vld [vmem:[#allocation2 + $0x1718] sm:$0xff]
    %v1036 = vld [vmem:[#allocation2 + $0x1720] sm:$0xff]
    %v1037 = vld [vmem:[#allocation2 + $0x1728] sm:$0xff]
    %v1038 = vld [vmem:[#allocation2 + $0x1730] sm:$0xff]
    %v1039 = vld [vmem:[#allocation2 + $0x1738] sm:$0xff]
    %v1040 = vld [vmem:[#allocation2 + $0x1740] sm:$0xff]
    %v1041 = vld [vmem:[#allocation2 + $0x1748] sm:$0xff]
    %v1042 = vld [vmem:[#allocation2 + $0x1750] sm:$0xff]
    %v1043 = vld [vmem:[#allocation2 + $0x1758] sm:$0xff]
    %v1044 = vld [vmem:[#allocation2 + $0x1760] sm:$0xff]
    %v1045 = vld [vmem:[#allocation2 + $0x1768] sm:$0xff]
    %v1046 = vld [vmem:[#allocation2 + $0x1770] sm:$0xff]
    %v1047 = vld [vmem:[#allocation2 + $0x1778] sm:$0xff]
    %v1048 = vld [vmem:[#allocation2 + $0x1780] sm:$0xff]
    %v1049 = vld [vmem:[#allocation2 + $0x1788] sm:$0xff]
    %v1050 = vld [vmem:[#allocation2 + $0x1790] sm:$0xff]
    %v1051 = vld [vmem:[#allocation2 + $0x1798] sm:$0xff]
    %v1052 = vld [vmem:[#allocation2 + $0x17a0] sm:$0xff]
    %v1053 = vld [vmem:[#allocation2 + $0x17a8] sm:$0xff]
    %v1054 = vld [vmem:[#allocation2 + $0x17b0] sm:$0xff]
    %v1055 = vld [vmem:[#allocation2 + $0x17b8] sm:$0xff]
    %v1056 = vld [vmem:[#allocation2 + $0x17c0] sm:$0xff]
    %v1057 = vld [vmem:[#allocation2 + $0x17c8] sm:$0xff]
    %v1058 = vld [vmem:[#allocation2 + $0x17d0] sm:$0xff]
    %v1059 = vld [vmem:[#allocation2 + $0x17d8] sm:$0xff]
    %v1060 = vld [vmem:[#allocation2 + $0x17e0] sm:$0xff]
    %v1061 = vld [vmem:[#allocation2 + $0x17e8] sm:$0xff]
    %v1062 = vld [vmem:[#allocation2 + $0x17f0] sm:$0xff]
    %v1063 = vld [vmem:[#allocation2 + $0x17f8] sm:$0xff]
    %v1064 = vld [vmem:[#allocation4] sm:$0xf]
    %v1066 = vlaneseq
    %v1067 = vshrl.u32 %v1066, 7
    %v1068 = vsub.s32 0, %v1067
    %v1069 = vrot.slane %v1064, %v1068
    %v1070 = vlaneseq
    %v1071 = vshrl.u32 %v1070, 7
    %v1072 = vsub.s32 1, %v1071
    %v1073 = vrot.slane %v1064, %v1072
    %v1074 = vlaneseq
    %v1075 = vshrl.u32 %v1074, 7
    %v1076 = vsub.s32 2, %v1075
    %v1077 = vrot.slane %v1064, %v1076
    %v1078 = vlaneseq
    %v1079 = vshrl.u32 %v1078, 7
    %v1080 = vsub.s32 3, %v1079
    %v1081 = vrot.slane %v1064, %v1080
    %v1854 = vunpack.c.l.b16 %v296
    %v1855 = vunpack.c.h.b16 %v296
    %v1856 = vunpack.c.l.b16 %v297
    %v1857 = vunpack.c.h.b16 %v297
    %v1858 = vunpack.c.l.b16 %v298
    %v1859 = vunpack.c.h.b16 %v298
    %v1860 = vunpack.c.l.b16 %v299
    %v1861 = vunpack.c.h.b16 %v299
    %v1862 = vunpack.c.l.b16 %v300
    %v1863 = vunpack.c.h.b16 %v300
    %v1864 = vunpack.c.l.b16 %v301
    %v1865 = vunpack.c.h.b16 %v301
    %v1866 = vunpack.c.l.b16 %v302
    %v1867 = vunpack.c.h.b16 %v302
    %v1868 = vunpack.c.l.b16 %v303
    %v1869 = vunpack.c.h.b16 %v303
    %v1870 = vunpack.c.l.b16 %v304
    %v1871 = vunpack.c.h.b16 %v304
    %v1872 = vunpack.c.l.b16 %v305
    %v1873 = vunpack.c.h.b16 %v305
    %v1874 = vunpack.c.l.b16 %v306
    %v1875 = vunpack.c.h.b16 %v306
    %v1876 = vunpack.c.l.b16 %v307
    %v1877 = vunpack.c.h.b16 %v307
    %v1878 = vunpack.c.l.b16 %v308
    %v1879 = vunpack.c.h.b16 %v308
    %v1880 = vunpack.c.l.b16 %v309
    %v1881 = vunpack.c.h.b16 %v309
    %v1882 = vunpack.c.l.b16 %v310
    %v1883 = vunpack.c.h.b16 %v310
    %v1884 = vunpack.c.l.b16 %v311
    %v1885 = vunpack.c.h.b16 %v311
    %v1886 = vunpack.c.l.b16 %v312
    %v1887 = vunpack.c.h.b16 %v312
    %v1888 = vunpack.c.l.b16 %v313
    %v1889 = vunpack.c.h.b16 %v313
    %v1890 = vunpack.c.l.b16 %v314
    %v1891 = vunpack.c.h.b16 %v314
    %v1892 = vunpack.c.l.b16 %v315
    %v1893 = vunpack.c.h.b16 %v315
    %v1894 = vunpack.c.l.b16 %v316
    %v1895 = vunpack.c.h.b16 %v316
    %v1896 = vunpack.c.l.b16 %v317
    %v1897 = vunpack.c.h.b16 %v317
    %v1898 = vunpack.c.l.b16 %v318
    %v1899 = vunpack.c.h.b16 %v318
    %v1900 = vunpack.c.l.b16 %v319
    %v1901 = vunpack.c.h.b16 %v319
    %v1902 = vunpack.c.l.b16 %v320
    %v1903 = vunpack.c.h.b16 %v320
    %v1904 = vunpack.c.l.b16 %v321
    %v1905 = vunpack.c.h.b16 %v321
    %v1906 = vunpack.c.l.b16 %v322
    %v1907 = vunpack.c.h.b16 %v322
    %v1908 = vunpack.c.l.b16 %v323
    %v1909 = vunpack.c.h.b16 %v323
    %v1910 = vunpack.c.l.b16 %v324
    %v1911 = vunpack.c.h.b16 %v324
    %v1912 = vunpack.c.l.b16 %v325
    %v1913 = vunpack.c.h.b16 %v325
    %v1914 = vunpack.c.l.b16 %v326
    %v1915 = vunpack.c.h.b16 %v326
    %v1916 = vunpack.c.l.b16 %v327
    %v1917 = vunpack.c.h.b16 %v327
    %v1918 = vunpack.c.l.b16 %v328
    %v1919 = vunpack.c.h.b16 %v328
    %v1920 = vunpack.c.l.b16 %v329
    %v1921 = vunpack.c.h.b16 %v329
    %v1922 = vunpack.c.l.b16 %v330
    %v1923 = vunpack.c.h.b16 %v330
    %v1924 = vunpack.c.l.b16 %v331
    %v1925 = vunpack.c.h.b16 %v331
    %v1926 = vunpack.c.l.b16 %v332
    %v1927 = vunpack.c.h.b16 %v332
    %v1928 = vunpack.c.l.b16 %v333
    %v1929 = vunpack.c.h.b16 %v333
    %v1930 = vunpack.c.l.b16 %v334
    %v1931 = vunpack.c.h.b16 %v334
    %v1932 = vunpack.c.l.b16 %v335
    %v1933 = vunpack.c.h.b16 %v335
    %v1934 = vunpack.c.l.b16 %v336
    %v1935 = vunpack.c.h.b16 %v336
    %v1936 = vunpack.c.l.b16 %v337
    %v1937 = vunpack.c.h.b16 %v337
    %v1938 = vunpack.c.l.b16 %v338
    %v1939 = vunpack.c.h.b16 %v338
    %v1940 = vunpack.c.l.b16 %v339
    %v1941 = vunpack.c.h.b16 %v339
    %v1942 = vunpack.c.l.b16 %v340
    %v1943 = vunpack.c.h.b16 %v340
    %v1944 = vunpack.c.l.b16 %v341
    %v1945 = vunpack.c.h.b16 %v341
    %v1946 = vunpack.c.l.b16 %v342
    %v1947 = vunpack.c.h.b16 %v342
    %v1948 = vunpack.c.l.b16 %v343
    %v1949 = vunpack.c.h.b16 %v343
    %v1950 = vunpack.c.l.b16 %v344
    %v1951 = vunpack.c.h.b16 %v344
    %v1952 = vunpack.c.l.b16 %v345
    %v1953 = vunpack.c.h.b16 %v345
    %v1954 = vunpack.c.l.b16 %v346
    %v1955 = vunpack.c.h.b16 %v346
    %v1956 = vunpack.c.l.b16 %v347
    %v1957 = vunpack.c.h.b16 %v347
    %v1958 = vunpack.c.l.b16 %v348
    %v1959 = vunpack.c.h.b16 %v348
    %v1960 = vunpack.c.l.b16 %v349
    %v1961 = vunpack.c.h.b16 %v349
    %v1962 = vunpack.c.l.b16 %v350
    %v1963 = vunpack.c.h.b16 %v350
    %v1964 = vunpack.c.l.b16 %v351
    %v1965 = vunpack.c.h.b16 %v351
    %v1966 = vunpack.c.l.b16 %v352
    %v1967 = vunpack.c.h.b16 %v352
    %v1968 = vunpack.c.l.b16 %v353
    %v1969 = vunpack.c.h.b16 %v353
    %v1970 = vunpack.c.l.b16 %v354
    %v1971 = vunpack.c.h.b16 %v354
    %v1972 = vunpack.c.l.b16 %v355
    %v1973 = vunpack.c.h.b16 %v355
    %v1974 = vunpack.c.l.b16 %v356
    %v1975 = vunpack.c.h.b16 %v356
    %v1976 = vunpack.c.l.b16 %v357
    %v1977 = vunpack.c.h.b16 %v357
    %v1978 = vunpack.c.l.b16 %v358
    %v1979 = vunpack.c.h.b16 %v358
    %v1980 = vunpack.c.l.b16 %v359
    %v1981 = vunpack.c.h.b16 %v359
    %v1982 = vunpack.c.l.b16 %v360
    %v1983 = vunpack.c.h.b16 %v360
    %v1984 = vunpack.c.l.b16 %v361
    %v1985 = vunpack.c.h.b16 %v361
    %v1986 = vunpack.c.l.b16 %v362
    %v1987 = vunpack.c.h.b16 %v362
    %v1988 = vunpack.c.l.b16 %v363
    %v1989 = vunpack.c.h.b16 %v363
    %v1990 = vunpack.c.l.b16 %v364
    %v1991 = vunpack.c.h.b16 %v364
    %v1992 = vunpack.c.l.b16 %v365
    %v1993 = vunpack.c.h.b16 %v365
    %v1994 = vunpack.c.l.b16 %v366
    %v1995 = vunpack.c.h.b16 %v366
    %v1996 = vunpack.c.l.b16 %v367
    %v1997 = vunpack.c.h.b16 %v367
    %v1998 = vunpack.c.l.b16 %v368
    %v1999 = vunpack.c.h.b16 %v368
    %v2000 = vunpack.c.l.b16 %v369
    %v2001 = vunpack.c.h.b16 %v369
    %v2002 = vunpack.c.l.b16 %v370
    %v2003 = vunpack.c.h.b16 %v370
    %v2004 = vunpack.c.l.b16 %v371
    %v2005 = vunpack.c.h.b16 %v371
    %v2006 = vunpack.c.l.b16 %v372
    %v2007 = vunpack.c.h.b16 %v372
    %v2008 = vunpack.c.l.b16 %v373
    %v2009 = vunpack.c.h.b16 %v373
    %v2010 = vunpack.c.l.b16 %v374
    %v2011 = vunpack.c.h.b16 %v374
    %v2012 = vunpack.c.l.b16 %v375
    %v2013 = vunpack.c.h.b16 %v375
    %v2014 = vunpack.c.l.b16 %v376
    %v2015 = vunpack.c.h.b16 %v376
    %v2016 = vunpack.c.l.b16 %v377
    %v2017 = vunpack.c.h.b16 %v377
    %v2018 = vunpack.c.l.b16 %v378
    %v2019 = vunpack.c.h.b16 %v378
    %v2020 = vunpack.c.l.b16 %v379
    %v2021 = vunpack.c.h.b16 %v379
    %v2022 = vunpack.c.l.b16 %v380
    %v2023 = vunpack.c.h.b16 %v380
    %v2024 = vunpack.c.l.b16 %v381
    %v2025 = vunpack.c.h.b16 %v381
    %v2026 = vunpack.c.l.b16 %v382
    %v2027 = vunpack.c.h.b16 %v382
    %v2028 = vunpack.c.l.b16 %v383
    %v2029 = vunpack.c.h.b16 %v383
    %v2030 = vunpack.c.l.b16 %v384
    %v2031 = vunpack.c.h.b16 %v384
    %v2032 = vunpack.c.l.b16 %v385
    %v2033 = vunpack.c.h.b16 %v385
    %v2034 = vunpack.c.l.b16 %v386
    %v2035 = vunpack.c.h.b16 %v386
    %v2036 = vunpack.c.l.b16 %v387
    %v2037 = vunpack.c.h.b16 %v387
    %v2038 = vunpack.c.l.b16 %v388
    %v2039 = vunpack.c.h.b16 %v388
    %v2040 = vunpack.c.l.b16 %v389
    %v2041 = vunpack.c.h.b16 %v389
    %v2042 = vunpack.c.l.b16 %v390
    %v2043 = vunpack.c.h.b16 %v390
    %v2044 = vunpack.c.l.b16 %v391
    %v2045 = vunpack.c.h.b16 %v391
    %v2046 = vunpack.c.l.b16 %v392
    %v2047 = vunpack.c.h.b16 %v392
    %v2048 = vunpack.c.l.b16 %v393
    %v2049 = vunpack.c.h.b16 %v393
    %v2050 = vunpack.c.l.b16 %v394
    %v2051 = vunpack.c.h.b16 %v394
    %v2052 = vunpack.c.l.b16 %v395
    %v2053 = vunpack.c.h.b16 %v395
    %v2054 = vunpack.c.l.b16 %v396
    %v2055 = vunpack.c.h.b16 %v396
    %v2056 = vunpack.c.l.b16 %v397
    %v2057 = vunpack.c.h.b16 %v397
    %v2058 = vunpack.c.l.b16 %v398
    %v2059 = vunpack.c.h.b16 %v398
    %v2060 = vunpack.c.l.b16 %v399
    %v2061 = vunpack.c.h.b16 %v399
    %v2062 = vunpack.c.l.b16 %v400
    %v2063 = vunpack.c.h.b16 %v400
    %v2064 = vunpack.c.l.b16 %v401
    %v2065 = vunpack.c.h.b16 %v401
    %v2066 = vunpack.c.l.b16 %v402
    %v2067 = vunpack.c.h.b16 %v402
    %v2068 = vunpack.c.l.b16 %v403
    %v2069 = vunpack.c.h.b16 %v403
    %v2070 = vunpack.c.l.b16 %v404
    %v2071 = vunpack.c.h.b16 %v404
    %v2072 = vunpack.c.l.b16 %v405
    %v2073 = vunpack.c.h.b16 %v405
    %v2074 = vunpack.c.l.b16 %v406
    %v2075 = vunpack.c.h.b16 %v406
    %v2076 = vunpack.c.l.b16 %v407
    %v2077 = vunpack.c.h.b16 %v407
    %v2078 = vunpack.c.l.b16 %v408
    %v2079 = vunpack.c.h.b16 %v408
    %v2080 = vunpack.c.l.b16 %v409
    %v2081 = vunpack.c.h.b16 %v409
    %v2082 = vunpack.c.l.b16 %v410
    %v2083 = vunpack.c.h.b16 %v410
    %v2084 = vunpack.c.l.b16 %v411
    %v2085 = vunpack.c.h.b16 %v411
    %v2086 = vunpack.c.l.b16 %v412
    %v2087 = vunpack.c.h.b16 %v412
    %v2088 = vunpack.c.l.b16 %v413
    %v2089 = vunpack.c.h.b16 %v413
    %v2090 = vunpack.c.l.b16 %v414
    %v2091 = vunpack.c.h.b16 %v414
    %v2092 = vunpack.c.l.b16 %v415
    %v2093 = vunpack.c.h.b16 %v415
    %v2094 = vunpack.c.l.b16 %v416
    %v2095 = vunpack.c.h.b16 %v416
    %v2096 = vunpack.c.l.b16 %v417
    %v2097 = vunpack.c.h.b16 %v417
    %v2098 = vunpack.c.l.b16 %v418
    %v2099 = vunpack.c.h.b16 %v418
    %v2100 = vunpack.c.l.b16 %v419
    %v2101 = vunpack.c.h.b16 %v419
    %v2102 = vunpack.c.l.b16 %v420
    %v2103 = vunpack.c.h.b16 %v420
    %v2104 = vunpack.c.l.b16 %v421
    %v2105 = vunpack.c.h.b16 %v421
    %v2106 = vunpack.c.l.b16 %v422
    %v2107 = vunpack.c.h.b16 %v422
    %v2108 = vunpack.c.l.b16 %v423
    %v2109 = vunpack.c.h.b16 %v423
    %v2110 = vunpack.c.l.b16 %v424
    %v2111 = vunpack.c.h.b16 %v424
    %v2112 = vunpack.c.l.b16 %v425
    %v2113 = vunpack.c.h.b16 %v425
    %v2114 = vunpack.c.l.b16 %v426
    %v2115 = vunpack.c.h.b16 %v426
    %v2116 = vunpack.c.l.b16 %v427
    %v2117 = vunpack.c.h.b16 %v427
    %v2118 = vunpack.c.l.b16 %v428
    %v2119 = vunpack.c.h.b16 %v428
    %v2120 = vunpack.c.l.b16 %v429
    %v2121 = vunpack.c.h.b16 %v429
    %v2122 = vunpack.c.l.b16 %v430
    %v2123 = vunpack.c.h.b16 %v430
    %v2124 = vunpack.c.l.b16 %v431
    %v2125 = vunpack.c.h.b16 %v431
    %v2126 = vunpack.c.l.b16 %v432
    %v2127 = vunpack.c.h.b16 %v432
    %v2128 = vunpack.c.l.b16 %v433
    %v2129 = vunpack.c.h.b16 %v433
    %v2130 = vunpack.c.l.b16 %v434
    %v2131 = vunpack.c.h.b16 %v434
    %v2132 = vunpack.c.l.b16 %v435
    %v2133 = vunpack.c.h.b16 %v435
    %v2134 = vunpack.c.l.b16 %v436
    %v2135 = vunpack.c.h.b16 %v436
    %v2136 = vunpack.c.l.b16 %v437
    %v2137 = vunpack.c.h.b16 %v437
    %v2138 = vunpack.c.l.b16 %v438
    %v2139 = vunpack.c.h.b16 %v438
    %v2140 = vunpack.c.l.b16 %v439
    %v2141 = vunpack.c.h.b16 %v439
    %v2142 = vunpack.c.l.b16 %v440
    %v2143 = vunpack.c.h.b16 %v440
    %v2144 = vunpack.c.l.b16 %v441
    %v2145 = vunpack.c.h.b16 %v441
    %v2146 = vunpack.c.l.b16 %v442
    %v2147 = vunpack.c.h.b16 %v442
    %v2148 = vunpack.c.l.b16 %v443
    %v2149 = vunpack.c.h.b16 %v443
    %v2150 = vunpack.c.l.b16 %v444
    %v2151 = vunpack.c.h.b16 %v444
    %v2152 = vunpack.c.l.b16 %v445
    %v2153 = vunpack.c.h.b16 %v445
    %v2154 = vunpack.c.l.b16 %v446
    %v2155 = vunpack.c.h.b16 %v446
    %v2156 = vunpack.c.l.b16 %v447
    %v2157 = vunpack.c.h.b16 %v447
    %v2158 = vunpack.c.l.b16 %v448
    %v2159 = vunpack.c.h.b16 %v448
    %v2160 = vunpack.c.l.b16 %v449
    %v2161 = vunpack.c.h.b16 %v449
    %v2162 = vunpack.c.l.b16 %v450
    %v2163 = vunpack.c.h.b16 %v450
    %v2164 = vunpack.c.l.b16 %v451
    %v2165 = vunpack.c.h.b16 %v451
    %v2166 = vunpack.c.l.b16 %v452
    %v2167 = vunpack.c.h.b16 %v452
    %v2168 = vunpack.c.l.b16 %v453
    %v2169 = vunpack.c.h.b16 %v453
    %v2170 = vunpack.c.l.b16 %v454
    %v2171 = vunpack.c.h.b16 %v454
    %v2172 = vunpack.c.l.b16 %v455
    %v2173 = vunpack.c.h.b16 %v455
    %v2174 = vunpack.c.l.b16 %v456
    %v2175 = vunpack.c.h.b16 %v456
    %v2176 = vunpack.c.l.b16 %v457
    %v2177 = vunpack.c.h.b16 %v457
    %v2178 = vunpack.c.l.b16 %v458
    %v2179 = vunpack.c.h.b16 %v458
    %v2180 = vunpack.c.l.b16 %v459
    %v2181 = vunpack.c.h.b16 %v459
    %v2182 = vunpack.c.l.b16 %v460
    %v2183 = vunpack.c.h.b16 %v460
    %v2184 = vunpack.c.l.b16 %v461
    %v2185 = vunpack.c.h.b16 %v461
    %v2186 = vunpack.c.l.b16 %v462
    %v2187 = vunpack.c.h.b16 %v462
    %v2188 = vunpack.c.l.b16 %v463
    %v2189 = vunpack.c.h.b16 %v463
    %v2190 = vunpack.c.l.b16 %v464
    %v2191 = vunpack.c.h.b16 %v464
    %v2192 = vunpack.c.l.b16 %v465
    %v2193 = vunpack.c.h.b16 %v465
    %v2194 = vunpack.c.l.b16 %v466
    %v2195 = vunpack.c.h.b16 %v466
    %v2196 = vunpack.c.l.b16 %v467
    %v2197 = vunpack.c.h.b16 %v467
    %v2198 = vunpack.c.l.b16 %v468
    %v2199 = vunpack.c.h.b16 %v468
    %v2200 = vunpack.c.l.b16 %v469
    %v2201 = vunpack.c.h.b16 %v469
    %v2202 = vunpack.c.l.b16 %v470
    %v2203 = vunpack.c.h.b16 %v470
    %v2204 = vunpack.c.l.b16 %v471
    %v2205 = vunpack.c.h.b16 %v471
    %v2206 = vunpack.c.l.b16 %v472
    %v2207 = vunpack.c.h.b16 %v472
    %v2208 = vunpack.c.l.b16 %v473
    %v2209 = vunpack.c.h.b16 %v473
    %v2210 = vunpack.c.l.b16 %v474
    %v2211 = vunpack.c.h.b16 %v474
    %v2212 = vunpack.c.l.b16 %v475
    %v2213 = vunpack.c.h.b16 %v475
    %v2214 = vunpack.c.l.b16 %v476
    %v2215 = vunpack.c.h.b16 %v476
    %v2216 = vunpack.c.l.b16 %v477
    %v2217 = vunpack.c.h.b16 %v477
    %v2218 = vunpack.c.l.b16 %v478
    %v2219 = vunpack.c.h.b16 %v478
    %v2220 = vunpack.c.l.b16 %v479
    %v2221 = vunpack.c.h.b16 %v479
    %v2222 = vunpack.c.l.b16 %v480
    %v2223 = vunpack.c.h.b16 %v480
    %v2224 = vunpack.c.l.b16 %v481
    %v2225 = vunpack.c.h.b16 %v481
    %v2226 = vunpack.c.l.b16 %v482
    %v2227 = vunpack.c.h.b16 %v482
    %v2228 = vunpack.c.l.b16 %v483
    %v2229 = vunpack.c.h.b16 %v483
    %v2230 = vunpack.c.l.b16 %v484
    %v2231 = vunpack.c.h.b16 %v484
    %v2232 = vunpack.c.l.b16 %v485
    %v2233 = vunpack.c.h.b16 %v485
    %v2234 = vunpack.c.l.b16 %v486
    %v2235 = vunpack.c.h.b16 %v486
    %v2236 = vunpack.c.l.b16 %v487
    %v2237 = vunpack.c.h.b16 %v487
    %v2238 = vunpack.c.l.b16 %v488
    %v2239 = vunpack.c.h.b16 %v488
    %v2240 = vunpack.c.l.b16 %v489
    %v2241 = vunpack.c.h.b16 %v489
    %v2242 = vunpack.c.l.b16 %v490
    %v2243 = vunpack.c.h.b16 %v490
    %v2244 = vunpack.c.l.b16 %v491
    %v2245 = vunpack.c.h.b16 %v491
    %v2246 = vunpack.c.l.b16 %v492
    %v2247 = vunpack.c.h.b16 %v492
    %v2248 = vunpack.c.l.b16 %v493
    %v2249 = vunpack.c.h.b16 %v493
    %v2250 = vunpack.c.l.b16 %v494
    %v2251 = vunpack.c.h.b16 %v494
    %v2252 = vunpack.c.l.b16 %v495
    %v2253 = vunpack.c.h.b16 %v495
    %v2254 = vunpack.c.l.b16 %v496
    %v2255 = vunpack.c.h.b16 %v496
    %v2256 = vunpack.c.l.b16 %v497
    %v2257 = vunpack.c.h.b16 %v497
    %v2258 = vunpack.c.l.b16 %v498
    %v2259 = vunpack.c.h.b16 %v498
    %v2260 = vunpack.c.l.b16 %v499
    %v2261 = vunpack.c.h.b16 %v499
    %v2262 = vunpack.c.l.b16 %v500
    %v2263 = vunpack.c.h.b16 %v500
    %v2264 = vunpack.c.l.b16 %v501
    %v2265 = vunpack.c.h.b16 %v501
    %v2266 = vunpack.c.l.b16 %v502
    %v2267 = vunpack.c.h.b16 %v502
    %v2268 = vunpack.c.l.b16 %v503
    %v2269 = vunpack.c.h.b16 %v503
    %v2270 = vunpack.c.l.b16 %v504
    %v2271 = vunpack.c.h.b16 %v504
    %v2272 = vunpack.c.l.b16 %v505
    %v2273 = vunpack.c.h.b16 %v505
    %v2274 = vunpack.c.l.b16 %v506
    %v2275 = vunpack.c.h.b16 %v506
    %v2276 = vunpack.c.l.b16 %v507
    %v2277 = vunpack.c.h.b16 %v507
    %v2278 = vunpack.c.l.b16 %v508
    %v2279 = vunpack.c.h.b16 %v508
    %v2280 = vunpack.c.l.b16 %v509
    %v2281 = vunpack.c.h.b16 %v509
    %v2282 = vunpack.c.l.b16 %v510
    %v2283 = vunpack.c.h.b16 %v510
    %v2284 = vunpack.c.l.b16 %v511
    %v2285 = vunpack.c.h.b16 %v511
    %v2286 = vunpack.c.l.b16 %v512
    %v2287 = vunpack.c.h.b16 %v512
    %v2288 = vunpack.c.l.b16 %v513
    %v2289 = vunpack.c.h.b16 %v513
    %v2290 = vunpack.c.l.b16 %v514
    %v2291 = vunpack.c.h.b16 %v514
    %v2292 = vunpack.c.l.b16 %v515
    %v2293 = vunpack.c.h.b16 %v515
    %v2294 = vunpack.c.l.b16 %v516
    %v2295 = vunpack.c.h.b16 %v516
    %v2296 = vunpack.c.l.b16 %v517
    %v2297 = vunpack.c.h.b16 %v517
    %v2298 = vunpack.c.l.b16 %v518
    %v2299 = vunpack.c.h.b16 %v518
    %v2300 = vunpack.c.l.b16 %v519
    %v2301 = vunpack.c.h.b16 %v519
    %v2302 = vunpack.c.l.b16 %v520
    %v2303 = vunpack.c.h.b16 %v520
    %v2304 = vunpack.c.l.b16 %v521
    %v2305 = vunpack.c.h.b16 %v521
    %v2306 = vunpack.c.l.b16 %v522
    %v2307 = vunpack.c.h.b16 %v522
    %v2308 = vunpack.c.l.b16 %v523
    %v2309 = vunpack.c.h.b16 %v523
    %v2310 = vunpack.c.l.b16 %v524
    %v2311 = vunpack.c.h.b16 %v524
    %v2312 = vunpack.c.l.b16 %v525
    %v2313 = vunpack.c.h.b16 %v525
    %v2314 = vunpack.c.l.b16 %v526
    %v2315 = vunpack.c.h.b16 %v526
    %v2316 = vunpack.c.l.b16 %v527
    %v2317 = vunpack.c.h.b16 %v527
    %v2318 = vunpack.c.l.b16 %v528
    %v2319 = vunpack.c.h.b16 %v528
    %v2320 = vunpack.c.l.b16 %v529
    %v2321 = vunpack.c.h.b16 %v529
    %v2322 = vunpack.c.l.b16 %v530
    %v2323 = vunpack.c.h.b16 %v530
    %v2324 = vunpack.c.l.b16 %v531
    %v2325 = vunpack.c.h.b16 %v531
    %v2326 = vunpack.c.l.b16 %v532
    %v2327 = vunpack.c.h.b16 %v532
    %v2328 = vunpack.c.l.b16 %v533
    %v2329 = vunpack.c.h.b16 %v533
    %v2330 = vunpack.c.l.b16 %v534
    %v2331 = vunpack.c.h.b16 %v534
    %v2332 = vunpack.c.l.b16 %v535
    %v2333 = vunpack.c.h.b16 %v535
    %v2334 = vunpack.c.l.b16 %v536
    %v2335 = vunpack.c.h.b16 %v536
    %v2336 = vunpack.c.l.b16 %v537
    %v2337 = vunpack.c.h.b16 %v537
    %v2338 = vunpack.c.l.b16 %v538
    %v2339 = vunpack.c.h.b16 %v538
    %v2340 = vunpack.c.l.b16 %v539
    %v2341 = vunpack.c.h.b16 %v539
    %v2342 = vunpack.c.l.b16 %v540
    %v2343 = vunpack.c.h.b16 %v540
    %v2344 = vunpack.c.l.b16 %v541
    %v2345 = vunpack.c.h.b16 %v541
    %v2346 = vunpack.c.l.b16 %v542
    %v2347 = vunpack.c.h.b16 %v542
    %v2348 = vunpack.c.l.b16 %v543
    %v2349 = vunpack.c.h.b16 %v543
    %v2350 = vunpack.c.l.b16 %v544
    %v2351 = vunpack.c.h.b16 %v544
    %v2352 = vunpack.c.l.b16 %v545
    %v2353 = vunpack.c.h.b16 %v545
    %v2354 = vunpack.c.l.b16 %v546
    %v2355 = vunpack.c.h.b16 %v546
    %v2356 = vunpack.c.l.b16 %v547
    %v2357 = vunpack.c.h.b16 %v547
    %v2358 = vunpack.c.l.b16 %v548
    %v2359 = vunpack.c.h.b16 %v548
    %v2360 = vunpack.c.l.b16 %v549
    %v2361 = vunpack.c.h.b16 %v549
    %v2362 = vunpack.c.l.b16 %v550
    %v2363 = vunpack.c.h.b16 %v550
    %v2364 = vunpack.c.l.b16 %v551
    %v2365 = vunpack.c.h.b16 %v551
    %v2366 = vunpack.c.l.b16 %v552
    %v2367 = vunpack.c.h.b16 %v552
    %v2368 = vunpack.c.l.b16 %v553
    %v2369 = vunpack.c.h.b16 %v553
    %v2370 = vunpack.c.l.b16 %v554
    %v2371 = vunpack.c.h.b16 %v554
    %v2372 = vunpack.c.l.b16 %v555
    %v2373 = vunpack.c.h.b16 %v555
    %v2374 = vunpack.c.l.b16 %v556
    %v2375 = vunpack.c.h.b16 %v556
    %v2376 = vunpack.c.l.b16 %v557
    %v2377 = vunpack.c.h.b16 %v557
    %v2378 = vunpack.c.l.b16 %v558
    %v2379 = vunpack.c.h.b16 %v558
    %v2380 = vunpack.c.l.b16 %v559
    %v2381 = vunpack.c.h.b16 %v559
    %v2382 = vunpack.c.l.b16 %v560
    %v2383 = vunpack.c.h.b16 %v560
    %v2384 = vunpack.c.l.b16 %v561
    %v2385 = vunpack.c.h.b16 %v561
    %v2386 = vunpack.c.l.b16 %v562
    %v2387 = vunpack.c.h.b16 %v562
    %v2388 = vunpack.c.l.b16 %v563
    %v2389 = vunpack.c.h.b16 %v563
    %v2390 = vunpack.c.l.b16 %v564
    %v2391 = vunpack.c.h.b16 %v564
    %v2392 = vunpack.c.l.b16 %v565
    %v2393 = vunpack.c.h.b16 %v565
    %v2394 = vunpack.c.l.b16 %v566
    %v2395 = vunpack.c.h.b16 %v566
    %v2396 = vunpack.c.l.b16 %v567
    %v2397 = vunpack.c.h.b16 %v567
    %v2398 = vunpack.c.l.b16 %v568
    %v2399 = vunpack.c.h.b16 %v568
    %v2400 = vunpack.c.l.b16 %v569
    %v2401 = vunpack.c.h.b16 %v569
    %v2402 = vunpack.c.l.b16 %v570
    %v2403 = vunpack.c.h.b16 %v570
    %v2404 = vunpack.c.l.b16 %v571
    %v2405 = vunpack.c.h.b16 %v571
    %v2406 = vunpack.c.l.b16 %v572
    %v2407 = vunpack.c.h.b16 %v572
    %v2408 = vunpack.c.l.b16 %v573
    %v2409 = vunpack.c.h.b16 %v573
    %v2410 = vunpack.c.l.b16 %v574
    %v2411 = vunpack.c.h.b16 %v574
    %v2412 = vunpack.c.l.b16 %v575
    %v2413 = vunpack.c.h.b16 %v575
    %v2414 = vunpack.c.l.b16 %v576
    %v2415 = vunpack.c.h.b16 %v576
    %v2416 = vunpack.c.l.b16 %v577
    %v2417 = vunpack.c.h.b16 %v577
    %v2418 = vunpack.c.l.b16 %v578
    %v2419 = vunpack.c.h.b16 %v578
    %v2420 = vunpack.c.l.b16 %v579
    %v2421 = vunpack.c.h.b16 %v579
    %v2422 = vunpack.c.l.b16 %v580
    %v2423 = vunpack.c.h.b16 %v580
    %v2424 = vunpack.c.l.b16 %v581
    %v2425 = vunpack.c.h.b16 %v581
    %v2426 = vunpack.c.l.b16 %v582
    %v2427 = vunpack.c.h.b16 %v582
    %v2428 = vunpack.c.l.b16 %v583
    %v2429 = vunpack.c.h.b16 %v583
    %v2430 = vunpack.c.l.b16 %v584
    %v2431 = vunpack.c.h.b16 %v584
    %v2432 = vunpack.c.l.b16 %v585
    %v2433 = vunpack.c.h.b16 %v585
    %v2434 = vunpack.c.l.b16 %v586
    %v2435 = vunpack.c.h.b16 %v586
    %v2436 = vunpack.c.l.b16 %v587
    %v2437 = vunpack.c.h.b16 %v587
    %v2438 = vunpack.c.l.b16 %v588
    %v2439 = vunpack.c.h.b16 %v588
    %v2440 = vunpack.c.l.b16 %v589
    %v2441 = vunpack.c.h.b16 %v589
    %v2442 = vunpack.c.l.b16 %v590
    %v2443 = vunpack.c.h.b16 %v590
    %v2444 = vunpack.c.l.b16 %v591
    %v2445 = vunpack.c.h.b16 %v591
    %v2446 = vunpack.c.l.b16 %v592
    %v2447 = vunpack.c.h.b16 %v592
    %v2448 = vunpack.c.l.b16 %v593
    %v2449 = vunpack.c.h.b16 %v593
    %v2450 = vunpack.c.l.b16 %v594
    %v2451 = vunpack.c.h.b16 %v594
    %v2452 = vunpack.c.l.b16 %v595
    %v2453 = vunpack.c.h.b16 %v595
    %v2454 = vunpack.c.l.b16 %v596
    %v2455 = vunpack.c.h.b16 %v596
    %v2456 = vunpack.c.l.b16 %v597
    %v2457 = vunpack.c.h.b16 %v597
    %v2458 = vunpack.c.l.b16 %v598
    %v2459 = vunpack.c.h.b16 %v598
    %v2460 = vunpack.c.l.b16 %v599
    %v2461 = vunpack.c.h.b16 %v599
    %v2462 = vunpack.c.l.b16 %v600
    %v2463 = vunpack.c.h.b16 %v600
    %v2464 = vunpack.c.l.b16 %v601
    %v2465 = vunpack.c.h.b16 %v601
    %v2466 = vunpack.c.l.b16 %v602
    %v2467 = vunpack.c.h.b16 %v602
    %v2468 = vunpack.c.l.b16 %v603
    %v2469 = vunpack.c.h.b16 %v603
    %v2470 = vunpack.c.l.b16 %v604
    %v2471 = vunpack.c.h.b16 %v604
    %v2472 = vunpack.c.l.b16 %v605
    %v2473 = vunpack.c.h.b16 %v605
    %v2474 = vunpack.c.l.b16 %v606
    %v2475 = vunpack.c.h.b16 %v606
    %v2476 = vunpack.c.l.b16 %v607
    %v2477 = vunpack.c.h.b16 %v607
    %v2478 = vunpack.c.l.b16 %v608
    %v2479 = vunpack.c.h.b16 %v608
    %v2480 = vunpack.c.l.b16 %v609
    %v2481 = vunpack.c.h.b16 %v609
    %v2482 = vunpack.c.l.b16 %v610
    %v2483 = vunpack.c.h.b16 %v610
    %v2484 = vunpack.c.l.b16 %v611
    %v2485 = vunpack.c.h.b16 %v611
    %v2486 = vunpack.c.l.b16 %v612
    %v2487 = vunpack.c.h.b16 %v612
    %v2488 = vunpack.c.l.b16 %v613
    %v2489 = vunpack.c.h.b16 %v613
    %v2490 = vunpack.c.l.b16 %v614
    %v2491 = vunpack.c.h.b16 %v614
    %v2492 = vunpack.c.l.b16 %v615
    %v2493 = vunpack.c.h.b16 %v615
    %v2494 = vunpack.c.l.b16 %v616
    %v2495 = vunpack.c.h.b16 %v616
    %v2496 = vunpack.c.l.b16 %v617
    %v2497 = vunpack.c.h.b16 %v617
    %v2498 = vunpack.c.l.b16 %v618
    %v2499 = vunpack.c.h.b16 %v618
    %v2500 = vunpack.c.l.b16 %v619
    %v2501 = vunpack.c.h.b16 %v619
    %v2502 = vunpack.c.l.b16 %v620
    %v2503 = vunpack.c.h.b16 %v620
    %v2504 = vunpack.c.l.b16 %v621
    %v2505 = vunpack.c.h.b16 %v621
    %v2506 = vunpack.c.l.b16 %v622
    %v2507 = vunpack.c.h.b16 %v622
    %v2508 = vunpack.c.l.b16 %v623
    %v2509 = vunpack.c.h.b16 %v623
    %v2510 = vunpack.c.l.b16 %v624
    %v2511 = vunpack.c.h.b16 %v624
    %v2512 = vunpack.c.l.b16 %v625
    %v2513 = vunpack.c.h.b16 %v625
    %v2514 = vunpack.c.l.b16 %v626
    %v2515 = vunpack.c.h.b16 %v626
    %v2516 = vunpack.c.l.b16 %v627
    %v2517 = vunpack.c.h.b16 %v627
    %v2518 = vunpack.c.l.b16 %v628
    %v2519 = vunpack.c.h.b16 %v628
    %v2520 = vunpack.c.l.b16 %v629
    %v2521 = vunpack.c.h.b16 %v629
    %v2522 = vunpack.c.l.b16 %v630
    %v2523 = vunpack.c.h.b16 %v630
    %v2524 = vunpack.c.l.b16 %v631
    %v2525 = vunpack.c.h.b16 %v631
    %v2526 = vunpack.c.l.b16 %v632
    %v2527 = vunpack.c.h.b16 %v632
    %v2528 = vunpack.c.l.b16 %v633
    %v2529 = vunpack.c.h.b16 %v633
    %v2530 = vunpack.c.l.b16 %v634
    %v2531 = vunpack.c.h.b16 %v634
    %v2532 = vunpack.c.l.b16 %v635
    %v2533 = vunpack.c.h.b16 %v635
    %v2534 = vunpack.c.l.b16 %v636
    %v2535 = vunpack.c.h.b16 %v636
    %v2536 = vunpack.c.l.b16 %v637
    %v2537 = vunpack.c.h.b16 %v637
    %v2538 = vunpack.c.l.b16 %v638
    %v2539 = vunpack.c.h.b16 %v638
    %v2540 = vunpack.c.l.b16 %v639
    %v2541 = vunpack.c.h.b16 %v639
    %v2542 = vunpack.c.l.b16 %v640
    %v2543 = vunpack.c.h.b16 %v640
    %v2544 = vunpack.c.l.b16 %v641
    %v2545 = vunpack.c.h.b16 %v641
    %v2546 = vunpack.c.l.b16 %v642
    %v2547 = vunpack.c.h.b16 %v642
    %v2548 = vunpack.c.l.b16 %v643
    %v2549 = vunpack.c.h.b16 %v643
    %v2550 = vunpack.c.l.b16 %v644
    %v2551 = vunpack.c.h.b16 %v644
    %v2552 = vunpack.c.l.b16 %v645
    %v2553 = vunpack.c.h.b16 %v645
    %v2554 = vunpack.c.l.b16 %v646
    %v2555 = vunpack.c.h.b16 %v646
    %v2556 = vunpack.c.l.b16 %v647
    %v2557 = vunpack.c.h.b16 %v647
    %v2558 = vunpack.c.l.b16 %v648
    %v2559 = vunpack.c.h.b16 %v648
    %v2560 = vunpack.c.l.b16 %v649
    %v2561 = vunpack.c.h.b16 %v649
    %v2562 = vunpack.c.l.b16 %v650
    %v2563 = vunpack.c.h.b16 %v650
    %v2564 = vunpack.c.l.b16 %v651
    %v2565 = vunpack.c.h.b16 %v651
    %v2566 = vunpack.c.l.b16 %v652
    %v2567 = vunpack.c.h.b16 %v652
    %v2568 = vunpack.c.l.b16 %v653
    %v2569 = vunpack.c.h.b16 %v653
    %v2570 = vunpack.c.l.b16 %v654
    %v2571 = vunpack.c.h.b16 %v654
    %v2572 = vunpack.c.l.b16 %v655
    %v2573 = vunpack.c.h.b16 %v655
    %v2574 = vunpack.c.l.b16 %v656
    %v2575 = vunpack.c.h.b16 %v656
    %v2576 = vunpack.c.l.b16 %v657
    %v2577 = vunpack.c.h.b16 %v657
    %v2578 = vunpack.c.l.b16 %v658
    %v2579 = vunpack.c.h.b16 %v658
    %v2580 = vunpack.c.l.b16 %v659
    %v2581 = vunpack.c.h.b16 %v659
    %v2582 = vunpack.c.l.b16 %v660
    %v2583 = vunpack.c.h.b16 %v660
    %v2584 = vunpack.c.l.b16 %v661
    %v2585 = vunpack.c.h.b16 %v661
    %v2586 = vunpack.c.l.b16 %v662
    %v2587 = vunpack.c.h.b16 %v662
    %v2588 = vunpack.c.l.b16 %v663
    %v2589 = vunpack.c.h.b16 %v663
    %v2590 = vunpack.c.l.b16 %v664
    %v2591 = vunpack.c.h.b16 %v664
    %v2592 = vunpack.c.l.b16 %v665
    %v2593 = vunpack.c.h.b16 %v665
    %v2594 = vunpack.c.l.b16 %v666
    %v2595 = vunpack.c.h.b16 %v666
    %v2596 = vunpack.c.l.b16 %v667
    %v2597 = vunpack.c.h.b16 %v667
    %v2598 = vunpack.c.l.b16 %v668
    %v2599 = vunpack.c.h.b16 %v668
    %v2600 = vunpack.c.l.b16 %v669
    %v2601 = vunpack.c.h.b16 %v669
    %v2602 = vunpack.c.l.b16 %v670
    %v2603 = vunpack.c.h.b16 %v670
    %v2604 = vunpack.c.l.b16 %v671
    %v2605 = vunpack.c.h.b16 %v671
    %v2606 = vunpack.c.l.b16 %v672
    %v2607 = vunpack.c.h.b16 %v672
    %v2608 = vunpack.c.l.b16 %v673
    %v2609 = vunpack.c.h.b16 %v673
    %v2610 = vunpack.c.l.b16 %v674
    %v2611 = vunpack.c.h.b16 %v674
    %v2612 = vunpack.c.l.b16 %v675
    %v2613 = vunpack.c.h.b16 %v675
    %v2614 = vunpack.c.l.b16 %v676
    %v2615 = vunpack.c.h.b16 %v676
    %v2616 = vunpack.c.l.b16 %v677
    %v2617 = vunpack.c.h.b16 %v677
    %v2618 = vunpack.c.l.b16 %v678
    %v2619 = vunpack.c.h.b16 %v678
    %v2620 = vunpack.c.l.b16 %v679
    %v2621 = vunpack.c.h.b16 %v679
    %v2622 = vunpack.c.l.b16 %v680
    %v2623 = vunpack.c.h.b16 %v680
    %v2624 = vunpack.c.l.b16 %v681
    %v2625 = vunpack.c.h.b16 %v681
    %v2626 = vunpack.c.l.b16 %v682
    %v2627 = vunpack.c.h.b16 %v682
    %v2628 = vunpack.c.l.b16 %v683
    %v2629 = vunpack.c.h.b16 %v683
    %v2630 = vunpack.c.l.b16 %v684
    %v2631 = vunpack.c.h.b16 %v684
    %v2632 = vunpack.c.l.b16 %v685
    %v2633 = vunpack.c.h.b16 %v685
    %v2634 = vunpack.c.l.b16 %v686
    %v2635 = vunpack.c.h.b16 %v686
    %v2636 = vunpack.c.l.b16 %v687
    %v2637 = vunpack.c.h.b16 %v687
    %v2638 = vunpack.c.l.b16 %v688
    %v2639 = vunpack.c.h.b16 %v688
    %v2640 = vunpack.c.l.b16 %v689
    %v2641 = vunpack.c.h.b16 %v689
    %v2642 = vunpack.c.l.b16 %v690
    %v2643 = vunpack.c.h.b16 %v690
    %v2644 = vunpack.c.l.b16 %v691
    %v2645 = vunpack.c.h.b16 %v691
    %v2646 = vunpack.c.l.b16 %v692
    %v2647 = vunpack.c.h.b16 %v692
    %v2648 = vunpack.c.l.b16 %v693
    %v2649 = vunpack.c.h.b16 %v693
    %v2650 = vunpack.c.l.b16 %v694
    %v2651 = vunpack.c.h.b16 %v694
    %v2652 = vunpack.c.l.b16 %v695
    %v2653 = vunpack.c.h.b16 %v695
    %v2654 = vunpack.c.l.b16 %v696
    %v2655 = vunpack.c.h.b16 %v696
    %v2656 = vunpack.c.l.b16 %v697
    %v2657 = vunpack.c.h.b16 %v697
    %v2658 = vunpack.c.l.b16 %v698
    %v2659 = vunpack.c.h.b16 %v698
    %v2660 = vunpack.c.l.b16 %v699
    %v2661 = vunpack.c.h.b16 %v699
    %v2662 = vunpack.c.l.b16 %v700
    %v2663 = vunpack.c.h.b16 %v700
    %v2664 = vunpack.c.l.b16 %v701
    %v2665 = vunpack.c.h.b16 %v701
    %v2666 = vunpack.c.l.b16 %v702
    %v2667 = vunpack.c.h.b16 %v702
    %v2668 = vunpack.c.l.b16 %v703
    %v2669 = vunpack.c.h.b16 %v703
    %v2670 = vunpack.c.l.b16 %v704
    %v2671 = vunpack.c.h.b16 %v704
    %v2672 = vunpack.c.l.b16 %v705
    %v2673 = vunpack.c.h.b16 %v705
    %v2674 = vunpack.c.l.b16 %v706
    %v2675 = vunpack.c.h.b16 %v706
    %v2676 = vunpack.c.l.b16 %v707
    %v2677 = vunpack.c.h.b16 %v707
    %v2678 = vunpack.c.l.b16 %v708
    %v2679 = vunpack.c.h.b16 %v708
    %v2680 = vunpack.c.l.b16 %v709
    %v2681 = vunpack.c.h.b16 %v709
    %v2682 = vunpack.c.l.b16 %v710
    %v2683 = vunpack.c.h.b16 %v710
    %v2684 = vunpack.c.l.b16 %v711
    %v2685 = vunpack.c.h.b16 %v711
    %v2686 = vunpack.c.l.b16 %v712
    %v2687 = vunpack.c.h.b16 %v712
    %v2688 = vunpack.c.l.b16 %v713
    %v2689 = vunpack.c.h.b16 %v713
    %v2690 = vunpack.c.l.b16 %v714
    %v2691 = vunpack.c.h.b16 %v714
    %v2692 = vunpack.c.l.b16 %v715
    %v2693 = vunpack.c.h.b16 %v715
    %v2694 = vunpack.c.l.b16 %v716
    %v2695 = vunpack.c.h.b16 %v716
    %v2696 = vunpack.c.l.b16 %v717
    %v2697 = vunpack.c.h.b16 %v717
    %v2698 = vunpack.c.l.b16 %v718
    %v2699 = vunpack.c.h.b16 %v718
    %v2700 = vunpack.c.l.b16 %v719
    %v2701 = vunpack.c.h.b16 %v719
    %v2702 = vunpack.c.l.b16 %v720
    %v2703 = vunpack.c.h.b16 %v720
    %v2704 = vunpack.c.l.b16 %v721
    %v2705 = vunpack.c.h.b16 %v721
    %v2706 = vunpack.c.l.b16 %v722
    %v2707 = vunpack.c.h.b16 %v722
    %v2708 = vunpack.c.l.b16 %v723
    %v2709 = vunpack.c.h.b16 %v723
    %v2710 = vunpack.c.l.b16 %v724
    %v2711 = vunpack.c.h.b16 %v724
    %v2712 = vunpack.c.l.b16 %v725
    %v2713 = vunpack.c.h.b16 %v725
    %v2714 = vunpack.c.l.b16 %v726
    %v2715 = vunpack.c.h.b16 %v726
    %v2716 = vunpack.c.l.b16 %v727
    %v2717 = vunpack.c.h.b16 %v727
    %v2718 = vunpack.c.l.b16 %v728
    %v2719 = vunpack.c.h.b16 %v728
    %v2720 = vunpack.c.l.b16 %v729
    %v2721 = vunpack.c.h.b16 %v729
    %v2722 = vunpack.c.l.b16 %v730
    %v2723 = vunpack.c.h.b16 %v730
    %v2724 = vunpack.c.l.b16 %v731
    %v2725 = vunpack.c.h.b16 %v731
    %v2726 = vunpack.c.l.b16 %v732
    %v2727 = vunpack.c.h.b16 %v732
    %v2728 = vunpack.c.l.b16 %v733
    %v2729 = vunpack.c.h.b16 %v733
    %v2730 = vunpack.c.l.b16 %v734
    %v2731 = vunpack.c.h.b16 %v734
    %v2732 = vunpack.c.l.b16 %v735
    %v2733 = vunpack.c.h.b16 %v735
    %v2734 = vunpack.c.l.b16 %v736
    %v2735 = vunpack.c.h.b16 %v736
    %v2736 = vunpack.c.l.b16 %v737
    %v2737 = vunpack.c.h.b16 %v737
    %v2738 = vunpack.c.l.b16 %v738
    %v2739 = vunpack.c.h.b16 %v738
    %v2740 = vunpack.c.l.b16 %v739
    %v2741 = vunpack.c.h.b16 %v739
    %v2742 = vunpack.c.l.b16 %v740
    %v2743 = vunpack.c.h.b16 %v740
    %v2744 = vunpack.c.l.b16 %v741
    %v2745 = vunpack.c.h.b16 %v741
    %v2746 = vunpack.c.l.b16 %v742
    %v2747 = vunpack.c.h.b16 %v742
    %v2748 = vunpack.c.l.b16 %v743
    %v2749 = vunpack.c.h.b16 %v743
    %v2750 = vunpack.c.l.b16 %v744
    %v2751 = vunpack.c.h.b16 %v744
    %v2752 = vunpack.c.l.b16 %v745
    %v2753 = vunpack.c.h.b16 %v745
    %v2754 = vunpack.c.l.b16 %v746
    %v2755 = vunpack.c.h.b16 %v746
    %v2756 = vunpack.c.l.b16 %v747
    %v2757 = vunpack.c.h.b16 %v747
    %v2758 = vunpack.c.l.b16 %v748
    %v2759 = vunpack.c.h.b16 %v748
    %v2760 = vunpack.c.l.b16 %v749
    %v2761 = vunpack.c.h.b16 %v749
    %v2762 = vunpack.c.l.b16 %v750
    %v2763 = vunpack.c.h.b16 %v750
    %v2764 = vunpack.c.l.b16 %v751
    %v2765 = vunpack.c.h.b16 %v751
    %v2766 = vunpack.c.l.b16 %v752
    %v2767 = vunpack.c.h.b16 %v752
    %v2768 = vunpack.c.l.b16 %v753
    %v2769 = vunpack.c.h.b16 %v753
    %v2770 = vunpack.c.l.b16 %v754
    %v2771 = vunpack.c.h.b16 %v754
    %v2772 = vunpack.c.l.b16 %v755
    %v2773 = vunpack.c.h.b16 %v755
    %v2774 = vunpack.c.l.b16 %v756
    %v2775 = vunpack.c.h.b16 %v756
    %v2776 = vunpack.c.l.b16 %v757
    %v2777 = vunpack.c.h.b16 %v757
    %v2778 = vunpack.c.l.b16 %v758
    %v2779 = vunpack.c.h.b16 %v758
    %v2780 = vunpack.c.l.b16 %v759
    %v2781 = vunpack.c.h.b16 %v759
    %v2782 = vunpack.c.l.b16 %v760
    %v2783 = vunpack.c.h.b16 %v760
    %v2784 = vunpack.c.l.b16 %v761
    %v2785 = vunpack.c.h.b16 %v761
    %v2786 = vunpack.c.l.b16 %v762
    %v2787 = vunpack.c.h.b16 %v762
    %v2788 = vunpack.c.l.b16 %v763
    %v2789 = vunpack.c.h.b16 %v763
    %v2790 = vunpack.c.l.b16 %v764
    %v2791 = vunpack.c.h.b16 %v764
    %v2792 = vunpack.c.l.b16 %v765
    %v2793 = vunpack.c.h.b16 %v765
    %v2794 = vunpack.c.l.b16 %v766
    %v2795 = vunpack.c.h.b16 %v766
    %v2796 = vunpack.c.l.b16 %v767
    %v2797 = vunpack.c.h.b16 %v767
    %v2798 = vunpack.c.l.b16 %v768
    %v2799 = vunpack.c.h.b16 %v768
    %v2800 = vunpack.c.l.b16 %v769
    %v2801 = vunpack.c.h.b16 %v769
    %v2802 = vunpack.c.l.b16 %v770
    %v2803 = vunpack.c.h.b16 %v770
    %v2804 = vunpack.c.l.b16 %v771
    %v2805 = vunpack.c.h.b16 %v771
    %v2806 = vunpack.c.l.b16 %v772
    %v2807 = vunpack.c.h.b16 %v772
    %v2808 = vunpack.c.l.b16 %v773
    %v2809 = vunpack.c.h.b16 %v773
    %v2810 = vunpack.c.l.b16 %v774
    %v2811 = vunpack.c.h.b16 %v774
    %v2812 = vunpack.c.l.b16 %v775
    %v2813 = vunpack.c.h.b16 %v775
    %v2814 = vunpack.c.l.b16 %v776
    %v2815 = vunpack.c.h.b16 %v776
    %v2816 = vunpack.c.l.b16 %v777
    %v2817 = vunpack.c.h.b16 %v777
    %v2818 = vunpack.c.l.b16 %v778
    %v2819 = vunpack.c.h.b16 %v778
    %v2820 = vunpack.c.l.b16 %v779
    %v2821 = vunpack.c.h.b16 %v779
    %v2822 = vunpack.c.l.b16 %v780
    %v2823 = vunpack.c.h.b16 %v780
    %v2824 = vunpack.c.l.b16 %v781
    %v2825 = vunpack.c.h.b16 %v781
    %v2826 = vunpack.c.l.b16 %v782
    %v2827 = vunpack.c.h.b16 %v782
    %v2828 = vunpack.c.l.b16 %v783
    %v2829 = vunpack.c.h.b16 %v783
    %v2830 = vunpack.c.l.b16 %v784
    %v2831 = vunpack.c.h.b16 %v784
    %v2832 = vunpack.c.l.b16 %v785
    %v2833 = vunpack.c.h.b16 %v785
    %v2834 = vunpack.c.l.b16 %v786
    %v2835 = vunpack.c.h.b16 %v786
    %v2836 = vunpack.c.l.b16 %v787
    %v2837 = vunpack.c.h.b16 %v787
    %v2838 = vunpack.c.l.b16 %v788
    %v2839 = vunpack.c.h.b16 %v788
    %v2840 = vunpack.c.l.b16 %v789
    %v2841 = vunpack.c.h.b16 %v789
    %v2842 = vunpack.c.l.b16 %v790
    %v2843 = vunpack.c.h.b16 %v790
    %v2844 = vunpack.c.l.b16 %v791
    %v2845 = vunpack.c.h.b16 %v791
    %v2846 = vunpack.c.l.b16 %v792
    %v2847 = vunpack.c.h.b16 %v792
    %v2848 = vunpack.c.l.b16 %v793
    %v2849 = vunpack.c.h.b16 %v793
    %v2850 = vunpack.c.l.b16 %v794
    %v2851 = vunpack.c.h.b16 %v794
    %v2852 = vunpack.c.l.b16 %v795
    %v2853 = vunpack.c.h.b16 %v795
    %v2854 = vunpack.c.l.b16 %v796
    %v2855 = vunpack.c.h.b16 %v796
    %v2856 = vunpack.c.l.b16 %v797
    %v2857 = vunpack.c.h.b16 %v797
    %v2858 = vunpack.c.l.b16 %v798
    %v2859 = vunpack.c.h.b16 %v798
    %v2860 = vunpack.c.l.b16 %v799
    %v2861 = vunpack.c.h.b16 %v799
    %v2862 = vunpack.c.l.b16 %v800
    %v2863 = vunpack.c.h.b16 %v800
    %v2864 = vunpack.c.l.b16 %v801
    %v2865 = vunpack.c.h.b16 %v801
    %v2866 = vunpack.c.l.b16 %v802
    %v2867 = vunpack.c.h.b16 %v802
    %v2868 = vunpack.c.l.b16 %v803
    %v2869 = vunpack.c.h.b16 %v803
    %v2870 = vunpack.c.l.b16 %v804
    %v2871 = vunpack.c.h.b16 %v804
    %v2872 = vunpack.c.l.b16 %v805
    %v2873 = vunpack.c.h.b16 %v805
    %v2874 = vunpack.c.l.b16 %v806
    %v2875 = vunpack.c.h.b16 %v806
    %v2876 = vunpack.c.l.b16 %v807
    %v2877 = vunpack.c.h.b16 %v807
    %v2878 = vunpack.c.l.b16 %v808
    %v2879 = vunpack.c.h.b16 %v808
    %v2880 = vunpack.c.l.b16 %v809
    %v2881 = vunpack.c.h.b16 %v809
    %v2882 = vunpack.c.l.b16 %v810
    %v2883 = vunpack.c.h.b16 %v810
    %v2884 = vunpack.c.l.b16 %v811
    %v2885 = vunpack.c.h.b16 %v811
    %v2886 = vunpack.c.l.b16 %v812
    %v2887 = vunpack.c.h.b16 %v812
    %v2888 = vunpack.c.l.b16 %v813
    %v2889 = vunpack.c.h.b16 %v813
    %v2890 = vunpack.c.l.b16 %v814
    %v2891 = vunpack.c.h.b16 %v814
    %v2892 = vunpack.c.l.b16 %v815
    %v2893 = vunpack.c.h.b16 %v815
    %v2894 = vunpack.c.l.b16 %v816
    %v2895 = vunpack.c.h.b16 %v816
    %v2896 = vunpack.c.l.b16 %v817
    %v2897 = vunpack.c.h.b16 %v817
    %v2898 = vunpack.c.l.b16 %v818
    %v2899 = vunpack.c.h.b16 %v818
    %v2900 = vunpack.c.l.b16 %v819
    %v2901 = vunpack.c.h.b16 %v819
    %v2902 = vunpack.c.l.b16 %v820
    %v2903 = vunpack.c.h.b16 %v820
    %v2904 = vunpack.c.l.b16 %v821
    %v2905 = vunpack.c.h.b16 %v821
    %v2906 = vunpack.c.l.b16 %v822
    %v2907 = vunpack.c.h.b16 %v822
    %v2908 = vunpack.c.l.b16 %v823
    %v2909 = vunpack.c.h.b16 %v823
    %v2910 = vunpack.c.l.b16 %v824
    %v2911 = vunpack.c.h.b16 %v824
    %v2912 = vunpack.c.l.b16 %v825
    %v2913 = vunpack.c.h.b16 %v825
    %v2914 = vunpack.c.l.b16 %v826
    %v2915 = vunpack.c.h.b16 %v826
    %v2916 = vunpack.c.l.b16 %v827
    %v2917 = vunpack.c.h.b16 %v827
    %v2918 = vunpack.c.l.b16 %v828
    %v2919 = vunpack.c.h.b16 %v828
    %v2920 = vunpack.c.l.b16 %v829
    %v2921 = vunpack.c.h.b16 %v829
    %v2922 = vunpack.c.l.b16 %v830
    %v2923 = vunpack.c.h.b16 %v830
    %v2924 = vunpack.c.l.b16 %v831
    %v2925 = vunpack.c.h.b16 %v831
    %v2926 = vunpack.c.l.b16 %v832
    %v2927 = vunpack.c.h.b16 %v832
    %v2928 = vunpack.c.l.b16 %v833
    %v2929 = vunpack.c.h.b16 %v833
    %v2930 = vunpack.c.l.b16 %v834
    %v2931 = vunpack.c.h.b16 %v834
    %v2932 = vunpack.c.l.b16 %v835
    %v2933 = vunpack.c.h.b16 %v835
    %v2934 = vunpack.c.l.b16 %v836
    %v2935 = vunpack.c.h.b16 %v836
    %v2936 = vunpack.c.l.b16 %v837
    %v2937 = vunpack.c.h.b16 %v837
    %v2938 = vunpack.c.l.b16 %v838
    %v2939 = vunpack.c.h.b16 %v838
    %v2940 = vunpack.c.l.b16 %v839
    %v2941 = vunpack.c.h.b16 %v839
    %v2942 = vunpack.c.l.b16 %v840
    %v2943 = vunpack.c.h.b16 %v840
    %v2944 = vunpack.c.l.b16 %v841
    %v2945 = vunpack.c.h.b16 %v841
    %v2946 = vunpack.c.l.b16 %v842
    %v2947 = vunpack.c.h.b16 %v842
    %v2948 = vunpack.c.l.b16 %v843
    %v2949 = vunpack.c.h.b16 %v843
    %v2950 = vunpack.c.l.b16 %v844
    %v2951 = vunpack.c.h.b16 %v844
    %v2952 = vunpack.c.l.b16 %v845
    %v2953 = vunpack.c.h.b16 %v845
    %v2954 = vunpack.c.l.b16 %v846
    %v2955 = vunpack.c.h.b16 %v846
    %v2956 = vunpack.c.l.b16 %v847
    %v2957 = vunpack.c.h.b16 %v847
    %v2958 = vunpack.c.l.b16 %v848
    %v2959 = vunpack.c.h.b16 %v848
    %v2960 = vunpack.c.l.b16 %v849
    %v2961 = vunpack.c.h.b16 %v849
    %v2962 = vunpack.c.l.b16 %v850
    %v2963 = vunpack.c.h.b16 %v850
    %v2964 = vunpack.c.l.b16 %v851
    %v2965 = vunpack.c.h.b16 %v851
    %v2966 = vunpack.c.l.b16 %v852
    %v2967 = vunpack.c.h.b16 %v852
    %v2968 = vunpack.c.l.b16 %v853
    %v2969 = vunpack.c.h.b16 %v853
    %v2970 = vunpack.c.l.b16 %v854
    %v2971 = vunpack.c.h.b16 %v854
    %v2972 = vunpack.c.l.b16 %v855
    %v2973 = vunpack.c.h.b16 %v855
    %v2974 = vunpack.c.l.b16 %v856
    %v2975 = vunpack.c.h.b16 %v856
    %v2976 = vunpack.c.l.b16 %v857
    %v2977 = vunpack.c.h.b16 %v857
    %v2978 = vunpack.c.l.b16 %v858
    %v2979 = vunpack.c.h.b16 %v858
    %v2980 = vunpack.c.l.b16 %v859
    %v2981 = vunpack.c.h.b16 %v859
    %v2982 = vunpack.c.l.b16 %v860
    %v2983 = vunpack.c.h.b16 %v860
    %v2984 = vunpack.c.l.b16 %v861
    %v2985 = vunpack.c.h.b16 %v861
    %v2986 = vunpack.c.l.b16 %v862
    %v2987 = vunpack.c.h.b16 %v862
    %v2988 = vunpack.c.l.b16 %v863
    %v2989 = vunpack.c.h.b16 %v863
    %v2990 = vunpack.c.l.b16 %v864
    %v2991 = vunpack.c.h.b16 %v864
    %v2992 = vunpack.c.l.b16 %v865
    %v2993 = vunpack.c.h.b16 %v865
    %v2994 = vunpack.c.l.b16 %v866
    %v2995 = vunpack.c.h.b16 %v866
    %v2996 = vunpack.c.l.b16 %v867
    %v2997 = vunpack.c.h.b16 %v867
    %v2998 = vunpack.c.l.b16 %v868
    %v2999 = vunpack.c.h.b16 %v868
    %v3000 = vunpack.c.l.b16 %v869
    %v3001 = vunpack.c.h.b16 %v869
    %v3002 = vunpack.c.l.b16 %v870
    %v3003 = vunpack.c.h.b16 %v870
    %v3004 = vunpack.c.l.b16 %v871
    %v3005 = vunpack.c.h.b16 %v871
    %v3006 = vunpack.c.l.b16 %v872
    %v3007 = vunpack.c.h.b16 %v872
    %v3008 = vunpack.c.l.b16 %v873
    %v3009 = vunpack.c.h.b16 %v873
    %v3010 = vunpack.c.l.b16 %v874
    %v3011 = vunpack.c.h.b16 %v874
    %v3012 = vunpack.c.l.b16 %v875
    %v3013 = vunpack.c.h.b16 %v875
    %v3014 = vunpack.c.l.b16 %v876
    %v3015 = vunpack.c.h.b16 %v876
    %v3016 = vunpack.c.l.b16 %v877
    %v3017 = vunpack.c.h.b16 %v877
    %v3018 = vunpack.c.l.b16 %v878
    %v3019 = vunpack.c.h.b16 %v878
    %v3020 = vunpack.c.l.b16 %v879
    %v3021 = vunpack.c.h.b16 %v879
    %v3022 = vunpack.c.l.b16 %v880
    %v3023 = vunpack.c.h.b16 %v880
    %v3024 = vunpack.c.l.b16 %v881
    %v3025 = vunpack.c.h.b16 %v881
    %v3026 = vunpack.c.l.b16 %v882
    %v3027 = vunpack.c.h.b16 %v882
    %v3028 = vunpack.c.l.b16 %v883
    %v3029 = vunpack.c.h.b16 %v883
    %v3030 = vunpack.c.l.b16 %v884
    %v3031 = vunpack.c.h.b16 %v884
    %v3032 = vunpack.c.l.b16 %v885
    %v3033 = vunpack.c.h.b16 %v885
    %v3034 = vunpack.c.l.b16 %v886
    %v3035 = vunpack.c.h.b16 %v886
    %v3036 = vunpack.c.l.b16 %v887
    %v3037 = vunpack.c.h.b16 %v887
    %v3038 = vunpack.c.l.b16 %v888
    %v3039 = vunpack.c.h.b16 %v888
    %v3040 = vunpack.c.l.b16 %v889
    %v3041 = vunpack.c.h.b16 %v889
    %v3042 = vunpack.c.l.b16 %v890
    %v3043 = vunpack.c.h.b16 %v890
    %v3044 = vunpack.c.l.b16 %v891
    %v3045 = vunpack.c.h.b16 %v891
    %v3046 = vunpack.c.l.b16 %v892
    %v3047 = vunpack.c.h.b16 %v892
    %v3048 = vunpack.c.l.b16 %v893
    %v3049 = vunpack.c.h.b16 %v893
    %v3050 = vunpack.c.l.b16 %v894
    %v3051 = vunpack.c.h.b16 %v894
    %v3052 = vunpack.c.l.b16 %v895
    %v3053 = vunpack.c.h.b16 %v895
    %v3054 = vunpack.c.l.b16 %v896
    %v3055 = vunpack.c.h.b16 %v896
    %v3056 = vunpack.c.l.b16 %v897
    %v3057 = vunpack.c.h.b16 %v897
    %v3058 = vunpack.c.l.b16 %v898
    %v3059 = vunpack.c.h.b16 %v898
    %v3060 = vunpack.c.l.b16 %v899
    %v3061 = vunpack.c.h.b16 %v899
    %v3062 = vunpack.c.l.b16 %v900
    %v3063 = vunpack.c.h.b16 %v900
    %v3064 = vunpack.c.l.b16 %v901
    %v3065 = vunpack.c.h.b16 %v901
    %v3066 = vunpack.c.l.b16 %v902
    %v3067 = vunpack.c.h.b16 %v902
    %v3068 = vunpack.c.l.b16 %v903
    %v3069 = vunpack.c.h.b16 %v903
    %v3070 = vunpack.c.l.b16 %v904
    %v3071 = vunpack.c.h.b16 %v904
    %v3072 = vunpack.c.l.b16 %v905
    %v3073 = vunpack.c.h.b16 %v905
    %v3074 = vunpack.c.l.b16 %v906
    %v3075 = vunpack.c.h.b16 %v906
    %v3076 = vunpack.c.l.b16 %v907
    %v3077 = vunpack.c.h.b16 %v907
    %v3078 = vunpack.c.l.b16 %v908
    %v3079 = vunpack.c.h.b16 %v908
    %v3080 = vunpack.c.l.b16 %v909
    %v3081 = vunpack.c.h.b16 %v909
    %v3082 = vunpack.c.l.b16 %v910
    %v3083 = vunpack.c.h.b16 %v910
    %v3084 = vunpack.c.l.b16 %v911
    %v3085 = vunpack.c.h.b16 %v911
    %v3086 = vunpack.c.l.b16 %v912
    %v3087 = vunpack.c.h.b16 %v912
    %v3088 = vunpack.c.l.b16 %v913
    %v3089 = vunpack.c.h.b16 %v913
    %v3090 = vunpack.c.l.b16 %v914
    %v3091 = vunpack.c.h.b16 %v914
    %v3092 = vunpack.c.l.b16 %v915
    %v3093 = vunpack.c.h.b16 %v915
    %v3094 = vunpack.c.l.b16 %v916
    %v3095 = vunpack.c.h.b16 %v916
    %v3096 = vunpack.c.l.b16 %v917
    %v3097 = vunpack.c.h.b16 %v917
    %v3098 = vunpack.c.l.b16 %v918
    %v3099 = vunpack.c.h.b16 %v918
    %v3100 = vunpack.c.l.b16 %v919
    %v3101 = vunpack.c.h.b16 %v919
    %v3102 = vunpack.c.l.b16 %v920
    %v3103 = vunpack.c.h.b16 %v920
    %v3104 = vunpack.c.l.b16 %v921
    %v3105 = vunpack.c.h.b16 %v921
    %v3106 = vunpack.c.l.b16 %v922
    %v3107 = vunpack.c.h.b16 %v922
    %v3108 = vunpack.c.l.b16 %v923
    %v3109 = vunpack.c.h.b16 %v923
    %v3110 = vunpack.c.l.b16 %v924
    %v3111 = vunpack.c.h.b16 %v924
    %v3112 = vunpack.c.l.b16 %v925
    %v3113 = vunpack.c.h.b16 %v925
    %v3114 = vunpack.c.l.b16 %v926
    %v3115 = vunpack.c.h.b16 %v926
    %v3116 = vunpack.c.l.b16 %v927
    %v3117 = vunpack.c.h.b16 %v927
    %v3118 = vunpack.c.l.b16 %v928
    %v3119 = vunpack.c.h.b16 %v928
    %v3120 = vunpack.c.l.b16 %v929
    %v3121 = vunpack.c.h.b16 %v929
    %v3122 = vunpack.c.l.b16 %v930
    %v3123 = vunpack.c.h.b16 %v930
    %v3124 = vunpack.c.l.b16 %v931
    %v3125 = vunpack.c.h.b16 %v931
    %v3126 = vunpack.c.l.b16 %v932
    %v3127 = vunpack.c.h.b16 %v932
    %v3128 = vunpack.c.l.b16 %v933
    %v3129 = vunpack.c.h.b16 %v933
    %v3130 = vunpack.c.l.b16 %v934
    %v3131 = vunpack.c.h.b16 %v934
    %v3132 = vunpack.c.l.b16 %v935
    %v3133 = vunpack.c.h.b16 %v935
    %v3134 = vunpack.c.l.b16 %v936
    %v3135 = vunpack.c.h.b16 %v936
    %v3136 = vunpack.c.l.b16 %v937
    %v3137 = vunpack.c.h.b16 %v937
    %v3138 = vunpack.c.l.b16 %v938
    %v3139 = vunpack.c.h.b16 %v938
    %v3140 = vunpack.c.l.b16 %v939
    %v3141 = vunpack.c.h.b16 %v939
    %v3142 = vunpack.c.l.b16 %v940
    %v3143 = vunpack.c.h.b16 %v940
    %v3144 = vunpack.c.l.b16 %v941
    %v3145 = vunpack.c.h.b16 %v941
    %v3146 = vunpack.c.l.b16 %v942
    %v3147 = vunpack.c.h.b16 %v942
    %v3148 = vunpack.c.l.b16 %v943
    %v3149 = vunpack.c.h.b16 %v943
    %v3150 = vunpack.c.l.b16 %v944
    %v3151 = vunpack.c.h.b16 %v944
    %v3152 = vunpack.c.l.b16 %v945
    %v3153 = vunpack.c.h.b16 %v945
    %v3154 = vunpack.c.l.b16 %v946
    %v3155 = vunpack.c.h.b16 %v946
    %v3156 = vunpack.c.l.b16 %v947
    %v3157 = vunpack.c.h.b16 %v947
    %v3158 = vunpack.c.l.b16 %v948
    %v3159 = vunpack.c.h.b16 %v948
    %v3160 = vunpack.c.l.b16 %v949
    %v3161 = vunpack.c.h.b16 %v949
    %v3162 = vunpack.c.l.b16 %v950
    %v3163 = vunpack.c.h.b16 %v950
    %v3164 = vunpack.c.l.b16 %v951
    %v3165 = vunpack.c.h.b16 %v951
    %v3166 = vunpack.c.l.b16 %v952
    %v3167 = vunpack.c.h.b16 %v952
    %v3168 = vunpack.c.l.b16 %v953
    %v3169 = vunpack.c.h.b16 %v953
    %v3170 = vunpack.c.l.b16 %v954
    %v3171 = vunpack.c.h.b16 %v954
    %v3172 = vunpack.c.l.b16 %v955
    %v3173 = vunpack.c.h.b16 %v955
    %v3174 = vunpack.c.l.b16 %v956
    %v3175 = vunpack.c.h.b16 %v956
    %v3176 = vunpack.c.l.b16 %v957
    %v3177 = vunpack.c.h.b16 %v957
    %v3178 = vunpack.c.l.b16 %v958
    %v3179 = vunpack.c.h.b16 %v958
    %v3180 = vunpack.c.l.b16 %v959
    %v3181 = vunpack.c.h.b16 %v959
    %v3182 = vunpack.c.l.b16 %v960
    %v3183 = vunpack.c.h.b16 %v960
    %v3184 = vunpack.c.l.b16 %v961
    %v3185 = vunpack.c.h.b16 %v961
    %v3186 = vunpack.c.l.b16 %v962
    %v3187 = vunpack.c.h.b16 %v962
    %v3188 = vunpack.c.l.b16 %v963
    %v3189 = vunpack.c.h.b16 %v963
    %v3190 = vunpack.c.l.b16 %v964
    %v3191 = vunpack.c.h.b16 %v964
    %v3192 = vunpack.c.l.b16 %v965
    %v3193 = vunpack.c.h.b16 %v965
    %v3194 = vunpack.c.l.b16 %v966
    %v3195 = vunpack.c.h.b16 %v966
    %v3196 = vunpack.c.l.b16 %v967
    %v3197 = vunpack.c.h.b16 %v967
    %v3198 = vunpack.c.l.b16 %v968
    %v3199 = vunpack.c.h.b16 %v968
    %v3200 = vunpack.c.l.b16 %v969
    %v3201 = vunpack.c.h.b16 %v969
    %v3202 = vunpack.c.l.b16 %v970
    %v3203 = vunpack.c.h.b16 %v970
    %v3204 = vunpack.c.l.b16 %v971
    %v3205 = vunpack.c.h.b16 %v971
    %v3206 = vunpack.c.l.b16 %v972
    %v3207 = vunpack.c.h.b16 %v972
    %v3208 = vunpack.c.l.b16 %v973
    %v3209 = vunpack.c.h.b16 %v973
    %v3210 = vunpack.c.l.b16 %v974
    %v3211 = vunpack.c.h.b16 %v974
    %v3212 = vunpack.c.l.b16 %v975
    %v3213 = vunpack.c.h.b16 %v975
    %v3214 = vunpack.c.l.b16 %v976
    %v3215 = vunpack.c.h.b16 %v976
    %v3216 = vunpack.c.l.b16 %v977
    %v3217 = vunpack.c.h.b16 %v977
    %v3218 = vunpack.c.l.b16 %v978
    %v3219 = vunpack.c.h.b16 %v978
    %v3220 = vunpack.c.l.b16 %v979
    %v3221 = vunpack.c.h.b16 %v979
    %v3222 = vunpack.c.l.b16 %v980
    %v3223 = vunpack.c.h.b16 %v980
    %v3224 = vunpack.c.l.b16 %v981
    %v3225 = vunpack.c.h.b16 %v981
    %v3226 = vunpack.c.l.b16 %v982
    %v3227 = vunpack.c.h.b16 %v982
    %v3228 = vunpack.c.l.b16 %v983
    %v3229 = vunpack.c.h.b16 %v983
    %v3230 = vunpack.c.l.b16 %v984
    %v3231 = vunpack.c.h.b16 %v984
    %v3232 = vunpack.c.l.b16 %v985
    %v3233 = vunpack.c.h.b16 %v985
    %v3234 = vunpack.c.l.b16 %v986
    %v3235 = vunpack.c.h.b16 %v986
    %v3236 = vunpack.c.l.b16 %v987
    %v3237 = vunpack.c.h.b16 %v987
    %v3238 = vunpack.c.l.b16 %v988
    %v3239 = vunpack.c.h.b16 %v988
    %v3240 = vunpack.c.l.b16 %v989
    %v3241 = vunpack.c.h.b16 %v989
    %v3242 = vunpack.c.l.b16 %v990
    %v3243 = vunpack.c.h.b16 %v990
    %v3244 = vunpack.c.l.b16 %v991
    %v3245 = vunpack.c.h.b16 %v991
    %v3246 = vunpack.c.l.b16 %v992
    %v3247 = vunpack.c.h.b16 %v992
    %v3248 = vunpack.c.l.b16 %v993
    %v3249 = vunpack.c.h.b16 %v993
    %v3250 = vunpack.c.l.b16 %v994
    %v3251 = vunpack.c.h.b16 %v994
    %v3252 = vunpack.c.l.b16 %v995
    %v3253 = vunpack.c.h.b16 %v995
    %v3254 = vunpack.c.l.b16 %v996
    %v3255 = vunpack.c.h.b16 %v996
    %v3256 = vunpack.c.l.b16 %v997
    %v3257 = vunpack.c.h.b16 %v997
    %v3258 = vunpack.c.l.b16 %v998
    %v3259 = vunpack.c.h.b16 %v998
    %v3260 = vunpack.c.l.b16 %v999
    %v3261 = vunpack.c.h.b16 %v999
    %v3262 = vunpack.c.l.b16 %v1000
    %v3263 = vunpack.c.h.b16 %v1000
    %v3264 = vunpack.c.l.b16 %v1001
    %v3265 = vunpack.c.h.b16 %v1001
    %v3266 = vunpack.c.l.b16 %v1002
    %v3267 = vunpack.c.h.b16 %v1002
    %v3268 = vunpack.c.l.b16 %v1003
    %v3269 = vunpack.c.h.b16 %v1003
    %v3270 = vunpack.c.l.b16 %v1004
    %v3271 = vunpack.c.h.b16 %v1004
    %v3272 = vunpack.c.l.b16 %v1005
    %v3273 = vunpack.c.h.b16 %v1005
    %v3274 = vunpack.c.l.b16 %v1006
    %v3275 = vunpack.c.h.b16 %v1006
    %v3276 = vunpack.c.l.b16 %v1007
    %v3277 = vunpack.c.h.b16 %v1007
    %v3278 = vunpack.c.l.b16 %v1008
    %v3279 = vunpack.c.h.b16 %v1008
    %v3280 = vunpack.c.l.b16 %v1009
    %v3281 = vunpack.c.h.b16 %v1009
    %v3282 = vunpack.c.l.b16 %v1010
    %v3283 = vunpack.c.h.b16 %v1010
    %v3284 = vunpack.c.l.b16 %v1011
    %v3285 = vunpack.c.h.b16 %v1011
    %v3286 = vunpack.c.l.b16 %v1012
    %v3287 = vunpack.c.h.b16 %v1012
    %v3288 = vunpack.c.l.b16 %v1013
    %v3289 = vunpack.c.h.b16 %v1013
    %v3290 = vunpack.c.l.b16 %v1014
    %v3291 = vunpack.c.h.b16 %v1014
    %v3292 = vunpack.c.l.b16 %v1015
    %v3293 = vunpack.c.h.b16 %v1015
    %v3294 = vunpack.c.l.b16 %v1016
    %v3295 = vunpack.c.h.b16 %v1016
    %v3296 = vunpack.c.l.b16 %v1017
    %v3297 = vunpack.c.h.b16 %v1017
    %v3298 = vunpack.c.l.b16 %v1018
    %v3299 = vunpack.c.h.b16 %v1018
    %v3300 = vunpack.c.l.b16 %v1019
    %v3301 = vunpack.c.h.b16 %v1019
    %v3302 = vunpack.c.l.b16 %v1020
    %v3303 = vunpack.c.h.b16 %v1020
    %v3304 = vunpack.c.l.b16 %v1021
    %v3305 = vunpack.c.h.b16 %v1021
    %v3306 = vunpack.c.l.b16 %v1022
    %v3307 = vunpack.c.h.b16 %v1022
    %v3308 = vunpack.c.l.b16 %v1023
    %v3309 = vunpack.c.h.b16 %v1023
    %v3310 = vunpack.c.l.b16 %v1024
    %v3311 = vunpack.c.h.b16 %v1024
    %v3312 = vunpack.c.l.b16 %v1025
    %v3313 = vunpack.c.h.b16 %v1025
    %v3314 = vunpack.c.l.b16 %v1026
    %v3315 = vunpack.c.h.b16 %v1026
    %v3316 = vunpack.c.l.b16 %v1027
    %v3317 = vunpack.c.h.b16 %v1027
    %v3318 = vunpack.c.l.b16 %v1028
    %v3319 = vunpack.c.h.b16 %v1028
    %v3320 = vunpack.c.l.b16 %v1029
    %v3321 = vunpack.c.h.b16 %v1029
    %v3322 = vunpack.c.l.b16 %v1030
    %v3323 = vunpack.c.h.b16 %v1030
    %v3324 = vunpack.c.l.b16 %v1031
    %v3325 = vunpack.c.h.b16 %v1031
    %v3326 = vunpack.c.l.b16 %v1032
    %v3327 = vunpack.c.h.b16 %v1032
    %v3328 = vunpack.c.l.b16 %v1033
    %v3329 = vunpack.c.h.b16 %v1033
    %v3330 = vunpack.c.l.b16 %v1034
    %v3331 = vunpack.c.h.b16 %v1034
    %v3332 = vunpack.c.l.b16 %v1035
    %v3333 = vunpack.c.h.b16 %v1035
    %v3334 = vunpack.c.l.b16 %v1036
    %v3335 = vunpack.c.h.b16 %v1036
    %v3336 = vunpack.c.l.b16 %v1037
    %v3337 = vunpack.c.h.b16 %v1037
    %v3338 = vunpack.c.l.b16 %v1038
    %v3339 = vunpack.c.h.b16 %v1038
    %v3340 = vunpack.c.l.b16 %v1039
    %v3341 = vunpack.c.h.b16 %v1039
    %v3342 = vunpack.c.l.b16 %v1040
    %v3343 = vunpack.c.h.b16 %v1040
    %v3344 = vunpack.c.l.b16 %v1041
    %v3345 = vunpack.c.h.b16 %v1041
    %v3346 = vunpack.c.l.b16 %v1042
    %v3347 = vunpack.c.h.b16 %v1042
    %v3348 = vunpack.c.l.b16 %v1043
    %v3349 = vunpack.c.h.b16 %v1043
    %v3350 = vunpack.c.l.b16 %v1044
    %v3351 = vunpack.c.h.b16 %v1044
    %v3352 = vunpack.c.l.b16 %v1045
    %v3353 = vunpack.c.h.b16 %v1045
    %v3354 = vunpack.c.l.b16 %v1046
    %v3355 = vunpack.c.h.b16 %v1046
    %v3356 = vunpack.c.l.b16 %v1047
    %v3357 = vunpack.c.h.b16 %v1047
    %v3358 = vunpack.c.l.b16 %v1048
    %v3359 = vunpack.c.h.b16 %v1048
    %v3360 = vunpack.c.l.b16 %v1049
    %v3361 = vunpack.c.h.b16 %v1049
    %v3362 = vunpack.c.l.b16 %v1050
    %v3363 = vunpack.c.h.b16 %v1050
    %v3364 = vunpack.c.l.b16 %v1051
    %v3365 = vunpack.c.h.b16 %v1051
    %v3366 = vunpack.c.l.b16 %v1052
    %v3367 = vunpack.c.h.b16 %v1052
    %v3368 = vunpack.c.l.b16 %v1053
    %v3369 = vunpack.c.h.b16 %v1053
    %v3370 = vunpack.c.l.b16 %v1054
    %v3371 = vunpack.c.h.b16 %v1054
    %v3372 = vunpack.c.l.b16 %v1055
    %v3373 = vunpack.c.h.b16 %v1055
    %v3374 = vunpack.c.l.b16 %v1056
    %v3375 = vunpack.c.h.b16 %v1056
    %v3376 = vunpack.c.l.b16 %v1057
    %v3377 = vunpack.c.h.b16 %v1057
    %v3378 = vunpack.c.l.b16 %v1058
    %v3379 = vunpack.c.h.b16 %v1058
    %v3380 = vunpack.c.l.b16 %v1059
    %v3381 = vunpack.c.h.b16 %v1059
    %v3382 = vunpack.c.l.b16 %v1060
    %v3383 = vunpack.c.h.b16 %v1060
    %v3384 = vunpack.c.l.b16 %v1061
    %v3385 = vunpack.c.h.b16 %v1061
    %v3386 = vunpack.c.l.b16 %v1062
    %v3387 = vunpack.c.h.b16 %v1062
    %v3388 = vunpack.c.l.b16 %v1063
    %v3389 = vunpack.c.h.b16 %v1063
    %v3390 = vpack.c.b16 %v1858, %v1854
    %v3391 = vpack.c.b16 %v1859, %v1855
    %v3392 = vpack.c.b16 %v1860, %v1856
    %v3393 = vpack.c.b16 %v1861, %v1857
    %v3394 = vpack.c.b16 %v1866, %v1862
    %v3395 = vpack.c.b16 %v1867, %v1863
    %v3396 = vpack.c.b16 %v1868, %v1864
    %v3397 = vpack.c.b16 %v1869, %v1865
    %v3398 = vpack.c.b16 %v1874, %v1870
    %v3399 = vpack.c.b16 %v1875, %v1871
    %v3400 = vpack.c.b16 %v1876, %v1872
    %v3401 = vpack.c.b16 %v1877, %v1873
    %v3402 = vpack.c.b16 %v1882, %v1878
    %v3403 = vpack.c.b16 %v1883, %v1879
    %v3404 = vpack.c.b16 %v1884, %v1880
    %v3405 = vpack.c.b16 %v1885, %v1881
    %v3406 = vpack.c.b16 %v1890, %v1886
    %v3407 = vpack.c.b16 %v1891, %v1887
    %v3408 = vpack.c.b16 %v1892, %v1888
    %v3409 = vpack.c.b16 %v1893, %v1889
    %v3410 = vpack.c.b16 %v1898, %v1894
    %v3411 = vpack.c.b16 %v1899, %v1895
    %v3412 = vpack.c.b16 %v1900, %v1896
    %v3413 = vpack.c.b16 %v1901, %v1897
    %v3414 = vpack.c.b16 %v1906, %v1902
    %v3415 = vpack.c.b16 %v1907, %v1903
    %v3416 = vpack.c.b16 %v1908, %v1904
    %v3417 = vpack.c.b16 %v1909, %v1905
    %v3418 = vpack.c.b16 %v1914, %v1910
    %v3419 = vpack.c.b16 %v1915, %v1911
    %v3420 = vpack.c.b16 %v1916, %v1912
    %v3421 = vpack.c.b16 %v1917, %v1913
    %v3422 = vpack.c.b16 %v1922, %v1918
    %v3423 = vpack.c.b16 %v1923, %v1919
    %v3424 = vpack.c.b16 %v1924, %v1920
    %v3425 = vpack.c.b16 %v1925, %v1921
    %v3426 = vpack.c.b16 %v1930, %v1926
    %v3427 = vpack.c.b16 %v1931, %v1927
    %v3428 = vpack.c.b16 %v1932, %v1928
    %v3429 = vpack.c.b16 %v1933, %v1929
    %v3430 = vpack.c.b16 %v1938, %v1934
    %v3431 = vpack.c.b16 %v1939, %v1935
    %v3432 = vpack.c.b16 %v1940, %v1936
    %v3433 = vpack.c.b16 %v1941, %v1937
    %v3434 = vpack.c.b16 %v1946, %v1942
    %v3435 = vpack.c.b16 %v1947, %v1943
    %v3436 = vpack.c.b16 %v1948, %v1944
    %v3437 = vpack.c.b16 %v1949, %v1945
    %v3438 = vpack.c.b16 %v1954, %v1950
    %v3439 = vpack.c.b16 %v1955, %v1951
    %v3440 = vpack.c.b16 %v1956, %v1952
    %v3441 = vpack.c.b16 %v1957, %v1953
    %v3442 = vpack.c.b16 %v1962, %v1958
    %v3443 = vpack.c.b16 %v1963, %v1959
    %v3444 = vpack.c.b16 %v1964, %v1960
    %v3445 = vpack.c.b16 %v1965, %v1961
    %v3446 = vpack.c.b16 %v1970, %v1966
    %v3447 = vpack.c.b16 %v1971, %v1967
    %v3448 = vpack.c.b16 %v1972, %v1968
    %v3449 = vpack.c.b16 %v1973, %v1969
    %v3450 = vpack.c.b16 %v1978, %v1974
    %v3451 = vpack.c.b16 %v1979, %v1975
    %v3452 = vpack.c.b16 %v1980, %v1976
    %v3453 = vpack.c.b16 %v1981, %v1977
    %v3454 = vpack.c.b16 %v1986, %v1982
    %v3455 = vpack.c.b16 %v1987, %v1983
    %v3456 = vpack.c.b16 %v1988, %v1984
    %v3457 = vpack.c.b16 %v1989, %v1985
    %v3458 = vpack.c.b16 %v1994, %v1990
    %v3459 = vpack.c.b16 %v1995, %v1991
    %v3460 = vpack.c.b16 %v1996, %v1992
    %v3461 = vpack.c.b16 %v1997, %v1993
    %v3462 = vpack.c.b16 %v2002, %v1998
    %v3463 = vpack.c.b16 %v2003, %v1999
    %v3464 = vpack.c.b16 %v2004, %v2000
    %v3465 = vpack.c.b16 %v2005, %v2001
    %v3466 = vpack.c.b16 %v2010, %v2006
    %v3467 = vpack.c.b16 %v2011, %v2007
    %v3468 = vpack.c.b16 %v2012, %v2008
    %v3469 = vpack.c.b16 %v2013, %v2009
    %v3470 = vpack.c.b16 %v2018, %v2014
    %v3471 = vpack.c.b16 %v2019, %v2015
    %v3472 = vpack.c.b16 %v2020, %v2016
    %v3473 = vpack.c.b16 %v2021, %v2017
    %v3474 = vpack.c.b16 %v2026, %v2022
    %v3475 = vpack.c.b16 %v2027, %v2023
    %v3476 = vpack.c.b16 %v2028, %v2024
    %v3477 = vpack.c.b16 %v2029, %v2025
    %v3478 = vpack.c.b16 %v2034, %v2030
    %v3479 = vpack.c.b16 %v2035, %v2031
    %v3480 = vpack.c.b16 %v2036, %v2032
    %v3481 = vpack.c.b16 %v2037, %v2033
    %v3482 = vpack.c.b16 %v2042, %v2038
    %v3483 = vpack.c.b16 %v2043, %v2039
    %v3484 = vpack.c.b16 %v2044, %v2040
    %v3485 = vpack.c.b16 %v2045, %v2041
    %v3486 = vpack.c.b16 %v2050, %v2046
    %v3487 = vpack.c.b16 %v2051, %v2047
    %v3488 = vpack.c.b16 %v2052, %v2048
    %v3489 = vpack.c.b16 %v2053, %v2049
    %v3490 = vpack.c.b16 %v2058, %v2054
    %v3491 = vpack.c.b16 %v2059, %v2055
    %v3492 = vpack.c.b16 %v2060, %v2056
    %v3493 = vpack.c.b16 %v2061, %v2057
    %v3494 = vpack.c.b16 %v2066, %v2062
    %v3495 = vpack.c.b16 %v2067, %v2063
    %v3496 = vpack.c.b16 %v2068, %v2064
    %v3497 = vpack.c.b16 %v2069, %v2065
    %v3498 = vpack.c.b16 %v2074, %v2070
    %v3499 = vpack.c.b16 %v2075, %v2071
    %v3500 = vpack.c.b16 %v2076, %v2072
    %v3501 = vpack.c.b16 %v2077, %v2073
    %v3502 = vpack.c.b16 %v2082, %v2078
    %v3503 = vpack.c.b16 %v2083, %v2079
    %v3504 = vpack.c.b16 %v2084, %v2080
    %v3505 = vpack.c.b16 %v2085, %v2081
    %v3506 = vpack.c.b16 %v2090, %v2086
    %v3507 = vpack.c.b16 %v2091, %v2087
    %v3508 = vpack.c.b16 %v2092, %v2088
    %v3509 = vpack.c.b16 %v2093, %v2089
    %v3510 = vpack.c.b16 %v2098, %v2094
    %v3511 = vpack.c.b16 %v2099, %v2095
    %v3512 = vpack.c.b16 %v2100, %v2096
    %v3513 = vpack.c.b16 %v2101, %v2097
    %v3514 = vpack.c.b16 %v2106, %v2102
    %v3515 = vpack.c.b16 %v2107, %v2103
    %v3516 = vpack.c.b16 %v2108, %v2104
    %v3517 = vpack.c.b16 %v2109, %v2105
    %v3518 = vpack.c.b16 %v2114, %v2110
    %v3519 = vpack.c.b16 %v2115, %v2111
    %v3520 = vpack.c.b16 %v2116, %v2112
    %v3521 = vpack.c.b16 %v2117, %v2113
    %v3522 = vpack.c.b16 %v2122, %v2118
    %v3523 = vpack.c.b16 %v2123, %v2119
    %v3524 = vpack.c.b16 %v2124, %v2120
    %v3525 = vpack.c.b16 %v2125, %v2121
    %v3526 = vpack.c.b16 %v2130, %v2126
    %v3527 = vpack.c.b16 %v2131, %v2127
    %v3528 = vpack.c.b16 %v2132, %v2128
    %v3529 = vpack.c.b16 %v2133, %v2129
    %v3530 = vpack.c.b16 %v2138, %v2134
    %v3531 = vpack.c.b16 %v2139, %v2135
    %v3532 = vpack.c.b16 %v2140, %v2136
    %v3533 = vpack.c.b16 %v2141, %v2137
    %v3534 = vpack.c.b16 %v2146, %v2142
    %v3535 = vpack.c.b16 %v2147, %v2143
    %v3536 = vpack.c.b16 %v2148, %v2144
    %v3537 = vpack.c.b16 %v2149, %v2145
    %v3538 = vpack.c.b16 %v2154, %v2150
    %v3539 = vpack.c.b16 %v2155, %v2151
    %v3540 = vpack.c.b16 %v2156, %v2152
    %v3541 = vpack.c.b16 %v2157, %v2153
    %v3542 = vpack.c.b16 %v2162, %v2158
    %v3543 = vpack.c.b16 %v2163, %v2159
    %v3544 = vpack.c.b16 %v2164, %v2160
    %v3545 = vpack.c.b16 %v2165, %v2161
    %v3546 = vpack.c.b16 %v2170, %v2166
    %v3547 = vpack.c.b16 %v2171, %v2167
    %v3548 = vpack.c.b16 %v2172, %v2168
    %v3549 = vpack.c.b16 %v2173, %v2169
    %v3550 = vpack.c.b16 %v2178, %v2174
    %v3551 = vpack.c.b16 %v2179, %v2175
    %v3552 = vpack.c.b16 %v2180, %v2176
    %v3553 = vpack.c.b16 %v2181, %v2177
    %v3554 = vpack.c.b16 %v2186, %v2182
    %v3555 = vpack.c.b16 %v2187, %v2183
    %v3556 = vpack.c.b16 %v2188, %v2184
    %v3557 = vpack.c.b16 %v2189, %v2185
    %v3558 = vpack.c.b16 %v2194, %v2190
    %v3559 = vpack.c.b16 %v2195, %v2191
    %v3560 = vpack.c.b16 %v2196, %v2192
    %v3561 = vpack.c.b16 %v2197, %v2193
    %v3562 = vpack.c.b16 %v2202, %v2198
    %v3563 = vpack.c.b16 %v2203, %v2199
    %v3564 = vpack.c.b16 %v2204, %v2200
    %v3565 = vpack.c.b16 %v2205, %v2201
    %v3566 = vpack.c.b16 %v2210, %v2206
    %v3567 = vpack.c.b16 %v2211, %v2207
    %v3568 = vpack.c.b16 %v2212, %v2208
    %v3569 = vpack.c.b16 %v2213, %v2209
    %v3570 = vpack.c.b16 %v2218, %v2214
    %v3571 = vpack.c.b16 %v2219, %v2215
    %v3572 = vpack.c.b16 %v2220, %v2216
    %v3573 = vpack.c.b16 %v2221, %v2217
    %v3574 = vpack.c.b16 %v2226, %v2222
    %v3575 = vpack.c.b16 %v2227, %v2223
    %v3576 = vpack.c.b16 %v2228, %v2224
    %v3577 = vpack.c.b16 %v2229, %v2225
    %v3578 = vpack.c.b16 %v2234, %v2230
    %v3579 = vpack.c.b16 %v2235, %v2231
    %v3580 = vpack.c.b16 %v2236, %v2232
    %v3581 = vpack.c.b16 %v2237, %v2233
    %v3582 = vpack.c.b16 %v2242, %v2238
    %v3583 = vpack.c.b16 %v2243, %v2239
    %v3584 = vpack.c.b16 %v2244, %v2240
    %v3585 = vpack.c.b16 %v2245, %v2241
    %v3586 = vpack.c.b16 %v2250, %v2246
    %v3587 = vpack.c.b16 %v2251, %v2247
    %v3588 = vpack.c.b16 %v2252, %v2248
    %v3589 = vpack.c.b16 %v2253, %v2249
    %v3590 = vpack.c.b16 %v2258, %v2254
    %v3591 = vpack.c.b16 %v2259, %v2255
    %v3592 = vpack.c.b16 %v2260, %v2256
    %v3593 = vpack.c.b16 %v2261, %v2257
    %v3594 = vpack.c.b16 %v2266, %v2262
    %v3595 = vpack.c.b16 %v2267, %v2263
    %v3596 = vpack.c.b16 %v2268, %v2264
    %v3597 = vpack.c.b16 %v2269, %v2265
    %v3598 = vpack.c.b16 %v2274, %v2270
    %v3599 = vpack.c.b16 %v2275, %v2271
    %v3600 = vpack.c.b16 %v2276, %v2272
    %v3601 = vpack.c.b16 %v2277, %v2273
    %v3602 = vpack.c.b16 %v2282, %v2278
    %v3603 = vpack.c.b16 %v2283, %v2279
    %v3604 = vpack.c.b16 %v2284, %v2280
    %v3605 = vpack.c.b16 %v2285, %v2281
    %v3606 = vpack.c.b16 %v2290, %v2286
    %v3607 = vpack.c.b16 %v2291, %v2287
    %v3608 = vpack.c.b16 %v2292, %v2288
    %v3609 = vpack.c.b16 %v2293, %v2289
    %v3610 = vpack.c.b16 %v2298, %v2294
    %v3611 = vpack.c.b16 %v2299, %v2295
    %v3612 = vpack.c.b16 %v2300, %v2296
    %v3613 = vpack.c.b16 %v2301, %v2297
    %v3614 = vpack.c.b16 %v2306, %v2302
    %v3615 = vpack.c.b16 %v2307, %v2303
    %v3616 = vpack.c.b16 %v2308, %v2304
    %v3617 = vpack.c.b16 %v2309, %v2305
    %v3618 = vpack.c.b16 %v2314, %v2310
    %v3619 = vpack.c.b16 %v2315, %v2311
    %v3620 = vpack.c.b16 %v2316, %v2312
    %v3621 = vpack.c.b16 %v2317, %v2313
    %v3622 = vpack.c.b16 %v2322, %v2318
    %v3623 = vpack.c.b16 %v2323, %v2319
    %v3624 = vpack.c.b16 %v2324, %v2320
    %v3625 = vpack.c.b16 %v2325, %v2321
    %v3626 = vpack.c.b16 %v2330, %v2326
    %v3627 = vpack.c.b16 %v2331, %v2327
    %v3628 = vpack.c.b16 %v2332, %v2328
    %v3629 = vpack.c.b16 %v2333, %v2329
    %v3630 = vpack.c.b16 %v2338, %v2334
    %v3631 = vpack.c.b16 %v2339, %v2335
    %v3632 = vpack.c.b16 %v2340, %v2336
    %v3633 = vpack.c.b16 %v2341, %v2337
    %v3634 = vpack.c.b16 %v2346, %v2342
    %v3635 = vpack.c.b16 %v2347, %v2343
    %v3636 = vpack.c.b16 %v2348, %v2344
    %v3637 = vpack.c.b16 %v2349, %v2345
    %v3638 = vpack.c.b16 %v2354, %v2350
    %v3639 = vpack.c.b16 %v2355, %v2351
    %v3640 = vpack.c.b16 %v2356, %v2352
    %v3641 = vpack.c.b16 %v2357, %v2353
    %v3642 = vpack.c.b16 %v2362, %v2358
    %v3643 = vpack.c.b16 %v2363, %v2359
    %v3644 = vpack.c.b16 %v2364, %v2360
    %v3645 = vpack.c.b16 %v2365, %v2361
    %v3646 = vpack.c.b16 %v2370, %v2366
    %v3647 = vpack.c.b16 %v2371, %v2367
    %v3648 = vpack.c.b16 %v2372, %v2368
    %v3649 = vpack.c.b16 %v2373, %v2369
    %v3650 = vpack.c.b16 %v2378, %v2374
    %v3651 = vpack.c.b16 %v2379, %v2375
    %v3652 = vpack.c.b16 %v2380, %v2376
    %v3653 = vpack.c.b16 %v2381, %v2377
    %v3654 = vpack.c.b16 %v2386, %v2382
    %v3655 = vpack.c.b16 %v2387, %v2383
    %v3656 = vpack.c.b16 %v2388, %v2384
    %v3657 = vpack.c.b16 %v2389, %v2385
    %v3658 = vpack.c.b16 %v2394, %v2390
    %v3659 = vpack.c.b16 %v2395, %v2391
    %v3660 = vpack.c.b16 %v2396, %v2392
    %v3661 = vpack.c.b16 %v2397, %v2393
    %v3662 = vpack.c.b16 %v2402, %v2398
    %v3663 = vpack.c.b16 %v2403, %v2399
    %v3664 = vpack.c.b16 %v2404, %v2400
    %v3665 = vpack.c.b16 %v2405, %v2401
    %v3666 = vpack.c.b16 %v2410, %v2406
    %v3667 = vpack.c.b16 %v2411, %v2407
    %v3668 = vpack.c.b16 %v2412, %v2408
    %v3669 = vpack.c.b16 %v2413, %v2409
    %v3670 = vpack.c.b16 %v2418, %v2414
    %v3671 = vpack.c.b16 %v2419, %v2415
    %v3672 = vpack.c.b16 %v2420, %v2416
    %v3673 = vpack.c.b16 %v2421, %v2417
    %v3674 = vpack.c.b16 %v2426, %v2422
    %v3675 = vpack.c.b16 %v2427, %v2423
    %v3676 = vpack.c.b16 %v2428, %v2424
    %v3677 = vpack.c.b16 %v2429, %v2425
    %v3678 = vpack.c.b16 %v2434, %v2430
    %v3679 = vpack.c.b16 %v2435, %v2431
    %v3680 = vpack.c.b16 %v2436, %v2432
    %v3681 = vpack.c.b16 %v2437, %v2433
    %v3682 = vpack.c.b16 %v2442, %v2438
    %v3683 = vpack.c.b16 %v2443, %v2439
    %v3684 = vpack.c.b16 %v2444, %v2440
    %v3685 = vpack.c.b16 %v2445, %v2441
    %v3686 = vpack.c.b16 %v2450, %v2446
    %v3687 = vpack.c.b16 %v2451, %v2447
    %v3688 = vpack.c.b16 %v2452, %v2448
    %v3689 = vpack.c.b16 %v2453, %v2449
    %v3690 = vpack.c.b16 %v2458, %v2454
    %v3691 = vpack.c.b16 %v2459, %v2455
    %v3692 = vpack.c.b16 %v2460, %v2456
    %v3693 = vpack.c.b16 %v2461, %v2457
    %v3694 = vpack.c.b16 %v2466, %v2462
    %v3695 = vpack.c.b16 %v2467, %v2463
    %v3696 = vpack.c.b16 %v2468, %v2464
    %v3697 = vpack.c.b16 %v2469, %v2465
    %v3698 = vpack.c.b16 %v2474, %v2470
    %v3699 = vpack.c.b16 %v2475, %v2471
    %v3700 = vpack.c.b16 %v2476, %v2472
    %v3701 = vpack.c.b16 %v2477, %v2473
    %v3702 = vpack.c.b16 %v2482, %v2478
    %v3703 = vpack.c.b16 %v2483, %v2479
    %v3704 = vpack.c.b16 %v2484, %v2480
    %v3705 = vpack.c.b16 %v2485, %v2481
    %v3706 = vpack.c.b16 %v2490, %v2486
    %v3707 = vpack.c.b16 %v2491, %v2487
    %v3708 = vpack.c.b16 %v2492, %v2488
    %v3709 = vpack.c.b16 %v2493, %v2489
    %v3710 = vpack.c.b16 %v2498, %v2494
    %v3711 = vpack.c.b16 %v2499, %v2495
    %v3712 = vpack.c.b16 %v2500, %v2496
    %v3713 = vpack.c.b16 %v2501, %v2497
    %v3714 = vpack.c.b16 %v2506, %v2502
    %v3715 = vpack.c.b16 %v2507, %v2503
    %v3716 = vpack.c.b16 %v2508, %v2504
    %v3717 = vpack.c.b16 %v2509, %v2505
    %v3718 = vpack.c.b16 %v2514, %v2510
    %v3719 = vpack.c.b16 %v2515, %v2511
    %v3720 = vpack.c.b16 %v2516, %v2512
    %v3721 = vpack.c.b16 %v2517, %v2513
    %v3722 = vpack.c.b16 %v2522, %v2518
    %v3723 = vpack.c.b16 %v2523, %v2519
    %v3724 = vpack.c.b16 %v2524, %v2520
    %v3725 = vpack.c.b16 %v2525, %v2521
    %v3726 = vpack.c.b16 %v2530, %v2526
    %v3727 = vpack.c.b16 %v2531, %v2527
    %v3728 = vpack.c.b16 %v2532, %v2528
    %v3729 = vpack.c.b16 %v2533, %v2529
    %v3730 = vpack.c.b16 %v2538, %v2534
    %v3731 = vpack.c.b16 %v2539, %v2535
    %v3732 = vpack.c.b16 %v2540, %v2536
    %v3733 = vpack.c.b16 %v2541, %v2537
    %v3734 = vpack.c.b16 %v2546, %v2542
    %v3735 = vpack.c.b16 %v2547, %v2543
    %v3736 = vpack.c.b16 %v2548, %v2544
    %v3737 = vpack.c.b16 %v2549, %v2545
    %v3738 = vpack.c.b16 %v2554, %v2550
    %v3739 = vpack.c.b16 %v2555, %v2551
    %v3740 = vpack.c.b16 %v2556, %v2552
    %v3741 = vpack.c.b16 %v2557, %v2553
    %v3742 = vpack.c.b16 %v2562, %v2558
    %v3743 = vpack.c.b16 %v2563, %v2559
    %v3744 = vpack.c.b16 %v2564, %v2560
    %v3745 = vpack.c.b16 %v2565, %v2561
    %v3746 = vpack.c.b16 %v2570, %v2566
    %v3747 = vpack.c.b16 %v2571, %v2567
    %v3748 = vpack.c.b16 %v2572, %v2568
    %v3749 = vpack.c.b16 %v2573, %v2569
    %v3750 = vpack.c.b16 %v2578, %v2574
    %v3751 = vpack.c.b16 %v2579, %v2575
    %v3752 = vpack.c.b16 %v2580, %v2576
    %v3753 = vpack.c.b16 %v2581, %v2577
    %v3754 = vpack.c.b16 %v2586, %v2582
    %v3755 = vpack.c.b16 %v2587, %v2583
    %v3756 = vpack.c.b16 %v2588, %v2584
    %v3757 = vpack.c.b16 %v2589, %v2585
    %v3758 = vpack.c.b16 %v2594, %v2590
    %v3759 = vpack.c.b16 %v2595, %v2591
    %v3760 = vpack.c.b16 %v2596, %v2592
    %v3761 = vpack.c.b16 %v2597, %v2593
    %v3762 = vpack.c.b16 %v2602, %v2598
    %v3763 = vpack.c.b16 %v2603, %v2599
    %v3764 = vpack.c.b16 %v2604, %v2600
    %v3765 = vpack.c.b16 %v2605, %v2601
    %v3766 = vpack.c.b16 %v2610, %v2606
    %v3767 = vpack.c.b16 %v2611, %v2607
    %v3768 = vpack.c.b16 %v2612, %v2608
    %v3769 = vpack.c.b16 %v2613, %v2609
    %v3770 = vpack.c.b16 %v2618, %v2614
    %v3771 = vpack.c.b16 %v2619, %v2615
    %v3772 = vpack.c.b16 %v2620, %v2616
    %v3773 = vpack.c.b16 %v2621, %v2617
    %v3774 = vpack.c.b16 %v2626, %v2622
    %v3775 = vpack.c.b16 %v2627, %v2623
    %v3776 = vpack.c.b16 %v2628, %v2624
    %v3777 = vpack.c.b16 %v2629, %v2625
    %v3778 = vpack.c.b16 %v2634, %v2630
    %v3779 = vpack.c.b16 %v2635, %v2631
    %v3780 = vpack.c.b16 %v2636, %v2632
    %v3781 = vpack.c.b16 %v2637, %v2633
    %v3782 = vpack.c.b16 %v2642, %v2638
    %v3783 = vpack.c.b16 %v2643, %v2639
    %v3784 = vpack.c.b16 %v2644, %v2640
    %v3785 = vpack.c.b16 %v2645, %v2641
    %v3786 = vpack.c.b16 %v2650, %v2646
    %v3787 = vpack.c.b16 %v2651, %v2647
    %v3788 = vpack.c.b16 %v2652, %v2648
    %v3789 = vpack.c.b16 %v2653, %v2649
    %v3790 = vpack.c.b16 %v2658, %v2654
    %v3791 = vpack.c.b16 %v2659, %v2655
    %v3792 = vpack.c.b16 %v2660, %v2656
    %v3793 = vpack.c.b16 %v2661, %v2657
    %v3794 = vpack.c.b16 %v2666, %v2662
    %v3795 = vpack.c.b16 %v2667, %v2663
    %v3796 = vpack.c.b16 %v2668, %v2664
    %v3797 = vpack.c.b16 %v2669, %v2665
    %v3798 = vpack.c.b16 %v2674, %v2670
    %v3799 = vpack.c.b16 %v2675, %v2671
    %v3800 = vpack.c.b16 %v2676, %v2672
    %v3801 = vpack.c.b16 %v2677, %v2673
    %v3802 = vpack.c.b16 %v2682, %v2678
    %v3803 = vpack.c.b16 %v2683, %v2679
    %v3804 = vpack.c.b16 %v2684, %v2680
    %v3805 = vpack.c.b16 %v2685, %v2681
    %v3806 = vpack.c.b16 %v2690, %v2686
    %v3807 = vpack.c.b16 %v2691, %v2687
    %v3808 = vpack.c.b16 %v2692, %v2688
    %v3809 = vpack.c.b16 %v2693, %v2689
    %v3810 = vpack.c.b16 %v2698, %v2694
    %v3811 = vpack.c.b16 %v2699, %v2695
    %v3812 = vpack.c.b16 %v2700, %v2696
    %v3813 = vpack.c.b16 %v2701, %v2697
    %v3814 = vpack.c.b16 %v2706, %v2702
    %v3815 = vpack.c.b16 %v2707, %v2703
    %v3816 = vpack.c.b16 %v2708, %v2704
    %v3817 = vpack.c.b16 %v2709, %v2705
    %v3818 = vpack.c.b16 %v2714, %v2710
    %v3819 = vpack.c.b16 %v2715, %v2711
    %v3820 = vpack.c.b16 %v2716, %v2712
    %v3821 = vpack.c.b16 %v2717, %v2713
    %v3822 = vpack.c.b16 %v2722, %v2718
    %v3823 = vpack.c.b16 %v2723, %v2719
    %v3824 = vpack.c.b16 %v2724, %v2720
    %v3825 = vpack.c.b16 %v2725, %v2721
    %v3826 = vpack.c.b16 %v2730, %v2726
    %v3827 = vpack.c.b16 %v2731, %v2727
    %v3828 = vpack.c.b16 %v2732, %v2728
    %v3829 = vpack.c.b16 %v2733, %v2729
    %v3830 = vpack.c.b16 %v2738, %v2734
    %v3831 = vpack.c.b16 %v2739, %v2735
    %v3832 = vpack.c.b16 %v2740, %v2736
    %v3833 = vpack.c.b16 %v2741, %v2737
    %v3834 = vpack.c.b16 %v2746, %v2742
    %v3835 = vpack.c.b16 %v2747, %v2743
    %v3836 = vpack.c.b16 %v2748, %v2744
    %v3837 = vpack.c.b16 %v2749, %v2745
    %v3838 = vpack.c.b16 %v2754, %v2750
    %v3839 = vpack.c.b16 %v2755, %v2751
    %v3840 = vpack.c.b16 %v2756, %v2752
    %v3841 = vpack.c.b16 %v2757, %v2753
    %v3842 = vpack.c.b16 %v2762, %v2758
    %v3843 = vpack.c.b16 %v2763, %v2759
    %v3844 = vpack.c.b16 %v2764, %v2760
    %v3845 = vpack.c.b16 %v2765, %v2761
    %v3846 = vpack.c.b16 %v2770, %v2766
    %v3847 = vpack.c.b16 %v2771, %v2767
    %v3848 = vpack.c.b16 %v2772, %v2768
    %v3849 = vpack.c.b16 %v2773, %v2769
    %v3850 = vpack.c.b16 %v2778, %v2774
    %v3851 = vpack.c.b16 %v2779, %v2775
    %v3852 = vpack.c.b16 %v2780, %v2776
    %v3853 = vpack.c.b16 %v2781, %v2777
    %v3854 = vpack.c.b16 %v2786, %v2782
    %v3855 = vpack.c.b16 %v2787, %v2783
    %v3856 = vpack.c.b16 %v2788, %v2784
    %v3857 = vpack.c.b16 %v2789, %v2785
    %v3858 = vpack.c.b16 %v2794, %v2790
    %v3859 = vpack.c.b16 %v2795, %v2791
    %v3860 = vpack.c.b16 %v2796, %v2792
    %v3861 = vpack.c.b16 %v2797, %v2793
    %v3862 = vpack.c.b16 %v2802, %v2798
    %v3863 = vpack.c.b16 %v2803, %v2799
    %v3864 = vpack.c.b16 %v2804, %v2800
    %v3865 = vpack.c.b16 %v2805, %v2801
    %v3866 = vpack.c.b16 %v2810, %v2806
    %v3867 = vpack.c.b16 %v2811, %v2807
    %v3868 = vpack.c.b16 %v2812, %v2808
    %v3869 = vpack.c.b16 %v2813, %v2809
    %v3870 = vpack.c.b16 %v2818, %v2814
    %v3871 = vpack.c.b16 %v2819, %v2815
    %v3872 = vpack.c.b16 %v2820, %v2816
    %v3873 = vpack.c.b16 %v2821, %v2817
    %v3874 = vpack.c.b16 %v2826, %v2822
    %v3875 = vpack.c.b16 %v2827, %v2823
    %v3876 = vpack.c.b16 %v2828, %v2824
    %v3877 = vpack.c.b16 %v2829, %v2825
    %v3878 = vpack.c.b16 %v2834, %v2830
    %v3879 = vpack.c.b16 %v2835, %v2831
    %v3880 = vpack.c.b16 %v2836, %v2832
    %v3881 = vpack.c.b16 %v2837, %v2833
    %v3882 = vpack.c.b16 %v2842, %v2838
    %v3883 = vpack.c.b16 %v2843, %v2839
    %v3884 = vpack.c.b16 %v2844, %v2840
    %v3885 = vpack.c.b16 %v2845, %v2841
    %v3886 = vpack.c.b16 %v2850, %v2846
    %v3887 = vpack.c.b16 %v2851, %v2847
    %v3888 = vpack.c.b16 %v2852, %v2848
    %v3889 = vpack.c.b16 %v2853, %v2849
    %v3890 = vpack.c.b16 %v2858, %v2854
    %v3891 = vpack.c.b16 %v2859, %v2855
    %v3892 = vpack.c.b16 %v2860, %v2856
    %v3893 = vpack.c.b16 %v2861, %v2857
    %v3894 = vpack.c.b16 %v2866, %v2862
    %v3895 = vpack.c.b16 %v2867, %v2863
    %v3896 = vpack.c.b16 %v2868, %v2864
    %v3897 = vpack.c.b16 %v2869, %v2865
    %v3898 = vpack.c.b16 %v2874, %v2870
    %v3899 = vpack.c.b16 %v2875, %v2871
    %v3900 = vpack.c.b16 %v2876, %v2872
    %v3901 = vpack.c.b16 %v2877, %v2873
    %v3902 = vpack.c.b16 %v2882, %v2878
    %v3903 = vpack.c.b16 %v2883, %v2879
    %v3904 = vpack.c.b16 %v2884, %v2880
    %v3905 = vpack.c.b16 %v2885, %v2881
    %v3906 = vpack.c.b16 %v2890, %v2886
    %v3907 = vpack.c.b16 %v2891, %v2887
    %v3908 = vpack.c.b16 %v2892, %v2888
    %v3909 = vpack.c.b16 %v2893, %v2889
    %v3910 = vpack.c.b16 %v2898, %v2894
    %v3911 = vpack.c.b16 %v2899, %v2895
    %v3912 = vpack.c.b16 %v2900, %v2896
    %v3913 = vpack.c.b16 %v2901, %v2897
    %v3914 = vpack.c.b16 %v2906, %v2902
    %v3915 = vpack.c.b16 %v2907, %v2903
    %v3916 = vpack.c.b16 %v2908, %v2904
    %v3917 = vpack.c.b16 %v2909, %v2905
    %v3918 = vpack.c.b16 %v2914, %v2910
    %v3919 = vpack.c.b16 %v2915, %v2911
    %v3920 = vpack.c.b16 %v2916, %v2912
    %v3921 = vpack.c.b16 %v2917, %v2913
    %v3922 = vpack.c.b16 %v2922, %v2918
    %v3923 = vpack.c.b16 %v2923, %v2919
    %v3924 = vpack.c.b16 %v2924, %v2920
    %v3925 = vpack.c.b16 %v2925, %v2921
    %v3926 = vpack.c.b16 %v2930, %v2926
    %v3927 = vpack.c.b16 %v2931, %v2927
    %v3928 = vpack.c.b16 %v2932, %v2928
    %v3929 = vpack.c.b16 %v2933, %v2929
    %v3930 = vpack.c.b16 %v2938, %v2934
    %v3931 = vpack.c.b16 %v2939, %v2935
    %v3932 = vpack.c.b16 %v2940, %v2936
    %v3933 = vpack.c.b16 %v2941, %v2937
    %v3934 = vpack.c.b16 %v2946, %v2942
    %v3935 = vpack.c.b16 %v2947, %v2943
    %v3936 = vpack.c.b16 %v2948, %v2944
    %v3937 = vpack.c.b16 %v2949, %v2945
    %v3938 = vpack.c.b16 %v2954, %v2950
    %v3939 = vpack.c.b16 %v2955, %v2951
    %v3940 = vpack.c.b16 %v2956, %v2952
    %v3941 = vpack.c.b16 %v2957, %v2953
    %v3942 = vpack.c.b16 %v2962, %v2958
    %v3943 = vpack.c.b16 %v2963, %v2959
    %v3944 = vpack.c.b16 %v2964, %v2960
    %v3945 = vpack.c.b16 %v2965, %v2961
    %v3946 = vpack.c.b16 %v2970, %v2966
    %v3947 = vpack.c.b16 %v2971, %v2967
    %v3948 = vpack.c.b16 %v2972, %v2968
    %v3949 = vpack.c.b16 %v2973, %v2969
    %v3950 = vpack.c.b16 %v2978, %v2974
    %v3951 = vpack.c.b16 %v2979, %v2975
    %v3952 = vpack.c.b16 %v2980, %v2976
    %v3953 = vpack.c.b16 %v2981, %v2977
    %v3954 = vpack.c.b16 %v2986, %v2982
    %v3955 = vpack.c.b16 %v2987, %v2983
    %v3956 = vpack.c.b16 %v2988, %v2984
    %v3957 = vpack.c.b16 %v2989, %v2985
    %v3958 = vpack.c.b16 %v2994, %v2990
    %v3959 = vpack.c.b16 %v2995, %v2991
    %v3960 = vpack.c.b16 %v2996, %v2992
    %v3961 = vpack.c.b16 %v2997, %v2993
    %v3962 = vpack.c.b16 %v3002, %v2998
    %v3963 = vpack.c.b16 %v3003, %v2999
    %v3964 = vpack.c.b16 %v3004, %v3000
    %v3965 = vpack.c.b16 %v3005, %v3001
    %v3966 = vpack.c.b16 %v3010, %v3006
    %v3967 = vpack.c.b16 %v3011, %v3007
    %v3968 = vpack.c.b16 %v3012, %v3008
    %v3969 = vpack.c.b16 %v3013, %v3009
    %v3970 = vpack.c.b16 %v3018, %v3014
    %v3971 = vpack.c.b16 %v3019, %v3015
    %v3972 = vpack.c.b16 %v3020, %v3016
    %v3973 = vpack.c.b16 %v3021, %v3017
    %v3974 = vpack.c.b16 %v3026, %v3022
    %v3975 = vpack.c.b16 %v3027, %v3023
    %v3976 = vpack.c.b16 %v3028, %v3024
    %v3977 = vpack.c.b16 %v3029, %v3025
    %v3978 = vpack.c.b16 %v3034, %v3030
    %v3979 = vpack.c.b16 %v3035, %v3031
    %v3980 = vpack.c.b16 %v3036, %v3032
    %v3981 = vpack.c.b16 %v3037, %v3033
    %v3982 = vpack.c.b16 %v3042, %v3038
    %v3983 = vpack.c.b16 %v3043, %v3039
    %v3984 = vpack.c.b16 %v3044, %v3040
    %v3985 = vpack.c.b16 %v3045, %v3041
    %v3986 = vpack.c.b16 %v3050, %v3046
    %v3987 = vpack.c.b16 %v3051, %v3047
    %v3988 = vpack.c.b16 %v3052, %v3048
    %v3989 = vpack.c.b16 %v3053, %v3049
    %v3990 = vpack.c.b16 %v3058, %v3054
    %v3991 = vpack.c.b16 %v3059, %v3055
    %v3992 = vpack.c.b16 %v3060, %v3056
    %v3993 = vpack.c.b16 %v3061, %v3057
    %v3994 = vpack.c.b16 %v3066, %v3062
    %v3995 = vpack.c.b16 %v3067, %v3063
    %v3996 = vpack.c.b16 %v3068, %v3064
    %v3997 = vpack.c.b16 %v3069, %v3065
    %v3998 = vpack.c.b16 %v3074, %v3070
    %v3999 = vpack.c.b16 %v3075, %v3071
    %v4000 = vpack.c.b16 %v3076, %v3072
    %v4001 = vpack.c.b16 %v3077, %v3073
    %v4002 = vpack.c.b16 %v3082, %v3078
    %v4003 = vpack.c.b16 %v3083, %v3079
    %v4004 = vpack.c.b16 %v3084, %v3080
    %v4005 = vpack.c.b16 %v3085, %v3081
    %v4006 = vpack.c.b16 %v3090, %v3086
    %v4007 = vpack.c.b16 %v3091, %v3087
    %v4008 = vpack.c.b16 %v3092, %v3088
    %v4009 = vpack.c.b16 %v3093, %v3089
    %v4010 = vpack.c.b16 %v3098, %v3094
    %v4011 = vpack.c.b16 %v3099, %v3095
    %v4012 = vpack.c.b16 %v3100, %v3096
    %v4013 = vpack.c.b16 %v3101, %v3097
    %v4014 = vpack.c.b16 %v3106, %v3102
    %v4015 = vpack.c.b16 %v3107, %v3103
    %v4016 = vpack.c.b16 %v3108, %v3104
    %v4017 = vpack.c.b16 %v3109, %v3105
    %v4018 = vpack.c.b16 %v3114, %v3110
    %v4019 = vpack.c.b16 %v3115, %v3111
    %v4020 = vpack.c.b16 %v3116, %v3112
    %v4021 = vpack.c.b16 %v3117, %v3113
    %v4022 = vpack.c.b16 %v3122, %v3118
    %v4023 = vpack.c.b16 %v3123, %v3119
    %v4024 = vpack.c.b16 %v3124, %v3120
    %v4025 = vpack.c.b16 %v3125, %v3121
    %v4026 = vpack.c.b16 %v3130, %v3126
    %v4027 = vpack.c.b16 %v3131, %v3127
    %v4028 = vpack.c.b16 %v3132, %v3128
    %v4029 = vpack.c.b16 %v3133, %v3129
    %v4030 = vpack.c.b16 %v3138, %v3134
    %v4031 = vpack.c.b16 %v3139, %v3135
    %v4032 = vpack.c.b16 %v3140, %v3136
    %v4033 = vpack.c.b16 %v3141, %v3137
    %v4034 = vpack.c.b16 %v3146, %v3142
    %v4035 = vpack.c.b16 %v3147, %v3143
    %v4036 = vpack.c.b16 %v3148, %v3144
    %v4037 = vpack.c.b16 %v3149, %v3145
    %v4038 = vpack.c.b16 %v3154, %v3150
    %v4039 = vpack.c.b16 %v3155, %v3151
    %v4040 = vpack.c.b16 %v3156, %v3152
    %v4041 = vpack.c.b16 %v3157, %v3153
    %v4042 = vpack.c.b16 %v3162, %v3158
    %v4043 = vpack.c.b16 %v3163, %v3159
    %v4044 = vpack.c.b16 %v3164, %v3160
    %v4045 = vpack.c.b16 %v3165, %v3161
    %v4046 = vpack.c.b16 %v3170, %v3166
    %v4047 = vpack.c.b16 %v3171, %v3167
    %v4048 = vpack.c.b16 %v3172, %v3168
    %v4049 = vpack.c.b16 %v3173, %v3169
    %v4050 = vpack.c.b16 %v3178, %v3174
    %v4051 = vpack.c.b16 %v3179, %v3175
    %v4052 = vpack.c.b16 %v3180, %v3176
    %v4053 = vpack.c.b16 %v3181, %v3177
    %v4054 = vpack.c.b16 %v3186, %v3182
    %v4055 = vpack.c.b16 %v3187, %v3183
    %v4056 = vpack.c.b16 %v3188, %v3184
    %v4057 = vpack.c.b16 %v3189, %v3185
    %v4058 = vpack.c.b16 %v3194, %v3190
    %v4059 = vpack.c.b16 %v3195, %v3191
    %v4060 = vpack.c.b16 %v3196, %v3192
    %v4061 = vpack.c.b16 %v3197, %v3193
    %v4062 = vpack.c.b16 %v3202, %v3198
    %v4063 = vpack.c.b16 %v3203, %v3199
    %v4064 = vpack.c.b16 %v3204, %v3200
    %v4065 = vpack.c.b16 %v3205, %v3201
    %v4066 = vpack.c.b16 %v3210, %v3206
    %v4067 = vpack.c.b16 %v3211, %v3207
    %v4068 = vpack.c.b16 %v3212, %v3208
    %v4069 = vpack.c.b16 %v3213, %v3209
    %v4070 = vpack.c.b16 %v3218, %v3214
    %v4071 = vpack.c.b16 %v3219, %v3215
    %v4072 = vpack.c.b16 %v3220, %v3216
    %v4073 = vpack.c.b16 %v3221, %v3217
    %v4074 = vpack.c.b16 %v3226, %v3222
    %v4075 = vpack.c.b16 %v3227, %v3223
    %v4076 = vpack.c.b16 %v3228, %v3224
    %v4077 = vpack.c.b16 %v3229, %v3225
    %v4078 = vpack.c.b16 %v3234, %v3230
    %v4079 = vpack.c.b16 %v3235, %v3231
    %v4080 = vpack.c.b16 %v3236, %v3232
    %v4081 = vpack.c.b16 %v3237, %v3233
    %v4082 = vpack.c.b16 %v3242, %v3238
    %v4083 = vpack.c.b16 %v3243, %v3239
    %v4084 = vpack.c.b16 %v3244, %v3240
    %v4085 = vpack.c.b16 %v3245, %v3241
    %v4086 = vpack.c.b16 %v3250, %v3246
    %v4087 = vpack.c.b16 %v3251, %v3247
    %v4088 = vpack.c.b16 %v3252, %v3248
    %v4089 = vpack.c.b16 %v3253, %v3249
    %v4090 = vpack.c.b16 %v3258, %v3254
    %v4091 = vpack.c.b16 %v3259, %v3255
    %v4092 = vpack.c.b16 %v3260, %v3256
    %v4093 = vpack.c.b16 %v3261, %v3257
    %v4094 = vpack.c.b16 %v3266, %v3262
    %v4095 = vpack.c.b16 %v3267, %v3263
    %v4096 = vpack.c.b16 %v3268, %v3264
    %v4097 = vpack.c.b16 %v3269, %v3265
    %v4098 = vpack.c.b16 %v3274, %v3270
    %v4099 = vpack.c.b16 %v3275, %v3271
    %v4100 = vpack.c.b16 %v3276, %v3272
    %v4101 = vpack.c.b16 %v3277, %v3273
    %v4102 = vpack.c.b16 %v3282, %v3278
    %v4103 = vpack.c.b16 %v3283, %v3279
    %v4104 = vpack.c.b16 %v3284, %v3280
    %v4105 = vpack.c.b16 %v3285, %v3281
    %v4106 = vpack.c.b16 %v3290, %v3286
    %v4107 = vpack.c.b16 %v3291, %v3287
    %v4108 = vpack.c.b16 %v3292, %v3288
    %v4109 = vpack.c.b16 %v3293, %v3289
    %v4110 = vpack.c.b16 %v3298, %v3294
    %v4111 = vpack.c.b16 %v3299, %v3295
    %v4112 = vpack.c.b16 %v3300, %v3296
    %v4113 = vpack.c.b16 %v3301, %v3297
    %v4114 = vpack.c.b16 %v3306, %v3302
    %v4115 = vpack.c.b16 %v3307, %v3303
    %v4116 = vpack.c.b16 %v3308, %v3304
    %v4117 = vpack.c.b16 %v3309, %v3305
    %v4118 = vpack.c.b16 %v3314, %v3310
    %v4119 = vpack.c.b16 %v3315, %v3311
    %v4120 = vpack.c.b16 %v3316, %v3312
    %v4121 = vpack.c.b16 %v3317, %v3313
    %v4122 = vpack.c.b16 %v3322, %v3318
    %v4123 = vpack.c.b16 %v3323, %v3319
    %v4124 = vpack.c.b16 %v3324, %v3320
    %v4125 = vpack.c.b16 %v3325, %v3321
    %v4126 = vpack.c.b16 %v3330, %v3326
    %v4127 = vpack.c.b16 %v3331, %v3327
    %v4128 = vpack.c.b16 %v3332, %v3328
    %v4129 = vpack.c.b16 %v3333, %v3329
    %v4130 = vpack.c.b16 %v3338, %v3334
    %v4131 = vpack.c.b16 %v3339, %v3335
    %v4132 = vpack.c.b16 %v3340, %v3336
    %v4133 = vpack.c.b16 %v3341, %v3337
    %v4134 = vpack.c.b16 %v3346, %v3342
    %v4135 = vpack.c.b16 %v3347, %v3343
    %v4136 = vpack.c.b16 %v3348, %v3344
    %v4137 = vpack.c.b16 %v3349, %v3345
    %v4138 = vpack.c.b16 %v3354, %v3350
    %v4139 = vpack.c.b16 %v3355, %v3351
    %v4140 = vpack.c.b16 %v3356, %v3352
    %v4141 = vpack.c.b16 %v3357, %v3353
    %v4142 = vpack.c.b16 %v3362, %v3358
    %v4143 = vpack.c.b16 %v3363, %v3359
    %v4144 = vpack.c.b16 %v3364, %v3360
    %v4145 = vpack.c.b16 %v3365, %v3361
    %v4146 = vpack.c.b16 %v3370, %v3366
    %v4147 = vpack.c.b16 %v3371, %v3367
    %v4148 = vpack.c.b16 %v3372, %v3368
    %v4149 = vpack.c.b16 %v3373, %v3369
    %v4150 = vpack.c.b16 %v3378, %v3374
    %v4151 = vpack.c.b16 %v3379, %v3375
    %v4152 = vpack.c.b16 %v3380, %v3376
    %v4153 = vpack.c.b16 %v3381, %v3377
    %v4154 = vpack.c.b16 %v3386, %v3382
    %v4155 = vpack.c.b16 %v3387, %v3383
    %v4156 = vpack.c.b16 %v3388, %v3384
    %v4157 = vpack.c.b16 %v3389, %v3385
    %4926 = vmatprep.subr.bf16.mxu0 %v3391
    %4927 = vmatpush1.bf16.msra.mxu0 %v3390
    %4928 = vmatprep.subr.bf16.mxu0 %v3395
    %4929 = vmatpush1.bf16.msra.mxu0 %v3394
    %4930 = vmatprep.subr.bf16.mxu0 %v3399
    %4931 = vmatpush1.bf16.msra.mxu0 %v3398
    %4932 = vmatprep.subr.bf16.mxu0 %v3403
    %4933 = vmatpush1.bf16.msra.mxu0 %v3402
    %4934 = vmatprep.subr.bf16.mxu0 %v3407
    %4935 = vmatpush1.bf16.msra.mxu0 %v3406
    %4936 = vmatprep.subr.bf16.mxu0 %v3411
    %4937 = vmatpush1.bf16.msra.mxu0 %v3410
    %4938 = vmatprep.subr.bf16.mxu0 %v3415
    %4939 = vmatpush1.bf16.msra.mxu0 %v3414
    %4940 = vmatprep.subr.bf16.mxu0 %v3419
    %4941 = vmatpush1.bf16.msra.mxu0 %v3418
    %4942 = vmatprep.subr.bf16.mxu0 %v3423
    %4943 = vmatpush1.bf16.msra.mxu0 %v3422
    %4944 = vmatprep.subr.bf16.mxu0 %v3427
    %4945 = vmatpush1.bf16.msra.mxu0 %v3426
    %4946 = vmatprep.subr.bf16.mxu0 %v3431
    %4947 = vmatpush1.bf16.msra.mxu0 %v3430
    %4948 = vmatprep.subr.bf16.mxu0 %v3435
    %4949 = vmatpush1.bf16.msra.mxu0 %v3434
    %4950 = vmatprep.subr.bf16.mxu0 %v3439
    %4951 = vmatpush1.bf16.msra.mxu0 %v3438
    %4952 = vmatprep.subr.bf16.mxu0 %v3443
    %4953 = vmatpush1.bf16.msra.mxu0 %v3442
    %4954 = vmatprep.subr.bf16.mxu0 %v3447
    %4955 = vmatpush1.bf16.msra.mxu0 %v3446
    %4956 = vmatprep.subr.bf16.mxu0 %v3451
    %4957 = vmatpush1.bf16.msra.mxu0 %v3450
    %4958 = vmatprep.mubr.bf16.mxu0 %v273
    %4959 = vmatmul.mubr.bf16.gmra.mrb[0].mxu0 %v272
    %v4960 = vpop.f32.mrb[0].mxu0
    %v4961 = vadd.f32 %v1069, %v4960
    %v4962 = vpop.f32.mrb[0].mxu0
    %v4963 = vadd.f32 %v1073, %v4962
    %v4964 = vpop.f32.mrb[0].mxu0
    %v4965 = vpop.f32.mrb[0].mxu0
    %4966 = vdwg.mxu0
    %4967 = vmatprep.subr.bf16.mxu0 %v3455
    %4968 = vmatpush1.bf16.msra.mxu0 %v3454
    %4969 = vmatprep.subr.bf16.mxu0 %v3459
    %4970 = vmatpush1.bf16.msra.mxu0 %v3458
    %4971 = vmatprep.subr.bf16.mxu0 %v3463
    %4972 = vmatpush1.bf16.msra.mxu0 %v3462
    %4973 = vmatprep.subr.bf16.mxu0 %v3467
    %4974 = vmatpush1.bf16.msra.mxu0 %v3466
    %4975 = vmatprep.subr.bf16.mxu0 %v3471
    %4976 = vmatpush1.bf16.msra.mxu0 %v3470
    %4977 = vmatprep.subr.bf16.mxu0 %v3475
    %4978 = vmatpush1.bf16.msra.mxu0 %v3474
    %4979 = vmatprep.subr.bf16.mxu0 %v3479
    %4980 = vmatpush1.bf16.msra.mxu0 %v3478
    %4981 = vmatprep.subr.bf16.mxu0 %v3483
    %4982 = vmatpush1.bf16.msra.mxu0 %v3482
    %4983 = vmatprep.subr.bf16.mxu0 %v3487
    %4984 = vmatpush1.bf16.msra.mxu0 %v3486
    %4985 = vmatprep.subr.bf16.mxu0 %v3491
    %4986 = vmatpush1.bf16.msra.mxu0 %v3490
    %4987 = vmatprep.subr.bf16.mxu0 %v3495
    %4988 = vmatpush1.bf16.msra.mxu0 %v3494
    %4989 = vmatprep.subr.bf16.mxu0 %v3499
    %4990 = vmatpush1.bf16.msra.mxu0 %v3498
    %4991 = vmatprep.subr.bf16.mxu0 %v3503
    %4992 = vmatpush1.bf16.msra.mxu0 %v3502
    %4993 = vmatprep.subr.bf16.mxu0 %v3507
    %4994 = vmatpush1.bf16.msra.mxu0 %v3506
    %4995 = vmatprep.subr.bf16.mxu0 %v3511
    %4996 = vmatpush1.bf16.msra.mxu0 %v3510
    %4997 = vmatprep.subr.bf16.mxu0 %v3515
    %4998 = vmatpush1.bf16.msra.mxu0 %v3514
    %4999 = vmatprep.mubr.bf16.mxu0 %v275
    %5000 = vmatmul.mubr.bf16.gmra.mrb[0].mxu0 %v274
    %v5001 = vpop.f32.mrb[0].mxu0
    %v5002 = vadd.f32 %v4961, %v5001
    %v5003 = vpop.f32.mrb[0].mxu0
    %v5004 = vadd.f32 %v4963, %v5003
    %v5005 = vpop.f32.mrb[0].mxu0
    %v5006 = vpop.f32.mrb[0].mxu0
    %5007 = vdwg.mxu0
    %5008 = vmatprep.subr.bf16.mxu0 %v3519
    %5009 = vmatpush1.bf16.msra.mxu0 %v3518
    %5010 = vmatprep.subr.bf16.mxu0 %v3523
    %5011 = vmatpush1.bf16.msra.mxu0 %v3522
    %5012 = vmatprep.subr.bf16.mxu0 %v3527
    %5013 = vmatpush1.bf16.msra.mxu0 %v3526
    %5014 = vmatprep.subr.bf16.mxu0 %v3531
    %5015 = vmatpush1.bf16.msra.mxu0 %v3530
    %5016 = vmatprep.subr.bf16.mxu0 %v3535
    %5017 = vmatpush1.bf16.msra.mxu0 %v3534
    %5018 = vmatprep.subr.bf16.mxu0 %v3539
    %5019 = vmatpush1.bf16.msra.mxu0 %v3538
    %5020 = vmatprep.subr.bf16.mxu0 %v3543
    %5021 = vmatpush1.bf16.msra.mxu0 %v3542
    %5022 = vmatprep.subr.bf16.mxu0 %v3547
    %5023 = vmatpush1.bf16.msra.mxu0 %v3546
    %5024 = vmatprep.subr.bf16.mxu0 %v3551
    %5025 = vmatpush1.bf16.msra.mxu0 %v3550
    %5026 = vmatprep.subr.bf16.mxu0 %v3555
    %5027 = vmatpush1.bf16.msra.mxu0 %v3554
    %5028 = vmatprep.subr.bf16.mxu0 %v3559
    %5029 = vmatpush1.bf16.msra.mxu0 %v3558
    %5030 = vmatprep.subr.bf16.mxu0 %v3563
    %5031 = vmatpush1.bf16.msra.mxu0 %v3562
    %5032 = vmatprep.subr.bf16.mxu0 %v3567
    %5033 = vmatpush1.bf16.msra.mxu0 %v3566
    %5034 = vmatprep.subr.bf16.mxu0 %v3571
    %5035 = vmatpush1.bf16.msra.mxu0 %v3570
    %5036 = vmatprep.subr.bf16.mxu0 %v3575
    %5037 = vmatpush1.bf16.msra.mxu0 %v3574
    %5038 = vmatprep.subr.bf16.mxu0 %v3579
    %5039 = vmatpush1.bf16.msra.mxu0 %v3578
    %5040 = vmatprep.mubr.bf16.mxu0 %v277
    %5041 = vmatmul.mubr.bf16.gmra.mrb[0].mxu0 %v276
    %v5042 = vpop.f32.mrb[0].mxu0
    %v5043 = vadd.f32 %v5002, %v5042
    %v5044 = vpop.f32.mrb[0].mxu0
    %v5045 = vadd.f32 %v5004, %v5044
    %v5046 = vpop.f32.mrb[0].mxu0
    %v5047 = vpop.f32.mrb[0].mxu0
    %5048 = vdwg.mxu0
    %5049 = vmatprep.subr.bf16.mxu0 %v3583
    %5050 = vmatpush1.bf16.msra.mxu0 %v3582
    %5051 = vmatprep.subr.bf16.mxu0 %v3587
    %5052 = vmatpush1.bf16.msra.mxu0 %v3586
    %5053 = vmatprep.subr.bf16.mxu0 %v3591
    %5054 = vmatpush1.bf16.msra.mxu0 %v3590
    %5055 = vmatprep.subr.bf16.mxu0 %v3595
    %5056 = vmatpush1.bf16.msra.mxu0 %v3594
    %5057 = vmatprep.subr.bf16.mxu0 %v3599
    %5058 = vmatpush1.bf16.msra.mxu0 %v3598
    %5059 = vmatprep.subr.bf16.mxu0 %v3603
    %5060 = vmatpush1.bf16.msra.mxu0 %v3602
    %5061 = vmatprep.subr.bf16.mxu0 %v3607
    %5062 = vmatpush1.bf16.msra.mxu0 %v3606
    %5063 = vmatprep.subr.bf16.mxu0 %v3611
    %5064 = vmatpush1.bf16.msra.mxu0 %v3610
    %5065 = vmatprep.subr.bf16.mxu0 %v3615
    %5066 = vmatpush1.bf16.msra.mxu0 %v3614
    %5067 = vmatprep.subr.bf16.mxu0 %v3619
    %5068 = vmatpush1.bf16.msra.mxu0 %v3618
    %5069 = vmatprep.subr.bf16.mxu0 %v3623
    %5070 = vmatpush1.bf16.msra.mxu0 %v3622
    %5071 = vmatprep.subr.bf16.mxu0 %v3627
    %5072 = vmatpush1.bf16.msra.mxu0 %v3626
    %5073 = vmatprep.subr.bf16.mxu0 %v3631
    %5074 = vmatpush1.bf16.msra.mxu0 %v3630
    %5075 = vmatprep.subr.bf16.mxu0 %v3635
    %5076 = vmatpush1.bf16.msra.mxu0 %v3634
    %5077 = vmatprep.subr.bf16.mxu0 %v3639
    %5078 = vmatpush1.bf16.msra.mxu0 %v3638
    %5079 = vmatprep.subr.bf16.mxu0 %v3643
    %5080 = vmatpush1.bf16.msra.mxu0 %v3642
    %5081 = vmatprep.mubr.bf16.mxu0 %v279
    %5082 = vmatmul.mubr.bf16.gmra.mrb[0].mxu0 %v278
    %v5083 = vpop.f32.mrb[0].mxu0
    %v5084 = vadd.f32 %v5043, %v5083
    %v5085 = vpop.f32.mrb[0].mxu0
    %v5086 = vadd.f32 %v5045, %v5085
    %v5087 = vpop.f32.mrb[0].mxu0
    %v5088 = vpop.f32.mrb[0].mxu0
    %5089 = vdwg.mxu0
    %5090 = vmatprep.subr.bf16.mxu0 %v3647
    %5091 = vmatpush1.bf16.msra.mxu0 %v3646
    %5092 = vmatprep.subr.bf16.mxu0 %v3651
    %5093 = vmatpush1.bf16.msra.mxu0 %v3650
    %5094 = vmatprep.subr.bf16.mxu0 %v3655
    %5095 = vmatpush1.bf16.msra.mxu0 %v3654
    %5096 = vmatprep.subr.bf16.mxu0 %v3659
    %5097 = vmatpush1.bf16.msra.mxu0 %v3658
    %5098 = vmatprep.subr.bf16.mxu0 %v3663
    %5099 = vmatpush1.bf16.msra.mxu0 %v3662
    %5100 = vmatprep.subr.bf16.mxu0 %v3667
    %5101 = vmatpush1.bf16.msra.mxu0 %v3666
    %5102 = vmatprep.subr.bf16.mxu0 %v3671
    %5103 = vmatpush1.bf16.msra.mxu0 %v3670
    %5104 = vmatprep.subr.bf16.mxu0 %v3675
    %5105 = vmatpush1.bf16.msra.mxu0 %v3674
    %5106 = vmatprep.subr.bf16.mxu0 %v3679
    %5107 = vmatpush1.bf16.msra.mxu0 %v3678
    %5108 = vmatprep.subr.bf16.mxu0 %v3683
    %5109 = vmatpush1.bf16.msra.mxu0 %v3682
    %5110 = vmatprep.subr.bf16.mxu0 %v3687
    %5111 = vmatpush1.bf16.msra.mxu0 %v3686
    %5112 = vmatprep.subr.bf16.mxu0 %v3691
    %5113 = vmatpush1.bf16.msra.mxu0 %v3690
    %5114 = vmatprep.subr.bf16.mxu0 %v3695
    %5115 = vmatpush1.bf16.msra.mxu0 %v3694
    %5116 = vmatprep.subr.bf16.mxu0 %v3699
    %5117 = vmatpush1.bf16.msra.mxu0 %v3698
    %5118 = vmatprep.subr.bf16.mxu0 %v3703
    %5119 = vmatpush1.bf16.msra.mxu0 %v3702
    %5120 = vmatprep.subr.bf16.mxu0 %v3707
    %5121 = vmatpush1.bf16.msra.mxu0 %v3706
    %5122 = vmatprep.mubr.bf16.mxu0 %v281
    %5123 = vmatmul.mubr.bf16.gmra.mrb[0].mxu0 %v280
    %v5124 = vpop.f32.mrb[0].mxu0
    %v5125 = vadd.f32 %v5084, %v5124
    %v5126 = vpop.f32.mrb[0].mxu0
    %v5127 = vadd.f32 %v5086, %v5126
    %v5128 = vpop.f32.mrb[0].mxu0
    %v5129 = vpop.f32.mrb[0].mxu0
    %5130 = vdwg.mxu0
    %5131 = vmatprep.subr.bf16.mxu0 %v3711
    %5132 = vmatpush1.bf16.msra.mxu0 %v3710
    %5133 = vmatprep.subr.bf16.mxu0 %v3715
    %5134 = vmatpush1.bf16.msra.mxu0 %v3714
    %5135 = vmatprep.subr.bf16.mxu0 %v3719
    %5136 = vmatpush1.bf16.msra.mxu0 %v3718
    %5137 = vmatprep.subr.bf16.mxu0 %v3723
    %5138 = vmatpush1.bf16.msra.mxu0 %v3722
    %5139 = vmatprep.subr.bf16.mxu0 %v3727
    %5140 = vmatpush1.bf16.msra.mxu0 %v3726
    %5141 = vmatprep.subr.bf16.mxu0 %v3731
    %5142 = vmatpush1.bf16.msra.mxu0 %v3730
    %5143 = vmatprep.subr.bf16.mxu0 %v3735
    %5144 = vmatpush1.bf16.msra.mxu0 %v3734
    %5145 = vmatprep.subr.bf16.mxu0 %v3739
    %5146 = vmatpush1.bf16.msra.mxu0 %v3738
    %5147 = vmatprep.subr.bf16.mxu0 %v3743
    %5148 = vmatpush1.bf16.msra.mxu0 %v3742
    %5149 = vmatprep.subr.bf16.mxu0 %v3747
    %5150 = vmatpush1.bf16.msra.mxu0 %v3746
    %5151 = vmatprep.subr.bf16.mxu0 %v3751
    %5152 = vmatpush1.bf16.msra.mxu0 %v3750
    %5153 = vmatprep.subr.bf16.mxu0 %v3755
    %5154 = vmatpush1.bf16.msra.mxu0 %v3754
    %5155 = vmatprep.subr.bf16.mxu0 %v3759
    %5156 = vmatpush1.bf16.msra.mxu0 %v3758
    %5157 = vmatprep.subr.bf16.mxu0 %v3763
    %5158 = vmatpush1.bf16.msra.mxu0 %v3762
    %5159 = vmatprep.subr.bf16.mxu0 %v3767
    %5160 = vmatpush1.bf16.msra.mxu0 %v3766
    %5161 = vmatprep.subr.bf16.mxu0 %v3771
    %5162 = vmatpush1.bf16.msra.mxu0 %v3770
    %5163 = vmatprep.mubr.bf16.mxu0 %v283
    %5164 = vmatmul.mubr.bf16.gmra.mrb[0].mxu0 %v282
    %v5165 = vpop.f32.mrb[0].mxu0
    %v5166 = vadd.f32 %v5125, %v5165
    %v5167 = vpop.f32.mrb[0].mxu0
    %v5168 = vadd.f32 %v5127, %v5167
    %v5169 = vpop.f32.mrb[0].mxu0
    %v5170 = vpop.f32.mrb[0].mxu0
    %5171 = vdwg.mxu0
    %5172 = vmatprep.subr.bf16.mxu0 %v3775
    %5173 = vmatpush1.bf16.msra.mxu0 %v3774
    %5174 = vmatprep.subr.bf16.mxu0 %v3779
    %5175 = vmatpush1.bf16.msra.mxu0 %v3778
    %5176 = vmatprep.subr.bf16.mxu0 %v3783
    %5177 = vmatpush1.bf16.msra.mxu0 %v3782
    %5178 = vmatprep.subr.bf16.mxu0 %v3787
    %5179 = vmatpush1.bf16.msra.mxu0 %v3786
    %5180 = vmatprep.subr.bf16.mxu0 %v3791
    %5181 = vmatpush1.bf16.msra.mxu0 %v3790
    %5182 = vmatprep.subr.bf16.mxu0 %v3795
    %5183 = vmatpush1.bf16.msra.mxu0 %v3794
    %5184 = vmatprep.subr.bf16.mxu0 %v3799
    %5185 = vmatpush1.bf16.msra.mxu0 %v3798
    %5186 = vmatprep.subr.bf16.mxu0 %v3803
    %5187 = vmatpush1.bf16.msra.mxu0 %v3802
    %5188 = vmatprep.subr.bf16.mxu0 %v3807
    %5189 = vmatpush1.bf16.msra.mxu0 %v3806
    %5190 = vmatprep.subr.bf16.mxu0 %v3811
    %5191 = vmatpush1.bf16.msra.mxu0 %v3810
    %5192 = vmatprep.subr.bf16.mxu0 %v3815
    %5193 = vmatpush1.bf16.msra.mxu0 %v3814
    %5194 = vmatprep.subr.bf16.mxu0 %v3819
    %5195 = vmatpush1.bf16.msra.mxu0 %v3818
    %5196 = vmatprep.subr.bf16.mxu0 %v3823
    %5197 = vmatpush1.bf16.msra.mxu0 %v3822
    %5198 = vmatprep.subr.bf16.mxu0 %v3827
    %5199 = vmatpush1.bf16.msra.mxu0 %v3826
    %5200 = vmatprep.subr.bf16.mxu0 %v3831
    %5201 = vmatpush1.bf16.msra.mxu0 %v3830
    %5202 = vmatprep.subr.bf16.mxu0 %v3835
    %5203 = vmatpush1.bf16.msra.mxu0 %v3834
    %5204 = vmatprep.mubr.bf16.mxu0 %v285
    %5205 = vmatmul.mubr.bf16.gmra.mrb[0].mxu0 %v284
    %v5206 = vpop.f32.mrb[0].mxu0
    %v5207 = vadd.f32 %v5166, %v5206
    %v5208 = vpop.f32.mrb[0].mxu0
    %v5209 = vadd.f32 %v5168, %v5208
    %v5210 = vpop.f32.mrb[0].mxu0
    %v5211 = vpop.f32.mrb[0].mxu0
    %5212 = vdwg.mxu0
    %5213 = vmatprep.subr.bf16.mxu0 %v3839
    %5214 = vmatpush1.bf16.msra.mxu0 %v3838
    %5215 = vmatprep.subr.bf16.mxu0 %v3843
    %5216 = vmatpush1.bf16.msra.mxu0 %v3842
    %5217 = vmatprep.subr.bf16.mxu0 %v3847
    %5218 = vmatpush1.bf16.msra.mxu0 %v3846
    %5219 = vmatprep.subr.bf16.mxu0 %v3851
    %5220 = vmatpush1.bf16.msra.mxu0 %v3850
    %5221 = vmatprep.subr.bf16.mxu0 %v3855
    %5222 = vmatpush1.bf16.msra.mxu0 %v3854
    %5223 = vmatprep.subr.bf16.mxu0 %v3859
    %5224 = vmatpush1.bf16.msra.mxu0 %v3858
    %5225 = vmatprep.subr.bf16.mxu0 %v3863
    %5226 = vmatpush1.bf16.msra.mxu0 %v3862
    %5227 = vmatprep.subr.bf16.mxu0 %v3867
    %5228 = vmatpush1.bf16.msra.mxu0 %v3866
    %5229 = vmatprep.subr.bf16.mxu0 %v3871
    %5230 = vmatpush1.bf16.msra.mxu0 %v3870
    %5231 = vmatprep.subr.bf16.mxu0 %v3875
    %5232 = vmatpush1.bf16.msra.mxu0 %v3874
    %5233 = vmatprep.subr.bf16.mxu0 %v3879
    %5234 = vmatpush1.bf16.msra.mxu0 %v3878
    %5235 = vmatprep.subr.bf16.mxu0 %v3883
    %5236 = vmatpush1.bf16.msra.mxu0 %v3882
    %5237 = vmatprep.subr.bf16.mxu0 %v3887
    %5238 = vmatpush1.bf16.msra.mxu0 %v3886
    %5239 = vmatprep.subr.bf16.mxu0 %v3891
    %5240 = vmatpush1.bf16.msra.mxu0 %v3890
    %5241 = vmatprep.subr.bf16.mxu0 %v3895
    %5242 = vmatpush1.bf16.msra.mxu0 %v3894
    %5243 = vmatprep.subr.bf16.mxu0 %v3899
    %5244 = vmatpush1.bf16.msra.mxu0 %v3898
    %5245 = vmatprep.mubr.bf16.mxu0 %v287
    %5246 = vmatmul.mubr.bf16.gmra.mrb[0].mxu0 %v286
    %v5247 = vpop.f32.mrb[0].mxu0
    %v5248 = vadd.f32 %v5207, %v5247
    %v5249 = vpop.f32.mrb[0].mxu0
    %v5250 = vadd.f32 %v5209, %v5249
    %v5251 = vpop.f32.mrb[0].mxu0
    %v5252 = vpop.f32.mrb[0].mxu0
    %5253 = vdwg.mxu0
    %5254 = vmatprep.subr.bf16.mxu0 %v3903
    %5255 = vmatpush1.bf16.msra.mxu0 %v3902
    %5256 = vmatprep.subr.bf16.mxu0 %v3907
    %5257 = vmatpush1.bf16.msra.mxu0 %v3906
    %5258 = vmatprep.subr.bf16.mxu0 %v3911
    %5259 = vmatpush1.bf16.msra.mxu0 %v3910
    %5260 = vmatprep.subr.bf16.mxu0 %v3915
    %5261 = vmatpush1.bf16.msra.mxu0 %v3914
    %5262 = vmatprep.subr.bf16.mxu0 %v3919
    %5263 = vmatpush1.bf16.msra.mxu0 %v3918
    %5264 = vmatprep.subr.bf16.mxu0 %v3923
    %5265 = vmatpush1.bf16.msra.mxu0 %v3922
    %5266 = vmatprep.subr.bf16.mxu0 %v3927
    %5267 = vmatpush1.bf16.msra.mxu0 %v3926
    %5268 = vmatprep.subr.bf16.mxu0 %v3931
    %5269 = vmatpush1.bf16.msra.mxu0 %v3930
    %5270 = vmatprep.subr.bf16.mxu0 %v3935
    %5271 = vmatpush1.bf16.msra.mxu0 %v3934
    %5272 = vmatprep.subr.bf16.mxu0 %v3939
    %5273 = vmatpush1.bf16.msra.mxu0 %v3938
    %5274 = vmatprep.subr.bf16.mxu0 %v3943
    %5275 = vmatpush1.bf16.msra.mxu0 %v3942
    %5276 = vmatprep.subr.bf16.mxu0 %v3947
    %5277 = vmatpush1.bf16.msra.mxu0 %v3946
    %5278 = vmatprep.subr.bf16.mxu0 %v3951
    %5279 = vmatpush1.bf16.msra.mxu0 %v3950
    %5280 = vmatprep.subr.bf16.mxu0 %v3955
    %5281 = vmatpush1.bf16.msra.mxu0 %v3954
    %5282 = vmatprep.subr.bf16.mxu0 %v3959
    %5283 = vmatpush1.bf16.msra.mxu0 %v3958
    %5284 = vmatprep.subr.bf16.mxu0 %v3963
    %5285 = vmatpush1.bf16.msra.mxu0 %v3962
    %5286 = vmatprep.mubr.bf16.mxu0 %v289
    %5287 = vmatmul.mubr.bf16.gmra.mrb[0].mxu0 %v288
    %v5288 = vpop.f32.mrb[0].mxu0
    %v5289 = vadd.f32 %v5248, %v5288
    %v5290 = vpop.f32.mrb[0].mxu0
    %v5291 = vadd.f32 %v5250, %v5290
    %v5292 = vpop.f32.mrb[0].mxu0
    %v5293 = vpop.f32.mrb[0].mxu0
    %5294 = vdwg.mxu0
    %5295 = vmatprep.subr.bf16.mxu0 %v3967
    %5296 = vmatpush1.bf16.msra.mxu0 %v3966
    %5297 = vmatprep.subr.bf16.mxu0 %v3971
    %5298 = vmatpush1.bf16.msra.mxu0 %v3970
    %5299 = vmatprep.subr.bf16.mxu0 %v3975
    %5300 = vmatpush1.bf16.msra.mxu0 %v3974
    %5301 = vmatprep.subr.bf16.mxu0 %v3979
    %5302 = vmatpush1.bf16.msra.mxu0 %v3978
    %5303 = vmatprep.subr.bf16.mxu0 %v3983
    %5304 = vmatpush1.bf16.msra.mxu0 %v3982
    %5305 = vmatprep.subr.bf16.mxu0 %v3987
    %5306 = vmatpush1.bf16.msra.mxu0 %v3986
    %5307 = vmatprep.subr.bf16.mxu0 %v3991
    %5308 = vmatpush1.bf16.msra.mxu0 %v3990
    %5309 = vmatprep.subr.bf16.mxu0 %v3995
    %5310 = vmatpush1.bf16.msra.mxu0 %v3994
    %5311 = vmatprep.subr.bf16.mxu0 %v3999
    %5312 = vmatpush1.bf16.msra.mxu0 %v3998
    %5313 = vmatprep.subr.bf16.mxu0 %v4003
    %5314 = vmatpush1.bf16.msra.mxu0 %v4002
    %5315 = vmatprep.subr.bf16.mxu0 %v4007
    %5316 = vmatpush1.bf16.msra.mxu0 %v4006
    %5317 = vmatprep.subr.bf16.mxu0 %v4011
    %5318 = vmatpush1.bf16.msra.mxu0 %v4010
    %5319 = vmatprep.subr.bf16.mxu0 %v4015
    %5320 = vmatpush1.bf16.msra.mxu0 %v4014
    %5321 = vmatprep.subr.bf16.mxu0 %v4019
    %5322 = vmatpush1.bf16.msra.mxu0 %v4018
    %5323 = vmatprep.subr.bf16.mxu0 %v4023
    %5324 = vmatpush1.bf16.msra.mxu0 %v4022
    %5325 = vmatprep.subr.bf16.mxu0 %v4027
    %5326 = vmatpush1.bf16.msra.mxu0 %v4026
    %5327 = vmatprep.mubr.bf16.mxu0 %v291
    %5328 = vmatmul.mubr.bf16.gmra.mrb[0].mxu0 %v290
    %v5329 = vpop.f32.mrb[0].mxu0
    %v5330 = vadd.f32 %v5289, %v5329
    %v5331 = vpop.f32.mrb[0].mxu0
    %v5332 = vadd.f32 %v5291, %v5331
    %v5333 = vpop.f32.mrb[0].mxu0
    %v5334 = vpop.f32.mrb[0].mxu0
    %5335 = vdwg.mxu0
    %5336 = vmatprep.subr.bf16.mxu0 %v4031
    %5337 = vmatpush1.bf16.msra.mxu0 %v4030
    %5338 = vmatprep.subr.bf16.mxu0 %v4035
    %5339 = vmatpush1.bf16.msra.mxu0 %v4034
    %5340 = vmatprep.subr.bf16.mxu0 %v4039
    %5341 = vmatpush1.bf16.msra.mxu0 %v4038
    %5342 = vmatprep.subr.bf16.mxu0 %v4043
    %5343 = vmatpush1.bf16.msra.mxu0 %v4042
    %5344 = vmatprep.subr.bf16.mxu0 %v4047
    %5345 = vmatpush1.bf16.msra.mxu0 %v4046
    %5346 = vmatprep.subr.bf16.mxu0 %v4051
    %5347 = vmatpush1.bf16.msra.mxu0 %v4050
    %5348 = vmatprep.subr.bf16.mxu0 %v4055
    %5349 = vmatpush1.bf16.msra.mxu0 %v4054
    %5350 = vmatprep.subr.bf16.mxu0 %v4059
    %5351 = vmatpush1.bf16.msra.mxu0 %v4058
    %5352 = vmatprep.subr.bf16.mxu0 %v4063
    %5353 = vmatpush1.bf16.msra.mxu0 %v4062
    %5354 = vmatprep.subr.bf16.mxu0 %v4067
    %5355 = vmatpush1.bf16.msra.mxu0 %v4066
    %5356 = vmatprep.subr.bf16.mxu0 %v4071
    %5357 = vmatpush1.bf16.msra.mxu0 %v4070
    %5358 = vmatprep.subr.bf16.mxu0 %v4075
    %5359 = vmatpush1.bf16.msra.mxu0 %v4074
    %5360 = vmatprep.subr.bf16.mxu0 %v4079
    %5361 = vmatpush1.bf16.msra.mxu0 %v4078
    %5362 = vmatprep.subr.bf16.mxu0 %v4083
    %5363 = vmatpush1.bf16.msra.mxu0 %v4082
    %5364 = vmatprep.subr.bf16.mxu0 %v4087
    %5365 = vmatpush1.bf16.msra.mxu0 %v4086
    %5366 = vmatprep.subr.bf16.mxu0 %v4091
    %5367 = vmatpush1.bf16.msra.mxu0 %v4090
    %5368 = vmatprep.mubr.bf16.mxu0 %v293
    %5369 = vmatmul.mubr.bf16.gmra.mrb[0].mxu0 %v292
    %v5370 = vpop.f32.mrb[0].mxu0
    %v5371 = vadd.f32 %v5330, %v5370
    %v5372 = vpop.f32.mrb[0].mxu0
    %v5373 = vadd.f32 %v5332, %v5372
    %v5374 = vpop.f32.mrb[0].mxu0
    %v5375 = vpop.f32.mrb[0].mxu0
    %5376 = vdwg.mxu0
    %5377 = vmatprep.subr.bf16.mxu0 %v4095
    %5378 = vmatpush1.bf16.msra.mxu0 %v4094
    %5379 = vmatprep.subr.bf16.mxu0 %v4099
    %5380 = vmatpush1.bf16.msra.mxu0 %v4098
    %5381 = vmatprep.subr.bf16.mxu0 %v4103
    %5382 = vmatpush1.bf16.msra.mxu0 %v4102
    %5383 = vmatprep.subr.bf16.mxu0 %v4107
    %5384 = vmatpush1.bf16.msra.mxu0 %v4106
    %5385 = vmatprep.subr.bf16.mxu0 %v4111
    %5386 = vmatpush1.bf16.msra.mxu0 %v4110
    %5387 = vmatprep.subr.bf16.mxu0 %v4115
    %5388 = vmatpush1.bf16.msra.mxu0 %v4114
    %5389 = vmatprep.subr.bf16.mxu0 %v4119
    %5390 = vmatpush1.bf16.msra.mxu0 %v4118
    %5391 = vmatprep.subr.bf16.mxu0 %v4123
    %5392 = vmatpush1.bf16.msra.mxu0 %v4122
    %5393 = vmatprep.subr.bf16.mxu0 %v4127
    %5394 = vmatpush1.bf16.msra.mxu0 %v4126
    %5395 = vmatprep.subr.bf16.mxu0 %v4131
    %5396 = vmatpush1.bf16.msra.mxu0 %v4130
    %5397 = vmatprep.subr.bf16.mxu0 %v4135
    %5398 = vmatpush1.bf16.msra.mxu0 %v4134
    %5399 = vmatprep.subr.bf16.mxu0 %v4139
    %5400 = vmatpush1.bf16.msra.mxu0 %v4138
    %5401 = vmatprep.subr.bf16.mxu0 %v4143
    %5402 = vmatpush1.bf16.msra.mxu0 %v4142
    %5403 = vmatprep.subr.bf16.mxu0 %v4147
    %5404 = vmatpush1.bf16.msra.mxu0 %v4146
    %5405 = vmatprep.subr.bf16.mxu0 %v4151
    %5406 = vmatpush1.bf16.msra.mxu0 %v4150
    %5407 = vmatprep.subr.bf16.mxu0 %v4155
    %5408 = vmatpush1.bf16.msra.mxu0 %v4154
    %5409 = vmatprep.mubr.bf16.mxu0 %v295
    %5410 = vmatmul.mubr.bf16.gmra.mrb[0].mxu0 %v294
    %v5411 = vpop.f32.mrb[0].mxu0
    %v5412 = vadd.f32 %v5371, %v5411
    %v5413 = vpop.f32.mrb[0].mxu0
    %v5414 = vadd.f32 %v5373, %v5413
    %v5415 = vpop.f32.mrb[0].mxu0
    %v5416 = vpop.f32.mrb[0].mxu0
    %5417 = vdwg.mxu0
    %5418 = vmatprep.subr.bf16.mxu0 %v3393
    %5419 = vmatpush1.bf16.msra.mxu0 %v3392
    %5420 = vmatprep.subr.bf16.mxu0 %v3397
    %5421 = vmatpush1.bf16.msra.mxu0 %v3396
    %5422 = vmatprep.subr.bf16.mxu0 %v3401
    %5423 = vmatpush1.bf16.msra.mxu0 %v3400
    %5424 = vmatprep.subr.bf16.mxu0 %v3405
    %5425 = vmatpush1.bf16.msra.mxu0 %v3404
    %5426 = vmatprep.subr.bf16.mxu0 %v3409
    %5427 = vmatpush1.bf16.msra.mxu0 %v3408
    %5428 = vmatprep.subr.bf16.mxu0 %v3413
    %5429 = vmatpush1.bf16.msra.mxu0 %v3412
    %5430 = vmatprep.subr.bf16.mxu0 %v3417
    %5431 = vmatpush1.bf16.msra.mxu0 %v3416
    %5432 = vmatprep.subr.bf16.mxu0 %v3421
    %5433 = vmatpush1.bf16.msra.mxu0 %v3420
    %5434 = vmatprep.subr.bf16.mxu0 %v3425
    %5435 = vmatpush1.bf16.msra.mxu0 %v3424
    %5436 = vmatprep.subr.bf16.mxu0 %v3429
    %5437 = vmatpush1.bf16.msra.mxu0 %v3428
    %5438 = vmatprep.subr.bf16.mxu0 %v3433
    %5439 = vmatpush1.bf16.msra.mxu0 %v3432
    %5440 = vmatprep.subr.bf16.mxu0 %v3437
    %5441 = vmatpush1.bf16.msra.mxu0 %v3436
    %5442 = vmatprep.subr.bf16.mxu0 %v3441
    %5443 = vmatpush1.bf16.msra.mxu0 %v3440
    %5444 = vmatprep.subr.bf16.mxu0 %v3445
    %5445 = vmatpush1.bf16.msra.mxu0 %v3444
    %5446 = vmatprep.subr.bf16.mxu0 %v3449
    %5447 = vmatpush1.bf16.msra.mxu0 %v3448
    %5448 = vmatprep.subr.bf16.mxu0 %v3453
    %5449 = vmatpush1.bf16.msra.mxu0 %v3452
    %5450 = vmatprep.mubr.bf16.mxu0 %v273
    %5451 = vmatmul.mubr.bf16.gmra.mrb[0].mxu0 %v272
    %v5452 = vpop.f32.mrb[0].mxu0
    %v5453 = vadd.f32 %v1077, %v5452
    %v5454 = vpop.f32.mrb[0].mxu0
    %v5455 = vadd.f32 %v1081, %v5454
    %v5456 = vpop.f32.mrb[0].mxu0
    %v5457 = vpop.f32.mrb[0].mxu0
    %5458 = vdwg.mxu0
    %5459 = vmatprep.subr.bf16.mxu0 %v3457
    %5460 = vmatpush1.bf16.msra.mxu0 %v3456
    %5461 = vmatprep.subr.bf16.mxu0 %v3461
    %5462 = vmatpush1.bf16.msra.mxu0 %v3460
    %5463 = vmatprep.subr.bf16.mxu0 %v3465
    %5464 = vmatpush1.bf16.msra.mxu0 %v3464
    %5465 = vmatprep.subr.bf16.mxu0 %v3469
    %5466 = vmatpush1.bf16.msra.mxu0 %v3468
    %5467 = vmatprep.subr.bf16.mxu0 %v3473
    %5468 = vmatpush1.bf16.msra.mxu0 %v3472
    %5469 = vmatprep.subr.bf16.mxu0 %v3477
    %5470 = vmatpush1.bf16.msra.mxu0 %v3476
    %5471 = vmatprep.subr.bf16.mxu0 %v3481
    %5472 = vmatpush1.bf16.msra.mxu0 %v3480
    %5473 = vmatprep.subr.bf16.mxu0 %v3485
    %5474 = vmatpush1.bf16.msra.mxu0 %v3484
    %5475 = vmatprep.subr.bf16.mxu0 %v3489
    %5476 = vmatpush1.bf16.msra.mxu0 %v3488
    %5477 = vmatprep.subr.bf16.mxu0 %v3493
    %5478 = vmatpush1.bf16.msra.mxu0 %v3492
    %5479 = vmatprep.subr.bf16.mxu0 %v3497
    %5480 = vmatpush1.bf16.msra.mxu0 %v3496
    %5481 = vmatprep.subr.bf16.mxu0 %v3501
    %5482 = vmatpush1.bf16.msra.mxu0 %v3500
    %5483 = vmatprep.subr.bf16.mxu0 %v3505
    %5484 = vmatpush1.bf16.msra.mxu0 %v3504
    %5485 = vmatprep.subr.bf16.mxu0 %v3509
    %5486 = vmatpush1.bf16.msra.mxu0 %v3508
    %5487 = vmatprep.subr.bf16.mxu0 %v3513
    %5488 = vmatpush1.bf16.msra.mxu0 %v3512
    %5489 = vmatprep.subr.bf16.mxu0 %v3517
    %5490 = vmatpush1.bf16.msra.mxu0 %v3516
    %5491 = vmatprep.mubr.bf16.mxu0 %v275
    %5492 = vmatmul.mubr.bf16.gmra.mrb[0].mxu0 %v274
    %v5493 = vpop.f32.mrb[0].mxu0
    %v5494 = vadd.f32 %v5453, %v5493
    %v5495 = vpop.f32.mrb[0].mxu0
    %v5496 = vadd.f32 %v5455, %v5495
    %v5497 = vpop.f32.mrb[0].mxu0
    %v5498 = vpop.f32.mrb[0].mxu0
    %5499 = vdwg.mxu0
    %5500 = vmatprep.subr.bf16.mxu0 %v3521
    %5501 = vmatpush1.bf16.msra.mxu0 %v3520
    %5502 = vmatprep.subr.bf16.mxu0 %v3525
    %5503 = vmatpush1.bf16.msra.mxu0 %v3524
    %5504 = vmatprep.subr.bf16.mxu0 %v3529
    %5505 = vmatpush1.bf16.msra.mxu0 %v3528
    %5506 = vmatprep.subr.bf16.mxu0 %v3533
    %5507 = vmatpush1.bf16.msra.mxu0 %v3532
    %5508 = vmatprep.subr.bf16.mxu0 %v3537
    %5509 = vmatpush1.bf16.msra.mxu0 %v3536
    %5510 = vmatprep.subr.bf16.mxu0 %v3541
    %5511 = vmatpush1.bf16.msra.mxu0 %v3540
    %5512 = vmatprep.subr.bf16.mxu0 %v3545
    %5513 = vmatpush1.bf16.msra.mxu0 %v3544
    %5514 = vmatprep.subr.bf16.mxu0 %v3549
    %5515 = vmatpush1.bf16.msra.mxu0 %v3548
    %5516 = vmatprep.subr.bf16.mxu0 %v3553
    %5517 = vmatpush1.bf16.msra.mxu0 %v3552
    %5518 = vmatprep.subr.bf16.mxu0 %v3557
    %5519 = vmatpush1.bf16.msra.mxu0 %v3556
    %5520 = vmatprep.subr.bf16.mxu0 %v3561
    %5521 = vmatpush1.bf16.msra.mxu0 %v3560
    %5522 = vmatprep.subr.bf16.mxu0 %v3565
    %5523 = vmatpush1.bf16.msra.mxu0 %v3564
    %5524 = vmatprep.subr.bf16.mxu0 %v3569
    %5525 = vmatpush1.bf16.msra.mxu0 %v3568
    %5526 = vmatprep.subr.bf16.mxu0 %v3573
    %5527 = vmatpush1.bf16.msra.mxu0 %v3572
    %5528 = vmatprep.subr.bf16.mxu0 %v3577
    %5529 = vmatpush1.bf16.msra.mxu0 %v3576
    %5530 = vmatprep.subr.bf16.mxu0 %v3581
    %5531 = vmatpush1.bf16.msra.mxu0 %v3580
    %5532 = vmatprep.mubr.bf16.mxu0 %v277
    %5533 = vmatmul.mubr.bf16.gmra.mrb[0].mxu0 %v276
    %v5534 = vpop.f32.mrb[0].mxu0
    %v5535 = vadd.f32 %v5494, %v5534
    %v5536 = vpop.f32.mrb[0].mxu0
    %v5537 = vadd.f32 %v5496, %v5536
    %v5538 = vpop.f32.mrb[0].mxu0
    %v5539 = vpop.f32.mrb[0].mxu0
    %5540 = vdwg.mxu0
    %5541 = vmatprep.subr.bf16.mxu0 %v3585
    %5542 = vmatpush1.bf16.msra.mxu0 %v3584
    %5543 = vmatprep.subr.bf16.mxu0 %v3589
    %5544 = vmatpush1.bf16.msra.mxu0 %v3588
    %5545 = vmatprep.subr.bf16.mxu0 %v3593
    %5546 = vmatpush1.bf16.msra.mxu0 %v3592
    %5547 = vmatprep.subr.bf16.mxu0 %v3597
    %5548 = vmatpush1.bf16.msra.mxu0 %v3596
    %5549 = vmatprep.subr.bf16.mxu0 %v3601
    %5550 = vmatpush1.bf16.msra.mxu0 %v3600
    %5551 = vmatprep.subr.bf16.mxu0 %v3605
    %5552 = vmatpush1.bf16.msra.mxu0 %v3604
    %5553 = vmatprep.subr.bf16.mxu0 %v3609
    %5554 = vmatpush1.bf16.msra.mxu0 %v3608
    %5555 = vmatprep.subr.bf16.mxu0 %v3613
    %5556 = vmatpush1.bf16.msra.mxu0 %v3612
    %5557 = vmatprep.subr.bf16.mxu0 %v3617
    %5558 = vmatpush1.bf16.msra.mxu0 %v3616
    %5559 = vmatprep.subr.bf16.mxu0 %v3621
    %5560 = vmatpush1.bf16.msra.mxu0 %v3620
    %5561 = vmatprep.subr.bf16.mxu0 %v3625
    %5562 = vmatpush1.bf16.msra.mxu0 %v3624
    %5563 = vmatprep.subr.bf16.mxu0 %v3629
    %5564 = vmatpush1.bf16.msra.mxu0 %v3628
    %5565 = vmatprep.subr.bf16.mxu0 %v3633
    %5566 = vmatpush1.bf16.msra.mxu0 %v3632
    %5567 = vmatprep.subr.bf16.mxu0 %v3637
    %5568 = vmatpush1.bf16.msra.mxu0 %v3636
    %5569 = vmatprep.subr.bf16.mxu0 %v3641
    %5570 = vmatpush1.bf16.msra.mxu0 %v3640
    %5571 = vmatprep.subr.bf16.mxu0 %v3645
    %5572 = vmatpush1.bf16.msra.mxu0 %v3644
    %5573 = vmatprep.mubr.bf16.mxu0 %v279
    %5574 = vmatmul.mubr.bf16.gmra.mrb[0].mxu0 %v278
    %v5575 = vpop.f32.mrb[0].mxu0
    %v5576 = vadd.f32 %v5535, %v5575
    %v5577 = vpop.f32.mrb[0].mxu0
    %v5578 = vadd.f32 %v5537, %v5577
    %v5579 = vpop.f32.mrb[0].mxu0
    %v5580 = vpop.f32.mrb[0].mxu0
    %5581 = vdwg.mxu0
    %5582 = vmatprep.subr.bf16.mxu0 %v3649
    %5583 = vmatpush1.bf16.msra.mxu0 %v3648
    %5584 = vmatprep.subr.bf16.mxu0 %v3653
    %5585 = vmatpush1.bf16.msra.mxu0 %v3652
    %5586 = vmatprep.subr.bf16.mxu0 %v3657
    %5587 = vmatpush1.bf16.msra.mxu0 %v3656
    %5588 = vmatprep.subr.bf16.mxu0 %v3661
    %5589 = vmatpush1.bf16.msra.mxu0 %v3660
    %5590 = vmatprep.subr.bf16.mxu0 %v3665
    %5591 = vmatpush1.bf16.msra.mxu0 %v3664
    %5592 = vmatprep.subr.bf16.mxu0 %v3669
    %5593 = vmatpush1.bf16.msra.mxu0 %v3668
    %5594 = vmatprep.subr.bf16.mxu0 %v3673
    %5595 = vmatpush1.bf16.msra.mxu0 %v3672
    %5596 = vmatprep.subr.bf16.mxu0 %v3677
    %5597 = vmatpush1.bf16.msra.mxu0 %v3676
    %5598 = vmatprep.subr.bf16.mxu0 %v3681
    %5599 = vmatpush1.bf16.msra.mxu0 %v3680
    %5600 = vmatprep.subr.bf16.mxu0 %v3685
    %5601 = vmatpush1.bf16.msra.mxu0 %v3684
    %5602 = vmatprep.subr.bf16.mxu0 %v3689
    %5603 = vmatpush1.bf16.msra.mxu0 %v3688
    %5604 = vmatprep.subr.bf16.mxu0 %v3693
    %5605 = vmatpush1.bf16.msra.mxu0 %v3692
    %5606 = vmatprep.subr.bf16.mxu0 %v3697
    %5607 = vmatpush1.bf16.msra.mxu0 %v3696
    %5608 = vmatprep.subr.bf16.mxu0 %v3701
    %5609 = vmatpush1.bf16.msra.mxu0 %v3700
    %5610 = vmatprep.subr.bf16.mxu0 %v3705
    %5611 = vmatpush1.bf16.msra.mxu0 %v3704
    %5612 = vmatprep.subr.bf16.mxu0 %v3709
    %5613 = vmatpush1.bf16.msra.mxu0 %v3708
    %5614 = vmatprep.mubr.bf16.mxu0 %v281
    %5615 = vmatmul.mubr.bf16.gmra.mrb[0].mxu0 %v280
    %v5616 = vpop.f32.mrb[0].mxu0
    %v5617 = vadd.f32 %v5576, %v5616
    %v5618 = vpop.f32.mrb[0].mxu0
    %v5619 = vadd.f32 %v5578, %v5618
    %v5620 = vpop.f32.mrb[0].mxu0
    %v5621 = vpop.f32.mrb[0].mxu0
    %5622 = vdwg.mxu0
    %5623 = vmatprep.subr.bf16.mxu0 %v3713
    %5624 = vmatpush1.bf16.msra.mxu0 %v3712
    %5625 = vmatprep.subr.bf16.mxu0 %v3717
    %5626 = vmatpush1.bf16.msra.mxu0 %v3716
    %5627 = vmatprep.subr.bf16.mxu0 %v3721
    %5628 = vmatpush1.bf16.msra.mxu0 %v3720
    %5629 = vmatprep.subr.bf16.mxu0 %v3725
    %5630 = vmatpush1.bf16.msra.mxu0 %v3724
    %5631 = vmatprep.subr.bf16.mxu0 %v3729
    %5632 = vmatpush1.bf16.msra.mxu0 %v3728
    %5633 = vmatprep.subr.bf16.mxu0 %v3733
    %5634 = vmatpush1.bf16.msra.mxu0 %v3732
    %5635 = vmatprep.subr.bf16.mxu0 %v3737
    %5636 = vmatpush1.bf16.msra.mxu0 %v3736
    %5637 = vmatprep.subr.bf16.mxu0 %v3741
    %5638 = vmatpush1.bf16.msra.mxu0 %v3740
    %5639 = vmatprep.subr.bf16.mxu0 %v3745
    %5640 = vmatpush1.bf16.msra.mxu0 %v3744
    %5641 = vmatprep.subr.bf16.mxu0 %v3749
    %5642 = vmatpush1.bf16.msra.mxu0 %v3748
    %5643 = vmatprep.subr.bf16.mxu0 %v3753
    %5644 = vmatpush1.bf16.msra.mxu0 %v3752
    %5645 = vmatprep.subr.bf16.mxu0 %v3757
    %5646 = vmatpush1.bf16.msra.mxu0 %v3756
    %5647 = vmatprep.subr.bf16.mxu0 %v3761
    %5648 = vmatpush1.bf16.msra.mxu0 %v3760
    %5649 = vmatprep.subr.bf16.mxu0 %v3765
    %5650 = vmatpush1.bf16.msra.mxu0 %v3764
    %5651 = vmatprep.subr.bf16.mxu0 %v3769
    %5652 = vmatpush1.bf16.msra.mxu0 %v3768
    %5653 = vmatprep.subr.bf16.mxu0 %v3773
    %5654 = vmatpush1.bf16.msra.mxu0 %v3772
    %5655 = vmatprep.mubr.bf16.mxu0 %v283
    %5656 = vmatmul.mubr.bf16.gmra.mrb[0].mxu0 %v282
    %v5657 = vpop.f32.mrb[0].mxu0
    %v5658 = vadd.f32 %v5617, %v5657
    %v5659 = vpop.f32.mrb[0].mxu0
    %v5660 = vadd.f32 %v5619, %v5659
    %v5661 = vpop.f32.mrb[0].mxu0
    %v5662 = vpop.f32.mrb[0].mxu0
    %5663 = vdwg.mxu0
    %5664 = vmatprep.subr.bf16.mxu0 %v3777
    %5665 = vmatpush1.bf16.msra.mxu0 %v3776
    %5666 = vmatprep.subr.bf16.mxu0 %v3781
    %5667 = vmatpush1.bf16.msra.mxu0 %v3780
    %5668 = vmatprep.subr.bf16.mxu0 %v3785
    %5669 = vmatpush1.bf16.msra.mxu0 %v3784
    %5670 = vmatprep.subr.bf16.mxu0 %v3789
    %5671 = vmatpush1.bf16.msra.mxu0 %v3788
    %5672 = vmatprep.subr.bf16.mxu0 %v3793
    %5673 = vmatpush1.bf16.msra.mxu0 %v3792
    %5674 = vmatprep.subr.bf16.mxu0 %v3797
    %5675 = vmatpush1.bf16.msra.mxu0 %v3796
    %5676 = vmatprep.subr.bf16.mxu0 %v3801
    %5677 = vmatpush1.bf16.msra.mxu0 %v3800
    %5678 = vmatprep.subr.bf16.mxu0 %v3805
    %5679 = vmatpush1.bf16.msra.mxu0 %v3804
    %5680 = vmatprep.subr.bf16.mxu0 %v3809
    %5681 = vmatpush1.bf16.msra.mxu0 %v3808
    %5682 = vmatprep.subr.bf16.mxu0 %v3813
    %5683 = vmatpush1.bf16.msra.mxu0 %v3812
    %5684 = vmatprep.subr.bf16.mxu0 %v3817
    %5685 = vmatpush1.bf16.msra.mxu0 %v3816
    %5686 = vmatprep.subr.bf16.mxu0 %v3821
    %5687 = vmatpush1.bf16.msra.mxu0 %v3820
    %5688 = vmatprep.subr.bf16.mxu0 %v3825
    %5689 = vmatpush1.bf16.msra.mxu0 %v3824
    %5690 = vmatprep.subr.bf16.mxu0 %v3829
    %5691 = vmatpush1.bf16.msra.mxu0 %v3828
    %5692 = vmatprep.subr.bf16.mxu0 %v3833
    %5693 = vmatpush1.bf16.msra.mxu0 %v3832
    %5694 = vmatprep.subr.bf16.mxu0 %v3837
    %5695 = vmatpush1.bf16.msra.mxu0 %v3836
    %5696 = vmatprep.mubr.bf16.mxu0 %v285
    %5697 = vmatmul.mubr.bf16.gmra.mrb[0].mxu0 %v284
    %v5698 = vpop.f32.mrb[0].mxu0
    %v5699 = vadd.f32 %v5658, %v5698
    %v5700 = vpop.f32.mrb[0].mxu0
    %v5701 = vadd.f32 %v5660, %v5700
    %v5702 = vpop.f32.mrb[0].mxu0
    %v5703 = vpop.f32.mrb[0].mxu0
    %5704 = vdwg.mxu0
    %5705 = vmatprep.subr.bf16.mxu0 %v3841
    %5706 = vmatpush1.bf16.msra.mxu0 %v3840
    %5707 = vmatprep.subr.bf16.mxu0 %v3845
    %5708 = vmatpush1.bf16.msra.mxu0 %v3844
    %5709 = vmatprep.subr.bf16.mxu0 %v3849
    %5710 = vmatpush1.bf16.msra.mxu0 %v3848
    %5711 = vmatprep.subr.bf16.mxu0 %v3853
    %5712 = vmatpush1.bf16.msra.mxu0 %v3852
    %5713 = vmatprep.subr.bf16.mxu0 %v3857
    %5714 = vmatpush1.bf16.msra.mxu0 %v3856
    %5715 = vmatprep.subr.bf16.mxu0 %v3861
    %5716 = vmatpush1.bf16.msra.mxu0 %v3860
    %5717 = vmatprep.subr.bf16.mxu0 %v3865
    %5718 = vmatpush1.bf16.msra.mxu0 %v3864
    %5719 = vmatprep.subr.bf16.mxu0 %v3869
    %5720 = vmatpush1.bf16.msra.mxu0 %v3868
    %5721 = vmatprep.subr.bf16.mxu0 %v3873
    %5722 = vmatpush1.bf16.msra.mxu0 %v3872
    %5723 = vmatprep.subr.bf16.mxu0 %v3877
    %5724 = vmatpush1.bf16.msra.mxu0 %v3876
    %5725 = vmatprep.subr.bf16.mxu0 %v3881
    %5726 = vmatpush1.bf16.msra.mxu0 %v3880
    %5727 = vmatprep.subr.bf16.mxu0 %v3885
    %5728 = vmatpush1.bf16.msra.mxu0 %v3884
    %5729 = vmatprep.subr.bf16.mxu0 %v3889
    %5730 = vmatpush1.bf16.msra.mxu0 %v3888
    %5731 = vmatprep.subr.bf16.mxu0 %v3893
    %5732 = vmatpush1.bf16.msra.mxu0 %v3892
    %5733 = vmatprep.subr.bf16.mxu0 %v3897
    %5734 = vmatpush1.bf16.msra.mxu0 %v3896
    %5735 = vmatprep.subr.bf16.mxu0 %v3901
    %5736 = vmatpush1.bf16.msra.mxu0 %v3900
    %5737 = vmatprep.mubr.bf16.mxu0 %v287
    %5738 = vmatmul.mubr.bf16.gmra.mrb[0].mxu0 %v286
    %v5739 = vpop.f32.mrb[0].mxu0
    %v5740 = vadd.f32 %v5699, %v5739
    %v5741 = vpop.f32.mrb[0].mxu0
    %v5742 = vadd.f32 %v5701, %v5741
    %v5743 = vpop.f32.mrb[0].mxu0
    %v5744 = vpop.f32.mrb[0].mxu0
    %5745 = vdwg.mxu0
    %5746 = vmatprep.subr.bf16.mxu0 %v3905
    %5747 = vmatpush1.bf16.msra.mxu0 %v3904
    %5748 = vmatprep.subr.bf16.mxu0 %v3909
    %5749 = vmatpush1.bf16.msra.mxu0 %v3908
    %5750 = vmatprep.subr.bf16.mxu0 %v3913
    %5751 = vmatpush1.bf16.msra.mxu0 %v3912
    %5752 = vmatprep.subr.bf16.mxu0 %v3917
    %5753 = vmatpush1.bf16.msra.mxu0 %v3916
    %5754 = vmatprep.subr.bf16.mxu0 %v3921
    %5755 = vmatpush1.bf16.msra.mxu0 %v3920
    %5756 = vmatprep.subr.bf16.mxu0 %v3925
    %5757 = vmatpush1.bf16.msra.mxu0 %v3924
    %5758 = vmatprep.subr.bf16.mxu0 %v3929
    %5759 = vmatpush1.bf16.msra.mxu0 %v3928
    %5760 = vmatprep.subr.bf16.mxu0 %v3933
    %5761 = vmatpush1.bf16.msra.mxu0 %v3932
    %5762 = vmatprep.subr.bf16.mxu0 %v3937
    %5763 = vmatpush1.bf16.msra.mxu0 %v3936
    %5764 = vmatprep.subr.bf16.mxu0 %v3941
    %5765 = vmatpush1.bf16.msra.mxu0 %v3940
    %5766 = vmatprep.subr.bf16.mxu0 %v3945
    %5767 = vmatpush1.bf16.msra.mxu0 %v3944
    %5768 = vmatprep.subr.bf16.mxu0 %v3949
    %5769 = vmatpush1.bf16.msra.mxu0 %v3948
    %5770 = vmatprep.subr.bf16.mxu0 %v3953
    %5771 = vmatpush1.bf16.msra.mxu0 %v3952
    %5772 = vmatprep.subr.bf16.mxu0 %v3957
    %5773 = vmatpush1.bf16.msra.mxu0 %v3956
    %5774 = vmatprep.subr.bf16.mxu0 %v3961
    %5775 = vmatpush1.bf16.msra.mxu0 %v3960
    %5776 = vmatprep.subr.bf16.mxu0 %v3965
    %5777 = vmatpush1.bf16.msra.mxu0 %v3964
    %5778 = vmatprep.mubr.bf16.mxu0 %v289
    %5779 = vmatmul.mubr.bf16.gmra.mrb[0].mxu0 %v288
    %v5780 = vpop.f32.mrb[0].mxu0
    %v5781 = vadd.f32 %v5740, %v5780
    %v5782 = vpop.f32.mrb[0].mxu0
    %v5783 = vadd.f32 %v5742, %v5782
    %v5784 = vpop.f32.mrb[0].mxu0
    %v5785 = vpop.f32.mrb[0].mxu0
    %5786 = vdwg.mxu0
    %5787 = vmatprep.subr.bf16.mxu0 %v3969
    %5788 = vmatpush1.bf16.msra.mxu0 %v3968
    %5789 = vmatprep.subr.bf16.mxu0 %v3973
    %5790 = vmatpush1.bf16.msra.mxu0 %v3972
    %5791 = vmatprep.subr.bf16.mxu0 %v3977
    %5792 = vmatpush1.bf16.msra.mxu0 %v3976
    %5793 = vmatprep.subr.bf16.mxu0 %v3981
    %5794 = vmatpush1.bf16.msra.mxu0 %v3980
    %5795 = vmatprep.subr.bf16.mxu0 %v3985
    %5796 = vmatpush1.bf16.msra.mxu0 %v3984
    %5797 = vmatprep.subr.bf16.mxu0 %v3989
    %5798 = vmatpush1.bf16.msra.mxu0 %v3988
    %5799 = vmatprep.subr.bf16.mxu0 %v3993
    %5800 = vmatpush1.bf16.msra.mxu0 %v3992
    %5801 = vmatprep.subr.bf16.mxu0 %v3997
    %5802 = vmatpush1.bf16.msra.mxu0 %v3996
    %5803 = vmatprep.subr.bf16.mxu0 %v4001
    %5804 = vmatpush1.bf16.msra.mxu0 %v4000
    %5805 = vmatprep.subr.bf16.mxu0 %v4005
    %5806 = vmatpush1.bf16.msra.mxu0 %v4004
    %5807 = vmatprep.subr.bf16.mxu0 %v4009
    %5808 = vmatpush1.bf16.msra.mxu0 %v4008
    %5809 = vmatprep.subr.bf16.mxu0 %v4013
    %5810 = vmatpush1.bf16.msra.mxu0 %v4012
    %5811 = vmatprep.subr.bf16.mxu0 %v4017
    %5812 = vmatpush1.bf16.msra.mxu0 %v4016
    %5813 = vmatprep.subr.bf16.mxu0 %v4021
    %5814 = vmatpush1.bf16.msra.mxu0 %v4020
    %5815 = vmatprep.subr.bf16.mxu0 %v4025
    %5816 = vmatpush1.bf16.msra.mxu0 %v4024
    %5817 = vmatprep.subr.bf16.mxu0 %v4029
    %5818 = vmatpush1.bf16.msra.mxu0 %v4028
    %5819 = vmatprep.mubr.bf16.mxu0 %v291
    %5820 = vmatmul.mubr.bf16.gmra.mrb[0].mxu0 %v290
    %v5821 = vpop.f32.mrb[0].mxu0
    %v5822 = vadd.f32 %v5781, %v5821
    %v5823 = vpop.f32.mrb[0].mxu0
    %v5824 = vadd.f32 %v5783, %v5823
    %v5825 = vpop.f32.mrb[0].mxu0
    %v5826 = vpop.f32.mrb[0].mxu0
    %5827 = vdwg.mxu0
    %5828 = vmatprep.subr.bf16.mxu0 %v4033
    %5829 = vmatpush1.bf16.msra.mxu0 %v4032
    %5830 = vmatprep.subr.bf16.mxu0 %v4037
    %5831 = vmatpush1.bf16.msra.mxu0 %v4036
    %5832 = vmatprep.subr.bf16.mxu0 %v4041
    %5833 = vmatpush1.bf16.msra.mxu0 %v4040
    %5834 = vmatprep.subr.bf16.mxu0 %v4045
    %5835 = vmatpush1.bf16.msra.mxu0 %v4044
    %5836 = vmatprep.subr.bf16.mxu0 %v4049
    %5837 = vmatpush1.bf16.msra.mxu0 %v4048
    %5838 = vmatprep.subr.bf16.mxu0 %v4053
    %5839 = vmatpush1.bf16.msra.mxu0 %v4052
    %5840 = vmatprep.subr.bf16.mxu0 %v4057
    %5841 = vmatpush1.bf16.msra.mxu0 %v4056
    %5842 = vmatprep.subr.bf16.mxu0 %v4061
    %5843 = vmatpush1.bf16.msra.mxu0 %v4060
    %5844 = vmatprep.subr.bf16.mxu0 %v4065
    %5845 = vmatpush1.bf16.msra.mxu0 %v4064
    %5846 = vmatprep.subr.bf16.mxu0 %v4069
    %5847 = vmatpush1.bf16.msra.mxu0 %v4068
    %5848 = vmatprep.subr.bf16.mxu0 %v4073
    %5849 = vmatpush1.bf16.msra.mxu0 %v4072
    %5850 = vmatprep.subr.bf16.mxu0 %v4077
    %5851 = vmatpush1.bf16.msra.mxu0 %v4076
    %5852 = vmatprep.subr.bf16.mxu0 %v4081
    %5853 = vmatpush1.bf16.msra.mxu0 %v4080
    %5854 = vmatprep.subr.bf16.mxu0 %v4085
    %5855 = vmatpush1.bf16.msra.mxu0 %v4084
    %5856 = vmatprep.subr.bf16.mxu0 %v4089
    %5857 = vmatpush1.bf16.msra.mxu0 %v4088
    %5858 = vmatprep.subr.bf16.mxu0 %v4093
    %5859 = vmatpush1.bf16.msra.mxu0 %v4092
    %5860 = vmatprep.mubr.bf16.mxu0 %v293
    %5861 = vmatmul.mubr.bf16.gmra.mrb[0].mxu0 %v292
    %v5862 = vpop.f32.mrb[0].mxu0
    %v5863 = vadd.f32 %v5822, %v5862
    %v5864 = vpop.f32.mrb[0].mxu0
    %v5865 = vadd.f32 %v5824, %v5864
    %v5866 = vpop.f32.mrb[0].mxu0
    %v5867 = vpop.f32.mrb[0].mxu0
    %5868 = vdwg.mxu0
    %5869 = vmatprep.subr.bf16.mxu0 %v4097
    %5870 = vmatpush1.bf16.msra.mxu0 %v4096
    %5871 = vmatprep.subr.bf16.mxu0 %v4101
    %5872 = vmatpush1.bf16.msra.mxu0 %v4100
    %5873 = vmatprep.subr.bf16.mxu0 %v4105
    %5874 = vmatpush1.bf16.msra.mxu0 %v4104
    %5875 = vmatprep.subr.bf16.mxu0 %v4109
    %5876 = vmatpush1.bf16.msra.mxu0 %v4108
    %5877 = vmatprep.subr.bf16.mxu0 %v4113
    %5878 = vmatpush1.bf16.msra.mxu0 %v4112
    %5879 = vmatprep.subr.bf16.mxu0 %v4117
    %5880 = vmatpush1.bf16.msra.mxu0 %v4116
    %5881 = vmatprep.subr.bf16.mxu0 %v4121
    %5882 = vmatpush1.bf16.msra.mxu0 %v4120
    %5883 = vmatprep.subr.bf16.mxu0 %v4125
    %5884 = vmatpush1.bf16.msra.mxu0 %v4124
    %5885 = vmatprep.subr.bf16.mxu0 %v4129
    %5886 = vmatpush1.bf16.msra.mxu0 %v4128
    %5887 = vmatprep.subr.bf16.mxu0 %v4133
    %5888 = vmatpush1.bf16.msra.mxu0 %v4132
    %5889 = vmatprep.subr.bf16.mxu0 %v4137
    %5890 = vmatpush1.bf16.msra.mxu0 %v4136
    %5891 = vmatprep.subr.bf16.mxu0 %v4141
    %5892 = vmatpush1.bf16.msra.mxu0 %v4140
    %5893 = vmatprep.subr.bf16.mxu0 %v4145
    %5894 = vmatpush1.bf16.msra.mxu0 %v4144
    %5895 = vmatprep.subr.bf16.mxu0 %v4149
    %5896 = vmatpush1.bf16.msra.mxu0 %v4148
    %5897 = vmatprep.subr.bf16.mxu0 %v4153
    %5898 = vmatpush1.bf16.msra.mxu0 %v4152
    %5899 = vmatprep.subr.bf16.mxu0 %v4157
    %5900 = vmatpush1.bf16.msra.mxu0 %v4156
    %5901 = vmatprep.mubr.bf16.mxu0 %v295
    %5902 = vmatmul.mubr.bf16.gmra.mrb[0].mxu0 %v294
    %v5903 = vpop.f32.mrb[0].mxu0
    %v5904 = vadd.f32 %v5863, %v5903
    %v5905 = vpop.f32.mrb[0].mxu0
    %v5906 = vadd.f32 %v5865, %v5905
    %v5907 = vpop.f32.mrb[0].mxu0
    %v5908 = vpop.f32.mrb[0].mxu0
    %5909 = vdwg.mxu0
    %v5910 = vmax.f32 %v5412, 0.0
    %v5911 = vmax.f32 %v5414, 0.0
    %v5912 = vmax.f32 %v5904, 0.0
    %v5913 = vmax.f32 %v5906, 0.0
    %v5914 = vpack.c.bf16 %v5910, %v5910
    %v5915 = vpack.c.bf16 %v5911, %v5911
    %v5916 = vpack.c.bf16 %v5912, %v5912
    %v5917 = vpack.c.bf16 %v5913, %v5913
    %v5918 = vld [vmem:[#allocation6] sm:$0xff]
    %v5919 = vld [vmem:[#allocation6 + $0x8] sm:$0xff]
    %v5920 = vld [vmem:[#allocation6 + $0x10] sm:$0xff]
    %v5921 = vld [vmem:[#allocation6 + $0x18] sm:$0xff]
    %v5922 = vld [vmem:[#allocation6 + $0x20] sm:$0xff]
    %v5923 = vld [vmem:[#allocation6 + $0x28] sm:$0xff]
    %v5924 = vld [vmem:[#allocation6 + $0x30] sm:$0xff]
    %v5925 = vld [vmem:[#allocation6 + $0x38] sm:$0xff]
    %v5926 = vld [vmem:[#allocation6 + $0x40] sm:$0xff]
    %v5927 = vld [vmem:[#allocation6 + $0x48] sm:$0xff]
    %v5928 = vld [vmem:[#allocation6 + $0x50] sm:$0xff]
    %v5929 = vld [vmem:[#allocation6 + $0x58] sm:$0xff]
    %v5930 = vld [vmem:[#allocation6 + $0x60] sm:$0xff]
    %v5931 = vld [vmem:[#allocation6 + $0x68] sm:$0xff]
    %v5932 = vld [vmem:[#allocation6 + $0x70] sm:$0xff]
    %v5933 = vld [vmem:[#allocation6 + $0x78] sm:$0xff]
    %v5934 = vld [vmem:[#allocation6 + $0x80] sm:$0xff]
    %v5935 = vld [vmem:[#allocation6 + $0x88] sm:$0xff]
    %v5936 = vld [vmem:[#allocation6 + $0x90] sm:$0xff]
    %v5937 = vld [vmem:[#allocation6 + $0x98] sm:$0xff]
    %v5938 = vld [vmem:[#allocation6 + $0xa0] sm:$0xff]
    %v5939 = vld [vmem:[#allocation6 + $0xa8] sm:$0xff]
    %v5940 = vld [vmem:[#allocation6 + $0xb0] sm:$0xff]
    %v5941 = vld [vmem:[#allocation6 + $0xb8] sm:$0xff]
    %v5942 = vld [vmem:[#allocation6 + $0xc0] sm:$0xff]
    %v5943 = vld [vmem:[#allocation6 + $0xc8] sm:$0xff]
    %v5944 = vld [vmem:[#allocation6 + $0xd0] sm:$0xff]
    %v5945 = vld [vmem:[#allocation6 + $0xd8] sm:$0xff]
    %v5946 = vld [vmem:[#allocation6 + $0xe0] sm:$0xff]
    %v5947 = vld [vmem:[#allocation6 + $0xe8] sm:$0xff]
    %v5948 = vld [vmem:[#allocation6 + $0xf0] sm:$0xff]
    %v5949 = vld [vmem:[#allocation6 + $0xf8] sm:$0xff]
    %v5950 = vld [vmem:[#allocation6 + $0x100] sm:$0xff]
    %v5951 = vld [vmem:[#allocation6 + $0x108] sm:$0xff]
    %v5952 = vld [vmem:[#allocation6 + $0x110] sm:$0xff]
    %v5953 = vld [vmem:[#allocation6 + $0x118] sm:$0xff]
    %v5954 = vld [vmem:[#allocation6 + $0x120] sm:$0xff]
    %v5955 = vld [vmem:[#allocation6 + $0x128] sm:$0xff]
    %v5956 = vld [vmem:[#allocation6 + $0x130] sm:$0xff]
    %v5957 = vld [vmem:[#allocation6 + $0x138] sm:$0xff]
    %v5958 = vld [vmem:[#allocation6 + $0x140] sm:$0xff]
    %v5959 = vld [vmem:[#allocation6 + $0x148] sm:$0xff]
    %v5960 = vld [vmem:[#allocation6 + $0x150] sm:$0xff]
    %v5961 = vld [vmem:[#allocation6 + $0x158] sm:$0xff]
    %v5962 = vld [vmem:[#allocation6 + $0x160] sm:$0xff]
    %v5963 = vld [vmem:[#allocation6 + $0x168] sm:$0xff]
    %v5964 = vld [vmem:[#allocation6 + $0x170] sm:$0xff]
    %v5965 = vld [vmem:[#allocation6 + $0x178] sm:$0xff]
    %v5966 = vld [vmem:[#allocation6 + $0x180] sm:$0xff]
    %v5967 = vld [vmem:[#allocation6 + $0x188] sm:$0xff]
    %v5968 = vld [vmem:[#allocation6 + $0x190] sm:$0xff]
    %v5969 = vld [vmem:[#allocation6 + $0x198] sm:$0xff]
    %v5970 = vld [vmem:[#allocation6 + $0x1a0] sm:$0xff]
    %v5971 = vld [vmem:[#allocation6 + $0x1a8] sm:$0xff]
    %v5972 = vld [vmem:[#allocation6 + $0x1b0] sm:$0xff]
    %v5973 = vld [vmem:[#allocation6 + $0x1b8] sm:$0xff]
    %v5974 = vld [vmem:[#allocation6 + $0x1c0] sm:$0xff]
    %v5975 = vld [vmem:[#allocation6 + $0x1c8] sm:$0xff]
    %v5976 = vld [vmem:[#allocation6 + $0x1d0] sm:$0xff]
    %v5977 = vld [vmem:[#allocation6 + $0x1d8] sm:$0xff]
    %v5978 = vld [vmem:[#allocation6 + $0x1e0] sm:$0xff]
    %v5979 = vld [vmem:[#allocation6 + $0x1e8] sm:$0xff]
    %v5980 = vld [vmem:[#allocation6 + $0x1f0] sm:$0xff]
    %v5981 = vld [vmem:[#allocation6 + $0x1f8] sm:$0xff]
    %v5982 = vld [vmem:[#allocation6 + $0x200] sm:$0xff]
    %v5983 = vld [vmem:[#allocation6 + $0x208] sm:$0xff]
    %v5984 = vld [vmem:[#allocation6 + $0x210] sm:$0xff]
    %v5985 = vld [vmem:[#allocation6 + $0x218] sm:$0xff]
    %v5986 = vld [vmem:[#allocation6 + $0x220] sm:$0xff]
    %v5987 = vld [vmem:[#allocation6 + $0x228] sm:$0xff]
    %v5988 = vld [vmem:[#allocation6 + $0x230] sm:$0xff]
    %v5989 = vld [vmem:[#allocation6 + $0x238] sm:$0xff]
    %v5990 = vld [vmem:[#allocation6 + $0x240] sm:$0xff]
    %v5991 = vld [vmem:[#allocation6 + $0x248] sm:$0xff]
    %v5992 = vld [vmem:[#allocation6 + $0x250] sm:$0xff]
    %v5993 = vld [vmem:[#allocation6 + $0x258] sm:$0xff]
    %v5994 = vld [vmem:[#allocation6 + $0x260] sm:$0xff]
    %v5995 = vld [vmem:[#allocation6 + $0x268] sm:$0xff]
    %v5996 = vld [vmem:[#allocation6 + $0x270] sm:$0xff]
    %v5997 = vld [vmem:[#allocation6 + $0x278] sm:$0xff]
    %v5998 = vld [vmem:[#allocation6 + $0x280] sm:$0xff]
    %v5999 = vld [vmem:[#allocation6 + $0x288] sm:$0xff]
    %v6000 = vld [vmem:[#allocation6 + $0x290] sm:$0xff]
    %v6001 = vld [vmem:[#allocation6 + $0x298] sm:$0xff]
    %v6002 = vld [vmem:[#allocation6 + $0x2a0] sm:$0xff]
    %v6003 = vld [vmem:[#allocation6 + $0x2a8] sm:$0xff]
    %v6004 = vld [vmem:[#allocation6 + $0x2b0] sm:$0xff]
    %v6005 = vld [vmem:[#allocation6 + $0x2b8] sm:$0xff]
    %v6006 = vld [vmem:[#allocation6 + $0x2c0] sm:$0xff]
    %v6007 = vld [vmem:[#allocation6 + $0x2c8] sm:$0xff]
    %v6008 = vld [vmem:[#allocation6 + $0x2d0] sm:$0xff]
    %v6009 = vld [vmem:[#allocation6 + $0x2d8] sm:$0xff]
    %v6010 = vld [vmem:[#allocation6 + $0x2e0] sm:$0xff]
    %v6011 = vld [vmem:[#allocation6 + $0x2e8] sm:$0xff]
    %v6012 = vld [vmem:[#allocation6 + $0x2f0] sm:$0xff]
    %v6013 = vld [vmem:[#allocation6 + $0x2f8] sm:$0xff]
    %v6014 = vld [vmem:[#allocation6 + $0x300] sm:$0xff]
    %v6015 = vld [vmem:[#allocation6 + $0x308] sm:$0xff]
    %v6016 = vld [vmem:[#allocation6 + $0x310] sm:$0xff]
    %v6017 = vld [vmem:[#allocation6 + $0x318] sm:$0xff]
    %v6018 = vld [vmem:[#allocation6 + $0x320] sm:$0xff]
    %v6019 = vld [vmem:[#allocation6 + $0x328] sm:$0xff]
    %v6020 = vld [vmem:[#allocation6 + $0x330] sm:$0xff]
    %v6021 = vld [vmem:[#allocation6 + $0x338] sm:$0xff]
    %v6022 = vld [vmem:[#allocation6 + $0x340] sm:$0xff]
    %v6023 = vld [vmem:[#allocation6 + $0x348] sm:$0xff]
    %v6024 = vld [vmem:[#allocation6 + $0x350] sm:$0xff]
    %v6025 = vld [vmem:[#allocation6 + $0x358] sm:$0xff]
    %v6026 = vld [vmem:[#allocation6 + $0x360] sm:$0xff]
    %v6027 = vld [vmem:[#allocation6 + $0x368] sm:$0xff]
    %v6028 = vld [vmem:[#allocation6 + $0x370] sm:$0xff]
    %v6029 = vld [vmem:[#allocation6 + $0x378] sm:$0xff]
    %v6030 = vld [vmem:[#allocation6 + $0x380] sm:$0xff]
    %v6031 = vld [vmem:[#allocation6 + $0x388] sm:$0xff]
    %v6032 = vld [vmem:[#allocation6 + $0x390] sm:$0xff]
    %v6033 = vld [vmem:[#allocation6 + $0x398] sm:$0xff]
    %v6034 = vld [vmem:[#allocation6 + $0x3a0] sm:$0xff]
    %v6035 = vld [vmem:[#allocation6 + $0x3a8] sm:$0xff]
    %v6036 = vld [vmem:[#allocation6 + $0x3b0] sm:$0xff]
    %v6037 = vld [vmem:[#allocation6 + $0x3b8] sm:$0xff]
    %v6038 = vld [vmem:[#allocation6 + $0x3c0] sm:$0xff]
    %v6039 = vld [vmem:[#allocation6 + $0x3c8] sm:$0xff]
    %v6040 = vld [vmem:[#allocation6 + $0x3d0] sm:$0xff]
    %v6041 = vld [vmem:[#allocation6 + $0x3d8] sm:$0xff]
    %v6042 = vld [vmem:[#allocation6 + $0x3e0] sm:$0xff]
    %v6043 = vld [vmem:[#allocation6 + $0x3e8] sm:$0xff]
    %v6044 = vld [vmem:[#allocation6 + $0x3f0] sm:$0xff]
    %v6045 = vld [vmem:[#allocation6 + $0x3f8] sm:$0xff]
    %v6046 = vld [vmem:[#allocation7] sm:$0xf]
    %v6048 = vlaneseq
    %v6049 = vshrl.u32 %v6048, 7
    %v6050 = vsub.s32 0, %v6049
    %v6051 = vrot.slane %v6046, %v6050
    %v6052 = vlaneseq
    %v6053 = vshrl.u32 %v6052, 7
    %v6054 = vsub.s32 1, %v6053
    %v6055 = vrot.slane %v6046, %v6054
    %v6056 = vlaneseq
    %v6057 = vshrl.u32 %v6056, 7
    %v6058 = vsub.s32 2, %v6057
    %v6059 = vrot.slane %v6046, %v6058
    %v6060 = vlaneseq
    %v6061 = vshrl.u32 %v6060, 7
    %v6062 = vsub.s32 3, %v6061
    %v6063 = vrot.slane %v6046, %v6062
    %v6196 = vunpack.c.l.b16 %v5918
    %v6197 = vunpack.c.h.b16 %v5918
    %v6198 = vunpack.c.l.b16 %v5919
    %v6199 = vunpack.c.h.b16 %v5919
    %v6200 = vunpack.c.l.b16 %v5920
    %v6201 = vunpack.c.h.b16 %v5920
    %v6202 = vunpack.c.l.b16 %v5921
    %v6203 = vunpack.c.h.b16 %v5921
    %v6204 = vunpack.c.l.b16 %v5922
    %v6205 = vunpack.c.h.b16 %v5922
    %v6206 = vunpack.c.l.b16 %v5923
    %v6207 = vunpack.c.h.b16 %v5923
    %v6208 = vunpack.c.l.b16 %v5924
    %v6209 = vunpack.c.h.b16 %v5924
    %v6210 = vunpack.c.l.b16 %v5925
    %v6211 = vunpack.c.h.b16 %v5925
    %v6212 = vunpack.c.l.b16 %v5926
    %v6213 = vunpack.c.h.b16 %v5926
    %v6214 = vunpack.c.l.b16 %v5927
    %v6215 = vunpack.c.h.b16 %v5927
    %v6216 = vunpack.c.l.b16 %v5928
    %v6217 = vunpack.c.h.b16 %v5928
    %v6218 = vunpack.c.l.b16 %v5929
    %v6219 = vunpack.c.h.b16 %v5929
    %v6220 = vunpack.c.l.b16 %v5930
    %v6221 = vunpack.c.h.b16 %v5930
    %v6222 = vunpack.c.l.b16 %v5931
    %v6223 = vunpack.c.h.b16 %v5931
    %v6224 = vunpack.c.l.b16 %v5932
    %v6225 = vunpack.c.h.b16 %v5932
    %v6226 = vunpack.c.l.b16 %v5933
    %v6227 = vunpack.c.h.b16 %v5933
    %v6228 = vunpack.c.l.b16 %v5934
    %v6229 = vunpack.c.h.b16 %v5934
    %v6230 = vunpack.c.l.b16 %v5935
    %v6231 = vunpack.c.h.b16 %v5935
    %v6232 = vunpack.c.l.b16 %v5936
    %v6233 = vunpack.c.h.b16 %v5936
    %v6234 = vunpack.c.l.b16 %v5937
    %v6235 = vunpack.c.h.b16 %v5937
    %v6236 = vunpack.c.l.b16 %v5938
    %v6237 = vunpack.c.h.b16 %v5938
    %v6238 = vunpack.c.l.b16 %v5939
    %v6239 = vunpack.c.h.b16 %v5939
    %v6240 = vunpack.c.l.b16 %v5940
    %v6241 = vunpack.c.h.b16 %v5940
    %v6242 = vunpack.c.l.b16 %v5941
    %v6243 = vunpack.c.h.b16 %v5941
    %v6244 = vunpack.c.l.b16 %v5942
    %v6245 = vunpack.c.h.b16 %v5942
    %v6246 = vunpack.c.l.b16 %v5943
    %v6247 = vunpack.c.h.b16 %v5943
    %v6248 = vunpack.c.l.b16 %v5944
    %v6249 = vunpack.c.h.b16 %v5944
    %v6250 = vunpack.c.l.b16 %v5945
    %v6251 = vunpack.c.h.b16 %v5945
    %v6252 = vunpack.c.l.b16 %v5946
    %v6253 = vunpack.c.h.b16 %v5946
    %v6254 = vunpack.c.l.b16 %v5947
    %v6255 = vunpack.c.h.b16 %v5947
    %v6256 = vunpack.c.l.b16 %v5948
    %v6257 = vunpack.c.h.b16 %v5948
    %v6258 = vunpack.c.l.b16 %v5949
    %v6259 = vunpack.c.h.b16 %v5949
    %v6260 = vunpack.c.l.b16 %v5950
    %v6261 = vunpack.c.h.b16 %v5950
    %v6262 = vunpack.c.l.b16 %v5951
    %v6263 = vunpack.c.h.b16 %v5951
    %v6264 = vunpack.c.l.b16 %v5952
    %v6265 = vunpack.c.h.b16 %v5952
    %v6266 = vunpack.c.l.b16 %v5953
    %v6267 = vunpack.c.h.b16 %v5953
    %v6268 = vunpack.c.l.b16 %v5954
    %v6269 = vunpack.c.h.b16 %v5954
    %v6270 = vunpack.c.l.b16 %v5955
    %v6271 = vunpack.c.h.b16 %v5955
    %v6272 = vunpack.c.l.b16 %v5956
    %v6273 = vunpack.c.h.b16 %v5956
    %v6274 = vunpack.c.l.b16 %v5957
    %v6275 = vunpack.c.h.b16 %v5957
    %v6276 = vunpack.c.l.b16 %v5958
    %v6277 = vunpack.c.h.b16 %v5958
    %v6278 = vunpack.c.l.b16 %v5959
    %v6279 = vunpack.c.h.b16 %v5959
    %v6280 = vunpack.c.l.b16 %v5960
    %v6281 = vunpack.c.h.b16 %v5960
    %v6282 = vunpack.c.l.b16 %v5961
    %v6283 = vunpack.c.h.b16 %v5961
    %v6284 = vunpack.c.l.b16 %v5962
    %v6285 = vunpack.c.h.b16 %v5962
    %v6286 = vunpack.c.l.b16 %v5963
    %v6287 = vunpack.c.h.b16 %v5963
    %v6288 = vunpack.c.l.b16 %v5964
    %v6289 = vunpack.c.h.b16 %v5964
    %v6290 = vunpack.c.l.b16 %v5965
    %v6291 = vunpack.c.h.b16 %v5965
    %v6292 = vunpack.c.l.b16 %v5966
    %v6293 = vunpack.c.h.b16 %v5966
    %v6294 = vunpack.c.l.b16 %v5967
    %v6295 = vunpack.c.h.b16 %v5967
    %v6296 = vunpack.c.l.b16 %v5968
    %v6297 = vunpack.c.h.b16 %v5968
    %v6298 = vunpack.c.l.b16 %v5969
    %v6299 = vunpack.c.h.b16 %v5969
    %v6300 = vunpack.c.l.b16 %v5970
    %v6301 = vunpack.c.h.b16 %v5970
    %v6302 = vunpack.c.l.b16 %v5971
    %v6303 = vunpack.c.h.b16 %v5971
    %v6304 = vunpack.c.l.b16 %v5972
    %v6305 = vunpack.c.h.b16 %v5972
    %v6306 = vunpack.c.l.b16 %v5973
    %v6307 = vunpack.c.h.b16 %v5973
    %v6308 = vunpack.c.l.b16 %v5974
    %v6309 = vunpack.c.h.b16 %v5974
    %v6310 = vunpack.c.l.b16 %v5975
    %v6311 = vunpack.c.h.b16 %v5975
    %v6312 = vunpack.c.l.b16 %v5976
    %v6313 = vunpack.c.h.b16 %v5976
    %v6314 = vunpack.c.l.b16 %v5977
    %v6315 = vunpack.c.h.b16 %v5977
    %v6316 = vunpack.c.l.b16 %v5978
    %v6317 = vunpack.c.h.b16 %v5978
    %v6318 = vunpack.c.l.b16 %v5979
    %v6319 = vunpack.c.h.b16 %v5979
    %v6320 = vunpack.c.l.b16 %v5980
    %v6321 = vunpack.c.h.b16 %v5980
    %v6322 = vunpack.c.l.b16 %v5981
    %v6323 = vunpack.c.h.b16 %v5981
    %v6324 = vunpack.c.l.b16 %v5982
    %v6325 = vunpack.c.h.b16 %v5982
    %v6326 = vunpack.c.l.b16 %v5983
    %v6327 = vunpack.c.h.b16 %v5983
    %v6328 = vunpack.c.l.b16 %v5984
    %v6329 = vunpack.c.h.b16 %v5984
    %v6330 = vunpack.c.l.b16 %v5985
    %v6331 = vunpack.c.h.b16 %v5985
    %v6332 = vunpack.c.l.b16 %v5986
    %v6333 = vunpack.c.h.b16 %v5986
    %v6334 = vunpack.c.l.b16 %v5987
    %v6335 = vunpack.c.h.b16 %v5987
    %v6336 = vunpack.c.l.b16 %v5988
    %v6337 = vunpack.c.h.b16 %v5988
    %v6338 = vunpack.c.l.b16 %v5989
    %v6339 = vunpack.c.h.b16 %v5989
    %v6340 = vunpack.c.l.b16 %v5990
    %v6341 = vunpack.c.h.b16 %v5990
    %v6342 = vunpack.c.l.b16 %v5991
    %v6343 = vunpack.c.h.b16 %v5991
    %v6344 = vunpack.c.l.b16 %v5992
    %v6345 = vunpack.c.h.b16 %v5992
    %v6346 = vunpack.c.l.b16 %v5993
    %v6347 = vunpack.c.h.b16 %v5993
    %v6348 = vunpack.c.l.b16 %v5994
    %v6349 = vunpack.c.h.b16 %v5994
    %v6350 = vunpack.c.l.b16 %v5995
    %v6351 = vunpack.c.h.b16 %v5995
    %v6352 = vunpack.c.l.b16 %v5996
    %v6353 = vunpack.c.h.b16 %v5996
    %v6354 = vunpack.c.l.b16 %v5997
    %v6355 = vunpack.c.h.b16 %v5997
    %v6356 = vunpack.c.l.b16 %v5998
    %v6357 = vunpack.c.h.b16 %v5998
    %v6358 = vunpack.c.l.b16 %v5999
    %v6359 = vunpack.c.h.b16 %v5999
    %v6360 = vunpack.c.l.b16 %v6000
    %v6361 = vunpack.c.h.b16 %v6000
    %v6362 = vunpack.c.l.b16 %v6001
    %v6363 = vunpack.c.h.b16 %v6001
    %v6364 = vunpack.c.l.b16 %v6002
    %v6365 = vunpack.c.h.b16 %v6002
    %v6366 = vunpack.c.l.b16 %v6003
    %v6367 = vunpack.c.h.b16 %v6003
    %v6368 = vunpack.c.l.b16 %v6004
    %v6369 = vunpack.c.h.b16 %v6004
    %v6370 = vunpack.c.l.b16 %v6005
    %v6371 = vunpack.c.h.b16 %v6005
    %v6372 = vunpack.c.l.b16 %v6006
    %v6373 = vunpack.c.h.b16 %v6006
    %v6374 = vunpack.c.l.b16 %v6007
    %v6375 = vunpack.c.h.b16 %v6007
    %v6376 = vunpack.c.l.b16 %v6008
    %v6377 = vunpack.c.h.b16 %v6008
    %v6378 = vunpack.c.l.b16 %v6009
    %v6379 = vunpack.c.h.b16 %v6009
    %v6380 = vunpack.c.l.b16 %v6010
    %v6381 = vunpack.c.h.b16 %v6010
    %v6382 = vunpack.c.l.b16 %v6011
    %v6383 = vunpack.c.h.b16 %v6011
    %v6384 = vunpack.c.l.b16 %v6012
    %v6385 = vunpack.c.h.b16 %v6012
    %v6386 = vunpack.c.l.b16 %v6013
    %v6387 = vunpack.c.h.b16 %v6013
    %v6388 = vunpack.c.l.b16 %v6014
    %v6389 = vunpack.c.h.b16 %v6014
    %v6390 = vunpack.c.l.b16 %v6015
    %v6391 = vunpack.c.h.b16 %v6015
    %v6392 = vunpack.c.l.b16 %v6016
    %v6393 = vunpack.c.h.b16 %v6016
    %v6394 = vunpack.c.l.b16 %v6017
    %v6395 = vunpack.c.h.b16 %v6017
    %v6396 = vunpack.c.l.b16 %v6018
    %v6397 = vunpack.c.h.b16 %v6018
    %v6398 = vunpack.c.l.b16 %v6019
    %v6399 = vunpack.c.h.b16 %v6019
    %v6400 = vunpack.c.l.b16 %v6020
    %v6401 = vunpack.c.h.b16 %v6020
    %v6402 = vunpack.c.l.b16 %v6021
    %v6403 = vunpack.c.h.b16 %v6021
    %v6404 = vunpack.c.l.b16 %v6022
    %v6405 = vunpack.c.h.b16 %v6022
    %v6406 = vunpack.c.l.b16 %v6023
    %v6407 = vunpack.c.h.b16 %v6023
    %v6408 = vunpack.c.l.b16 %v6024
    %v6409 = vunpack.c.h.b16 %v6024
    %v6410 = vunpack.c.l.b16 %v6025
    %v6411 = vunpack.c.h.b16 %v6025
    %v6412 = vunpack.c.l.b16 %v6026
    %v6413 = vunpack.c.h.b16 %v6026
    %v6414 = vunpack.c.l.b16 %v6027
    %v6415 = vunpack.c.h.b16 %v6027
    %v6416 = vunpack.c.l.b16 %v6028
    %v6417 = vunpack.c.h.b16 %v6028
    %v6418 = vunpack.c.l.b16 %v6029
    %v6419 = vunpack.c.h.b16 %v6029
    %v6420 = vunpack.c.l.b16 %v6030
    %v6421 = vunpack.c.h.b16 %v6030
    %v6422 = vunpack.c.l.b16 %v6031
    %v6423 = vunpack.c.h.b16 %v6031
    %v6424 = vunpack.c.l.b16 %v6032
    %v6425 = vunpack.c.h.b16 %v6032
    %v6426 = vunpack.c.l.b16 %v6033
    %v6427 = vunpack.c.h.b16 %v6033
    %v6428 = vunpack.c.l.b16 %v6034
    %v6429 = vunpack.c.h.b16 %v6034
    %v6430 = vunpack.c.l.b16 %v6035
    %v6431 = vunpack.c.h.b16 %v6035
    %v6432 = vunpack.c.l.b16 %v6036
    %v6433 = vunpack.c.h.b16 %v6036
    %v6434 = vunpack.c.l.b16 %v6037
    %v6435 = vunpack.c.h.b16 %v6037
    %v6436 = vunpack.c.l.b16 %v6038
    %v6437 = vunpack.c.h.b16 %v6038
    %v6438 = vunpack.c.l.b16 %v6039
    %v6439 = vunpack.c.h.b16 %v6039
    %v6440 = vunpack.c.l.b16 %v6040
    %v6441 = vunpack.c.h.b16 %v6040
    %v6442 = vunpack.c.l.b16 %v6041
    %v6443 = vunpack.c.h.b16 %v6041
    %v6444 = vunpack.c.l.b16 %v6042
    %v6445 = vunpack.c.h.b16 %v6042
    %v6446 = vunpack.c.l.b16 %v6043
    %v6447 = vunpack.c.h.b16 %v6043
    %v6448 = vunpack.c.l.b16 %v6044
    %v6449 = vunpack.c.h.b16 %v6044
    %v6450 = vunpack.c.l.b16 %v6045
    %v6451 = vunpack.c.h.b16 %v6045
    %v6452 = vpack.c.b16 %v6200, %v6196
    %v6453 = vpack.c.b16 %v6201, %v6197
    %v6454 = vpack.c.b16 %v6202, %v6198
    %v6455 = vpack.c.b16 %v6203, %v6199
    %v6456 = vpack.c.b16 %v6208, %v6204
    %v6457 = vpack.c.b16 %v6209, %v6205
    %v6458 = vpack.c.b16 %v6210, %v6206
    %v6459 = vpack.c.b16 %v6211, %v6207
    %v6460 = vpack.c.b16 %v6216, %v6212
    %v6461 = vpack.c.b16 %v6217, %v6213
    %v6462 = vpack.c.b16 %v6218, %v6214
    %v6463 = vpack.c.b16 %v6219, %v6215
    %v6464 = vpack.c.b16 %v6224, %v6220
    %v6465 = vpack.c.b16 %v6225, %v6221
    %v6466 = vpack.c.b16 %v6226, %v6222
    %v6467 = vpack.c.b16 %v6227, %v6223
    %v6468 = vpack.c.b16 %v6232, %v6228
    %v6469 = vpack.c.b16 %v6233, %v6229
    %v6470 = vpack.c.b16 %v6234, %v6230
    %v6471 = vpack.c.b16 %v6235, %v6231
    %v6472 = vpack.c.b16 %v6240, %v6236
    %v6473 = vpack.c.b16 %v6241, %v6237
    %v6474 = vpack.c.b16 %v6242, %v6238
    %v6475 = vpack.c.b16 %v6243, %v6239
    %v6476 = vpack.c.b16 %v6248, %v6244
    %v6477 = vpack.c.b16 %v6249, %v6245
    %v6478 = vpack.c.b16 %v6250, %v6246
    %v6479 = vpack.c.b16 %v6251, %v6247
    %v6480 = vpack.c.b16 %v6256, %v6252
    %v6481 = vpack.c.b16 %v6257, %v6253
    %v6482 = vpack.c.b16 %v6258, %v6254
    %v6483 = vpack.c.b16 %v6259, %v6255
    %v6484 = vpack.c.b16 %v6264, %v6260
    %v6485 = vpack.c.b16 %v6265, %v6261
    %v6486 = vpack.c.b16 %v6266, %v6262
    %v6487 = vpack.c.b16 %v6267, %v6263
    %v6488 = vpack.c.b16 %v6272, %v6268
    %v6489 = vpack.c.b16 %v6273, %v6269
    %v6490 = vpack.c.b16 %v6274, %v6270
    %v6491 = vpack.c.b16 %v6275, %v6271
    %v6492 = vpack.c.b16 %v6280, %v6276
    %v6493 = vpack.c.b16 %v6281, %v6277
    %v6494 = vpack.c.b16 %v6282, %v6278
    %v6495 = vpack.c.b16 %v6283, %v6279
    %v6496 = vpack.c.b16 %v6288, %v6284
    %v6497 = vpack.c.b16 %v6289, %v6285
    %v6498 = vpack.c.b16 %v6290, %v6286
    %v6499 = vpack.c.b16 %v6291, %v6287
    %v6500 = vpack.c.b16 %v6296, %v6292
    %v6501 = vpack.c.b16 %v6297, %v6293
    %v6502 = vpack.c.b16 %v6298, %v6294
    %v6503 = vpack.c.b16 %v6299, %v6295
    %v6504 = vpack.c.b16 %v6304, %v6300
    %v6505 = vpack.c.b16 %v6305, %v6301
    %v6506 = vpack.c.b16 %v6306, %v6302
    %v6507 = vpack.c.b16 %v6307, %v6303
    %v6508 = vpack.c.b16 %v6312, %v6308
    %v6509 = vpack.c.b16 %v6313, %v6309
    %v6510 = vpack.c.b16 %v6314, %v6310
    %v6511 = vpack.c.b16 %v6315, %v6311
    %v6512 = vpack.c.b16 %v6320, %v6316
    %v6513 = vpack.c.b16 %v6321, %v6317
    %v6514 = vpack.c.b16 %v6322, %v6318
    %v6515 = vpack.c.b16 %v6323, %v6319
    %v6516 = vpack.c.b16 %v6328, %v6324
    %v6517 = vpack.c.b16 %v6329, %v6325
    %v6518 = vpack.c.b16 %v6330, %v6326
    %v6519 = vpack.c.b16 %v6331, %v6327
    %v6520 = vpack.c.b16 %v6336, %v6332
    %v6521 = vpack.c.b16 %v6337, %v6333
    %v6522 = vpack.c.b16 %v6338, %v6334
    %v6523 = vpack.c.b16 %v6339, %v6335
    %v6524 = vpack.c.b16 %v6344, %v6340
    %v6525 = vpack.c.b16 %v6345, %v6341
    %v6526 = vpack.c.b16 %v6346, %v6342
    %v6527 = vpack.c.b16 %v6347, %v6343
    %v6528 = vpack.c.b16 %v6352, %v6348
    %v6529 = vpack.c.b16 %v6353, %v6349
    %v6530 = vpack.c.b16 %v6354, %v6350
    %v6531 = vpack.c.b16 %v6355, %v6351
    %v6532 = vpack.c.b16 %v6360, %v6356
    %v6533 = vpack.c.b16 %v6361, %v6357
    %v6534 = vpack.c.b16 %v6362, %v6358
    %v6535 = vpack.c.b16 %v6363, %v6359
    %v6536 = vpack.c.b16 %v6368, %v6364
    %v6537 = vpack.c.b16 %v6369, %v6365
    %v6538 = vpack.c.b16 %v6370, %v6366
    %v6539 = vpack.c.b16 %v6371, %v6367
    %v6540 = vpack.c.b16 %v6376, %v6372
    %v6541 = vpack.c.b16 %v6377, %v6373
    %v6542 = vpack.c.b16 %v6378, %v6374
    %v6543 = vpack.c.b16 %v6379, %v6375
    %v6544 = vpack.c.b16 %v6384, %v6380
    %v6545 = vpack.c.b16 %v6385, %v6381
    %v6546 = vpack.c.b16 %v6386, %v6382
    %v6547 = vpack.c.b16 %v6387, %v6383
    %v6548 = vpack.c.b16 %v6392, %v6388
    %v6549 = vpack.c.b16 %v6393, %v6389
    %v6550 = vpack.c.b16 %v6394, %v6390
    %v6551 = vpack.c.b16 %v6395, %v6391
    %v6552 = vpack.c.b16 %v6400, %v6396
    %v6553 = vpack.c.b16 %v6401, %v6397
    %v6554 = vpack.c.b16 %v6402, %v6398
    %v6555 = vpack.c.b16 %v6403, %v6399
    %v6556 = vpack.c.b16 %v6408, %v6404
    %v6557 = vpack.c.b16 %v6409, %v6405
    %v6558 = vpack.c.b16 %v6410, %v6406
    %v6559 = vpack.c.b16 %v6411, %v6407
    %v6560 = vpack.c.b16 %v6416, %v6412
    %v6561 = vpack.c.b16 %v6417, %v6413
    %v6562 = vpack.c.b16 %v6418, %v6414
    %v6563 = vpack.c.b16 %v6419, %v6415
    %v6564 = vpack.c.b16 %v6424, %v6420
    %v6565 = vpack.c.b16 %v6425, %v6421
    %v6566 = vpack.c.b16 %v6426, %v6422
    %v6567 = vpack.c.b16 %v6427, %v6423
    %v6568 = vpack.c.b16 %v6432, %v6428
    %v6569 = vpack.c.b16 %v6433, %v6429
    %v6570 = vpack.c.b16 %v6434, %v6430
    %v6571 = vpack.c.b16 %v6435, %v6431
    %v6572 = vpack.c.b16 %v6440, %v6436
    %v6573 = vpack.c.b16 %v6441, %v6437
    %v6574 = vpack.c.b16 %v6442, %v6438
    %v6575 = vpack.c.b16 %v6443, %v6439
    %v6576 = vpack.c.b16 %v6448, %v6444
    %v6577 = vpack.c.b16 %v6449, %v6445
    %v6578 = vpack.c.b16 %v6450, %v6446
    %v6579 = vpack.c.b16 %v6451, %v6447
    %6708 = vmatprep.subr.bf16.mxu0 %v6453
    %6709 = vmatpush1.bf16.msra.mxu0 %v6452
    %6710 = vmatprep.subr.bf16.mxu0 %v6457
    %6711 = vmatpush1.bf16.msra.mxu0 %v6456
    %6712 = vmatprep.subr.bf16.mxu0 %v6461
    %6713 = vmatpush1.bf16.msra.mxu0 %v6460
    %6714 = vmatprep.subr.bf16.mxu0 %v6465
    %6715 = vmatpush1.bf16.msra.mxu0 %v6464
    %6716 = vmatprep.subr.bf16.mxu0 %v6469
    %6717 = vmatpush1.bf16.msra.mxu0 %v6468
    %6718 = vmatprep.subr.bf16.mxu0 %v6473
    %6719 = vmatpush1.bf16.msra.mxu0 %v6472
    %6720 = vmatprep.subr.bf16.mxu0 %v6477
    %6721 = vmatpush1.bf16.msra.mxu0 %v6476
    %6722 = vmatprep.subr.bf16.mxu0 %v6481
    %6723 = vmatpush1.bf16.msra.mxu0 %v6480
    %6724 = vmatprep.subr.bf16.mxu0 %v6485
    %6725 = vmatpush1.bf16.msra.mxu0 %v6484
    %6726 = vmatprep.subr.bf16.mxu0 %v6489
    %6727 = vmatpush1.bf16.msra.mxu0 %v6488
    %6728 = vmatprep.subr.bf16.mxu0 %v6493
    %6729 = vmatpush1.bf16.msra.mxu0 %v6492
    %6730 = vmatprep.subr.bf16.mxu0 %v6497
    %6731 = vmatpush1.bf16.msra.mxu0 %v6496
    %6732 = vmatprep.subr.bf16.mxu0 %v6501
    %6733 = vmatpush1.bf16.msra.mxu0 %v6500
    %6734 = vmatprep.subr.bf16.mxu0 %v6505
    %6735 = vmatpush1.bf16.msra.mxu0 %v6504
    %6736 = vmatprep.subr.bf16.mxu0 %v6509
    %6737 = vmatpush1.bf16.msra.mxu0 %v6508
    %6738 = vmatprep.subr.bf16.mxu0 %v6513
    %6739 = vmatpush1.bf16.msra.mxu0 %v6512
    %6740 = vmatprep.mubr.bf16.mxu0 %v5915
    %6741 = vmatmul.mubr.bf16.gmra.mrb[0].mxu0 %v5914
    %v6742 = vpop.f32.mrb[0].mxu0
    %v6743 = vadd.f32 %v6051, %v6742
    %v6744 = vpop.f32.mrb[0].mxu0
    %v6745 = vadd.f32 %v6055, %v6744
    %v6746 = vpop.f32.mrb[0].mxu0
    %v6747 = vpop.f32.mrb[0].mxu0
    %6748 = vdwg.mxu0
    %6749 = vmatprep.subr.bf16.mxu0 %v6517
    %6750 = vmatpush1.bf16.msra.mxu0 %v6516
    %6751 = vmatprep.subr.bf16.mxu0 %v6521
    %6752 = vmatpush1.bf16.msra.mxu0 %v6520
    %6753 = vmatprep.subr.bf16.mxu0 %v6525
    %6754 = vmatpush1.bf16.msra.mxu0 %v6524
    %6755 = vmatprep.subr.bf16.mxu0 %v6529
    %6756 = vmatpush1.bf16.msra.mxu0 %v6528
    %6757 = vmatprep.subr.bf16.mxu0 %v6533
    %6758 = vmatpush1.bf16.msra.mxu0 %v6532
    %6759 = vmatprep.subr.bf16.mxu0 %v6537
    %6760 = vmatpush1.bf16.msra.mxu0 %v6536
    %6761 = vmatprep.subr.bf16.mxu0 %v6541
    %6762 = vmatpush1.bf16.msra.mxu0 %v6540
    %6763 = vmatprep.subr.bf16.mxu0 %v6545
    %6764 = vmatpush1.bf16.msra.mxu0 %v6544
    %6765 = vmatprep.subr.bf16.mxu0 %v6549
    %6766 = vmatpush1.bf16.msra.mxu0 %v6548
    %6767 = vmatprep.subr.bf16.mxu0 %v6553
    %6768 = vmatpush1.bf16.msra.mxu0 %v6552
    %6769 = vmatprep.subr.bf16.mxu0 %v6557
    %6770 = vmatpush1.bf16.msra.mxu0 %v6556
    %6771 = vmatprep.subr.bf16.mxu0 %v6561
    %6772 = vmatpush1.bf16.msra.mxu0 %v6560
    %6773 = vmatprep.subr.bf16.mxu0 %v6565
    %6774 = vmatpush1.bf16.msra.mxu0 %v6564
    %6775 = vmatprep.subr.bf16.mxu0 %v6569
    %6776 = vmatpush1.bf16.msra.mxu0 %v6568
    %6777 = vmatprep.subr.bf16.mxu0 %v6573
    %6778 = vmatpush1.bf16.msra.mxu0 %v6572
    %6779 = vmatprep.subr.bf16.mxu0 %v6577
    %6780 = vmatpush1.bf16.msra.mxu0 %v6576
    %6781 = vmatprep.mubr.bf16.mxu0 %v5917
    %6782 = vmatmul.mubr.bf16.gmra.mrb[0].mxu0 %v5916
    %v6783 = vpop.f32.mrb[0].mxu0
    %v6784 = vadd.f32 %v6743, %v6783
    %v6785 = vpop.f32.mrb[0].mxu0
    %v6786 = vadd.f32 %v6745, %v6785
    %v6787 = vpop.f32.mrb[0].mxu0
    %v6788 = vpop.f32.mrb[0].mxu0
    %6789 = vdwg.mxu0
    %6790 = vmatprep.subr.bf16.mxu0 %v6455
    %6791 = vmatpush1.bf16.msra.mxu0 %v6454
    %6792 = vmatprep.subr.bf16.mxu0 %v6459
    %6793 = vmatpush1.bf16.msra.mxu0 %v6458
    %6794 = vmatprep.subr.bf16.mxu0 %v6463
    %6795 = vmatpush1.bf16.msra.mxu0 %v6462
    %6796 = vmatprep.subr.bf16.mxu0 %v6467
    %6797 = vmatpush1.bf16.msra.mxu0 %v6466
    %6798 = vmatprep.subr.bf16.mxu0 %v6471
    %6799 = vmatpush1.bf16.msra.mxu0 %v6470
    %6800 = vmatprep.subr.bf16.mxu0 %v6475
    %6801 = vmatpush1.bf16.msra.mxu0 %v6474
    %6802 = vmatprep.subr.bf16.mxu0 %v6479
    %6803 = vmatpush1.bf16.msra.mxu0 %v6478
    %6804 = vmatprep.subr.bf16.mxu0 %v6483
    %6805 = vmatpush1.bf16.msra.mxu0 %v6482
    %6806 = vmatprep.subr.bf16.mxu0 %v6487
    %6807 = vmatpush1.bf16.msra.mxu0 %v6486
    %6808 = vmatprep.subr.bf16.mxu0 %v6491
    %6809 = vmatpush1.bf16.msra.mxu0 %v6490
    %6810 = vmatprep.subr.bf16.mxu0 %v6495
    %6811 = vmatpush1.bf16.msra.mxu0 %v6494
    %6812 = vmatprep.subr.bf16.mxu0 %v6499
    %6813 = vmatpush1.bf16.msra.mxu0 %v6498
    %6814 = vmatprep.subr.bf16.mxu0 %v6503
    %6815 = vmatpush1.bf16.msra.mxu0 %v6502
    %6816 = vmatprep.subr.bf16.mxu0 %v6507
    %6817 = vmatpush1.bf16.msra.mxu0 %v6506
    %6818 = vmatprep.subr.bf16.mxu0 %v6511
    %6819 = vmatpush1.bf16.msra.mxu0 %v6510
    %6820 = vmatprep.subr.bf16.mxu0 %v6515
    %6821 = vmatpush1.bf16.msra.mxu0 %v6514
    %6822 = vmatprep.mubr.bf16.mxu0 %v5915
    %6823 = vmatmul.mubr.bf16.gmra.mrb[0].mxu0 %v5914
    %v6824 = vpop.f32.mrb[0].mxu0
    %v6825 = vadd.f32 %v6059, %v6824
    %v6826 = vpop.f32.mrb[0].mxu0
    %v6827 = vadd.f32 %v6063, %v6826
    %v6828 = vpop.f32.mrb[0].mxu0
    %v6829 = vpop.f32.mrb[0].mxu0
    %6830 = vdwg.mxu0
    %6831 = vmatprep.subr.bf16.mxu0 %v6519
    %6832 = vmatpush1.bf16.msra.mxu0 %v6518
    %6833 = vmatprep.subr.bf16.mxu0 %v6523
    %6834 = vmatpush1.bf16.msra.mxu0 %v6522
    %6835 = vmatprep.subr.bf16.mxu0 %v6527
    %6836 = vmatpush1.bf16.msra.mxu0 %v6526
    %6837 = vmatprep.subr.bf16.mxu0 %v6531
    %6838 = vmatpush1.bf16.msra.mxu0 %v6530
    %6839 = vmatprep.subr.bf16.mxu0 %v6535
    %6840 = vmatpush1.bf16.msra.mxu0 %v6534
    %6841 = vmatprep.subr.bf16.mxu0 %v6539
    %6842 = vmatpush1.bf16.msra.mxu0 %v6538
    %6843 = vmatprep.subr.bf16.mxu0 %v6543
    %6844 = vmatpush1.bf16.msra.mxu0 %v6542
    %6845 = vmatprep.subr.bf16.mxu0 %v6547
    %6846 = vmatpush1.bf16.msra.mxu0 %v6546
    %6847 = vmatprep.subr.bf16.mxu0 %v6551
    %6848 = vmatpush1.bf16.msra.mxu0 %v6550
    %6849 = vmatprep.subr.bf16.mxu0 %v6555
    %6850 = vmatpush1.bf16.msra.mxu0 %v6554
    %6851 = vmatprep.subr.bf16.mxu0 %v6559
    %6852 = vmatpush1.bf16.msra.mxu0 %v6558
    %6853 = vmatprep.subr.bf16.mxu0 %v6563
    %6854 = vmatpush1.bf16.msra.mxu0 %v6562
    %6855 = vmatprep.subr.bf16.mxu0 %v6567
    %6856 = vmatpush1.bf16.msra.mxu0 %v6566
    %6857 = vmatprep.subr.bf16.mxu0 %v6571
    %6858 = vmatpush1.bf16.msra.mxu0 %v6570
    %6859 = vmatprep.subr.bf16.mxu0 %v6575
    %6860 = vmatpush1.bf16.msra.mxu0 %v6574
    %6861 = vmatprep.subr.bf16.mxu0 %v6579
    %6862 = vmatpush1.bf16.msra.mxu0 %v6578
    %6863 = vmatprep.mubr.bf16.mxu0 %v5917
    %6864 = vmatmul.mubr.bf16.gmra.mrb[0].mxu0 %v5916
    %v6865 = vpop.f32.mrb[0].mxu0
    %v6866 = vadd.f32 %v6825, %v6865
    %v6867 = vpop.f32.mrb[0].mxu0
    %v6868 = vadd.f32 %v6827, %v6867
    %v6869 = vpop.f32.mrb[0].mxu0
    %v6870 = vpop.f32.mrb[0].mxu0
    %6871 = vdwg.mxu0
    %v6872 = vmax.f32 %v6784, 0.0
    %v6873 = vmax.f32 %v6786, 0.0
    %v6874 = vmax.f32 %v6866, 0.0
    %v6875 = vmax.f32 %v6868, 0.0
    %v6876 = vpack.c.bf16 %v6872, %v6872
    %v6877 = vpack.c.bf16 %v6873, %v6873
    %v6878 = vpack.c.bf16 %v6874, %v6874
    %v6879 = vpack.c.bf16 %v6875, %v6875
    %v6880 = vld [vmem:[#allocation9] sm:$0xff]
    %v6881 = vld [vmem:[#allocation9 + $0x8] sm:$0xff]
    %v6882 = vld [vmem:[#allocation9 + $0x10] sm:$0xff]
    %v6883 = vld [vmem:[#allocation9 + $0x18] sm:$0xff]
    %v6884 = vld [vmem:[#allocation9 + $0x20] sm:$0xff]
    %v6885 = vld [vmem:[#allocation9 + $0x28] sm:$0xff]
    %v6886 = vld [vmem:[#allocation9 + $0x30] sm:$0xff]
    %v6887 = vld [vmem:[#allocation9 + $0x38] sm:$0xff]
    %v6888 = vld [vmem:[#allocation9 + $0x40] sm:$0xff]
    %v6889 = vld [vmem:[#allocation9 + $0x48] sm:$0xff]
    %v6890 = vld [vmem:[#allocation9 + $0x50] sm:$0xff]
    %v6891 = vld [vmem:[#allocation9 + $0x58] sm:$0xff]
    %v6892 = vld [vmem:[#allocation9 + $0x60] sm:$0xff]
    %v6893 = vld [vmem:[#allocation9 + $0x68] sm:$0xff]
    %v6894 = vld [vmem:[#allocation9 + $0x70] sm:$0xff]
    %v6895 = vld [vmem:[#allocation9 + $0x78] sm:$0xff]
    %v6896 = vld [vmem:[#allocation9 + $0x80] sm:$0xff]
    %v6897 = vld [vmem:[#allocation9 + $0x88] sm:$0xff]
    %v6898 = vld [vmem:[#allocation9 + $0x90] sm:$0xff]
    %v6899 = vld [vmem:[#allocation9 + $0x98] sm:$0xff]
    %v6900 = vld [vmem:[#allocation9 + $0xa0] sm:$0xff]
    %v6901 = vld [vmem:[#allocation9 + $0xa8] sm:$0xff]
    %v6902 = vld [vmem:[#allocation9 + $0xb0] sm:$0xff]
    %v6903 = vld [vmem:[#allocation9 + $0xb8] sm:$0xff]
    %v6904 = vld [vmem:[#allocation9 + $0xc0] sm:$0xff]
    %v6905 = vld [vmem:[#allocation9 + $0xc8] sm:$0xff]
    %v6906 = vld [vmem:[#allocation9 + $0xd0] sm:$0xff]
    %v6907 = vld [vmem:[#allocation9 + $0xd8] sm:$0xff]
    %v6908 = vld [vmem:[#allocation9 + $0xe0] sm:$0xff]
    %v6909 = vld [vmem:[#allocation9 + $0xe8] sm:$0xff]
    %v6910 = vld [vmem:[#allocation9 + $0xf0] sm:$0xff]
    %v6911 = vld [vmem:[#allocation9 + $0xf8] sm:$0xff]
    %v6912 = vld [vmem:[#allocation9 + $0x100] sm:$0xff]
    %v6913 = vld [vmem:[#allocation9 + $0x108] sm:$0xff]
    %v6914 = vld [vmem:[#allocation9 + $0x110] sm:$0xff]
    %v6915 = vld [vmem:[#allocation9 + $0x118] sm:$0xff]
    %v6916 = vld [vmem:[#allocation9 + $0x120] sm:$0xff]
    %v6917 = vld [vmem:[#allocation9 + $0x128] sm:$0xff]
    %v6918 = vld [vmem:[#allocation9 + $0x130] sm:$0xff]
    %v6919 = vld [vmem:[#allocation9 + $0x138] sm:$0xff]
    %v6920 = vld [vmem:[#allocation9 + $0x140] sm:$0xff]
    %v6921 = vld [vmem:[#allocation9 + $0x148] sm:$0xff]
    %v6922 = vld [vmem:[#allocation9 + $0x150] sm:$0xff]
    %v6923 = vld [vmem:[#allocation9 + $0x158] sm:$0xff]
    %v6924 = vld [vmem:[#allocation9 + $0x160] sm:$0xff]
    %v6925 = vld [vmem:[#allocation9 + $0x168] sm:$0xff]
    %v6926 = vld [vmem:[#allocation9 + $0x170] sm:$0xff]
    %v6927 = vld [vmem:[#allocation9 + $0x178] sm:$0xff]
    %v6928 = vld [vmem:[#allocation9 + $0x180] sm:$0xff]
    %v6929 = vld [vmem:[#allocation9 + $0x188] sm:$0xff]
    %v6930 = vld [vmem:[#allocation9 + $0x190] sm:$0xff]
    %v6931 = vld [vmem:[#allocation9 + $0x198] sm:$0xff]
    %v6932 = vld [vmem:[#allocation9 + $0x1a0] sm:$0xff]
    %v6933 = vld [vmem:[#allocation9 + $0x1a8] sm:$0xff]
    %v6934 = vld [vmem:[#allocation9 + $0x1b0] sm:$0xff]
    %v6935 = vld [vmem:[#allocation9 + $0x1b8] sm:$0xff]
    %v6936 = vld [vmem:[#allocation9 + $0x1c0] sm:$0xff]
    %v6937 = vld [vmem:[#allocation9 + $0x1c8] sm:$0xff]
    %v6938 = vld [vmem:[#allocation9 + $0x1d0] sm:$0xff]
    %v6939 = vld [vmem:[#allocation9 + $0x1d8] sm:$0xff]
    %v6940 = vld [vmem:[#allocation9 + $0x1e0] sm:$0xff]
    %v6941 = vld [vmem:[#allocation9 + $0x1e8] sm:$0xff]
    %v6942 = vld [vmem:[#allocation9 + $0x1f0] sm:$0xff]
    %v6943 = vld [vmem:[#allocation9 + $0x1f8] sm:$0xff]
    %v6944 = vld [vmem:[#allocation9 + $0x200] sm:$0xff]
    %v6945 = vld [vmem:[#allocation9 + $0x208] sm:$0xff]
    %v6946 = vld [vmem:[#allocation9 + $0x210] sm:$0xff]
    %v6947 = vld [vmem:[#allocation9 + $0x218] sm:$0xff]
    %v6948 = vld [vmem:[#allocation9 + $0x220] sm:$0xff]
    %v6949 = vld [vmem:[#allocation9 + $0x228] sm:$0xff]
    %v6950 = vld [vmem:[#allocation9 + $0x230] sm:$0xff]
    %v6951 = vld [vmem:[#allocation9 + $0x238] sm:$0xff]
    %v6952 = vld [vmem:[#allocation9 + $0x240] sm:$0xff]
    %v6953 = vld [vmem:[#allocation9 + $0x248] sm:$0xff]
    %v6954 = vld [vmem:[#allocation9 + $0x250] sm:$0xff]
    %v6955 = vld [vmem:[#allocation9 + $0x258] sm:$0xff]
    %v6956 = vld [vmem:[#allocation9 + $0x260] sm:$0xff]
    %v6957 = vld [vmem:[#allocation9 + $0x268] sm:$0xff]
    %v6958 = vld [vmem:[#allocation9 + $0x270] sm:$0xff]
    %v6959 = vld [vmem:[#allocation9 + $0x278] sm:$0xff]
    %v6960 = vld [vmem:[#allocation9 + $0x280] sm:$0xff]
    %v6961 = vld [vmem:[#allocation9 + $0x288] sm:$0xff]
    %v6962 = vld [vmem:[#allocation9 + $0x290] sm:$0xff]
    %v6963 = vld [vmem:[#allocation9 + $0x298] sm:$0xff]
    %v6964 = vld [vmem:[#allocation9 + $0x2a0] sm:$0xff]
    %v6965 = vld [vmem:[#allocation9 + $0x2a8] sm:$0xff]
    %v6966 = vld [vmem:[#allocation9 + $0x2b0] sm:$0xff]
    %v6967 = vld [vmem:[#allocation9 + $0x2b8] sm:$0xff]
    %v6968 = vld [vmem:[#allocation9 + $0x2c0] sm:$0xff]
    %v6969 = vld [vmem:[#allocation9 + $0x2c8] sm:$0xff]
    %v6970 = vld [vmem:[#allocation9 + $0x2d0] sm:$0xff]
    %v6971 = vld [vmem:[#allocation9 + $0x2d8] sm:$0xff]
    %v6972 = vld [vmem:[#allocation9 + $0x2e0] sm:$0xff]
    %v6973 = vld [vmem:[#allocation9 + $0x2e8] sm:$0xff]
    %v6974 = vld [vmem:[#allocation9 + $0x2f0] sm:$0xff]
    %v6975 = vld [vmem:[#allocation9 + $0x2f8] sm:$0xff]
    %v6976 = vld [vmem:[#allocation9 + $0x300] sm:$0xff]
    %v6977 = vld [vmem:[#allocation9 + $0x308] sm:$0xff]
    %v6978 = vld [vmem:[#allocation9 + $0x310] sm:$0xff]
    %v6979 = vld [vmem:[#allocation9 + $0x318] sm:$0xff]
    %v6980 = vld [vmem:[#allocation9 + $0x320] sm:$0xff]
    %v6981 = vld [vmem:[#allocation9 + $0x328] sm:$0xff]
    %v6982 = vld [vmem:[#allocation9 + $0x330] sm:$0xff]
    %v6983 = vld [vmem:[#allocation9 + $0x338] sm:$0xff]
    %v6984 = vld [vmem:[#allocation9 + $0x340] sm:$0xff]
    %v6985 = vld [vmem:[#allocation9 + $0x348] sm:$0xff]
    %v6986 = vld [vmem:[#allocation9 + $0x350] sm:$0xff]
    %v6987 = vld [vmem:[#allocation9 + $0x358] sm:$0xff]
    %v6988 = vld [vmem:[#allocation9 + $0x360] sm:$0xff]
    %v6989 = vld [vmem:[#allocation9 + $0x368] sm:$0xff]
    %v6990 = vld [vmem:[#allocation9 + $0x370] sm:$0xff]
    %v6991 = vld [vmem:[#allocation9 + $0x378] sm:$0xff]
    %v6992 = vld [vmem:[#allocation9 + $0x380] sm:$0xff]
    %v6993 = vld [vmem:[#allocation9 + $0x388] sm:$0xff]
    %v6994 = vld [vmem:[#allocation9 + $0x390] sm:$0xff]
    %v6995 = vld [vmem:[#allocation9 + $0x398] sm:$0xff]
    %v6996 = vld [vmem:[#allocation9 + $0x3a0] sm:$0xff]
    %v6997 = vld [vmem:[#allocation9 + $0x3a8] sm:$0xff]
    %v6998 = vld [vmem:[#allocation9 + $0x3b0] sm:$0xff]
    %v6999 = vld [vmem:[#allocation9 + $0x3b8] sm:$0xff]
    %v7000 = vld [vmem:[#allocation9 + $0x3c0] sm:$0xff]
    %v7001 = vld [vmem:[#allocation9 + $0x3c8] sm:$0xff]
    %v7002 = vld [vmem:[#allocation9 + $0x3d0] sm:$0xff]
    %v7003 = vld [vmem:[#allocation9 + $0x3d8] sm:$0xff]
    %v7004 = vld [vmem:[#allocation9 + $0x3e0] sm:$0xff]
    %v7005 = vld [vmem:[#allocation9 + $0x3e8] sm:$0xff]
    %v7006 = vld [vmem:[#allocation9 + $0x3f0] sm:$0xff]
    %v7007 = vld [vmem:[#allocation9 + $0x3f8] sm:$0xff]
    %v7008 = vld [vmem:[#allocation10] sm:$0xf]
    %v7010 = vlaneseq
    %v7011 = vshrl.u32 %v7010, 7
    %v7012 = vsub.s32 0, %v7011
    %v7013 = vrot.slane %v7008, %v7012
    %v7014 = vlaneseq
    %v7015 = vshrl.u32 %v7014, 7
    %v7016 = vsub.s32 1, %v7015
    %v7017 = vrot.slane %v7008, %v7016
    %v7018 = vlaneseq
    %v7019 = vshrl.u32 %v7018, 7
    %v7020 = vsub.s32 2, %v7019
    %v7021 = vrot.slane %v7008, %v7020
    %v7022 = vlaneseq
    %v7023 = vshrl.u32 %v7022, 7
    %v7024 = vsub.s32 3, %v7023
    %v7025 = vrot.slane %v7008, %v7024
    %v7158 = vunpack.c.l.b16 %v6880
    %v7159 = vunpack.c.h.b16 %v6880
    %v7160 = vunpack.c.l.b16 %v6881
    %v7161 = vunpack.c.h.b16 %v6881
    %v7162 = vunpack.c.l.b16 %v6882
    %v7163 = vunpack.c.h.b16 %v6882
    %v7164 = vunpack.c.l.b16 %v6883
    %v7165 = vunpack.c.h.b16 %v6883
    %v7166 = vunpack.c.l.b16 %v6884
    %v7167 = vunpack.c.h.b16 %v6884
    %v7168 = vunpack.c.l.b16 %v6885
    %v7169 = vunpack.c.h.b16 %v6885
    %v7170 = vunpack.c.l.b16 %v6886
    %v7171 = vunpack.c.h.b16 %v6886
    %v7172 = vunpack.c.l.b16 %v6887
    %v7173 = vunpack.c.h.b16 %v6887
    %v7174 = vunpack.c.l.b16 %v6888
    %v7175 = vunpack.c.h.b16 %v6888
    %v7176 = vunpack.c.l.b16 %v6889
    %v7177 = vunpack.c.h.b16 %v6889
    %v7178 = vunpack.c.l.b16 %v6890
    %v7179 = vunpack.c.h.b16 %v6890
    %v7180 = vunpack.c.l.b16 %v6891
    %v7181 = vunpack.c.h.b16 %v6891
    %v7182 = vunpack.c.l.b16 %v6892
    %v7183 = vunpack.c.h.b16 %v6892
    %v7184 = vunpack.c.l.b16 %v6893
    %v7185 = vunpack.c.h.b16 %v6893
    %v7186 = vunpack.c.l.b16 %v6894
    %v7187 = vunpack.c.h.b16 %v6894
    %v7188 = vunpack.c.l.b16 %v6895
    %v7189 = vunpack.c.h.b16 %v6895
    %v7190 = vunpack.c.l.b16 %v6896
    %v7191 = vunpack.c.h.b16 %v6896
    %v7192 = vunpack.c.l.b16 %v6897
    %v7193 = vunpack.c.h.b16 %v6897
    %v7194 = vunpack.c.l.b16 %v6898
    %v7195 = vunpack.c.h.b16 %v6898
    %v7196 = vunpack.c.l.b16 %v6899
    %v7197 = vunpack.c.h.b16 %v6899
    %v7198 = vunpack.c.l.b16 %v6900
    %v7199 = vunpack.c.h.b16 %v6900
    %v7200 = vunpack.c.l.b16 %v6901
    %v7201 = vunpack.c.h.b16 %v6901
    %v7202 = vunpack.c.l.b16 %v6902
    %v7203 = vunpack.c.h.b16 %v6902
    %v7204 = vunpack.c.l.b16 %v6903
    %v7205 = vunpack.c.h.b16 %v6903
    %v7206 = vunpack.c.l.b16 %v6904
    %v7207 = vunpack.c.h.b16 %v6904
    %v7208 = vunpack.c.l.b16 %v6905
    %v7209 = vunpack.c.h.b16 %v6905
    %v7210 = vunpack.c.l.b16 %v6906
    %v7211 = vunpack.c.h.b16 %v6906
    %v7212 = vunpack.c.l.b16 %v6907
    %v7213 = vunpack.c.h.b16 %v6907
    %v7214 = vunpack.c.l.b16 %v6908
    %v7215 = vunpack.c.h.b16 %v6908
    %v7216 = vunpack.c.l.b16 %v6909
    %v7217 = vunpack.c.h.b16 %v6909
    %v7218 = vunpack.c.l.b16 %v6910
    %v7219 = vunpack.c.h.b16 %v6910
    %v7220 = vunpack.c.l.b16 %v6911
    %v7221 = vunpack.c.h.b16 %v6911
    %v7222 = vunpack.c.l.b16 %v6912
    %v7223 = vunpack.c.h.b16 %v6912
    %v7224 = vunpack.c.l.b16 %v6913
    %v7225 = vunpack.c.h.b16 %v6913
    %v7226 = vunpack.c.l.b16 %v6914
    %v7227 = vunpack.c.h.b16 %v6914
    %v7228 = vunpack.c.l.b16 %v6915
    %v7229 = vunpack.c.h.b16 %v6915
    %v7230 = vunpack.c.l.b16 %v6916
    %v7231 = vunpack.c.h.b16 %v6916
    %v7232 = vunpack.c.l.b16 %v6917
    %v7233 = vunpack.c.h.b16 %v6917
    %v7234 = vunpack.c.l.b16 %v6918
    %v7235 = vunpack.c.h.b16 %v6918
    %v7236 = vunpack.c.l.b16 %v6919
    %v7237 = vunpack.c.h.b16 %v6919
    %v7238 = vunpack.c.l.b16 %v6920
    %v7239 = vunpack.c.h.b16 %v6920
    %v7240 = vunpack.c.l.b16 %v6921
    %v7241 = vunpack.c.h.b16 %v6921
    %v7242 = vunpack.c.l.b16 %v6922
    %v7243 = vunpack.c.h.b16 %v6922
    %v7244 = vunpack.c.l.b16 %v6923
    %v7245 = vunpack.c.h.b16 %v6923
    %v7246 = vunpack.c.l.b16 %v6924
    %v7247 = vunpack.c.h.b16 %v6924
    %v7248 = vunpack.c.l.b16 %v6925
    %v7249 = vunpack.c.h.b16 %v6925
    %v7250 = vunpack.c.l.b16 %v6926
    %v7251 = vunpack.c.h.b16 %v6926
    %v7252 = vunpack.c.l.b16 %v6927
    %v7253 = vunpack.c.h.b16 %v6927
    %v7254 = vunpack.c.l.b16 %v6928
    %v7255 = vunpack.c.h.b16 %v6928
    %v7256 = vunpack.c.l.b16 %v6929
    %v7257 = vunpack.c.h.b16 %v6929
    %v7258 = vunpack.c.l.b16 %v6930
    %v7259 = vunpack.c.h.b16 %v6930
    %v7260 = vunpack.c.l.b16 %v6931
    %v7261 = vunpack.c.h.b16 %v6931
    %v7262 = vunpack.c.l.b16 %v6932
    %v7263 = vunpack.c.h.b16 %v6932
    %v7264 = vunpack.c.l.b16 %v6933
    %v7265 = vunpack.c.h.b16 %v6933
    %v7266 = vunpack.c.l.b16 %v6934
    %v7267 = vunpack.c.h.b16 %v6934
    %v7268 = vunpack.c.l.b16 %v6935
    %v7269 = vunpack.c.h.b16 %v6935
    %v7270 = vunpack.c.l.b16 %v6936
    %v7271 = vunpack.c.h.b16 %v6936
    %v7272 = vunpack.c.l.b16 %v6937
    %v7273 = vunpack.c.h.b16 %v6937
    %v7274 = vunpack.c.l.b16 %v6938
    %v7275 = vunpack.c.h.b16 %v6938
    %v7276 = vunpack.c.l.b16 %v6939
    %v7277 = vunpack.c.h.b16 %v6939
    %v7278 = vunpack.c.l.b16 %v6940
    %v7279 = vunpack.c.h.b16 %v6940
    %v7280 = vunpack.c.l.b16 %v6941
    %v7281 = vunpack.c.h.b16 %v6941
    %v7282 = vunpack.c.l.b16 %v6942
    %v7283 = vunpack.c.h.b16 %v6942
    %v7284 = vunpack.c.l.b16 %v6943
    %v7285 = vunpack.c.h.b16 %v6943
    %v7286 = vunpack.c.l.b16 %v6944
    %v7287 = vunpack.c.h.b16 %v6944
    %v7288 = vunpack.c.l.b16 %v6945
    %v7289 = vunpack.c.h.b16 %v6945
    %v7290 = vunpack.c.l.b16 %v6946
    %v7291 = vunpack.c.h.b16 %v6946
    %v7292 = vunpack.c.l.b16 %v6947
    %v7293 = vunpack.c.h.b16 %v6947
    %v7294 = vunpack.c.l.b16 %v6948
    %v7295 = vunpack.c.h.b16 %v6948
    %v7296 = vunpack.c.l.b16 %v6949
    %v7297 = vunpack.c.h.b16 %v6949
    %v7298 = vunpack.c.l.b16 %v6950
    %v7299 = vunpack.c.h.b16 %v6950
    %v7300 = vunpack.c.l.b16 %v6951
    %v7301 = vunpack.c.h.b16 %v6951
    %v7302 = vunpack.c.l.b16 %v6952
    %v7303 = vunpack.c.h.b16 %v6952
    %v7304 = vunpack.c.l.b16 %v6953
    %v7305 = vunpack.c.h.b16 %v6953
    %v7306 = vunpack.c.l.b16 %v6954
    %v7307 = vunpack.c.h.b16 %v6954
    %v7308 = vunpack.c.l.b16 %v6955
    %v7309 = vunpack.c.h.b16 %v6955
    %v7310 = vunpack.c.l.b16 %v6956
    %v7311 = vunpack.c.h.b16 %v6956
    %v7312 = vunpack.c.l.b16 %v6957
    %v7313 = vunpack.c.h.b16 %v6957
    %v7314 = vunpack.c.l.b16 %v6958
    %v7315 = vunpack.c.h.b16 %v6958
    %v7316 = vunpack.c.l.b16 %v6959
    %v7317 = vunpack.c.h.b16 %v6959
    %v7318 = vunpack.c.l.b16 %v6960
    %v7319 = vunpack.c.h.b16 %v6960
    %v7320 = vunpack.c.l.b16 %v6961
    %v7321 = vunpack.c.h.b16 %v6961
    %v7322 = vunpack.c.l.b16 %v6962
    %v7323 = vunpack.c.h.b16 %v6962
    %v7324 = vunpack.c.l.b16 %v6963
    %v7325 = vunpack.c.h.b16 %v6963
    %v7326 = vunpack.c.l.b16 %v6964
    %v7327 = vunpack.c.h.b16 %v6964
    %v7328 = vunpack.c.l.b16 %v6965
    %v7329 = vunpack.c.h.b16 %v6965
    %v7330 = vunpack.c.l.b16 %v6966
    %v7331 = vunpack.c.h.b16 %v6966
    %v7332 = vunpack.c.l.b16 %v6967
    %v7333 = vunpack.c.h.b16 %v6967
    %v7334 = vunpack.c.l.b16 %v6968
    %v7335 = vunpack.c.h.b16 %v6968
    %v7336 = vunpack.c.l.b16 %v6969
    %v7337 = vunpack.c.h.b16 %v6969
    %v7338 = vunpack.c.l.b16 %v6970
    %v7339 = vunpack.c.h.b16 %v6970
    %v7340 = vunpack.c.l.b16 %v6971
    %v7341 = vunpack.c.h.b16 %v6971
    %v7342 = vunpack.c.l.b16 %v6972
    %v7343 = vunpack.c.h.b16 %v6972
    %v7344 = vunpack.c.l.b16 %v6973
    %v7345 = vunpack.c.h.b16 %v6973
    %v7346 = vunpack.c.l.b16 %v6974
    %v7347 = vunpack.c.h.b16 %v6974
    %v7348 = vunpack.c.l.b16 %v6975
    %v7349 = vunpack.c.h.b16 %v6975
    %v7350 = vunpack.c.l.b16 %v6976
    %v7351 = vunpack.c.h.b16 %v6976
    %v7352 = vunpack.c.l.b16 %v6977
    %v7353 = vunpack.c.h.b16 %v6977
    %v7354 = vunpack.c.l.b16 %v6978
    %v7355 = vunpack.c.h.b16 %v6978
    %v7356 = vunpack.c.l.b16 %v6979
    %v7357 = vunpack.c.h.b16 %v6979
    %v7358 = vunpack.c.l.b16 %v6980
    %v7359 = vunpack.c.h.b16 %v6980
    %v7360 = vunpack.c.l.b16 %v6981
    %v7361 = vunpack.c.h.b16 %v6981
    %v7362 = vunpack.c.l.b16 %v6982
    %v7363 = vunpack.c.h.b16 %v6982
    %v7364 = vunpack.c.l.b16 %v6983
    %v7365 = vunpack.c.h.b16 %v6983
    %v7366 = vunpack.c.l.b16 %v6984
    %v7367 = vunpack.c.h.b16 %v6984
    %v7368 = vunpack.c.l.b16 %v6985
    %v7369 = vunpack.c.h.b16 %v6985
    %v7370 = vunpack.c.l.b16 %v6986
    %v7371 = vunpack.c.h.b16 %v6986
    %v7372 = vunpack.c.l.b16 %v6987
    %v7373 = vunpack.c.h.b16 %v6987
    %v7374 = vunpack.c.l.b16 %v6988
    %v7375 = vunpack.c.h.b16 %v6988
    %v7376 = vunpack.c.l.b16 %v6989
    %v7377 = vunpack.c.h.b16 %v6989
    %v7378 = vunpack.c.l.b16 %v6990
    %v7379 = vunpack.c.h.b16 %v6990
    %v7380 = vunpack.c.l.b16 %v6991
    %v7381 = vunpack.c.h.b16 %v6991
    %v7382 = vunpack.c.l.b16 %v6992
    %v7383 = vunpack.c.h.b16 %v6992
    %v7384 = vunpack.c.l.b16 %v6993
    %v7385 = vunpack.c.h.b16 %v6993
    %v7386 = vunpack.c.l.b16 %v6994
    %v7387 = vunpack.c.h.b16 %v6994
    %v7388 = vunpack.c.l.b16 %v6995
    %v7389 = vunpack.c.h.b16 %v6995
    %v7390 = vunpack.c.l.b16 %v6996
    %v7391 = vunpack.c.h.b16 %v6996
    %v7392 = vunpack.c.l.b16 %v6997
    %v7393 = vunpack.c.h.b16 %v6997
    %v7394 = vunpack.c.l.b16 %v6998
    %v7395 = vunpack.c.h.b16 %v6998
    %v7396 = vunpack.c.l.b16 %v6999
    %v7397 = vunpack.c.h.b16 %v6999
    %v7398 = vunpack.c.l.b16 %v7000
    %v7399 = vunpack.c.h.b16 %v7000
    %v7400 = vunpack.c.l.b16 %v7001
    %v7401 = vunpack.c.h.b16 %v7001
    %v7402 = vunpack.c.l.b16 %v7002
    %v7403 = vunpack.c.h.b16 %v7002
    %v7404 = vunpack.c.l.b16 %v7003
    %v7405 = vunpack.c.h.b16 %v7003
    %v7406 = vunpack.c.l.b16 %v7004
    %v7407 = vunpack.c.h.b16 %v7004
    %v7408 = vunpack.c.l.b16 %v7005
    %v7409 = vunpack.c.h.b16 %v7005
    %v7410 = vunpack.c.l.b16 %v7006
    %v7411 = vunpack.c.h.b16 %v7006
    %v7412 = vunpack.c.l.b16 %v7007
    %v7413 = vunpack.c.h.b16 %v7007
    %v7414 = vpack.c.b16 %v7162, %v7158
    %v7415 = vpack.c.b16 %v7163, %v7159
    %v7416 = vpack.c.b16 %v7164, %v7160
    %v7417 = vpack.c.b16 %v7165, %v7161
    %v7418 = vpack.c.b16 %v7170, %v7166
    %v7419 = vpack.c.b16 %v7171, %v7167
    %v7420 = vpack.c.b16 %v7172, %v7168
    %v7421 = vpack.c.b16 %v7173, %v7169
    %v7422 = vpack.c.b16 %v7178, %v7174
    %v7423 = vpack.c.b16 %v7179, %v7175
    %v7424 = vpack.c.b16 %v7180, %v7176
    %v7425 = vpack.c.b16 %v7181, %v7177
    %v7426 = vpack.c.b16 %v7186, %v7182
    %v7427 = vpack.c.b16 %v7187, %v7183
    %v7428 = vpack.c.b16 %v7188, %v7184
    %v7429 = vpack.c.b16 %v7189, %v7185
    %v7430 = vpack.c.b16 %v7194, %v7190
    %v7431 = vpack.c.b16 %v7195, %v7191
    %v7432 = vpack.c.b16 %v7196, %v7192
    %v7433 = vpack.c.b16 %v7197, %v7193
    %v7434 = vpack.c.b16 %v7202, %v7198
    %v7435 = vpack.c.b16 %v7203, %v7199
    %v7436 = vpack.c.b16 %v7204, %v7200
    %v7437 = vpack.c.b16 %v7205, %v7201
    %v7438 = vpack.c.b16 %v7210, %v7206
    %v7439 = vpack.c.b16 %v7211, %v7207
    %v7440 = vpack.c.b16 %v7212, %v7208
    %v7441 = vpack.c.b16 %v7213, %v7209
    %v7442 = vpack.c.b16 %v7218, %v7214
    %v7443 = vpack.c.b16 %v7219, %v7215
    %v7444 = vpack.c.b16 %v7220, %v7216
    %v7445 = vpack.c.b16 %v7221, %v7217
    %v7446 = vpack.c.b16 %v7226, %v7222
    %v7447 = vpack.c.b16 %v7227, %v7223
    %v7448 = vpack.c.b16 %v7228, %v7224
    %v7449 = vpack.c.b16 %v7229, %v7225
    %v7450 = vpack.c.b16 %v7234, %v7230
    %v7451 = vpack.c.b16 %v7235, %v7231
    %v7452 = vpack.c.b16 %v7236, %v7232
    %v7453 = vpack.c.b16 %v7237, %v7233
    %v7454 = vpack.c.b16 %v7242, %v7238
    %v7455 = vpack.c.b16 %v7243, %v7239
    %v7456 = vpack.c.b16 %v7244, %v7240
    %v7457 = vpack.c.b16 %v7245, %v7241
    %v7458 = vpack.c.b16 %v7250, %v7246
    %v7459 = vpack.c.b16 %v7251, %v7247
    %v7460 = vpack.c.b16 %v7252, %v7248
    %v7461 = vpack.c.b16 %v7253, %v7249
    %v7462 = vpack.c.b16 %v7258, %v7254
    %v7463 = vpack.c.b16 %v7259, %v7255
    %v7464 = vpack.c.b16 %v7260, %v7256
    %v7465 = vpack.c.b16 %v7261, %v7257
    %v7466 = vpack.c.b16 %v7266, %v7262
    %v7467 = vpack.c.b16 %v7267, %v7263
    %v7468 = vpack.c.b16 %v7268, %v7264
    %v7469 = vpack.c.b16 %v7269, %v7265
    %v7470 = vpack.c.b16 %v7274, %v7270
    %v7471 = vpack.c.b16 %v7275, %v7271
    %v7472 = vpack.c.b16 %v7276, %v7272
    %v7473 = vpack.c.b16 %v7277, %v7273
    %v7474 = vpack.c.b16 %v7282, %v7278
    %v7475 = vpack.c.b16 %v7283, %v7279
    %v7476 = vpack.c.b16 %v7284, %v7280
    %v7477 = vpack.c.b16 %v7285, %v7281
    %v7478 = vpack.c.b16 %v7290, %v7286
    %v7479 = vpack.c.b16 %v7291, %v7287
    %v7480 = vpack.c.b16 %v7292, %v7288
    %v7481 = vpack.c.b16 %v7293, %v7289
    %v7482 = vpack.c.b16 %v7298, %v7294
    %v7483 = vpack.c.b16 %v7299, %v7295
    %v7484 = vpack.c.b16 %v7300, %v7296
    %v7485 = vpack.c.b16 %v7301, %v7297
    %v7486 = vpack.c.b16 %v7306, %v7302
    %v7487 = vpack.c.b16 %v7307, %v7303
    %v7488 = vpack.c.b16 %v7308, %v7304
    %v7489 = vpack.c.b16 %v7309, %v7305
    %v7490 = vpack.c.b16 %v7314, %v7310
    %v7491 = vpack.c.b16 %v7315, %v7311
    %v7492 = vpack.c.b16 %v7316, %v7312
    %v7493 = vpack.c.b16 %v7317, %v7313
    %v7494 = vpack.c.b16 %v7322, %v7318
    %v7495 = vpack.c.b16 %v7323, %v7319
    %v7496 = vpack.c.b16 %v7324, %v7320
    %v7497 = vpack.c.b16 %v7325, %v7321
    %v7498 = vpack.c.b16 %v7330, %v7326
    %v7499 = vpack.c.b16 %v7331, %v7327
    %v7500 = vpack.c.b16 %v7332, %v7328
    %v7501 = vpack.c.b16 %v7333, %v7329
    %v7502 = vpack.c.b16 %v7338, %v7334
    %v7503 = vpack.c.b16 %v7339, %v7335
    %v7504 = vpack.c.b16 %v7340, %v7336
    %v7505 = vpack.c.b16 %v7341, %v7337
    %v7506 = vpack.c.b16 %v7346, %v7342
    %v7507 = vpack.c.b16 %v7347, %v7343
    %v7508 = vpack.c.b16 %v7348, %v7344
    %v7509 = vpack.c.b16 %v7349, %v7345
    %v7510 = vpack.c.b16 %v7354, %v7350
    %v7511 = vpack.c.b16 %v7355, %v7351
    %v7512 = vpack.c.b16 %v7356, %v7352
    %v7513 = vpack.c.b16 %v7357, %v7353
    %v7514 = vpack.c.b16 %v7362, %v7358
    %v7515 = vpack.c.b16 %v7363, %v7359
    %v7516 = vpack.c.b16 %v7364, %v7360
    %v7517 = vpack.c.b16 %v7365, %v7361
    %v7518 = vpack.c.b16 %v7370, %v7366
    %v7519 = vpack.c.b16 %v7371, %v7367
    %v7520 = vpack.c.b16 %v7372, %v7368
    %v7521 = vpack.c.b16 %v7373, %v7369
    %v7522 = vpack.c.b16 %v7378, %v7374
    %v7523 = vpack.c.b16 %v7379, %v7375
    %v7524 = vpack.c.b16 %v7380, %v7376
    %v7525 = vpack.c.b16 %v7381, %v7377
    %v7526 = vpack.c.b16 %v7386, %v7382
    %v7527 = vpack.c.b16 %v7387, %v7383
    %v7528 = vpack.c.b16 %v7388, %v7384
    %v7529 = vpack.c.b16 %v7389, %v7385
    %v7530 = vpack.c.b16 %v7394, %v7390
    %v7531 = vpack.c.b16 %v7395, %v7391
    %v7532 = vpack.c.b16 %v7396, %v7392
    %v7533 = vpack.c.b16 %v7397, %v7393
    %v7534 = vpack.c.b16 %v7402, %v7398
    %v7535 = vpack.c.b16 %v7403, %v7399
    %v7536 = vpack.c.b16 %v7404, %v7400
    %v7537 = vpack.c.b16 %v7405, %v7401
    %v7538 = vpack.c.b16 %v7410, %v7406
    %v7539 = vpack.c.b16 %v7411, %v7407
    %v7540 = vpack.c.b16 %v7412, %v7408
    %v7541 = vpack.c.b16 %v7413, %v7409
    %7670 = vmatprep.subr.bf16.mxu0 %v7415
    %7671 = vmatpush1.bf16.msra.mxu0 %v7414
    %7672 = vmatprep.subr.bf16.mxu0 %v7419
    %7673 = vmatpush1.bf16.msra.mxu0 %v7418
    %7674 = vmatprep.subr.bf16.mxu0 %v7423
    %7675 = vmatpush1.bf16.msra.mxu0 %v7422
    %7676 = vmatprep.subr.bf16.mxu0 %v7427
    %7677 = vmatpush1.bf16.msra.mxu0 %v7426
    %7678 = vmatprep.subr.bf16.mxu0 %v7431
    %7679 = vmatpush1.bf16.msra.mxu0 %v7430
    %7680 = vmatprep.subr.bf16.mxu0 %v7435
    %7681 = vmatpush1.bf16.msra.mxu0 %v7434
    %7682 = vmatprep.subr.bf16.mxu0 %v7439
    %7683 = vmatpush1.bf16.msra.mxu0 %v7438
    %7684 = vmatprep.subr.bf16.mxu0 %v7443
    %7685 = vmatpush1.bf16.msra.mxu0 %v7442
    %7686 = vmatprep.subr.bf16.mxu0 %v7447
    %7687 = vmatpush1.bf16.msra.mxu0 %v7446
    %7688 = vmatprep.subr.bf16.mxu0 %v7451
    %7689 = vmatpush1.bf16.msra.mxu0 %v7450
    %7690 = vmatprep.subr.bf16.mxu0 %v7455
    %7691 = vmatpush1.bf16.msra.mxu0 %v7454
    %7692 = vmatprep.subr.bf16.mxu0 %v7459
    %7693 = vmatpush1.bf16.msra.mxu0 %v7458
    %7694 = vmatprep.subr.bf16.mxu0 %v7463
    %7695 = vmatpush1.bf16.msra.mxu0 %v7462
    %7696 = vmatprep.subr.bf16.mxu0 %v7467
    %7697 = vmatpush1.bf16.msra.mxu0 %v7466
    %7698 = vmatprep.subr.bf16.mxu0 %v7471
    %7699 = vmatpush1.bf16.msra.mxu0 %v7470
    %7700 = vmatprep.subr.bf16.mxu0 %v7475
    %7701 = vmatpush1.bf16.msra.mxu0 %v7474
    %7702 = vmatprep.mubr.bf16.mxu0 %v6877
    %7703 = vmatmul.mubr.bf16.gmra.mrb[0].mxu0 %v6876
    %v7704 = vpop.f32.mrb[0].mxu0
    %v7705 = vadd.f32 %v7013, %v7704
    %v7706 = vpop.f32.mrb[0].mxu0
    %v7707 = vadd.f32 %v7017, %v7706
    %v7708 = vpop.f32.mrb[0].mxu0
    %v7709 = vpop.f32.mrb[0].mxu0
    %7710 = vdwg.mxu0
    %7711 = vmatprep.subr.bf16.mxu0 %v7479
    %7712 = vmatpush1.bf16.msra.mxu0 %v7478
    %7713 = vmatprep.subr.bf16.mxu0 %v7483
    %7714 = vmatpush1.bf16.msra.mxu0 %v7482
    %7715 = vmatprep.subr.bf16.mxu0 %v7487
    %7716 = vmatpush1.bf16.msra.mxu0 %v7486
    %7717 = vmatprep.subr.bf16.mxu0 %v7491
    %7718 = vmatpush1.bf16.msra.mxu0 %v7490
    %7719 = vmatprep.subr.bf16.mxu0 %v7495
    %7720 = vmatpush1.bf16.msra.mxu0 %v7494
    %7721 = vmatprep.subr.bf16.mxu0 %v7499
    %7722 = vmatpush1.bf16.msra.mxu0 %v7498
    %7723 = vmatprep.subr.bf16.mxu0 %v7503
    %7724 = vmatpush1.bf16.msra.mxu0 %v7502
    %7725 = vmatprep.subr.bf16.mxu0 %v7507
    %7726 = vmatpush1.bf16.msra.mxu0 %v7506
    %7727 = vmatprep.subr.bf16.mxu0 %v7511
    %7728 = vmatpush1.bf16.msra.mxu0 %v7510
    %7729 = vmatprep.subr.bf16.mxu0 %v7515
    %7730 = vmatpush1.bf16.msra.mxu0 %v7514
    %7731 = vmatprep.subr.bf16.mxu0 %v7519
    %7732 = vmatpush1.bf16.msra.mxu0 %v7518
    %7733 = vmatprep.subr.bf16.mxu0 %v7523
    %7734 = vmatpush1.bf16.msra.mxu0 %v7522
    %7735 = vmatprep.subr.bf16.mxu0 %v7527
    %7736 = vmatpush1.bf16.msra.mxu0 %v7526
    %7737 = vmatprep.subr.bf16.mxu0 %v7531
    %7738 = vmatpush1.bf16.msra.mxu0 %v7530
    %7739 = vmatprep.subr.bf16.mxu0 %v7535
    %7740 = vmatpush1.bf16.msra.mxu0 %v7534
    %7741 = vmatprep.subr.bf16.mxu0 %v7539
    %7742 = vmatpush1.bf16.msra.mxu0 %v7538
    %7743 = vmatprep.mubr.bf16.mxu0 %v6879
    %7744 = vmatmul.mubr.bf16.gmra.mrb[0].mxu0 %v6878
    %v7745 = vpop.f32.mrb[0].mxu0
    %v7746 = vadd.f32 %v7705, %v7745
    %v7747 = vpop.f32.mrb[0].mxu0
    %v7748 = vadd.f32 %v7707, %v7747
    %v7749 = vpop.f32.mrb[0].mxu0
    %v7750 = vpop.f32.mrb[0].mxu0
    %7751 = vdwg.mxu0
    %7752 = vmatprep.subr.bf16.mxu0 %v7417
    %7753 = vmatpush1.bf16.msra.mxu0 %v7416
    %7754 = vmatprep.subr.bf16.mxu0 %v7421
    %7755 = vmatpush1.bf16.msra.mxu0 %v7420
    %7756 = vmatprep.subr.bf16.mxu0 %v7425
    %7757 = vmatpush1.bf16.msra.mxu0 %v7424
    %7758 = vmatprep.subr.bf16.mxu0 %v7429
    %7759 = vmatpush1.bf16.msra.mxu0 %v7428
    %7760 = vmatprep.subr.bf16.mxu0 %v7433
    %7761 = vmatpush1.bf16.msra.mxu0 %v7432
    %7762 = vmatprep.subr.bf16.mxu0 %v7437
    %7763 = vmatpush1.bf16.msra.mxu0 %v7436
    %7764 = vmatprep.subr.bf16.mxu0 %v7441
    %7765 = vmatpush1.bf16.msra.mxu0 %v7440
    %7766 = vmatprep.subr.bf16.mxu0 %v7445
    %7767 = vmatpush1.bf16.msra.mxu0 %v7444
    %7768 = vmatprep.subr.bf16.mxu0 %v7449
    %7769 = vmatpush1.bf16.msra.mxu0 %v7448
    %7770 = vmatprep.subr.bf16.mxu0 %v7453
    %7771 = vmatpush1.bf16.msra.mxu0 %v7452
    %7772 = vmatprep.subr.bf16.mxu0 %v7457
    %7773 = vmatpush1.bf16.msra.mxu0 %v7456
    %7774 = vmatprep.subr.bf16.mxu0 %v7461
    %7775 = vmatpush1.bf16.msra.mxu0 %v7460
    %7776 = vmatprep.subr.bf16.mxu0 %v7465
    %7777 = vmatpush1.bf16.msra.mxu0 %v7464
    %7778 = vmatprep.subr.bf16.mxu0 %v7469
    %7779 = vmatpush1.bf16.msra.mxu0 %v7468
    %7780 = vmatprep.subr.bf16.mxu0 %v7473
    %7781 = vmatpush1.bf16.msra.mxu0 %v7472
    %7782 = vmatprep.subr.bf16.mxu0 %v7477
    %7783 = vmatpush1.bf16.msra.mxu0 %v7476
    %7784 = vmatprep.mubr.bf16.mxu0 %v6877
    %7785 = vmatmul.mubr.bf16.gmra.mrb[0].mxu0 %v6876
    %v7786 = vpop.f32.mrb[0].mxu0
    %v7787 = vadd.f32 %v7021, %v7786
    %v7788 = vpop.f32.mrb[0].mxu0
    %v7789 = vadd.f32 %v7025, %v7788
    %v7790 = vpop.f32.mrb[0].mxu0
    %v7791 = vpop.f32.mrb[0].mxu0
    %7792 = vdwg.mxu0
    %7793 = vmatprep.subr.bf16.mxu0 %v7481
    %7794 = vmatpush1.bf16.msra.mxu0 %v7480
    %7795 = vmatprep.subr.bf16.mxu0 %v7485
    %7796 = vmatpush1.bf16.msra.mxu0 %v7484
    %7797 = vmatprep.subr.bf16.mxu0 %v7489
    %7798 = vmatpush1.bf16.msra.mxu0 %v7488
    %7799 = vmatprep.subr.bf16.mxu0 %v7493
    %7800 = vmatpush1.bf16.msra.mxu0 %v7492
    %7801 = vmatprep.subr.bf16.mxu0 %v7497
    %7802 = vmatpush1.bf16.msra.mxu0 %v7496
    %7803 = vmatprep.subr.bf16.mxu0 %v7501
    %7804 = vmatpush1.bf16.msra.mxu0 %v7500
    %7805 = vmatprep.subr.bf16.mxu0 %v7505
    %7806 = vmatpush1.bf16.msra.mxu0 %v7504
    %7807 = vmatprep.subr.bf16.mxu0 %v7509
    %7808 = vmatpush1.bf16.msra.mxu0 %v7508
    %7809 = vmatprep.subr.bf16.mxu0 %v7513
    %7810 = vmatpush1.bf16.msra.mxu0 %v7512
    %7811 = vmatprep.subr.bf16.mxu0 %v7517
    %7812 = vmatpush1.bf16.msra.mxu0 %v7516
    %7813 = vmatprep.subr.bf16.mxu0 %v7521
    %7814 = vmatpush1.bf16.msra.mxu0 %v7520
    %7815 = vmatprep.subr.bf16.mxu0 %v7525
    %7816 = vmatpush1.bf16.msra.mxu0 %v7524
    %7817 = vmatprep.subr.bf16.mxu0 %v7529
    %7818 = vmatpush1.bf16.msra.mxu0 %v7528
    %7819 = vmatprep.subr.bf16.mxu0 %v7533
    %7820 = vmatpush1.bf16.msra.mxu0 %v7532
    %7821 = vmatprep.subr.bf16.mxu0 %v7537
    %7822 = vmatpush1.bf16.msra.mxu0 %v7536
    %7823 = vmatprep.subr.bf16.mxu0 %v7541
    %7824 = vmatpush1.bf16.msra.mxu0 %v7540
    %7825 = vmatprep.mubr.bf16.mxu0 %v6879
    %7826 = vmatmul.mubr.bf16.gmra.mrb[0].mxu0 %v6878
    %v7827 = vpop.f32.mrb[0].mxu0
    %v7828 = vadd.f32 %v7787, %v7827
    %v7829 = vpop.f32.mrb[0].mxu0
    %v7830 = vadd.f32 %v7789, %v7829
    %v7831 = vpop.f32.mrb[0].mxu0
    %v7832 = vpop.f32.mrb[0].mxu0
    %7833 = vdwg.mxu0
    %v7834 = vmax.f32 %v7746, 0.0
    %v7835 = vmax.f32 %v7748, 0.0
    %v7836 = vmax.f32 %v7828, 0.0
    %v7837 = vmax.f32 %v7830, 0.0
    %v7838 = vpack.c.bf16 %v7834, %v7834
    %v7839 = vpack.c.bf16 %v7835, %v7835
    %v7840 = vpack.c.bf16 %v7836, %v7836
    %v7841 = vpack.c.bf16 %v7837, %v7837
    %v7842 = vld [vmem:[#allocation12] sm:$0xf]
    %v7843 = vld [vmem:[#allocation12 + $0x4] sm:$0xf]
    %v7844 = vld [vmem:[#allocation12 + $0x8] sm:$0xf]
    %v7845 = vld [vmem:[#allocation12 + $0xc] sm:$0xf]
    %v7846 = vld [vmem:[#allocation12 + $0x10] sm:$0xf]
    %v7847 = vld [vmem:[#allocation12 + $0x14] sm:$0xf]
    %v7848 = vld [vmem:[#allocation12 + $0x18] sm:$0xf]
    %v7849 = vld [vmem:[#allocation12 + $0x1c] sm:$0xf]
    %v7850 = vld [vmem:[#allocation12 + $0x20] sm:$0xf]
    %v7851 = vld [vmem:[#allocation12 + $0x24] sm:$0xf]
    %v7852 = vld [vmem:[#allocation12 + $0x28] sm:$0xf]
    %v7853 = vld [vmem:[#allocation12 + $0x2c] sm:$0xf]
    %v7854 = vld [vmem:[#allocation12 + $0x30] sm:$0xf]
    %v7855 = vld [vmem:[#allocation12 + $0x34] sm:$0xf]
    %v7856 = vld [vmem:[#allocation12 + $0x38] sm:$0xf]
    %v7857 = vld [vmem:[#allocation12 + $0x3c] sm:$0xf]
    %v7858 = vld [vmem:[#allocation12 + $0x40] sm:$0xf]
    %v7859 = vld [vmem:[#allocation12 + $0x44] sm:$0xf]
    %v7860 = vld [vmem:[#allocation12 + $0x48] sm:$0xf]
    %v7861 = vld [vmem:[#allocation12 + $0x4c] sm:$0xf]
    %v7862 = vld [vmem:[#allocation12 + $0x50] sm:$0xf]
    %v7863 = vld [vmem:[#allocation12 + $0x54] sm:$0xf]
    %v7864 = vld [vmem:[#allocation12 + $0x58] sm:$0xf]
    %v7865 = vld [vmem:[#allocation12 + $0x5c] sm:$0xf]
    %v7866 = vld [vmem:[#allocation12 + $0x60] sm:$0xf]
    %v7867 = vld [vmem:[#allocation12 + $0x64] sm:$0xf]
    %v7868 = vld [vmem:[#allocation12 + $0x68] sm:$0xf]
    %v7869 = vld [vmem:[#allocation12 + $0x6c] sm:$0xf]
    %v7870 = vld [vmem:[#allocation12 + $0x70] sm:$0xf]
    %v7871 = vld [vmem:[#allocation12 + $0x74] sm:$0xf]
    %v7872 = vld [vmem:[#allocation12 + $0x78] sm:$0xf]
    %v7873 = vld [vmem:[#allocation12 + $0x7c] sm:$0xf]
    %v7874 = vld [vmem:[#allocation12 + $0x80] sm:$0xf]
    %v7875 = vld [vmem:[#allocation12 + $0x84] sm:$0xf]
    %v7876 = vld [vmem:[#allocation12 + $0x88] sm:$0xf]
    %v7877 = vld [vmem:[#allocation12 + $0x8c] sm:$0xf]
    %v7878 = vld [vmem:[#allocation12 + $0x90] sm:$0xf]
    %v7879 = vld [vmem:[#allocation12 + $0x94] sm:$0xf]
    %v7880 = vld [vmem:[#allocation12 + $0x98] sm:$0xf]
    %v7881 = vld [vmem:[#allocation12 + $0x9c] sm:$0xf]
    %v7882 = vld [vmem:[#allocation12 + $0xa0] sm:$0xf]
    %v7883 = vld [vmem:[#allocation12 + $0xa4] sm:$0xf]
    %v7884 = vld [vmem:[#allocation12 + $0xa8] sm:$0xf]
    %v7885 = vld [vmem:[#allocation12 + $0xac] sm:$0xf]
    %v7886 = vld [vmem:[#allocation12 + $0xb0] sm:$0xf]
    %v7887 = vld [vmem:[#allocation12 + $0xb4] sm:$0xf]
    %v7888 = vld [vmem:[#allocation12 + $0xb8] sm:$0xf]
    %v7889 = vld [vmem:[#allocation12 + $0xbc] sm:$0xf]
    %v7890 = vld [vmem:[#allocation12 + $0xc0] sm:$0xf]
    %v7891 = vld [vmem:[#allocation12 + $0xc4] sm:$0xf]
    %v7892 = vld [vmem:[#allocation12 + $0xc8] sm:$0xf]
    %v7893 = vld [vmem:[#allocation12 + $0xcc] sm:$0xf]
    %v7894 = vld [vmem:[#allocation12 + $0xd0] sm:$0xf]
    %v7895 = vld [vmem:[#allocation12 + $0xd4] sm:$0xf]
    %v7896 = vld [vmem:[#allocation12 + $0xd8] sm:$0xf]
    %v7897 = vld [vmem:[#allocation12 + $0xdc] sm:$0xf]
    %v7898 = vld [vmem:[#allocation12 + $0xe0] sm:$0xf]
    %v7899 = vld [vmem:[#allocation12 + $0xe4] sm:$0xf]
    %v7900 = vld [vmem:[#allocation12 + $0xe8] sm:$0xf]
    %v7901 = vld [vmem:[#allocation12 + $0xec] sm:$0xf]
    %v7902 = vld [vmem:[#allocation12 + $0xf0] sm:$0xf]
    %v7903 = vld [vmem:[#allocation12 + $0xf4] sm:$0xf]
    %v7904 = vld [vmem:[#allocation12 + $0xf8] sm:$0xf]
    %v7905 = vld [vmem:[#allocation12 + $0xfc] sm:$0xf]
    %v7906 = vld [vmem:[#allocation13] sm:$0x1]
    %v7908 = vlaneseq
    %v7909 = vshrl.u32 %v7908, 7
    %v7910 = vsub.s32 0, %v7909
    %v7911 = vrot.slane %v7906, %v7910
    %v7977 = vunpack.c.l.b16 %v7842
    %v7978 = vunpack.c.l.b16 %v7843
    %v7979 = vunpack.c.l.b16 %v7844
    %v7980 = vunpack.c.l.b16 %v7845
    %v7981 = vunpack.c.l.b16 %v7846
    %v7982 = vunpack.c.l.b16 %v7847
    %v7983 = vunpack.c.l.b16 %v7848
    %v7984 = vunpack.c.l.b16 %v7849
    %v7985 = vunpack.c.l.b16 %v7850
    %v7986 = vunpack.c.l.b16 %v7851
    %v7987 = vunpack.c.l.b16 %v7852
    %v7988 = vunpack.c.l.b16 %v7853
    %v7989 = vunpack.c.l.b16 %v7854
    %v7990 = vunpack.c.l.b16 %v7855
    %v7991 = vunpack.c.l.b16 %v7856
    %v7992 = vunpack.c.l.b16 %v7857
    %v7993 = vunpack.c.l.b16 %v7858
    %v7994 = vunpack.c.l.b16 %v7859
    %v7995 = vunpack.c.l.b16 %v7860
    %v7996 = vunpack.c.l.b16 %v7861
    %v7997 = vunpack.c.l.b16 %v7862
    %v7998 = vunpack.c.l.b16 %v7863
    %v7999 = vunpack.c.l.b16 %v7864
    %v8000 = vunpack.c.l.b16 %v7865
    %v8001 = vunpack.c.l.b16 %v7866
    %v8002 = vunpack.c.l.b16 %v7867
    %v8003 = vunpack.c.l.b16 %v7868
    %v8004 = vunpack.c.l.b16 %v7869
    %v8005 = vunpack.c.l.b16 %v7870
    %v8006 = vunpack.c.l.b16 %v7871
    %v8007 = vunpack.c.l.b16 %v7872
    %v8008 = vunpack.c.l.b16 %v7873
    %v8009 = vunpack.c.l.b16 %v7874
    %v8010 = vunpack.c.l.b16 %v7875
    %v8011 = vunpack.c.l.b16 %v7876
    %v8012 = vunpack.c.l.b16 %v7877
    %v8013 = vunpack.c.l.b16 %v7878
    %v8014 = vunpack.c.l.b16 %v7879
    %v8015 = vunpack.c.l.b16 %v7880
    %v8016 = vunpack.c.l.b16 %v7881
    %v8017 = vunpack.c.l.b16 %v7882
    %v8018 = vunpack.c.l.b16 %v7883
    %v8019 = vunpack.c.l.b16 %v7884
    %v8020 = vunpack.c.l.b16 %v7885
    %v8021 = vunpack.c.l.b16 %v7886
    %v8022 = vunpack.c.l.b16 %v7887
    %v8023 = vunpack.c.l.b16 %v7888
    %v8024 = vunpack.c.l.b16 %v7889
    %v8025 = vunpack.c.l.b16 %v7890
    %v8026 = vunpack.c.l.b16 %v7891
    %v8027 = vunpack.c.l.b16 %v7892
    %v8028 = vunpack.c.l.b16 %v7893
    %v8029 = vunpack.c.l.b16 %v7894
    %v8030 = vunpack.c.l.b16 %v7895
    %v8031 = vunpack.c.l.b16 %v7896
    %v8032 = vunpack.c.l.b16 %v7897
    %v8033 = vunpack.c.l.b16 %v7898
    %v8034 = vunpack.c.l.b16 %v7899
    %v8035 = vunpack.c.l.b16 %v7900
    %v8036 = vunpack.c.l.b16 %v7901
    %v8037 = vunpack.c.l.b16 %v7902
    %v8038 = vunpack.c.l.b16 %v7903
    %v8039 = vunpack.c.l.b16 %v7904
    %v8040 = vunpack.c.l.b16 %v7905
    %v8041 = vpack.c.b16 %v7978, %v7977
    %v8042 = vpack.c.b16 %v7980, %v7979
    %v8043 = vpack.c.b16 %v7982, %v7981
    %v8044 = vpack.c.b16 %v7984, %v7983
    %v8045 = vpack.c.b16 %v7986, %v7985
    %v8046 = vpack.c.b16 %v7988, %v7987
    %v8047 = vpack.c.b16 %v7990, %v7989
    %v8048 = vpack.c.b16 %v7992, %v7991
    %v8049 = vpack.c.b16 %v7994, %v7993
    %v8050 = vpack.c.b16 %v7996, %v7995
    %v8051 = vpack.c.b16 %v7998, %v7997
    %v8052 = vpack.c.b16 %v8000, %v7999
    %v8053 = vpack.c.b16 %v8002, %v8001
    %v8054 = vpack.c.b16 %v8004, %v8003
    %v8055 = vpack.c.b16 %v8006, %v8005
    %v8056 = vpack.c.b16 %v8008, %v8007
    %v8057 = vpack.c.b16 %v8010, %v8009
    %v8058 = vpack.c.b16 %v8012, %v8011
    %v8059 = vpack.c.b16 %v8014, %v8013
    %v8060 = vpack.c.b16 %v8016, %v8015
    %v8061 = vpack.c.b16 %v8018, %v8017
    %v8062 = vpack.c.b16 %v8020, %v8019
    %v8063 = vpack.c.b16 %v8022, %v8021
    %v8064 = vpack.c.b16 %v8024, %v8023
    %v8065 = vpack.c.b16 %v8026, %v8025
    %v8066 = vpack.c.b16 %v8028, %v8027
    %v8067 = vpack.c.b16 %v8030, %v8029
    %v8068 = vpack.c.b16 %v8032, %v8031
    %v8069 = vpack.c.b16 %v8034, %v8033
    %v8070 = vpack.c.b16 %v8036, %v8035
    %v8071 = vpack.c.b16 %v8038, %v8037
    %v8072 = vpack.c.b16 %v8040, %v8039
    %8105 = vmatprep.subr.bf16.mxu0 0
    %8106 = vmatpush1.bf16.msra.mxu0 %v8041
    %8107 = vmatprep.subr.bf16.mxu0 0
    %8108 = vmatpush1.bf16.msra.mxu0 %v8042
    %8109 = vmatprep.subr.bf16.mxu0 0
    %8110 = vmatpush1.bf16.msra.mxu0 %v8043
    %8111 = vmatprep.subr.bf16.mxu0 0
    %8112 = vmatpush1.bf16.msra.mxu0 %v8044
    %8113 = vmatprep.subr.bf16.mxu0 0
    %8114 = vmatpush1.bf16.msra.mxu0 %v8045
    %8115 = vmatprep.subr.bf16.mxu0 0
    %8116 = vmatpush1.bf16.msra.mxu0 %v8046
    %8117 = vmatprep.subr.bf16.mxu0 0
    %8118 = vmatpush1.bf16.msra.mxu0 %v8047
    %8119 = vmatprep.subr.bf16.mxu0 0
    %8120 = vmatpush1.bf16.msra.mxu0 %v8048
    %8121 = vmatprep.subr.bf16.mxu0 0
    %8122 = vmatpush1.bf16.msra.mxu0 %v8049
    %8123 = vmatprep.subr.bf16.mxu0 0
    %8124 = vmatpush1.bf16.msra.mxu0 %v8050
    %8125 = vmatprep.subr.bf16.mxu0 0
    %8126 = vmatpush1.bf16.msra.mxu0 %v8051
    %8127 = vmatprep.subr.bf16.mxu0 0
    %8128 = vmatpush1.bf16.msra.mxu0 %v8052
    %8129 = vmatprep.subr.bf16.mxu0 0
    %8130 = vmatpush1.bf16.msra.mxu0 %v8053
    %8131 = vmatprep.subr.bf16.mxu0 0
    %8132 = vmatpush1.bf16.msra.mxu0 %v8054
    %8133 = vmatprep.subr.bf16.mxu0 0
    %8134 = vmatpush1.bf16.msra.mxu0 %v8055
    %8135 = vmatprep.subr.bf16.mxu0 0
    %8136 = vmatpush1.bf16.msra.mxu0 %v8056
    %8137 = vmatprep.mubr.bf16.mxu0 %v7839
    %8138 = vmatmul.mubr.bf16.gmra.mrb[0].mxu0 %v7838
    %v8139 = vpop.f32.mrb[0].mxu0
    %v8140 = vadd.f32 %v7911, %v8139
    %v8141 = vpop.f32.mrb[0].mxu0
    %v8142 = vpop.f32.mrb[0].mxu0
    %v8143 = vpop.f32.mrb[0].mxu0
    %8144 = vdwg.mxu0
    %8145 = vmatprep.subr.bf16.mxu0 0
    %8146 = vmatpush1.bf16.msra.mxu0 %v8057
    %8147 = vmatprep.subr.bf16.mxu0 0
    %8148 = vmatpush1.bf16.msra.mxu0 %v8058
    %8149 = vmatprep.subr.bf16.mxu0 0
    %8150 = vmatpush1.bf16.msra.mxu0 %v8059
    %8151 = vmatprep.subr.bf16.mxu0 0
    %8152 = vmatpush1.bf16.msra.mxu0 %v8060
    %8153 = vmatprep.subr.bf16.mxu0 0
    %8154 = vmatpush1.bf16.msra.mxu0 %v8061
    %8155 = vmatprep.subr.bf16.mxu0 0
    %8156 = vmatpush1.bf16.msra.mxu0 %v8062
    %8157 = vmatprep.subr.bf16.mxu0 0
    %8158 = vmatpush1.bf16.msra.mxu0 %v8063
    %8159 = vmatprep.subr.bf16.mxu0 0
    %8160 = vmatpush1.bf16.msra.mxu0 %v8064
    %8161 = vmatprep.subr.bf16.mxu0 0
    %8162 = vmatpush1.bf16.msra.mxu0 %v8065
    %8163 = vmatprep.subr.bf16.mxu0 0
    %8164 = vmatpush1.bf16.msra.mxu0 %v8066
    %8165 = vmatprep.subr.bf16.mxu0 0
    %8166 = vmatpush1.bf16.msra.mxu0 %v8067
    %8167 = vmatprep.subr.bf16.mxu0 0
    %8168 = vmatpush1.bf16.msra.mxu0 %v8068
    %8169 = vmatprep.subr.bf16.mxu0 0
    %8170 = vmatpush1.bf16.msra.mxu0 %v8069
    %8171 = vmatprep.subr.bf16.mxu0 0
    %8172 = vmatpush1.bf16.msra.mxu0 %v8070
    %8173 = vmatprep.subr.bf16.mxu0 0
    %8174 = vmatpush1.bf16.msra.mxu0 %v8071
    %8175 = vmatprep.subr.bf16.mxu0 0
    %8176 = vmatpush1.bf16.msra.mxu0 %v8072
    %8177 = vmatprep.mubr.bf16.mxu0 %v7841
    %8178 = vmatmul.mubr.bf16.gmra.mrb[0].mxu0 %v7840
    %v8179 = vpop.f32.mrb[0].mxu0
    %v8180 = vadd.f32 %v8140, %v8179
    %v8181 = vpop.f32.mrb[0].mxu0
    %v8182 = vpop.f32.mrb[0].mxu0
    %v8183 = vpop.f32.mrb[0].mxu0
    %8184 = vdwg.mxu0
    %v8185 = vmax.f32 %v8180, 0.0
    %v8186 = vpack.c.bf16 %v8185, %v8185
    %8187 = vst [vmem:[%s9] sm:$0x1] %v8186
    // Predicated region
    $region70: #{mlp_forward.1} parent=1 // pred_check
      _
    $region71: #{mlp_forward.1} parent=1 // pred_check_branch
      %8189 = sbr.rel (0) target = $region73
    $region72: #{mlp_forward.1} parent=1 // pred_region
      _
    $region73: #{mlp_forward.1} parent=1 // pred_fallthru
      _
    // Predicated region
    $region74: #{mlp_forward.1} parent=1 // pred_check
      _
    $region75: #{mlp_forward.1} parent=1 // pred_check_branch
      %8191 = sbr.rel (0) target = $region77
    $region76: #{mlp_forward.1} parent=1 // pred_region
      _
    $region77: #{mlp_forward.1} parent=1 // pred_fallthru
      _
    %8192 = vsyncpa [#allocation3], 1
    %8193 = vsyncpa [#allocation5], 1
    %8194 = vsyncpa [#allocation8], 1
    %8195 = vsyncpa [#allocation11], 1
    %8196 = vsyncpa [#allocation14], 1

</llo_original>
